<compile_context>
chip_gen: v7x
topology: tpu7x:2x2x1
jax: 0.10.0
libtpu: 0.0.40
codegen_flags: <defaults>
</compile_context>

<pallas_src>
import math

import jax
import jax.numpy as jnp
from jax import lax
from jax.experimental import pallas as pl
from jax.experimental.pallas import tpu as pltpu


# ------------------------------------------------------------------ fused kernel

def dpcnn_fused_kernel(h0_ref, wall_ref, ball_ref, fcw_ref, fcb_ref, o_ref, buf_ref):
    """One grid step = BT samples: pre-block + 6 rep blocks + head, VMEM resident.

    Activations use the flat sample-major layout (BT*L, C): row r = s*L + l.
    """
    R0, C = h0_ref.shape
    BT = o_ref.shape[1]
    L0 = R0 // BT

    # Load all 14 conv biases once; rows are sliced in registers below
    # (perf review: avoids 14 separate lane-sparse (1, C) sub-vreg loads).
    ball = ball_ref[...]                                       # (14, C) f32

    def masks(L, R):
        # Per-sample boundary masks at per-sample length L (R = BT*L rows).
        # Hoisted: reused by both convs at this length and by the next block's
        # pooling (JAX does not CSE broadcast_in_dim).
        pos = lax.broadcasted_iota(jnp.int32, (R, C), 0) & (L - 1)   # L is 2**k
        return pos == 0, pos == (L - 1)

    def conv3(v, idx, is_first, is_last):
        # Conv1d(C->C, k=3, pad=1) over the per-sample length axis as ONE
        # (R, 3C) x (3C, C) bf16 matmul, f32 accumulation.  Per-sample boundary
        # masks keep taps from leaking across samples.
        R = v.shape[0]
        prev = jnp.where(is_first, 0.0, pltpu.roll(v, shift=1, axis=0))      # x[l-1]
        nxt = jnp.where(is_last, 0.0, pltpu.roll(v, shift=R - 1, axis=0))    # x[l+1]
        # Lane concat of three 32-lane operands into one 96-lane matmul operand.
        # (The review's optional VMEM taps-staging alternative was skipped: it
        #  trades the concat for 3 masked stores + a reload per conv, which loads
        #  the store slot harder than the concat loads VPU/XLU here.)
        taps = jnp.concatenate([prev, v, nxt], axis=-1).astype(jnp.bfloat16)  # (R, 3C)
        out = jnp.dot(taps, wall_ref[idx], preferred_element_type=jnp.float32)
        return out + ball[idx:idx + 1, :]

    # ---- pre block (per-sample length L0): sc = x; relu(conv); relu(conv); + sc
    h = h0_ref[...]                                            # (R0, C) f32
    L, R = L0, R0
    is_first, is_last = masks(L, R)
    sc = h
    h = jnp.maximum(conv3(h, 0, is_first, is_last), 0.0)
    h = jnp.maximum(conv3(h, 1, is_first, is_last), 0.0)
    h = h + sc

    # ---- 6 rep blocks: MaxPool1d(3, 2, 1) then conv-relu-conv-relu + residual.
    for blk in range(6):
        # 3-tap running max at full resolution (rolls land on the XLU slot),
        # then ONE staging store + ONE stride-2 sublane read.
        left = jnp.where(is_first, -jnp.inf, pltpu.roll(h, shift=1, axis=0))
        right = pltpu.roll(h, shift=R - 1, axis=0)   # only read at even in-sample rows
        buf_ref[pl.ds(0, R), :] = jnp.maximum(jnp.maximum(left, h), right)
        L, R = L // 2, R // 2
        p = buf_ref[pl.ds(0, R, stride=2), :]        # pooled; still sample-major (BT*L, C)
        is_first, is_last = masks(L, R)
        h = jnp.maximum(conv3(p, 2 + 2 * blk, is_first, is_last), 0.0)
        h = jnp.maximum(conv3(h, 3 + 2 * blk, is_first, is_last), 0.0)
        h = h + p

    # ---- head: final MaxPool1d(k=2, s=2) on the remaining per-sample length 2,
    # flatten, Linear.  One dense (BT, N) store per grid step.
    # TODO(synk): Dropout(p=0.5) treated as identity (eval mode); stochastic dropout omitted.
    buf_ref[pl.ds(0, R), :] = h                      # R == 2*BT here
    ev = buf_ref[pl.ds(0, BT, stride=2), :]          # per-sample position 0
    od = buf_ref[pl.ds(1, BT, stride=2), :]          # per-sample position 1
    feat = jnp.maximum(ev, od)                       # (BT, C)
    logits = jnp.dot(feat.astype(jnp.bfloat16),
                     fcw_ref[...].astype(jnp.bfloat16),
                     preferred_element_type=jnp.float32) + fcb_ref[...]
    o_ref[0] = logits


# ------------------------------------------------------------------ pallas_call wrapper

def _choose_block_batch(batch):
    # Fill the MXU M dimension (the deepest conv has only 2 rows/sample, so
    # >=64 samples keeps even that matmul full) while keeping live activations
    # comfortably inside v7x's 64 MiB VMEM.  For small batches keep >=2 grid
    # steps so both v7x TensorCores get work under dimension_semantics=("parallel",).
    if batch >= 128:
        return 64
    if batch >= 2:
        return max(1, batch // 2)
    return 1


def dpcnn_fused(h0_flat, conv_w, conv_b, fc_w, fc_b, *, batch, block_batch=None):
    BL, C = h0_flat.shape
    L0 = BL // batch
    N = fc_w.shape[-1]
    assert L0 == 128, "DPCNN forward requires embed_dim == 128 (6 halvings -> 2 -> final pool)"

    BT = block_batch if block_batch is not None else _choose_block_batch(batch)
    n_steps = -(-batch // BT)
    Bp = n_steps * BT
    if Bp != batch:                       # pad with zero samples; sliced off below
        pad = jnp.zeros(((Bp - batch) * L0, C), h0_flat.dtype)
        h0_flat = jnp.concatenate([h0_flat, pad], axis=0)

    out = pl.pallas_call(
        dpcnn_fused_kernel,
        out_shape=jax.ShapeDtypeStruct((n_steps, BT, N), jnp.float32),
        grid=(n_steps,),
        in_specs=[
            pl.BlockSpec((BT * L0, C), lambda i: (i, 0)),     # BT region-embedded samples
            pl.BlockSpec(conv_w.shape, lambda i: (0, 0, 0)),  # 14 fused conv weights (bf16)
            pl.BlockSpec(conv_b.shape, lambda i: (0, 0)),     # 14 conv biases (f32)
            pl.BlockSpec(fc_w.shape, lambda i: (0, 0)),       # fc weight
            pl.BlockSpec(fc_b.shape, lambda i: (0, 0)),       # fc bias
        ],
        out_specs=pl.BlockSpec((1, BT, N), lambda i: (i, 0, 0)),
        scratch_shapes=[pltpu.VMEM((BT * L0, C), jnp.float32)],   # pooling staging buffer
        compiler_params=pltpu.CompilerParams(
            dimension_semantics=("parallel",),
            vmem_limit_bytes=48 * 1024 * 1024,
        ),
    )(h0_flat, conv_w, conv_b, fc_w, fc_b)
    return out.reshape(Bp, N)[:batch]


# ------------------------------------------------------------------ glue (plain JAX)

def embedding_bag_mean(table, text, offsets):
    """nn.EmbeddingBag(mode='mean') semantics: mean of embeddings per bag."""
    B = offsets.shape[0]
    n = text.shape[0]
    pos = jnp.arange(n)
    seg = jnp.sum(pos[:, None] >= offsets[None, :], axis=1) - 1   # bag id per token
    emb = table[text]                                             # (n, D) gather
    sums = jax.ops.segment_sum(emb, seg, num_segments=B)
    counts = jax.ops.segment_sum(jnp.ones((n,), jnp.float32), seg, num_segments=B)
    return sums / jnp.maximum(counts, 1.0)[:, None]               # empty-bag guard


def region_embed(x, region_w, region_b):
    """Region embedding Conv1d(1->C, k=3, p=1) over the embed_dim axis.

    Computed as a tiny fused XLA op in the wrapper so the kernel input is a
    dense (B*L, C) slab (perf review: the old (B, L, 1) kernel input padded
    every row to 128 lanes and produced a degenerate, lane-sparse DMA).
    """
    B, L = x.shape
    C = region_w.shape[-1]
    xp = jnp.pad(x, ((0, 0), (1, 0)))[:, :L]          # x[l-1], zero pad
    xn = jnp.pad(x, ((0, 0), (0, 1)))[:, 1:]          # x[l+1], zero pad
    h0 = (xp[..., None] * region_w[0] + x[..., None] * region_w[1]
          + xn[..., None] * region_w[2] + region_b)   # (B, L, C)
    return h0.reshape(B * L, C)


def dpcnn_forward(params, text, offsets):
    x = embedding_bag_mean(params["emb"], text, offsets)            # (B, embed_dim)
    h0 = region_embed(x, params["region_w"], params["region_b"])    # (B*L0, C)
    return dpcnn_fused(h0, params["conv_w"], params["conv_b"],
                       params["fc_w"], params["fc_b"], batch=x.shape[0])


def init_params(key, vocab_size, label_size, channels, embed_dim):
    def uni(k, shape, fan_in):
        s = 1.0 / math.sqrt(fan_in)
        return jax.random.uniform(k, shape, jnp.float32, -s, s)

    keys = iter(jax.random.split(key, 40))
    C = channels
    p = {}
    p["emb"] = jax.random.normal(next(keys), (vocab_size, embed_dim), jnp.float32)
    # region_embedding Conv1d(1, C, 3): torch weight (C,1,K) stored tap-major as (K, C).
    p["region_w"] = uni(next(keys), (3, C), 3)
    p["region_b"] = uni(next(keys), (C,), 3)
    # 14 C->C convs: pre_conv1, pre_conv2, then 6 blocks x (conv1, conv2).
    # torch (C_out, C_in, K) stored as (K, C_in, C_out) flattened to (3C, C) so the
    # kernel does one matmul per conv.  Row order matches the [prev|cur|next] taps.
    fan = 3 * C
    conv_ws, conv_bs = [], []
    for _ in range(14):
        conv_ws.append(uni(next(keys), (3, C, C), fan).reshape(3 * C, C))
        conv_bs.append(uni(next(keys), (C,), fan))
    p["conv_w"] = jnp.stack(conv_ws).astype(jnp.bfloat16)           # (14, 3C, C) bf16
    p["conv_b"] = jnp.stack(conv_bs)                                # (14, C) f32
    p["fc_w"] = uni(next(keys), (C, label_size), C)                 # Linear(C, label_size).T
    p["fc_b"] = uni(next(keys), (1, label_size), C)
    return p


# ------------------------------------------------------------------ pure-JAX reference

def dpcnn_reference(params, text, offsets):
    """Pure-JAX reference (same bf16 matmul operands) to validate the kernel."""
    C = params["region_w"].shape[-1]
    x = embedding_bag_mean(params["emb"], text, offsets)            # (B, L0)
    B, L0 = x.shape
    h = region_embed(x, params["region_w"], params["region_b"]).reshape(B, L0, C)
    wall, ball = params["conv_w"], params["conv_b"]

    def conv(v, idx):
        prev = jnp.pad(v, ((0, 0), (1, 0), (0, 0)))[:, :-1]
        nxt = jnp.pad(v, ((0, 0), (0, 1), (0, 0)))[:, 1:]
        taps = jnp.concatenate([prev, v, nxt], axis=-1).astype(jnp.bfloat16)
        out = jnp.einsum("blk,kc->blc", taps, wall[idx],
                         preferred_element_type=jnp.float32)
        return out + ball[idx]

    def pool(v):                                  # MaxPool1d(3, 2, 1), channels-last
        L = v.shape[1]
        vp = jnp.pad(v, ((0, 0), (1, 1), (0, 0)), constant_values=-jnp.inf)
        return jnp.maximum(jnp.maximum(vp[:, 0:L:2], vp[:, 1:L + 1:2]),
                           vp[:, 2:L + 2:2])

    sc = h
    h = jax.nn.relu(conv(h, 0))
    h = jax.nn.relu(conv(h, 1))
    h = h + sc
    for blk in range(6):
        p = pool(h)
        h = jax.nn.relu(conv(p, 2 + 2 * blk))
        h = jax.nn.relu(conv(h, 3 + 2 * blk))
        h = h + p
    feat = jnp.max(h, axis=1)                     # final MaxPool1d(2, 2) on length 2
    return jnp.dot(feat.astype(jnp.bfloat16), params["fc_w"].astype(jnp.bfloat16),
                   preferred_element_type=jnp.float32) + params["fc_b"]


if __name__ == "__main__":
    vocab_size, label_size, channels, embed_dim = 50, 4, 32, 128
    batch = 8                      # -> block_batch 4, grid (2,): exercises batched masking

    key = jax.random.PRNGKey(0)
    k_param, k_text = jax.random.split(key)
    params = init_params(k_param, vocab_size, label_size, channels, embed_dim)

    # EmbeddingBag-style input: flat token stream + per-sample offsets (8 bags of 7 tokens).
    tokens_per_bag = 7
    text = jax.random.randint(k_text, (batch * tokens_per_bag,), 0, vocab_size,
                              dtype=jnp.int32)
    offsets = jnp.arange(batch, dtype=jnp.int32) * tokens_per_bag

    out = jax.jit(dpcnn_forward)(params, text, offsets)
    out = jax.block_until_ready(out)

    assert out.shape == (batch, label_size), out.shape
    assert bool(jnp.all(jnp.isfinite(out)))

    ref = jax.jit(dpcnn_reference)(params, text, offsets)
    ref = jax.block_until_ready(ref)
    err = float(jnp.max(jnp.abs(out - ref)))
    assert err < 5e-3, f"max abs error vs reference: {err}"

    print("KERNEL_OK")
</pallas_src>

<mosaic_0001>
module attributes {stable_mosaic.version = 11 : i64} {
  func.func @dpcnn_fused_kernel(%arg0: i32, %arg1: memref<512x32xf32, #tpu.memory_space<vmem>>, %arg2: memref<14x96x32xbf16, #tpu.memory_space<vmem>>, %arg3: memref<14x32xf32, #tpu.memory_space<vmem>>, %arg4: memref<32x4xf32, #tpu.memory_space<vmem>>, %arg5: memref<1x4xf32, #tpu.memory_space<vmem>>, %arg6: memref<1x4x4xf32, #tpu.memory_space<vmem>>, %arg7: memref<512x32xf32, #tpu.memory_space<vmem>>) attributes {dimension_semantics = [#tpu.dimension_semantics<parallel>], iteration_bounds = array<i64: 2>, scalar_prefetch = 0 : i64, scratch_operands = 1 : i64, tpu.core_type = #tpu.core_type<tc>, window_params = [{transform_indices = @transform_0, window_bounds = array<i64: 512, 32>}, {pipeline_mode = #tpu.pipeline_mode<synchronous>, transform_indices = @transform_1, window_bounds = array<i64: 14, 96, 32>}, {pipeline_mode = #tpu.pipeline_mode<synchronous>, transform_indices = @transform_2, window_bounds = array<i64: 14, 32>}, {pipeline_mode = #tpu.pipeline_mode<synchronous>, transform_indices = @transform_3, window_bounds = array<i64: 32, 4>}, {pipeline_mode = #tpu.pipeline_mode<synchronous>, transform_indices = @transform_4, window_bounds = array<i64: 1, 4>}, {transform_indices = @transform_5, window_bounds = array<i64: 1, 4, 4>}]} {
    %c0 = arith.constant 0 : index
    %c0_0 = arith.constant 0 : index
    %0 = vector.load %arg3[%c0, %c0_0] : memref<14x32xf32, #tpu.memory_space<vmem>>, vector<14x32xf32>
    %c0_1 = arith.constant 0 : index
    %c0_2 = arith.constant 0 : index
    %1 = vector.load %arg1[%c0_1, %c0_2] : memref<512x32xf32, #tpu.memory_space<vmem>>, vector<512x32xf32>
    %2 = tpu.iota {dimensions = array<i32: 0>} : vector<512x32xi32>
    %c127_i32 = arith.constant 127 : i32
    %3 = vector.broadcast %c127_i32 : i32 to vector<512x32xi32>
    %4 = arith.andi %2, %3 : vector<512x32xi32>
    %c0_i32 = arith.constant 0 : i32
    %5 = vector.broadcast %c0_i32 : i32 to vector<512x32xi32>
    %6 = arith.cmpi eq, %4, %5 : vector<512x32xi32>
    %c127_i32_3 = arith.constant 127 : i32
    %7 = vector.broadcast %c127_i32_3 : i32 to vector<512x32xi32>
    %8 = arith.cmpi eq, %4, %7 : vector<512x32xi32>
    %c1_i32 = arith.constant 1 : i32
    %9 = tpu.dynamic_rotate %1 by %c1_i32 dim 0 : vector<512x32xf32>, i32 -> vector<512x32xf32>
    %cst = arith.constant 0.000000e+00 : f32
    %10 = vector.broadcast %cst : f32 to vector<512x32xf32>
    %11 = arith.select %6, %10, %9 : vector<512x32xi1>, vector<512x32xf32>
    %c511_i32 = arith.constant 511 : i32
    %12 = tpu.dynamic_rotate %1 by %c511_i32 dim 0 : vector<512x32xf32>, i32 -> vector<512x32xf32>
    %cst_4 = arith.constant 0.000000e+00 : f32
    %13 = vector.broadcast %cst_4 : f32 to vector<512x32xf32>
    %14 = arith.select %8, %13, %12 : vector<512x32xi1>, vector<512x32xf32>
    %15 = tpu.concatenate %11, %1, %14 in 1 : vector<512x32xf32>, vector<512x32xf32>, vector<512x32xf32> -> vector<512x96xf32>
    %16 = arith.truncf %15 : vector<512x96xf32> to vector<512x96xbf16>
    %c0_5 = arith.constant 0 : index
    %c0_6 = arith.constant 0 : index
    %c0_7 = arith.constant 0 : index
    %17 = vector.load %arg2[%c0_5, %c0_6, %c0_7] : memref<14x96x32xbf16, #tpu.memory_space<vmem>>, vector<1x96x32xbf16>
    %18 = vector.shape_cast %17 : vector<1x96x32xbf16> to vector<96x32xbf16>
    %cst_8 = arith.constant dense<0.000000e+00> : vector<512x32xf32>
    %19 = tpu.matmul %16, %18, %cst_8 {dimension_numbers = #tpu.dot_dimension_numbers<[1], [0], [0], [1], [0, 0, 1, 1], [], []>} : vector<512x96xbf16>, vector<96x32xbf16>, vector<512x32xf32> -> vector<512x32xf32>
    %20 = vector.extract_strided_slice %0 {offsets = [0, 0], sizes = [1, 32], strides = [1, 1]} : vector<14x32xf32> to vector<1x32xf32>
    %21 = vector.broadcast %20 : vector<1x32xf32> to vector<512x32xf32>
    %22 = arith.addf %19, %21 : vector<512x32xf32>
    %cst_9 = arith.constant 0.000000e+00 : f32
    %23 = vector.broadcast %cst_9 : f32 to vector<512x32xf32>
    %24 = arith.maximumf %22, %23 : vector<512x32xf32>
    %c1_i32_10 = arith.constant 1 : i32
    %25 = tpu.dynamic_rotate %24 by %c1_i32_10 dim 0 : vector<512x32xf32>, i32 -> vector<512x32xf32>
    %cst_11 = arith.constant 0.000000e+00 : f32
    %26 = vector.broadcast %cst_11 : f32 to vector<512x32xf32>
    %27 = arith.select %6, %26, %25 : vector<512x32xi1>, vector<512x32xf32>
    %c511_i32_12 = arith.constant 511 : i32
    %28 = tpu.dynamic_rotate %24 by %c511_i32_12 dim 0 : vector<512x32xf32>, i32 -> vector<512x32xf32>
    %cst_13 = arith.constant 0.000000e+00 : f32
    %29 = vector.broadcast %cst_13 : f32 to vector<512x32xf32>
    %30 = arith.select %8, %29, %28 : vector<512x32xi1>, vector<512x32xf32>
    %31 = tpu.concatenate %27, %24, %30 in 1 : vector<512x32xf32>, vector<512x32xf32>, vector<512x32xf32> -> vector<512x96xf32>
    %32 = arith.truncf %31 : vector<512x96xf32> to vector<512x96xbf16>
    %c1 = arith.constant 1 : index
    %c0_14 = arith.constant 0 : index
    %c0_15 = arith.constant 0 : index
    %33 = vector.load %arg2[%c1, %c0_14, %c0_15] : memref<14x96x32xbf16, #tpu.memory_space<vmem>>, vector<1x96x32xbf16>
    %34 = vector.shape_cast %33 : vector<1x96x32xbf16> to vector<96x32xbf16>
    %cst_16 = arith.constant dense<0.000000e+00> : vector<512x32xf32>
    %35 = tpu.matmul %32, %34, %cst_16 {dimension_numbers = #tpu.dot_dimension_numbers<[1], [0], [0], [1], [0, 0, 1, 1], [], []>} : vector<512x96xbf16>, vector<96x32xbf16>, vector<512x32xf32> -> vector<512x32xf32>
    %36 = vector.extract_strided_slice %0 {offsets = [1, 0], sizes = [1, 32], strides = [1, 1]} : vector<14x32xf32> to vector<1x32xf32>
    %37 = vector.broadcast %36 : vector<1x32xf32> to vector<512x32xf32>
    %38 = arith.addf %35, %37 : vector<512x32xf32>
    %cst_17 = arith.constant 0.000000e+00 : f32
    %39 = vector.broadcast %cst_17 : f32 to vector<512x32xf32>
    %40 = arith.maximumf %38, %39 : vector<512x32xf32>
    %41 = arith.addf %40, %1 : vector<512x32xf32>
    %c1_i32_18 = arith.constant 1 : i32
    %42 = tpu.dynamic_rotate %41 by %c1_i32_18 dim 0 : vector<512x32xf32>, i32 -> vector<512x32xf32>
    %cst_19 = arith.constant 0xFF800000 : f32
    %43 = vector.broadcast %cst_19 : f32 to vector<512x32xf32>
    %44 = arith.select %6, %43, %42 : vector<512x32xi1>, vector<512x32xf32>
    %c511_i32_20 = arith.constant 511 : i32
    %45 = tpu.dynamic_rotate %41 by %c511_i32_20 dim 0 : vector<512x32xf32>, i32 -> vector<512x32xf32>
    %46 = arith.maximumf %44, %41 : vector<512x32xf32>
    %47 = arith.maximumf %46, %45 : vector<512x32xf32>
    %c0_21 = arith.constant 0 : index
    %c0_22 = arith.constant 0 : index
    %48 = vector.load %arg7[%c0_21, %c0_22] : memref<512x32xf32, #tpu.memory_space<vmem>>, vector<512x32xf32>
    tpu.vector_store %arg7[%c0_21, %c0_22], %47 {strides = array<i32>} : memref<512x32xf32, #tpu.memory_space<vmem>>, vector<512x32xf32>,
    %c0_23 = arith.constant 0 : index
    %c0_24 = arith.constant 0 : index
    %49 = tpu.strided_load %arg7[%c0_23, %c0_24] {strides = array<i32: 2, 1>} : memref<512x32xf32, #tpu.memory_space<vmem>>, vector<256x32xf32>
    %50 = tpu.iota {dimensions = array<i32: 0>} : vector<256x32xi32>
    %c63_i32 = arith.constant 63 : i32
    %51 = vector.broadcast %c63_i32 : i32 to vector<256x32xi32>
    %52 = arith.andi %50, %51 : vector<256x32xi32>
    %c0_i32_25 = arith.constant 0 : i32
    %53 = vector.broadcast %c0_i32_25 : i32 to vector<256x32xi32>
    %54 = arith.cmpi eq, %52, %53 : vector<256x32xi32>
    %c63_i32_26 = arith.constant 63 : i32
    %55 = vector.broadcast %c63_i32_26 : i32 to vector<256x32xi32>
    %56 = arith.cmpi eq, %52, %55 : vector<256x32xi32>
    %c1_i32_27 = arith.constant 1 : i32
    %57 = tpu.dynamic_rotate %49 by %c1_i32_27 dim 0 : vector<256x32xf32>, i32 -> vector<256x32xf32>
    %cst_28 = arith.constant 0.000000e+00 : f32
    %58 = vector.broadcast %cst_28 : f32 to vector<256x32xf32>
    %59 = arith.select %54, %58, %57 : vector<256x32xi1>, vector<256x32xf32>
    %c255_i32 = arith.constant 255 : i32
    %60 = tpu.dynamic_rotate %49 by %c255_i32 dim 0 : vector<256x32xf32>, i32 -> vector<256x32xf32>
    %cst_29 = arith.constant 0.000000e+00 : f32
    %61 = vector.broadcast %cst_29 : f32 to vector<256x32xf32>
    %62 = arith.select %56, %61, %60 : vector<256x32xi1>, vector<256x32xf32>
    %63 = tpu.concatenate %59, %49, %62 in 1 : vector<256x32xf32>, vector<256x32xf32>, vector<256x32xf32> -> vector<256x96xf32>
    %64 = arith.truncf %63 : vector<256x96xf32> to vector<256x96xbf16>
    %c2 = arith.constant 2 : index
    %c0_30 = arith.constant 0 : index
    %c0_31 = arith.constant 0 : index
    %65 = vector.load %arg2[%c2, %c0_30, %c0_31] : memref<14x96x32xbf16, #tpu.memory_space<vmem>>, vector<1x96x32xbf16>
    %66 = vector.shape_cast %65 : vector<1x96x32xbf16> to vector<96x32xbf16>
    %cst_32 = arith.constant dense<0.000000e+00> : vector<256x32xf32>
    %67 = tpu.matmul %64, %66, %cst_32 {dimension_numbers = #tpu.dot_dimension_numbers<[1], [0], [0], [1], [0, 0, 1, 1], [], []>} : vector<256x96xbf16>, vector<96x32xbf16>, vector<256x32xf32> -> vector<256x32xf32>
    %68 = vector.extract_strided_slice %0 {offsets = [2, 0], sizes = [1, 32], strides = [1, 1]} : vector<14x32xf32> to vector<1x32xf32>
    %69 = vector.broadcast %68 : vector<1x32xf32> to vector<256x32xf32>
    %70 = arith.addf %67, %69 : vector<256x32xf32>
    %cst_33 = arith.constant 0.000000e+00 : f32
    %71 = vector.broadcast %cst_33 : f32 to vector<256x32xf32>
    %72 = arith.maximumf %70, %71 : vector<256x32xf32>
    %c1_i32_34 = arith.constant 1 : i32
    %73 = tpu.dynamic_rotate %72 by %c1_i32_34 dim 0 : vector<256x32xf32>, i32 -> vector<256x32xf32>
    %cst_35 = arith.constant 0.000000e+00 : f32
    %74 = vector.broadcast %cst_35 : f32 to vector<256x32xf32>
    %75 = arith.select %54, %74, %73 : vector<256x32xi1>, vector<256x32xf32>
    %c255_i32_36 = arith.constant 255 : i32
    %76 = tpu.dynamic_rotate %72 by %c255_i32_36 dim 0 : vector<256x32xf32>, i32 -> vector<256x32xf32>
    %cst_37 = arith.constant 0.000000e+00 : f32
    %77 = vector.broadcast %cst_37 : f32 to vector<256x32xf32>
    %78 = arith.select %56, %77, %76 : vector<256x32xi1>, vector<256x32xf32>
    %79 = tpu.concatenate %75, %72, %78 in 1 : vector<256x32xf32>, vector<256x32xf32>, vector<256x32xf32> -> vector<256x96xf32>
    %80 = arith.truncf %79 : vector<256x96xf32> to vector<256x96xbf16>
    %c3 = arith.constant 3 : index
    %c0_38 = arith.constant 0 : index
    %c0_39 = arith.constant 0 : index
    %81 = vector.load %arg2[%c3, %c0_38, %c0_39] : memref<14x96x32xbf16, #tpu.memory_space<vmem>>, vector<1x96x32xbf16>
    %82 = vector.shape_cast %81 : vector<1x96x32xbf16> to vector<96x32xbf16>
    %cst_40 = arith.constant dense<0.000000e+00> : vector<256x32xf32>
    %83 = tpu.matmul %80, %82, %cst_40 {dimension_numbers = #tpu.dot_dimension_numbers<[1], [0], [0], [1], [0, 0, 1, 1], [], []>} : vector<256x96xbf16>, vector<96x32xbf16>, vector<256x32xf32> -> vector<256x32xf32>
    %84 = vector.extract_strided_slice %0 {offsets = [3, 0], sizes = [1, 32], strides = [1, 1]} : vector<14x32xf32> to vector<1x32xf32>
    %85 = vector.broadcast %84 : vector<1x32xf32> to vector<256x32xf32>
    %86 = arith.addf %83, %85 : vector<256x32xf32>
    %cst_41 = arith.constant 0.000000e+00 : f32
    %87 = vector.broadcast %cst_41 : f32 to vector<256x32xf32>
    %88 = arith.maximumf %86, %87 : vector<256x32xf32>
    %89 = arith.addf %88, %49 : vector<256x32xf32>
    %c1_i32_42 = arith.constant 1 : i32
    %90 = tpu.dynamic_rotate %89 by %c1_i32_42 dim 0 : vector<256x32xf32>, i32 -> vector<256x32xf32>
    %cst_43 = arith.constant 0xFF800000 : f32
    %91 = vector.broadcast %cst_43 : f32 to vector<256x32xf32>
    %92 = arith.select %54, %91, %90 : vector<256x32xi1>, vector<256x32xf32>
    %c255_i32_44 = arith.constant 255 : i32
    %93 = tpu.dynamic_rotate %89 by %c255_i32_44 dim 0 : vector<256x32xf32>, i32 -> vector<256x32xf32>
    %94 = arith.maximumf %92, %89 : vector<256x32xf32>
    %95 = arith.maximumf %94, %93 : vector<256x32xf32>
    %c0_45 = arith.constant 0 : index
    %c0_46 = arith.constant 0 : index
    %96 = vector.load %arg7[%c0_45, %c0_46] : memref<512x32xf32, #tpu.memory_space<vmem>>, vector<256x32xf32>
    tpu.vector_store %arg7[%c0_45, %c0_46], %95 {strides = array<i32>} : memref<512x32xf32, #tpu.memory_space<vmem>>, vector<256x32xf32>,
    %c0_47 = arith.constant 0 : index
    %c0_48 = arith.constant 0 : index
    %97 = tpu.strided_load %arg7[%c0_47, %c0_48] {strides = array<i32: 2, 1>} : memref<512x32xf32, #tpu.memory_space<vmem>>, vector<128x32xf32>
    %98 = tpu.iota {dimensions = array<i32: 0>} : vector<128x32xi32>
    %c31_i32 = arith.constant 31 : i32
    %99 = vector.broadcast %c31_i32 : i32 to vector<128x32xi32>
    %100 = arith.andi %98, %99 : vector<128x32xi32>
    %c0_i32_49 = arith.constant 0 : i32
    %101 = vector.broadcast %c0_i32_49 : i32 to vector<128x32xi32>
    %102 = arith.cmpi eq, %100, %101 : vector<128x32xi32>
    %c31_i32_50 = arith.constant 31 : i32
    %103 = vector.broadcast %c31_i32_50 : i32 to vector<128x32xi32>
    %104 = arith.cmpi eq, %100, %103 : vector<128x32xi32>
    %c1_i32_51 = arith.constant 1 : i32
    %105 = tpu.dynamic_rotate %97 by %c1_i32_51 dim 0 : vector<128x32xf32>, i32 -> vector<128x32xf32>
    %cst_52 = arith.constant 0.000000e+00 : f32
    %106 = vector.broadcast %cst_52 : f32 to vector<128x32xf32>
    %107 = arith.select %102, %106, %105 : vector<128x32xi1>, vector<128x32xf32>
    %c127_i32_53 = arith.constant 127 : i32
    %108 = tpu.dynamic_rotate %97 by %c127_i32_53 dim 0 : vector<128x32xf32>, i32 -> vector<128x32xf32>
    %cst_54 = arith.constant 0.000000e+00 : f32
    %109 = vector.broadcast %cst_54 : f32 to vector<128x32xf32>
    %110 = arith.select %104, %109, %108 : vector<128x32xi1>, vector<128x32xf32>
    %111 = tpu.concatenate %107, %97, %110 in 1 : vector<128x32xf32>, vector<128x32xf32>, vector<128x32xf32> -> vector<128x96xf32>
    %112 = arith.truncf %111 : vector<128x96xf32> to vector<128x96xbf16>
    %c4 = arith.constant 4 : index
    %c0_55 = arith.constant 0 : index
    %c0_56 = arith.constant 0 : index
    %113 = vector.load %arg2[%c4, %c0_55, %c0_56] : memref<14x96x32xbf16, #tpu.memory_space<vmem>>, vector<1x96x32xbf16>
    %114 = vector.shape_cast %113 : vector<1x96x32xbf16> to vector<96x32xbf16>
    %cst_57 = arith.constant dense<0.000000e+00> : vector<128x32xf32>
    %115 = tpu.matmul %112, %114, %cst_57 {dimension_numbers = #tpu.dot_dimension_numbers<[1], [0], [0], [1], [0, 0, 1, 1], [], []>} : vector<128x96xbf16>, vector<96x32xbf16>, vector<128x32xf32> -> vector<128x32xf32>
    %116 = vector.extract_strided_slice %0 {offsets = [4, 0], sizes = [1, 32], strides = [1, 1]} : vector<14x32xf32> to vector<1x32xf32>
    %117 = vector.broadcast %116 : vector<1x32xf32> to vector<128x32xf32>
    %118 = arith.addf %115, %117 : vector<128x32xf32>
    %cst_58 = arith.constant 0.000000e+00 : f32
    %119 = vector.broadcast %cst_58 : f32 to vector<128x32xf32>
    %120 = arith.maximumf %118, %119 : vector<128x32xf32>
    %c1_i32_59 = arith.constant 1 : i32
    %121 = tpu.dynamic_rotate %120 by %c1_i32_59 dim 0 : vector<128x32xf32>, i32 -> vector<128x32xf32>
    %cst_60 = arith.constant 0.000000e+00 : f32
    %122 = vector.broadcast %cst_60 : f32 to vector<128x32xf32>
    %123 = arith.select %102, %122, %121 : vector<128x32xi1>, vector<128x32xf32>
    %c127_i32_61 = arith.constant 127 : i32
    %124 = tpu.dynamic_rotate %120 by %c127_i32_61 dim 0 : vector<128x32xf32>, i32 -> vector<128x32xf32>
    %cst_62 = arith.constant 0.000000e+00 : f32
    %125 = vector.broadcast %cst_62 : f32 to vector<128x32xf32>
    %126 = arith.select %104, %125, %124 : vector<128x32xi1>, vector<128x32xf32>
    %127 = tpu.concatenate %123, %120, %126 in 1 : vector<128x32xf32>, vector<128x32xf32>, vector<128x32xf32> -> vector<128x96xf32>
    %128 = arith.truncf %127 : vector<128x96xf32> to vector<128x96xbf16>
    %c5 = arith.constant 5 : index
    %c0_63 = arith.constant 0 : index
    %c0_64 = arith.constant 0 : index
    %129 = vector.load %arg2[%c5, %c0_63, %c0_64] : memref<14x96x32xbf16, #tpu.memory_space<vmem>>, vector<1x96x32xbf16>
    %130 = vector.shape_cast %129 : vector<1x96x32xbf16> to vector<96x32xbf16>
    %cst_65 = arith.constant dense<0.000000e+00> : vector<128x32xf32>
    %131 = tpu.matmul %128, %130, %cst_65 {dimension_numbers = #tpu.dot_dimension_numbers<[1], [0], [0], [1], [0, 0, 1, 1], [], []>} : vector<128x96xbf16>, vector<96x32xbf16>, vector<128x32xf32> -> vector<128x32xf32>
    %132 = vector.extract_strided_slice %0 {offsets = [5, 0], sizes = [1, 32], strides = [1, 1]} : vector<14x32xf32> to vector<1x32xf32>
    %133 = vector.broadcast %132 : vector<1x32xf32> to vector<128x32xf32>
    %134 = arith.addf %131, %133 : vector<128x32xf32>
    %cst_66 = arith.constant 0.000000e+00 : f32
    %135 = vector.broadcast %cst_66 : f32 to vector<128x32xf32>
    %136 = arith.maximumf %134, %135 : vector<128x32xf32>
    %137 = arith.addf %136, %97 : vector<128x32xf32>
    %c1_i32_67 = arith.constant 1 : i32
    %138 = tpu.dynamic_rotate %137 by %c1_i32_67 dim 0 : vector<128x32xf32>, i32 -> vector<128x32xf32>
    %cst_68 = arith.constant 0xFF800000 : f32
    %139 = vector.broadcast %cst_68 : f32 to vector<128x32xf32>
    %140 = arith.select %102, %139, %138 : vector<128x32xi1>, vector<128x32xf32>
    %c127_i32_69 = arith.constant 127 : i32
    %141 = tpu.dynamic_rotate %137 by %c127_i32_69 dim 0 : vector<128x32xf32>, i32 -> vector<128x32xf32>
    %142 = arith.maximumf %140, %137 : vector<128x32xf32>
    %143 = arith.maximumf %142, %141 : vector<128x32xf32>
    %c0_70 = arith.constant 0 : index
    %c0_71 = arith.constant 0 : index
    %144 = vector.load %arg7[%c0_70, %c0_71] : memref<512x32xf32, #tpu.memory_space<vmem>>, vector<128x32xf32>
    tpu.vector_store %arg7[%c0_70, %c0_71], %143 {strides = array<i32>} : memref<512x32xf32, #tpu.memory_space<vmem>>, vector<128x32xf32>,
    %c0_72 = arith.constant 0 : index
    %c0_73 = arith.constant 0 : index
    %145 = tpu.strided_load %arg7[%c0_72, %c0_73] {strides = array<i32: 2, 1>} : memref<512x32xf32, #tpu.memory_space<vmem>>, vector<64x32xf32>
    %146 = tpu.iota {dimensions = array<i32: 0>} : vector<64x32xi32>
    %c15_i32 = arith.constant 15 : i32
    %147 = vector.broadcast %c15_i32 : i32 to vector<64x32xi32>
    %148 = arith.andi %146, %147 : vector<64x32xi32>
    %c0_i32_74 = arith.constant 0 : i32
    %149 = vector.broadcast %c0_i32_74 : i32 to vector<64x32xi32>
    %150 = arith.cmpi eq, %148, %149 : vector<64x32xi32>
    %c15_i32_75 = arith.constant 15 : i32
    %151 = vector.broadcast %c15_i32_75 : i32 to vector<64x32xi32>
    %152 = arith.cmpi eq, %148, %151 : vector<64x32xi32>
    %c1_i32_76 = arith.constant 1 : i32
    %153 = tpu.dynamic_rotate %145 by %c1_i32_76 dim 0 : vector<64x32xf32>, i32 -> vector<64x32xf32>
    %cst_77 = arith.constant 0.000000e+00 : f32
    %154 = vector.broadcast %cst_77 : f32 to vector<64x32xf32>
    %155 = arith.select %150, %154, %153 : vector<64x32xi1>, vector<64x32xf32>
    %c63_i32_78 = arith.constant 63 : i32
    %156 = tpu.dynamic_rotate %145 by %c63_i32_78 dim 0 : vector<64x32xf32>, i32 -> vector<64x32xf32>
    %cst_79 = arith.constant 0.000000e+00 : f32
    %157 = vector.broadcast %cst_79 : f32 to vector<64x32xf32>
    %158 = arith.select %152, %157, %156 : vector<64x32xi1>, vector<64x32xf32>
    %159 = tpu.concatenate %155, %145, %158 in 1 : vector<64x32xf32>, vector<64x32xf32>, vector<64x32xf32> -> vector<64x96xf32>
    %160 = arith.truncf %159 : vector<64x96xf32> to vector<64x96xbf16>
    %c6 = arith.constant 6 : index
    %c0_80 = arith.constant 0 : index
    %c0_81 = arith.constant 0 : index
    %161 = vector.load %arg2[%c6, %c0_80, %c0_81] : memref<14x96x32xbf16, #tpu.memory_space<vmem>>, vector<1x96x32xbf16>
    %162 = vector.shape_cast %161 : vector<1x96x32xbf16> to vector<96x32xbf16>
    %cst_82 = arith.constant dense<0.000000e+00> : vector<64x32xf32>
    %163 = tpu.matmul %160, %162, %cst_82 {dimension_numbers = #tpu.dot_dimension_numbers<[1], [0], [0], [1], [0, 0, 1, 1], [], []>} : vector<64x96xbf16>, vector<96x32xbf16>, vector<64x32xf32> -> vector<64x32xf32>
    %164 = vector.extract_strided_slice %0 {offsets = [6, 0], sizes = [1, 32], strides = [1, 1]} : vector<14x32xf32> to vector<1x32xf32>
    %165 = vector.broadcast %164 : vector<1x32xf32> to vector<64x32xf32>
    %166 = arith.addf %163, %165 : vector<64x32xf32>
    %cst_83 = arith.constant 0.000000e+00 : f32
    %167 = vector.broadcast %cst_83 : f32 to vector<64x32xf32>
    %168 = arith.maximumf %166, %167 : vector<64x32xf32>
    %c1_i32_84 = arith.constant 1 : i32
    %169 = tpu.dynamic_rotate %168 by %c1_i32_84 dim 0 : vector<64x32xf32>, i32 -> vector<64x32xf32>
    %cst_85 = arith.constant 0.000000e+00 : f32
    %170 = vector.broadcast %cst_85 : f32 to vector<64x32xf32>
    %171 = arith.select %150, %170, %169 : vector<64x32xi1>, vector<64x32xf32>
    %c63_i32_86 = arith.constant 63 : i32
    %172 = tpu.dynamic_rotate %168 by %c63_i32_86 dim 0 : vector<64x32xf32>, i32 -> vector<64x32xf32>
    %cst_87 = arith.constant 0.000000e+00 : f32
    %173 = vector.broadcast %cst_87 : f32 to vector<64x32xf32>
    %174 = arith.select %152, %173, %172 : vector<64x32xi1>, vector<64x32xf32>
    %175 = tpu.concatenate %171, %168, %174 in 1 : vector<64x32xf32>, vector<64x32xf32>, vector<64x32xf32> -> vector<64x96xf32>
    %176 = arith.truncf %175 : vector<64x96xf32> to vector<64x96xbf16>
    %c7 = arith.constant 7 : index
    %c0_88 = arith.constant 0 : index
    %c0_89 = arith.constant 0 : index
    %177 = vector.load %arg2[%c7, %c0_88, %c0_89] : memref<14x96x32xbf16, #tpu.memory_space<vmem>>, vector<1x96x32xbf16>
    %178 = vector.shape_cast %177 : vector<1x96x32xbf16> to vector<96x32xbf16>
    %cst_90 = arith.constant dense<0.000000e+00> : vector<64x32xf32>
    %179 = tpu.matmul %176, %178, %cst_90 {dimension_numbers = #tpu.dot_dimension_numbers<[1], [0], [0], [1], [0, 0, 1, 1], [], []>} : vector<64x96xbf16>, vector<96x32xbf16>, vector<64x32xf32> -> vector<64x32xf32>
    %180 = vector.extract_strided_slice %0 {offsets = [7, 0], sizes = [1, 32], strides = [1, 1]} : vector<14x32xf32> to vector<1x32xf32>
    %181 = vector.broadcast %180 : vector<1x32xf32> to vector<64x32xf32>
    %182 = arith.addf %179, %181 : vector<64x32xf32>
    %cst_91 = arith.constant 0.000000e+00 : f32
    %183 = vector.broadcast %cst_91 : f32 to vector<64x32xf32>
    %184 = arith.maximumf %182, %183 : vector<64x32xf32>
    %185 = arith.addf %184, %145 : vector<64x32xf32>
    %c1_i32_92 = arith.constant 1 : i32
    %186 = tpu.dynamic_rotate %185 by %c1_i32_92 dim 0 : vector<64x32xf32>, i32 -> vector<64x32xf32>
    %cst_93 = arith.constant 0xFF800000 : f32
    %187 = vector.broadcast %cst_93 : f32 to vector<64x32xf32>
    %188 = arith.select %150, %187, %186 : vector<64x32xi1>, vector<64x32xf32>
    %c63_i32_94 = arith.constant 63 : i32
    %189 = tpu.dynamic_rotate %185 by %c63_i32_94 dim 0 : vector<64x32xf32>, i32 -> vector<64x32xf32>
    %190 = arith.maximumf %188, %185 : vector<64x32xf32>
    %191 = arith.maximumf %190, %189 : vector<64x32xf32>
    %c0_95 = arith.constant 0 : index
    %c0_96 = arith.constant 0 : index
    %192 = vector.load %arg7[%c0_95, %c0_96] : memref<512x32xf32, #tpu.memory_space<vmem>>, vector<64x32xf32>
    tpu.vector_store %arg7[%c0_95, %c0_96], %191 {strides = array<i32>} : memref<512x32xf32, #tpu.memory_space<vmem>>, vector<64x32xf32>,
    %c0_97 = arith.constant 0 : index
    %c0_98 = arith.constant 0 : index
    %193 = tpu.strided_load %arg7[%c0_97, %c0_98] {strides = array<i32: 2, 1>} : memref<512x32xf32, #tpu.memory_space<vmem>>, vector<32x32xf32>
    %194 = tpu.iota {dimensions = array<i32: 0>} : vector<32x32xi32>
    %c7_i32 = arith.constant 7 : i32
    %195 = vector.broadcast %c7_i32 : i32 to vector<32x32xi32>
    %196 = arith.andi %194, %195 : vector<32x32xi32>
    %c0_i32_99 = arith.constant 0 : i32
    %197 = vector.broadcast %c0_i32_99 : i32 to vector<32x32xi32>
    %198 = arith.cmpi eq, %196, %197 : vector<32x32xi32>
    %c7_i32_100 = arith.constant 7 : i32
    %199 = vector.broadcast %c7_i32_100 : i32 to vector<32x32xi32>
    %200 = arith.cmpi eq, %196, %199 : vector<32x32xi32>
    %c1_i32_101 = arith.constant 1 : i32
    %201 = tpu.dynamic_rotate %193 by %c1_i32_101 dim 0 : vector<32x32xf32>, i32 -> vector<32x32xf32>
    %cst_102 = arith.constant 0.000000e+00 : f32
    %202 = vector.broadcast %cst_102 : f32 to vector<32x32xf32>
    %203 = arith.select %198, %202, %201 : vector<32x32xi1>, vector<32x32xf32>
    %c31_i32_103 = arith.constant 31 : i32
    %204 = tpu.dynamic_rotate %193 by %c31_i32_103 dim 0 : vector<32x32xf32>, i32 -> vector<32x32xf32>
    %cst_104 = arith.constant 0.000000e+00 : f32
    %205 = vector.broadcast %cst_104 : f32 to vector<32x32xf32>
    %206 = arith.select %200, %205, %204 : vector<32x32xi1>, vector<32x32xf32>
    %207 = tpu.concatenate %203, %193, %206 in 1 : vector<32x32xf32>, vector<32x32xf32>, vector<32x32xf32> -> vector<32x96xf32>
    %208 = arith.truncf %207 : vector<32x96xf32> to vector<32x96xbf16>
    %c8 = arith.constant 8 : index
    %c0_105 = arith.constant 0 : index
    %c0_106 = arith.constant 0 : index
    %209 = vector.load %arg2[%c8, %c0_105, %c0_106] : memref<14x96x32xbf16, #tpu.memory_space<vmem>>, vector<1x96x32xbf16>
    %210 = vector.shape_cast %209 : vector<1x96x32xbf16> to vector<96x32xbf16>
    %cst_107 = arith.constant dense<0.000000e+00> : vector<32x32xf32>
    %211 = tpu.matmul %208, %210, %cst_107 {dimension_numbers = #tpu.dot_dimension_numbers<[1], [0], [0], [1], [0, 0, 1, 1], [], []>} : vector<32x96xbf16>, vector<96x32xbf16>, vector<32x32xf32> -> vector<32x32xf32>
    %212 = vector.extract_strided_slice %0 {offsets = [8, 0], sizes = [1, 32], strides = [1, 1]} : vector<14x32xf32> to vector<1x32xf32>
    %213 = vector.broadcast %212 : vector<1x32xf32> to vector<32x32xf32>
    %214 = arith.addf %211, %213 : vector<32x32xf32>
    %cst_108 = arith.constant 0.000000e+00 : f32
    %215 = vector.broadcast %cst_108 : f32 to vector<32x32xf32>
    %216 = arith.maximumf %214, %215 : vector<32x32xf32>
    %c1_i32_109 = arith.constant 1 : i32
    %217 = tpu.dynamic_rotate %216 by %c1_i32_109 dim 0 : vector<32x32xf32>, i32 -> vector<32x32xf32>
    %cst_110 = arith.constant 0.000000e+00 : f32
    %218 = vector.broadcast %cst_110 : f32 to vector<32x32xf32>
    %219 = arith.select %198, %218, %217 : vector<32x32xi1>, vector<32x32xf32>
    %c31_i32_111 = arith.constant 31 : i32
    %220 = tpu.dynamic_rotate %216 by %c31_i32_111 dim 0 : vector<32x32xf32>, i32 -> vector<32x32xf32>
    %cst_112 = arith.constant 0.000000e+00 : f32
    %221 = vector.broadcast %cst_112 : f32 to vector<32x32xf32>
    %222 = arith.select %200, %221, %220 : vector<32x32xi1>, vector<32x32xf32>
    %223 = tpu.concatenate %219, %216, %222 in 1 : vector<32x32xf32>, vector<32x32xf32>, vector<32x32xf32> -> vector<32x96xf32>
    %224 = arith.truncf %223 : vector<32x96xf32> to vector<32x96xbf16>
    %c9 = arith.constant 9 : index
    %c0_113 = arith.constant 0 : index
    %c0_114 = arith.constant 0 : index
    %225 = vector.load %arg2[%c9, %c0_113, %c0_114] : memref<14x96x32xbf16, #tpu.memory_space<vmem>>, vector<1x96x32xbf16>
    %226 = vector.shape_cast %225 : vector<1x96x32xbf16> to vector<96x32xbf16>
    %cst_115 = arith.constant dense<0.000000e+00> : vector<32x32xf32>
    %227 = tpu.matmul %224, %226, %cst_115 {dimension_numbers = #tpu.dot_dimension_numbers<[1], [0], [0], [1], [0, 0, 1, 1], [], []>} : vector<32x96xbf16>, vector<96x32xbf16>, vector<32x32xf32> -> vector<32x32xf32>
    %228 = vector.extract_strided_slice %0 {offsets = [9, 0], sizes = [1, 32], strides = [1, 1]} : vector<14x32xf32> to vector<1x32xf32>
    %229 = vector.broadcast %228 : vector<1x32xf32> to vector<32x32xf32>
    %230 = arith.addf %227, %229 : vector<32x32xf32>
    %cst_116 = arith.constant 0.000000e+00 : f32
    %231 = vector.broadcast %cst_116 : f32 to vector<32x32xf32>
    %232 = arith.maximumf %230, %231 : vector<32x32xf32>
    %233 = arith.addf %232, %193 : vector<32x32xf32>
    %c1_i32_117 = arith.constant 1 : i32
    %234 = tpu.dynamic_rotate %233 by %c1_i32_117 dim 0 : vector<32x32xf32>, i32 -> vector<32x32xf32>
    %cst_118 = arith.constant 0xFF800000 : f32
    %235 = vector.broadcast %cst_118 : f32 to vector<32x32xf32>
    %236 = arith.select %198, %235, %234 : vector<32x32xi1>, vector<32x32xf32>
    %c31_i32_119 = arith.constant 31 : i32
    %237 = tpu.dynamic_rotate %233 by %c31_i32_119 dim 0 : vector<32x32xf32>, i32 -> vector<32x32xf32>
    %238 = arith.maximumf %236, %233 : vector<32x32xf32>
    %239 = arith.maximumf %238, %237 : vector<32x32xf32>
    %c0_120 = arith.constant 0 : index
    %c0_121 = arith.constant 0 : index
    %240 = vector.load %arg7[%c0_120, %c0_121] : memref<512x32xf32, #tpu.memory_space<vmem>>, vector<32x32xf32>
    tpu.vector_store %arg7[%c0_120, %c0_121], %239 {strides = array<i32>} : memref<512x32xf32, #tpu.memory_space<vmem>>, vector<32x32xf32>,
    %c0_122 = arith.constant 0 : index
    %c0_123 = arith.constant 0 : index
    %241 = tpu.strided_load %arg7[%c0_122, %c0_123] {strides = array<i32: 2, 1>} : memref<512x32xf32, #tpu.memory_space<vmem>>, vector<16x32xf32>
    %242 = tpu.iota {dimensions = array<i32: 0>} : vector<16x32xi32>
    %c3_i32 = arith.constant 3 : i32
    %243 = vector.broadcast %c3_i32 : i32 to vector<16x32xi32>
    %244 = arith.andi %242, %243 : vector<16x32xi32>
    %c0_i32_124 = arith.constant 0 : i32
    %245 = vector.broadcast %c0_i32_124 : i32 to vector<16x32xi32>
    %246 = arith.cmpi eq, %244, %245 : vector<16x32xi32>
    %c3_i32_125 = arith.constant 3 : i32
    %247 = vector.broadcast %c3_i32_125 : i32 to vector<16x32xi32>
    %248 = arith.cmpi eq, %244, %247 : vector<16x32xi32>
    %c1_i32_126 = arith.constant 1 : i32
    %249 = tpu.dynamic_rotate %241 by %c1_i32_126 dim 0 : vector<16x32xf32>, i32 -> vector<16x32xf32>
    %cst_127 = arith.constant 0.000000e+00 : f32
    %250 = vector.broadcast %cst_127 : f32 to vector<16x32xf32>
    %251 = arith.select %246, %250, %249 : vector<16x32xi1>, vector<16x32xf32>
    %c15_i32_128 = arith.constant 15 : i32
    %252 = tpu.dynamic_rotate %241 by %c15_i32_128 dim 0 : vector<16x32xf32>, i32 -> vector<16x32xf32>
    %cst_129 = arith.constant 0.000000e+00 : f32
    %253 = vector.broadcast %cst_129 : f32 to vector<16x32xf32>
    %254 = arith.select %248, %253, %252 : vector<16x32xi1>, vector<16x32xf32>
    %255 = tpu.concatenate %251, %241, %254 in 1 : vector<16x32xf32>, vector<16x32xf32>, vector<16x32xf32> -> vector<16x96xf32>
    %256 = arith.truncf %255 : vector<16x96xf32> to vector<16x96xbf16>
    %c10 = arith.constant 10 : index
    %c0_130 = arith.constant 0 : index
    %c0_131 = arith.constant 0 : index
    %257 = vector.load %arg2[%c10, %c0_130, %c0_131] : memref<14x96x32xbf16, #tpu.memory_space<vmem>>, vector<1x96x32xbf16>
    %258 = vector.shape_cast %257 : vector<1x96x32xbf16> to vector<96x32xbf16>
    %cst_132 = arith.constant dense<0.000000e+00> : vector<16x32xf32>
    %259 = tpu.matmul %256, %258, %cst_132 {dimension_numbers = #tpu.dot_dimension_numbers<[1], [0], [0], [1], [0, 0, 1, 1], [], []>} : vector<16x96xbf16>, vector<96x32xbf16>, vector<16x32xf32> -> vector<16x32xf32>
    %260 = vector.extract_strided_slice %0 {offsets = [10, 0], sizes = [1, 32], strides = [1, 1]} : vector<14x32xf32> to vector<1x32xf32>
    %261 = vector.broadcast %260 : vector<1x32xf32> to vector<16x32xf32>
    %262 = arith.addf %259, %261 : vector<16x32xf32>
    %cst_133 = arith.constant 0.000000e+00 : f32
    %263 = vector.broadcast %cst_133 : f32 to vector<16x32xf32>
    %264 = arith.maximumf %262, %263 : vector<16x32xf32>
    %c1_i32_134 = arith.constant 1 : i32
    %265 = tpu.dynamic_rotate %264 by %c1_i32_134 dim 0 : vector<16x32xf32>, i32 -> vector<16x32xf32>
    %cst_135 = arith.constant 0.000000e+00 : f32
    %266 = vector.broadcast %cst_135 : f32 to vector<16x32xf32>
    %267 = arith.select %246, %266, %265 : vector<16x32xi1>, vector<16x32xf32>
    %c15_i32_136 = arith.constant 15 : i32
    %268 = tpu.dynamic_rotate %264 by %c15_i32_136 dim 0 : vector<16x32xf32>, i32 -> vector<16x32xf32>
    %cst_137 = arith.constant 0.000000e+00 : f32
    %269 = vector.broadcast %cst_137 : f32 to vector<16x32xf32>
    %270 = arith.select %248, %269, %268 : vector<16x32xi1>, vector<16x32xf32>
    %271 = tpu.concatenate %267, %264, %270 in 1 : vector<16x32xf32>, vector<16x32xf32>, vector<16x32xf32> -> vector<16x96xf32>
    %272 = arith.truncf %271 : vector<16x96xf32> to vector<16x96xbf16>
    %c11 = arith.constant 11 : index
    %c0_138 = arith.constant 0 : index
    %c0_139 = arith.constant 0 : index
    %273 = vector.load %arg2[%c11, %c0_138, %c0_139] : memref<14x96x32xbf16, #tpu.memory_space<vmem>>, vector<1x96x32xbf16>
    %274 = vector.shape_cast %273 : vector<1x96x32xbf16> to vector<96x32xbf16>
    %cst_140 = arith.constant dense<0.000000e+00> : vector<16x32xf32>
    %275 = tpu.matmul %272, %274, %cst_140 {dimension_numbers = #tpu.dot_dimension_numbers<[1], [0], [0], [1], [0, 0, 1, 1], [], []>} : vector<16x96xbf16>, vector<96x32xbf16>, vector<16x32xf32> -> vector<16x32xf32>
    %276 = vector.extract_strided_slice %0 {offsets = [11, 0], sizes = [1, 32], strides = [1, 1]} : vector<14x32xf32> to vector<1x32xf32>
    %277 = vector.broadcast %276 : vector<1x32xf32> to vector<16x32xf32>
    %278 = arith.addf %275, %277 : vector<16x32xf32>
    %cst_141 = arith.constant 0.000000e+00 : f32
    %279 = vector.broadcast %cst_141 : f32 to vector<16x32xf32>
    %280 = arith.maximumf %278, %279 : vector<16x32xf32>
    %281 = arith.addf %280, %241 : vector<16x32xf32>
    %c1_i32_142 = arith.constant 1 : i32
    %282 = tpu.dynamic_rotate %281 by %c1_i32_142 dim 0 : vector<16x32xf32>, i32 -> vector<16x32xf32>
    %cst_143 = arith.constant 0xFF800000 : f32
    %283 = vector.broadcast %cst_143 : f32 to vector<16x32xf32>
    %284 = arith.select %246, %283, %282 : vector<16x32xi1>, vector<16x32xf32>
    %c15_i32_144 = arith.constant 15 : i32
    %285 = tpu.dynamic_rotate %281 by %c15_i32_144 dim 0 : vector<16x32xf32>, i32 -> vector<16x32xf32>
    %286 = arith.maximumf %284, %281 : vector<16x32xf32>
    %287 = arith.maximumf %286, %285 : vector<16x32xf32>
    %c0_145 = arith.constant 0 : index
    %c0_146 = arith.constant 0 : index
    %288 = vector.load %arg7[%c0_145, %c0_146] : memref<512x32xf32, #tpu.memory_space<vmem>>, vector<16x32xf32>
    tpu.vector_store %arg7[%c0_145, %c0_146], %287 {strides = array<i32>} : memref<512x32xf32, #tpu.memory_space<vmem>>, vector<16x32xf32>,
    %c0_147 = arith.constant 0 : index
    %c0_148 = arith.constant 0 : index
    %289 = tpu.strided_load %arg7[%c0_147, %c0_148] {strides = array<i32: 2, 1>} : memref<512x32xf32, #tpu.memory_space<vmem>>, vector<8x32xf32>
    %290 = tpu.iota {dimensions = array<i32: 0>} : vector<8x32xi32>
    %c1_i32_149 = arith.constant 1 : i32
    %291 = vector.broadcast %c1_i32_149 : i32 to vector<8x32xi32>
    %292 = arith.andi %290, %291 : vector<8x32xi32>
    %c0_i32_150 = arith.constant 0 : i32
    %293 = vector.broadcast %c0_i32_150 : i32 to vector<8x32xi32>
    %294 = arith.cmpi eq, %292, %293 : vector<8x32xi32>
    %c1_i32_151 = arith.constant 1 : i32
    %295 = vector.broadcast %c1_i32_151 : i32 to vector<8x32xi32>
    %296 = arith.cmpi eq, %292, %295 : vector<8x32xi32>
    %c1_i32_152 = arith.constant 1 : i32
    %297 = tpu.dynamic_rotate %289 by %c1_i32_152 dim 0 : vector<8x32xf32>, i32 -> vector<8x32xf32>
    %cst_153 = arith.constant 0.000000e+00 : f32
    %298 = vector.broadcast %cst_153 : f32 to vector<8x32xf32>
    %299 = arith.select %294, %298, %297 : vector<8x32xi1>, vector<8x32xf32>
    %c7_i32_154 = arith.constant 7 : i32
    %300 = tpu.dynamic_rotate %289 by %c7_i32_154 dim 0 : vector<8x32xf32>, i32 -> vector<8x32xf32>
    %cst_155 = arith.constant 0.000000e+00 : f32
    %301 = vector.broadcast %cst_155 : f32 to vector<8x32xf32>
    %302 = arith.select %296, %301, %300 : vector<8x32xi1>, vector<8x32xf32>
    %303 = tpu.concatenate %299, %289, %302 in 1 : vector<8x32xf32>, vector<8x32xf32>, vector<8x32xf32> -> vector<8x96xf32>
    %304 = arith.truncf %303 : vector<8x96xf32> to vector<8x96xbf16>
    %c12 = arith.constant 12 : index
    %c0_156 = arith.constant 0 : index
    %c0_157 = arith.constant 0 : index
    %305 = vector.load %arg2[%c12, %c0_156, %c0_157] : memref<14x96x32xbf16, #tpu.memory_space<vmem>>, vector<1x96x32xbf16>
    %306 = vector.shape_cast %305 : vector<1x96x32xbf16> to vector<96x32xbf16>
    %cst_158 = arith.constant dense<0.000000e+00> : vector<8x32xf32>
    %307 = tpu.matmul %304, %306, %cst_158 {dimension_numbers = #tpu.dot_dimension_numbers<[1], [0], [0], [1], [0, 0, 1, 1], [], []>} : vector<8x96xbf16>, vector<96x32xbf16>, vector<8x32xf32> -> vector<8x32xf32>
    %308 = vector.extract_strided_slice %0 {offsets = [12, 0], sizes = [1, 32], strides = [1, 1]} : vector<14x32xf32> to vector<1x32xf32>
    %309 = vector.broadcast %308 : vector<1x32xf32> to vector<8x32xf32>
    %310 = arith.addf %307, %309 : vector<8x32xf32>
    %cst_159 = arith.constant 0.000000e+00 : f32
    %311 = vector.broadcast %cst_159 : f32 to vector<8x32xf32>
    %312 = arith.maximumf %310, %311 : vector<8x32xf32>
    %c1_i32_160 = arith.constant 1 : i32
    %313 = tpu.dynamic_rotate %312 by %c1_i32_160 dim 0 : vector<8x32xf32>, i32 -> vector<8x32xf32>
    %cst_161 = arith.constant 0.000000e+00 : f32
    %314 = vector.broadcast %cst_161 : f32 to vector<8x32xf32>
    %315 = arith.select %294, %314, %313 : vector<8x32xi1>, vector<8x32xf32>
    %c7_i32_162 = arith.constant 7 : i32
    %316 = tpu.dynamic_rotate %312 by %c7_i32_162 dim 0 : vector<8x32xf32>, i32 -> vector<8x32xf32>
    %cst_163 = arith.constant 0.000000e+00 : f32
    %317 = vector.broadcast %cst_163 : f32 to vector<8x32xf32>
    %318 = arith.select %296, %317, %316 : vector<8x32xi1>, vector<8x32xf32>
    %319 = tpu.concatenate %315, %312, %318 in 1 : vector<8x32xf32>, vector<8x32xf32>, vector<8x32xf32> -> vector<8x96xf32>
    %320 = arith.truncf %319 : vector<8x96xf32> to vector<8x96xbf16>
    %c13 = arith.constant 13 : index
    %c0_164 = arith.constant 0 : index
    %c0_165 = arith.constant 0 : index
    %321 = vector.load %arg2[%c13, %c0_164, %c0_165] : memref<14x96x32xbf16, #tpu.memory_space<vmem>>, vector<1x96x32xbf16>
    %322 = vector.shape_cast %321 : vector<1x96x32xbf16> to vector<96x32xbf16>
    %cst_166 = arith.constant dense<0.000000e+00> : vector<8x32xf32>
    %323 = tpu.matmul %320, %322, %cst_166 {dimension_numbers = #tpu.dot_dimension_numbers<[1], [0], [0], [1], [0, 0, 1, 1], [], []>} : vector<8x96xbf16>, vector<96x32xbf16>, vector<8x32xf32> -> vector<8x32xf32>
    %324 = vector.extract_strided_slice %0 {offsets = [13, 0], sizes = [1, 32], strides = [1, 1]} : vector<14x32xf32> to vector<1x32xf32>
    %325 = vector.broadcast %324 : vector<1x32xf32> to vector<8x32xf32>
    %326 = arith.addf %323, %325 : vector<8x32xf32>
    %cst_167 = arith.constant 0.000000e+00 : f32
    %327 = vector.broadcast %cst_167 : f32 to vector<8x32xf32>
    %328 = arith.maximumf %326, %327 : vector<8x32xf32>
    %329 = arith.addf %328, %289 : vector<8x32xf32>
    %c0_168 = arith.constant 0 : index
    %c0_169 = arith.constant 0 : index
    %330 = vector.load %arg7[%c0_168, %c0_169] : memref<512x32xf32, #tpu.memory_space<vmem>>, vector<8x32xf32>
    tpu.vector_store %arg7[%c0_168, %c0_169], %329 {strides = array<i32>} : memref<512x32xf32, #tpu.memory_space<vmem>>, vector<8x32xf32>,
    %c0_170 = arith.constant 0 : index
    %c0_171 = arith.constant 0 : index
    %331 = tpu.strided_load %arg7[%c0_170, %c0_171] {strides = array<i32: 2, 1>} : memref<512x32xf32, #tpu.memory_space<vmem>>, vector<4x32xf32>
    %c1_172 = arith.constant 1 : index
    %c0_173 = arith.constant 0 : index
    %332 = tpu.strided_load %arg7[%c1_172, %c0_173] {strides = array<i32: 2, 1>} : memref<512x32xf32, #tpu.memory_space<vmem>>, vector<4x32xf32>
    %333 = arith.maximumf %331, %332 : vector<4x32xf32>
    %334 = arith.truncf %333 : vector<4x32xf32> to vector<4x32xbf16>
    %c0_174 = arith.constant 0 : index
    %c0_175 = arith.constant 0 : index
    %335 = vector.load %arg4[%c0_174, %c0_175] : memref<32x4xf32, #tpu.memory_space<vmem>>, vector<32x4xf32>
    %336 = arith.truncf %335 : vector<32x4xf32> to vector<32x4xbf16>
    %cst_176 = arith.constant dense<0.000000e+00> : vector<4x4xf32>
    %337 = tpu.matmul %334, %336, %cst_176 {dimension_numbers = #tpu.dot_dimension_numbers<[1], [0], [0], [1], [0, 0, 1, 1], [], []>} : vector<4x32xbf16>, vector<32x4xbf16>, vector<4x4xf32> -> vector<4x4xf32>
    %c0_177 = arith.constant 0 : index
    %c0_178 = arith.constant 0 : index
    %338 = vector.load %arg5[%c0_177, %c0_178] : memref<1x4xf32, #tpu.memory_space<vmem>>, vector<1x4xf32>
    %339 = vector.broadcast %338 : vector<1x4xf32> to vector<4x4xf32>
    %340 = arith.addf %337, %339 : vector<4x4xf32>
    %c0_179 = arith.constant 0 : index
    %c0_180 = arith.constant 0 : index
    %c0_181 = arith.constant 0 : index
    %341 = vector.load %arg6[%c0_179, %c0_180, %c0_181] : memref<1x4x4xf32, #tpu.memory_space<vmem>>, vector<1x4x4xf32>
    %342 = vector.shape_cast %341 : vector<1x4x4xf32> to vector<4x4xf32>
    %343 = vector.shape_cast %340 : vector<4x4xf32> to vector<1x4x4xf32>
    tpu.vector_store %arg6[%c0_179, %c0_180, %c0_181], %343 {strides = array<i32>} : memref<1x4x4xf32, #tpu.memory_space<vmem>>, vector<1x4x4xf32>,
    return
  }
  func.func @transform_0(%arg0: i32) -> (i32, i32) {
    %c0_i32 = arith.constant 0 : i32
    %c0_i32_0 = arith.constant 0 : i32
    return %arg0, %c0_i32 : i32, i32
  }
  func.func @transform_1(%arg0: i32) -> (i32, i32, i32) {
    %c0_i32 = arith.constant 0 : i32
    %c0_i32_0 = arith.constant 0 : i32
    %c0_i32_1 = arith.constant 0 : i32
    %c0_i32_2 = arith.constant 0 : i32
    return %c0_i32, %c0_i32_0, %c0_i32_1 : i32, i32, i32
  }
  func.func @transform_2(%arg0: i32) -> (i32, i32) {
    %c0_i32 = arith.constant 0 : i32
    %c0_i32_0 = arith.constant 0 : i32
    %c0_i32_1 = arith.constant 0 : i32
    return %c0_i32, %c0_i32_0 : i32, i32
  }
  func.func @transform_3(%arg0: i32) -> (i32, i32) {
    %c0_i32 = arith.constant 0 : i32
    %c0_i32_0 = arith.constant 0 : i32
    %c0_i32_1 = arith.constant 0 : i32
    return %c0_i32, %c0_i32_0 : i32, i32
  }
  func.func @transform_4(%arg0: i32) -> (i32, i32) {
    %c0_i32 = arith.constant 0 : i32
    %c0_i32_0 = arith.constant 0 : i32
    %c0_i32_1 = arith.constant 0 : i32
    return %c0_i32, %c0_i32_0 : i32, i32
  }
  func.func @transform_5(%arg0: i32) -> (i32, i32, i32) {
    %c0_i32 = arith.constant 0 : i32
    %c0_i32_0 = arith.constant 0 : i32
    %c0_i32_1 = arith.constant 0 : i32
    return %arg0, %c0_i32, %c0_i32_0 : i32, i32, i32
  }
}

</mosaic_0001>

<llo_original>
// kernel: dpcnn_forward.1
$region0: #{dpcnn_forward.1}
  #allocation0 [shape = 'u32[]', space=smem, size = 0x4, offset = 0x4, fixed_abs, tag = 'smem constant byte address 0x4 - core index']
  #allocation1 [shape = 'u32[144,128]{1,0:T(1,128)}', space=vmem, size = 0x12000, scoped, tag = 'internal scratch']
  #allocation2 [shape = 'f32[512,32]{1,0:T(8,128)}', space=vmem, size = 0x40000, scoped, tag = 'scratch operand']
  %s0 = inlined_call_operand.vmem [shape: f32[1024,32], index: 0, kind: input, shape index: {}]
  %s1 = inlined_call_operand.vmem [shape: bf16[14,96,32], index: 1, kind: input, shape index: {}]
  %s2 = inlined_call_operand.vmem [shape: f32[14,32], index: 2, kind: input, shape index: {}]
  %s3 = inlined_call_operand.vmem [shape: f32[32,4], index: 3, kind: input, shape index: {}]
  %s4 = inlined_call_operand.vmem [shape: f32[1,4], index: 4, kind: input, shape index: {}]
  %s5 = inlined_call_operand.vmem [shape: f32[2,4,4], index: 5, kind: output, shape index: {}]
  %s6 = sld [smem:[#allocation0]]
  $region53: #{dpcnn_forward.1} parent=0
    _
  %s8 = ssub.s32 1, %s6
  %s9 = scalar_select 0, %s8, %s6
  loop: start=0, step=1, limit=4
  $region2: #{dpcnn_forward.1} parent=0 // loop_pre_header
    _
  $region3: #{dpcnn_forward.1} parent=0 // loop_header
    %s11 = sphi 0, %s15
    %p12 = scmp.ge.s32.totalorder %s11, 4
    %s21 = sphi 0, %s23
    %s24 = sphi 0, %s21
    %s25 = sphi 0, %s24
    %s41 = sphi 0, %s25
    %s45 = sphi 0, %s45
    %s47 = sphi 0, %s45
    %s48 = sphi 0, %s47
    %s62 = sphi 0, %s48
    %s66 = sphi 0, %s66
    %s68 = sphi 0, %s66
    %s69 = sphi 0, %s68
    %s83 = sphi 0, %s69
    %s87 = sphi 0, %s87
    %s89 = sphi 0, %s87
    %s90 = sphi 0, %s89
    %s104 = sphi 0, %s90
    %s108 = sphi 0, %s108
    %s110 = sphi 0, %s108
    %s111 = sphi 0, %s110
    %s125 = sphi 0, %s111
    %s131 = sphi 0, %s133
    %s134 = sphi 0, %s131
    %s135 = sphi 0, %s134
    %s151 = sphi 0, %s135
  $region4: #{dpcnn_forward.1} parent=0 // loop_header_branch
    %14 = sbr.rel (%p12) target = $region8
  $region5: #{dpcnn_forward.1} parent=0 // loop_body
    %s16 = ssub.s32 %s11, 1
    %s17 = ssub.s32 %s11, 2
    %s18 = sadd.s32 %s11, 1
    %s19 = ssub.s32 %s11, %s18
    %p20 = scmp.eq.s32.totalorder %s19, 0
    %s22 = sadd.s32 %s21, 1
    %s23 = scalar_select %p20, %s21, %s22
    %p26 = pneg %p20
    %p27 = scmp.eq.s32.totalorder %s11, 1
    %p28 = por %p26, %p27
    %p29 = scmp.ne.s32.totalorder %s21, %s24
    %p30 = scmp.eq.s32.totalorder %s11, 0
    %p31 = por %p29, %p30
    %p32 = scmp.ne.s32.totalorder %s21, %s24
    %p33 = scmp.eq.s32.totalorder %s16, 1
    %p34 = por %p32, %p33
    %p35 = scmp.ne.s32.totalorder %s24, %s25
    %p36 = scmp.eq.s32.totalorder %s16, 0
    %p37 = por %p35, %p36
    %p38 = scmp.ne.s32.totalorder %s24, %s25
    %p39 = scmp.eq.s32.totalorder %s17, 1
    %p40 = por %p38, %p39
    %p42 = scmp.ne.s32.totalorder %s25, %s41
    %p43 = scmp.eq.s32.totalorder %s17, 0
    %p44 = por %p42, %p43
    %s46 = sadd.s32 %s45, 1
    %p49 = scmp.eq.s32.totalorder %s11, 1
    %p50 = scmp.ne.s32.totalorder %s45, %s47
    %p51 = scmp.eq.s32.totalorder %s11, 0
    %p52 = por %p50, %p51
    %p53 = scmp.ne.s32.totalorder %s45, %s47
    %p54 = scmp.eq.s32.totalorder %s16, 1
    %p55 = por %p53, %p54
    %p56 = scmp.ne.s32.totalorder %s47, %s48
    %p57 = scmp.eq.s32.totalorder %s16, 0
    %p58 = por %p56, %p57
    %p59 = scmp.ne.s32.totalorder %s47, %s48
    %p60 = scmp.eq.s32.totalorder %s17, 1
    %p61 = por %p59, %p60
    %p63 = scmp.ne.s32.totalorder %s48, %s62
    %p64 = scmp.eq.s32.totalorder %s17, 0
    %p65 = por %p63, %p64
    %s67 = sadd.s32 %s66, 1
    %p70 = scmp.eq.s32.totalorder %s11, 1
    %p71 = scmp.ne.s32.totalorder %s66, %s68
    %p72 = scmp.eq.s32.totalorder %s11, 0
    %p73 = por %p71, %p72
    %p74 = scmp.ne.s32.totalorder %s66, %s68
    %p75 = scmp.eq.s32.totalorder %s16, 1
    %p76 = por %p74, %p75
    %p77 = scmp.ne.s32.totalorder %s68, %s69
    %p78 = scmp.eq.s32.totalorder %s16, 0
    %p79 = por %p77, %p78
    %p80 = scmp.ne.s32.totalorder %s68, %s69
    %p81 = scmp.eq.s32.totalorder %s17, 1
    %p82 = por %p80, %p81
    %p84 = scmp.ne.s32.totalorder %s69, %s83
    %p85 = scmp.eq.s32.totalorder %s17, 0
    %p86 = por %p84, %p85
    %s88 = sadd.s32 %s87, 1
    %p91 = scmp.eq.s32.totalorder %s11, 1
    %p92 = scmp.ne.s32.totalorder %s87, %s89
    %p93 = scmp.eq.s32.totalorder %s11, 0
    %p94 = por %p92, %p93
    %p95 = scmp.ne.s32.totalorder %s87, %s89
    %p96 = scmp.eq.s32.totalorder %s16, 1
    %p97 = por %p95, %p96
    %p98 = scmp.ne.s32.totalorder %s89, %s90
    %p99 = scmp.eq.s32.totalorder %s16, 0
    %p100 = por %p98, %p99
    %p101 = scmp.ne.s32.totalorder %s89, %s90
    %p102 = scmp.eq.s32.totalorder %s17, 1
    %p103 = por %p101, %p102
    %p105 = scmp.ne.s32.totalorder %s90, %s104
    %p106 = scmp.eq.s32.totalorder %s17, 0
    %p107 = por %p105, %p106
    %s109 = sadd.s32 %s108, 1
    %p112 = scmp.eq.s32.totalorder %s11, 1
    %p113 = scmp.ne.s32.totalorder %s108, %s110
    %p114 = scmp.eq.s32.totalorder %s11, 0
    %p115 = por %p113, %p114
    %p116 = scmp.ne.s32.totalorder %s108, %s110
    %p117 = scmp.eq.s32.totalorder %s16, 1
    %p118 = por %p116, %p117
    %p119 = scmp.ne.s32.totalorder %s110, %s111
    %p120 = scmp.eq.s32.totalorder %s16, 0
    %p121 = por %p119, %p120
    %p122 = scmp.ne.s32.totalorder %s110, %s111
    %p123 = scmp.eq.s32.totalorder %s17, 1
    %p124 = por %p122, %p123
    %p126 = scmp.ne.s32.totalorder %s111, %s125
    %p127 = scmp.eq.s32.totalorder %s17, 0
    %p128 = por %p126, %p127
    %s129 = ssub.s32 %s11, %s18
    %p130 = scmp.eq.s32.totalorder %s129, 0
    %s132 = sadd.s32 %s131, 1
    %s133 = scalar_select %p130, %s131, %s132
    %p136 = pneg %p130
    %p137 = scmp.eq.s32.totalorder %s11, 1
    %p138 = por %p136, %p137
    %p139 = scmp.ne.s32.totalorder %s131, %s134
    %p140 = scmp.eq.s32.totalorder %s11, 0
    %p141 = por %p139, %p140
    %p142 = scmp.ne.s32.totalorder %s131, %s134
    %p143 = scmp.eq.s32.totalorder %s16, 1
    %p144 = por %p142, %p143
    %p145 = scmp.ne.s32.totalorder %s134, %s135
    %p146 = scmp.eq.s32.totalorder %s16, 0
    %p147 = por %p145, %p146
    %p148 = scmp.ne.s32.totalorder %s134, %s135
    %p149 = scmp.eq.s32.totalorder %s17, 1
    %p150 = por %p148, %p149
    %p152 = scmp.ne.s32.totalorder %s135, %s151
    %p153 = scmp.eq.s32.totalorder %s17, 0
    %p154 = por %p152, %p153
    %p155 = scmp.le.s32.totalorder 1, %s11
    %p156 = scmp.lt.s32.totalorder %s11, 3
    %p157 = pnand %p155, %p156
    %p158 = pneg %p157
    // Predicated region
    $region9: #{dpcnn_forward.1} parent=5 // pred_check
      _
    $region10: #{dpcnn_forward.1} parent=5 // pred_check_branch
      %160 = sbr.rel (%p157) target = $region12
    $region11: #{dpcnn_forward.1} parent=5 // pred_region
      %s161 = ssub.s32 %s11, 1
      // Predicated region
      $region13: #{dpcnn_forward.1} parent=11 // pred_check
        %p162 = pneg %p58
      $region14: #{dpcnn_forward.1} parent=11 // pred_check_branch
        %164 = sbr.rel (%p162) target = $region16
      $region15: #{dpcnn_forward.1} parent=11 // pred_region
        _
      $region16: #{dpcnn_forward.1} parent=11 // pred_fallthru
        _
      // Predicated region
      $region17: #{dpcnn_forward.1} parent=11 // pred_check
        %p165 = pneg %p79
      $region18: #{dpcnn_forward.1} parent=11 // pred_check_branch
        %167 = sbr.rel (%p165) target = $region20
      $region19: #{dpcnn_forward.1} parent=11 // pred_region
        _
      $region20: #{dpcnn_forward.1} parent=11 // pred_fallthru
        _
      // Predicated region
      $region21: #{dpcnn_forward.1} parent=11 // pred_check
        %p168 = pneg %p100
      $region22: #{dpcnn_forward.1} parent=11 // pred_check_branch
        %170 = sbr.rel (%p168) target = $region24
      $region23: #{dpcnn_forward.1} parent=11 // pred_region
        _
      $region24: #{dpcnn_forward.1} parent=11 // pred_fallthru
        _
      // Predicated region
      $region25: #{dpcnn_forward.1} parent=11 // pred_check
        %p171 = pneg %p121
      $region26: #{dpcnn_forward.1} parent=11 // pred_check_branch
        %173 = sbr.rel (%p171) target = $region28
      $region27: #{dpcnn_forward.1} parent=11 // pred_region
        _
      $region28: #{dpcnn_forward.1} parent=11 // pred_fallthru
        _
    $region12: #{dpcnn_forward.1} parent=5 // pred_fallthru
      _
    %p174 = scmp.lt.s32.totalorder %s11, 2
    // Predicated region
    $region29: #{dpcnn_forward.1} parent=5 // pred_check
      %p175 = pneg %p174
    $region30: #{dpcnn_forward.1} parent=5 // pred_check_branch
      %177 = sbr.rel (%p175) target = $region32
    $region31: #{dpcnn_forward.1} parent=5 // pred_region
      // Predicated region
      $region33: #{dpcnn_forward.1} parent=31 // pred_check
        %p178 = pneg %p31
      $region34: #{dpcnn_forward.1} parent=31 // pred_check_branch
        %180 = sbr.rel (%p178) target = $region36
      $region35: #{dpcnn_forward.1} parent=31 // pred_region
        %s181 = smul.u32 64, %s11
        %p182 = scmp.lt.s32.totalorder %s181, 127
        %s183 = scalar_select %p182, %s181, 127
        %s184 = smul.addr %s183, 8
        %s185 = scalar_lea.vmem %s0, %s184
        %s186 = smul.u32 64, %s11
      $region36: #{dpcnn_forward.1} parent=31 // pred_fallthru
        _
    $region32: #{dpcnn_forward.1} parent=5 // pred_fallthru
      _
    %p187 = scmp.le.s32.totalorder 1, %s11
    %p188 = scmp.lt.s32.totalorder %s11, 3
    %p189 = pnand %p187, %p188
    %p190 = pneg %p189
    // Predicated region
    $region37: #{dpcnn_forward.1} parent=5 // pred_check
      _
    $region38: #{dpcnn_forward.1} parent=5 // pred_check_branch
      %192 = sbr.rel (%p189) target = $region40
    $region39: #{dpcnn_forward.1} parent=5 // pred_region
      %s193 = ssub.s32 %s11, 1
      %s194 = smul.u32 64, %s16
      %p195 = scmp.lt.s32.totalorder %s194, 127
      %s196 = scalar_select %p195, %s194, 127
      %s197 = smul.addr %s196, 8
      %s198 = scalar_lea.vmem %s0, %s197
      %p199 = pneg %p37
      %p200 = pneg %p34
      %p201 = pneg %p58
      %p202 = pneg %p55
      %p203 = pneg %p79
      %p204 = pneg %p76
      %p205 = pneg %p100
      %p206 = pneg %p97
      %p207 = pneg %p121
      %p208 = pneg %p118
      %p209 = pneg %p147
      %p210 = pneg %p144
      %p211 = scmp.lt.s32.totalorder %s16, 1
      %s212 = scalar_select %p211, %s16, 1
      %s213 = smul.addr %s212, 4
      %s214 = scalar_lea.vmem %s5, %s213
      %s215 = smul.u32 64, %s16
      %p216 = scmp.lt.s32.totalorder %s215, 127
      %s217 = scalar_select %p216, %s215, 127
      %s218 = smul.addr %s217, 8
      %s219 = scalar_lea.vmem %s0, %s218
      %s220 = smul.u32 64, %s16
      %p221 = scmp.lt.s32.totalorder %s16, 1
      %s222 = scalar_select %p221, %s16, 1
      %s223 = smul.addr %s222, 4
      %s224 = scalar_lea.vmem %s5, %s223
      %v226 = vld [vmem:[%s2] sm:$0xff]
      %v227 = vld [vmem:[%s2 + $0x8] sm:$0x3f]
      %v228 = vld [vmem:[%s219] sm:$0xff]
      %v229 = vld [vmem:[%s219 + $0x8] sm:$0xff]
      %v230 = vld [vmem:[%s219 + $0x10] sm:$0xff]
      %v231 = vld [vmem:[%s219 + $0x18] sm:$0xff]
      %v232 = vld [vmem:[%s219 + $0x20] sm:$0xff]
      %v233 = vld [vmem:[%s219 + $0x28] sm:$0xff]
      %v234 = vld [vmem:[%s219 + $0x30] sm:$0xff]
      %v235 = vld [vmem:[%s219 + $0x38] sm:$0xff]
      %v236 = vld [vmem:[%s219 + $0x40] sm:$0xff]
      %v237 = vld [vmem:[%s219 + $0x48] sm:$0xff]
      %v238 = vld [vmem:[%s219 + $0x50] sm:$0xff]
      %v239 = vld [vmem:[%s219 + $0x58] sm:$0xff]
      %v240 = vld [vmem:[%s219 + $0x60] sm:$0xff]
      %v241 = vld [vmem:[%s219 + $0x68] sm:$0xff]
      %v242 = vld [vmem:[%s219 + $0x70] sm:$0xff]
      %v243 = vld [vmem:[%s219 + $0x78] sm:$0xff]
      %v244 = vld [vmem:[%s219 + $0x80] sm:$0xff]
      %v245 = vld [vmem:[%s219 + $0x88] sm:$0xff]
      %v246 = vld [vmem:[%s219 + $0x90] sm:$0xff]
      %v247 = vld [vmem:[%s219 + $0x98] sm:$0xff]
      %v248 = vld [vmem:[%s219 + $0xa0] sm:$0xff]
      %v249 = vld [vmem:[%s219 + $0xa8] sm:$0xff]
      %v250 = vld [vmem:[%s219 + $0xb0] sm:$0xff]
      %v251 = vld [vmem:[%s219 + $0xb8] sm:$0xff]
      %v252 = vld [vmem:[%s219 + $0xc0] sm:$0xff]
      %v253 = vld [vmem:[%s219 + $0xc8] sm:$0xff]
      %v254 = vld [vmem:[%s219 + $0xd0] sm:$0xff]
      %v255 = vld [vmem:[%s219 + $0xd8] sm:$0xff]
      %v256 = vld [vmem:[%s219 + $0xe0] sm:$0xff]
      %v257 = vld [vmem:[%s219 + $0xe8] sm:$0xff]
      %v258 = vld [vmem:[%s219 + $0xf0] sm:$0xff]
      %v259 = vld [vmem:[%s219 + $0xf8] sm:$0xff]
      %v260 = vld [vmem:[%s219 + $0x100] sm:$0xff]
      %v261 = vld [vmem:[%s219 + $0x108] sm:$0xff]
      %v262 = vld [vmem:[%s219 + $0x110] sm:$0xff]
      %v263 = vld [vmem:[%s219 + $0x118] sm:$0xff]
      %v264 = vld [vmem:[%s219 + $0x120] sm:$0xff]
      %v265 = vld [vmem:[%s219 + $0x128] sm:$0xff]
      %v266 = vld [vmem:[%s219 + $0x130] sm:$0xff]
      %v267 = vld [vmem:[%s219 + $0x138] sm:$0xff]
      %v268 = vld [vmem:[%s219 + $0x140] sm:$0xff]
      %v269 = vld [vmem:[%s219 + $0x148] sm:$0xff]
      %v270 = vld [vmem:[%s219 + $0x150] sm:$0xff]
      %v271 = vld [vmem:[%s219 + $0x158] sm:$0xff]
      %v272 = vld [vmem:[%s219 + $0x160] sm:$0xff]
      %v273 = vld [vmem:[%s219 + $0x168] sm:$0xff]
      %v274 = vld [vmem:[%s219 + $0x170] sm:$0xff]
      %v275 = vld [vmem:[%s219 + $0x178] sm:$0xff]
      %v276 = vld [vmem:[%s219 + $0x180] sm:$0xff]
      %v277 = vld [vmem:[%s219 + $0x188] sm:$0xff]
      %v278 = vld [vmem:[%s219 + $0x190] sm:$0xff]
      %v279 = vld [vmem:[%s219 + $0x198] sm:$0xff]
      %v280 = vld [vmem:[%s219 + $0x1a0] sm:$0xff]
      %v281 = vld [vmem:[%s219 + $0x1a8] sm:$0xff]
      %v282 = vld [vmem:[%s219 + $0x1b0] sm:$0xff]
      %v283 = vld [vmem:[%s219 + $0x1b8] sm:$0xff]
      %v284 = vld [vmem:[%s219 + $0x1c0] sm:$0xff]
      %v285 = vld [vmem:[%s219 + $0x1c8] sm:$0xff]
      %v286 = vld [vmem:[%s219 + $0x1d0] sm:$0xff]
      %v287 = vld [vmem:[%s219 + $0x1d8] sm:$0xff]
      %v288 = vld [vmem:[%s219 + $0x1e0] sm:$0xff]
      %v289 = vld [vmem:[%s219 + $0x1e8] sm:$0xff]
      %v290 = vld [vmem:[%s219 + $0x1f0] sm:$0xff]
      %v291 = vld [vmem:[%s219 + $0x1f8] sm:$0xff]
      %v292 = vlaneseq
      %v293 = vshrl.u32 %v292, 7
      %v294 = vadd.s32 %v293, 8
      %v295 = vadd.s32 %v293, 16
      %v296 = vadd.s32 %v293, 24
      %v297 = vadd.s32 %v293, 32
      %v298 = vadd.s32 %v293, 40
      %v299 = vadd.s32 %v293, 48
      %v300 = vadd.s32 %v293, 56
      %v301 = vadd.s32 %v293, 64
      %v302 = vadd.s32 %v293, 72
      %v303 = vadd.s32 %v293, 80
      %v304 = vadd.s32 %v293, 88
      %v305 = vadd.s32 %v293, 96
      %v306 = vadd.s32 %v293, 104
      %v307 = vadd.s32 %v293, 112
      %v308 = vadd.s32 %v293, 120
      %v309 = vadd.s32 %v293, 128
      %v310 = vadd.s32 %v293, 136
      %v311 = vadd.s32 %v293, 144
      %v312 = vadd.s32 %v293, 152
      %v313 = vadd.s32 %v293, 160
      %v314 = vadd.s32 %v293, 168
      %v315 = vadd.s32 %v293, 176
      %v316 = vadd.s32 %v293, 184
      %v317 = vadd.s32 %v293, 192
      %v318 = vadd.s32 %v293, 200
      %v319 = vadd.s32 %v293, 208
      %v320 = vadd.s32 %v293, 216
      %v321 = vadd.s32 %v293, 224
      %v322 = vadd.s32 %v293, 232
      %v323 = vadd.s32 %v293, 240
      %v324 = vadd.s32 %v293, 248
      %v325 = vadd.s32 %v293, 256
      %v326 = vadd.s32 %v293, 264
      %v327 = vadd.s32 %v293, 272
      %v328 = vadd.s32 %v293, 280
      %v329 = vadd.s32 %v293, 288
      %v330 = vadd.s32 %v293, 296
      %v331 = vadd.s32 %v293, 304
      %v332 = vadd.s32 %v293, 312
      %v333 = vadd.s32 %v293, 320
      %v334 = vadd.s32 %v293, 328
      %v335 = vadd.s32 %v293, 336
      %v336 = vadd.s32 %v293, 344
      %v337 = vadd.s32 %v293, 352
      %v338 = vadd.s32 %v293, 360
      %v339 = vadd.s32 %v293, 368
      %v340 = vadd.s32 %v293, 376
      %v341 = vadd.s32 %v293, 384
      %v342 = vadd.s32 %v293, 392
      %v343 = vadd.s32 %v293, 400
      %v344 = vadd.s32 %v293, 408
      %v345 = vadd.s32 %v293, 416
      %v346 = vadd.s32 %v293, 424
      %v347 = vadd.s32 %v293, 432
      %v348 = vadd.s32 %v293, 440
      %v349 = vadd.s32 %v293, 448
      %v350 = vadd.s32 %v293, 456
      %v351 = vadd.s32 %v293, 464
      %v352 = vadd.s32 %v293, 472
      %v353 = vadd.s32 %v293, 480
      %v354 = vadd.s32 %v293, 488
      %v355 = vadd.s32 %v293, 496
      %v356 = vadd.s32 %v293, 504
      %v357 = vand.u32 %v293, 127
      %v358 = vand.u32 %v294, 127
      %v359 = vand.u32 %v295, 127
      %v360 = vand.u32 %v296, 127
      %v361 = vand.u32 %v297, 127
      %v362 = vand.u32 %v298, 127
      %v363 = vand.u32 %v299, 127
      %v364 = vand.u32 %v300, 127
      %v365 = vand.u32 %v301, 127
      %v366 = vand.u32 %v302, 127
      %v367 = vand.u32 %v303, 127
      %v368 = vand.u32 %v304, 127
      %v369 = vand.u32 %v305, 127
      %v370 = vand.u32 %v306, 127
      %v371 = vand.u32 %v307, 127
      %v372 = vand.u32 %v308, 127
      %v373 = vand.u32 %v309, 127
      %v374 = vand.u32 %v310, 127
      %v375 = vand.u32 %v311, 127
      %v376 = vand.u32 %v312, 127
      %v377 = vand.u32 %v313, 127
      %v378 = vand.u32 %v314, 127
      %v379 = vand.u32 %v315, 127
      %v380 = vand.u32 %v316, 127
      %v381 = vand.u32 %v317, 127
      %v382 = vand.u32 %v318, 127
      %v383 = vand.u32 %v319, 127
      %v384 = vand.u32 %v320, 127
      %v385 = vand.u32 %v321, 127
      %v386 = vand.u32 %v322, 127
      %v387 = vand.u32 %v323, 127
      %v388 = vand.u32 %v324, 127
      %v389 = vand.u32 %v325, 127
      %v390 = vand.u32 %v326, 127
      %v391 = vand.u32 %v327, 127
      %v392 = vand.u32 %v328, 127
      %v393 = vand.u32 %v329, 127
      %v394 = vand.u32 %v330, 127
      %v395 = vand.u32 %v331, 127
      %v396 = vand.u32 %v332, 127
      %v397 = vand.u32 %v333, 127
      %v398 = vand.u32 %v334, 127
      %v399 = vand.u32 %v335, 127
      %v400 = vand.u32 %v336, 127
      %v401 = vand.u32 %v337, 127
      %v402 = vand.u32 %v338, 127
      %v403 = vand.u32 %v339, 127
      %v404 = vand.u32 %v340, 127
      %v405 = vand.u32 %v341, 127
      %v406 = vand.u32 %v342, 127
      %v407 = vand.u32 %v343, 127
      %v408 = vand.u32 %v344, 127
      %v409 = vand.u32 %v345, 127
      %v410 = vand.u32 %v346, 127
      %v411 = vand.u32 %v347, 127
      %v412 = vand.u32 %v348, 127
      %v413 = vand.u32 %v349, 127
      %v414 = vand.u32 %v350, 127
      %v415 = vand.u32 %v351, 127
      %v416 = vand.u32 %v352, 127
      %v417 = vand.u32 %v353, 127
      %v418 = vand.u32 %v354, 127
      %v419 = vand.u32 %v355, 127
      %v420 = vand.u32 %v356, 127
      %vm421 = vcmp.eq.s32.totalorder %v357, 0
      %vm422 = vcmp.eq.s32.totalorder %v358, 0
      %vm423 = vcmp.eq.s32.totalorder %v359, 0
      %vm424 = vcmp.eq.s32.totalorder %v360, 0
      %vm425 = vcmp.eq.s32.totalorder %v361, 0
      %vm426 = vcmp.eq.s32.totalorder %v362, 0
      %vm427 = vcmp.eq.s32.totalorder %v363, 0
      %vm428 = vcmp.eq.s32.totalorder %v364, 0
      %vm429 = vcmp.eq.s32.totalorder %v365, 0
      %vm430 = vcmp.eq.s32.totalorder %v366, 0
      %vm431 = vcmp.eq.s32.totalorder %v367, 0
      %vm432 = vcmp.eq.s32.totalorder %v368, 0
      %vm433 = vcmp.eq.s32.totalorder %v369, 0
      %vm434 = vcmp.eq.s32.totalorder %v370, 0
      %vm435 = vcmp.eq.s32.totalorder %v371, 0
      %vm436 = vcmp.eq.s32.totalorder %v372, 0
      %vm437 = vcmp.eq.s32.totalorder %v373, 0
      %vm438 = vcmp.eq.s32.totalorder %v374, 0
      %vm439 = vcmp.eq.s32.totalorder %v375, 0
      %vm440 = vcmp.eq.s32.totalorder %v376, 0
      %vm441 = vcmp.eq.s32.totalorder %v377, 0
      %vm442 = vcmp.eq.s32.totalorder %v378, 0
      %vm443 = vcmp.eq.s32.totalorder %v379, 0
      %vm444 = vcmp.eq.s32.totalorder %v380, 0
      %vm445 = vcmp.eq.s32.totalorder %v381, 0
      %vm446 = vcmp.eq.s32.totalorder %v382, 0
      %vm447 = vcmp.eq.s32.totalorder %v383, 0
      %vm448 = vcmp.eq.s32.totalorder %v384, 0
      %vm449 = vcmp.eq.s32.totalorder %v385, 0
      %vm450 = vcmp.eq.s32.totalorder %v386, 0
      %vm451 = vcmp.eq.s32.totalorder %v387, 0
      %vm452 = vcmp.eq.s32.totalorder %v388, 0
      %vm453 = vcmp.eq.s32.totalorder %v389, 0
      %vm454 = vcmp.eq.s32.totalorder %v390, 0
      %vm455 = vcmp.eq.s32.totalorder %v391, 0
      %vm456 = vcmp.eq.s32.totalorder %v392, 0
      %vm457 = vcmp.eq.s32.totalorder %v393, 0
      %vm458 = vcmp.eq.s32.totalorder %v394, 0
      %vm459 = vcmp.eq.s32.totalorder %v395, 0
      %vm460 = vcmp.eq.s32.totalorder %v396, 0
      %vm461 = vcmp.eq.s32.totalorder %v397, 0
      %vm462 = vcmp.eq.s32.totalorder %v398, 0
      %vm463 = vcmp.eq.s32.totalorder %v399, 0
      %vm464 = vcmp.eq.s32.totalorder %v400, 0
      %vm465 = vcmp.eq.s32.totalorder %v401, 0
      %vm466 = vcmp.eq.s32.totalorder %v402, 0
      %vm467 = vcmp.eq.s32.totalorder %v403, 0
      %vm468 = vcmp.eq.s32.totalorder %v404, 0
      %vm469 = vcmp.eq.s32.totalorder %v405, 0
      %vm470 = vcmp.eq.s32.totalorder %v406, 0
      %vm471 = vcmp.eq.s32.totalorder %v407, 0
      %vm472 = vcmp.eq.s32.totalorder %v408, 0
      %vm473 = vcmp.eq.s32.totalorder %v409, 0
      %vm474 = vcmp.eq.s32.totalorder %v410, 0
      %vm475 = vcmp.eq.s32.totalorder %v411, 0
      %vm476 = vcmp.eq.s32.totalorder %v412, 0
      %vm477 = vcmp.eq.s32.totalorder %v413, 0
      %vm478 = vcmp.eq.s32.totalorder %v414, 0
      %vm479 = vcmp.eq.s32.totalorder %v415, 0
      %vm480 = vcmp.eq.s32.totalorder %v416, 0
      %vm481 = vcmp.eq.s32.totalorder %v417, 0
      %vm482 = vcmp.eq.s32.totalorder %v418, 0
      %vm483 = vcmp.eq.s32.totalorder %v419, 0
      %vm484 = vcmp.eq.s32.totalorder %v420, 0
      %vm485 = vcmp.eq.s32.totalorder %v357, 127
      %vm486 = vcmp.eq.s32.totalorder %v358, 127
      %vm487 = vcmp.eq.s32.totalorder %v359, 127
      %vm488 = vcmp.eq.s32.totalorder %v360, 127
      %vm489 = vcmp.eq.s32.totalorder %v361, 127
      %vm490 = vcmp.eq.s32.totalorder %v362, 127
      %vm491 = vcmp.eq.s32.totalorder %v363, 127
      %vm492 = vcmp.eq.s32.totalorder %v364, 127
      %vm493 = vcmp.eq.s32.totalorder %v365, 127
      %vm494 = vcmp.eq.s32.totalorder %v366, 127
      %vm495 = vcmp.eq.s32.totalorder %v367, 127
      %vm496 = vcmp.eq.s32.totalorder %v368, 127
      %vm497 = vcmp.eq.s32.totalorder %v369, 127
      %vm498 = vcmp.eq.s32.totalorder %v370, 127
      %vm499 = vcmp.eq.s32.totalorder %v371, 127
      %vm500 = vcmp.eq.s32.totalorder %v372, 127
      %vm501 = vcmp.eq.s32.totalorder %v373, 127
      %vm502 = vcmp.eq.s32.totalorder %v374, 127
      %vm503 = vcmp.eq.s32.totalorder %v375, 127
      %vm504 = vcmp.eq.s32.totalorder %v376, 127
      %vm505 = vcmp.eq.s32.totalorder %v377, 127
      %vm506 = vcmp.eq.s32.totalorder %v378, 127
      %vm507 = vcmp.eq.s32.totalorder %v379, 127
      %vm508 = vcmp.eq.s32.totalorder %v380, 127
      %vm509 = vcmp.eq.s32.totalorder %v381, 127
      %vm510 = vcmp.eq.s32.totalorder %v382, 127
      %vm511 = vcmp.eq.s32.totalorder %v383, 127
      %vm512 = vcmp.eq.s32.totalorder %v384, 127
      %vm513 = vcmp.eq.s32.totalorder %v385, 127
      %vm514 = vcmp.eq.s32.totalorder %v386, 127
      %vm515 = vcmp.eq.s32.totalorder %v387, 127
      %vm516 = vcmp.eq.s32.totalorder %v388, 127
      %vm517 = vcmp.eq.s32.totalorder %v389, 127
      %vm518 = vcmp.eq.s32.totalorder %v390, 127
      %vm519 = vcmp.eq.s32.totalorder %v391, 127
      %vm520 = vcmp.eq.s32.totalorder %v392, 127
      %vm521 = vcmp.eq.s32.totalorder %v393, 127
      %vm522 = vcmp.eq.s32.totalorder %v394, 127
      %vm523 = vcmp.eq.s32.totalorder %v395, 127
      %vm524 = vcmp.eq.s32.totalorder %v396, 127
      %vm525 = vcmp.eq.s32.totalorder %v397, 127
      %vm526 = vcmp.eq.s32.totalorder %v398, 127
      %vm527 = vcmp.eq.s32.totalorder %v399, 127
      %vm528 = vcmp.eq.s32.totalorder %v400, 127
      %vm529 = vcmp.eq.s32.totalorder %v401, 127
      %vm530 = vcmp.eq.s32.totalorder %v402, 127
      %vm531 = vcmp.eq.s32.totalorder %v403, 127
      %vm532 = vcmp.eq.s32.totalorder %v404, 127
      %vm533 = vcmp.eq.s32.totalorder %v405, 127
      %vm534 = vcmp.eq.s32.totalorder %v406, 127
      %vm535 = vcmp.eq.s32.totalorder %v407, 127
      %vm536 = vcmp.eq.s32.totalorder %v408, 127
      %vm537 = vcmp.eq.s32.totalorder %v409, 127
      %vm538 = vcmp.eq.s32.totalorder %v410, 127
      %vm539 = vcmp.eq.s32.totalorder %v411, 127
      %vm540 = vcmp.eq.s32.totalorder %v412, 127
      %vm541 = vcmp.eq.s32.totalorder %v413, 127
      %vm542 = vcmp.eq.s32.totalorder %v414, 127
      %vm543 = vcmp.eq.s32.totalorder %v415, 127
      %vm544 = vcmp.eq.s32.totalorder %v416, 127
      %vm545 = vcmp.eq.s32.totalorder %v417, 127
      %vm546 = vcmp.eq.s32.totalorder %v418, 127
      %vm547 = vcmp.eq.s32.totalorder %v419, 127
      %vm548 = vcmp.eq.s32.totalorder %v420, 127
      %v549 = vrot.slane %v228, 7
      %v550 = vrot.slane %v229, 7
      %v551 = vrot.slane %v230, 7
      %v552 = vrot.slane %v231, 7
      %v553 = vrot.slane %v232, 7
      %v554 = vrot.slane %v233, 7
      %v555 = vrot.slane %v234, 7
      %v556 = vrot.slane %v235, 7
      %v557 = vrot.slane %v236, 7
      %v558 = vrot.slane %v237, 7
      %v559 = vrot.slane %v238, 7
      %v560 = vrot.slane %v239, 7
      %v561 = vrot.slane %v240, 7
      %v562 = vrot.slane %v241, 7
      %v563 = vrot.slane %v242, 7
      %v564 = vrot.slane %v243, 7
      %v565 = vrot.slane %v244, 7
      %v566 = vrot.slane %v245, 7
      %v567 = vrot.slane %v246, 7
      %v568 = vrot.slane %v247, 7
      %v569 = vrot.slane %v248, 7
      %v570 = vrot.slane %v249, 7
      %v571 = vrot.slane %v250, 7
      %v572 = vrot.slane %v251, 7
      %v573 = vrot.slane %v252, 7
      %v574 = vrot.slane %v253, 7
      %v575 = vrot.slane %v254, 7
      %v576 = vrot.slane %v255, 7
      %v577 = vrot.slane %v256, 7
      %v578 = vrot.slane %v257, 7
      %v579 = vrot.slane %v258, 7
      %v580 = vrot.slane %v259, 7
      %v581 = vrot.slane %v260, 7
      %v582 = vrot.slane %v261, 7
      %v583 = vrot.slane %v262, 7
      %v584 = vrot.slane %v263, 7
      %v585 = vrot.slane %v264, 7
      %v586 = vrot.slane %v265, 7
      %v587 = vrot.slane %v266, 7
      %v588 = vrot.slane %v267, 7
      %v589 = vrot.slane %v268, 7
      %v590 = vrot.slane %v269, 7
      %v591 = vrot.slane %v270, 7
      %v592 = vrot.slane %v271, 7
      %v593 = vrot.slane %v272, 7
      %v594 = vrot.slane %v273, 7
      %v595 = vrot.slane %v274, 7
      %v596 = vrot.slane %v275, 7
      %v597 = vrot.slane %v276, 7
      %v598 = vrot.slane %v277, 7
      %v599 = vrot.slane %v278, 7
      %v600 = vrot.slane %v279, 7
      %v601 = vrot.slane %v280, 7
      %v602 = vrot.slane %v281, 7
      %v603 = vrot.slane %v282, 7
      %v604 = vrot.slane %v283, 7
      %v605 = vrot.slane %v284, 7
      %v606 = vrot.slane %v285, 7
      %v607 = vrot.slane %v286, 7
      %v608 = vrot.slane %v287, 7
      %v609 = vrot.slane %v288, 7
      %v610 = vrot.slane %v289, 7
      %v611 = vrot.slane %v290, 7
      %v612 = vrot.slane %v291, 7
      %vm613 = vcmp.lt.s32.totalorder %v293, 1
      %v614 = vsel %vm613, %v611, %v612
      %v615 = vsel %vm613, %v610, %v611
      %v616 = vsel %vm613, %v609, %v610
      %v617 = vsel %vm613, %v608, %v609
      %v618 = vsel %vm613, %v607, %v608
      %v619 = vsel %vm613, %v606, %v607
      %v620 = vsel %vm613, %v605, %v606
      %v621 = vsel %vm613, %v604, %v605
      %v622 = vsel %vm613, %v603, %v604
      %v623 = vsel %vm613, %v602, %v603
      %v624 = vsel %vm613, %v601, %v602
      %v625 = vsel %vm613, %v600, %v601
      %v626 = vsel %vm613, %v599, %v600
      %v627 = vsel %vm613, %v598, %v599
      %v628 = vsel %vm613, %v597, %v598
      %v629 = vsel %vm613, %v596, %v597
      %v630 = vsel %vm613, %v595, %v596
      %v631 = vsel %vm613, %v594, %v595
      %v632 = vsel %vm613, %v593, %v594
      %v633 = vsel %vm613, %v592, %v593
      %v634 = vsel %vm613, %v591, %v592
      %v635 = vsel %vm613, %v590, %v591
      %v636 = vsel %vm613, %v589, %v590
      %v637 = vsel %vm613, %v588, %v589
      %v638 = vsel %vm613, %v587, %v588
      %v639 = vsel %vm613, %v586, %v587
      %v640 = vsel %vm613, %v585, %v586
      %v641 = vsel %vm613, %v584, %v585
      %v642 = vsel %vm613, %v583, %v584
      %v643 = vsel %vm613, %v582, %v583
      %v644 = vsel %vm613, %v581, %v582
      %v645 = vsel %vm613, %v580, %v581
      %v646 = vsel %vm613, %v579, %v580
      %v647 = vsel %vm613, %v578, %v579
      %v648 = vsel %vm613, %v577, %v578
      %v649 = vsel %vm613, %v576, %v577
      %v650 = vsel %vm613, %v575, %v576
      %v651 = vsel %vm613, %v574, %v575
      %v652 = vsel %vm613, %v573, %v574
      %v653 = vsel %vm613, %v572, %v573
      %v654 = vsel %vm613, %v571, %v572
      %v655 = vsel %vm613, %v570, %v571
      %v656 = vsel %vm613, %v569, %v570
      %v657 = vsel %vm613, %v568, %v569
      %v658 = vsel %vm613, %v567, %v568
      %v659 = vsel %vm613, %v566, %v567
      %v660 = vsel %vm613, %v565, %v566
      %v661 = vsel %vm613, %v564, %v565
      %v662 = vsel %vm613, %v563, %v564
      %v663 = vsel %vm613, %v562, %v563
      %v664 = vsel %vm613, %v561, %v562
      %v665 = vsel %vm613, %v560, %v561
      %v666 = vsel %vm613, %v559, %v560
      %v667 = vsel %vm613, %v558, %v559
      %v668 = vsel %vm613, %v557, %v558
      %v669 = vsel %vm613, %v556, %v557
      %v670 = vsel %vm613, %v555, %v556
      %v671 = vsel %vm613, %v554, %v555
      %v672 = vsel %vm613, %v553, %v554
      %v673 = vsel %vm613, %v552, %v553
      %v674 = vsel %vm613, %v551, %v552
      %v675 = vsel %vm613, %v550, %v551
      %v676 = vsel %vm613, %v549, %v550
      %v677 = vsel %vm613, %v612, %v549
      %v678 = vsel %vm421, 0.0, %v677
      %v679 = vsel %vm422, 0.0, %v676
      %v680 = vsel %vm423, 0.0, %v675
      %v681 = vsel %vm424, 0.0, %v674
      %v682 = vsel %vm425, 0.0, %v673
      %v683 = vsel %vm426, 0.0, %v672
      %v684 = vsel %vm427, 0.0, %v671
      %v685 = vsel %vm428, 0.0, %v670
      %v686 = vsel %vm429, 0.0, %v669
      %v687 = vsel %vm430, 0.0, %v668
      %v688 = vsel %vm431, 0.0, %v667
      %v689 = vsel %vm432, 0.0, %v666
      %v690 = vsel %vm433, 0.0, %v665
      %v691 = vsel %vm434, 0.0, %v664
      %v692 = vsel %vm435, 0.0, %v663
      %v693 = vsel %vm436, 0.0, %v662
      %v694 = vsel %vm437, 0.0, %v661
      %v695 = vsel %vm438, 0.0, %v660
      %v696 = vsel %vm439, 0.0, %v659
      %v697 = vsel %vm440, 0.0, %v658
      %v698 = vsel %vm441, 0.0, %v657
      %v699 = vsel %vm442, 0.0, %v656
      %v700 = vsel %vm443, 0.0, %v655
      %v701 = vsel %vm444, 0.0, %v654
      %v702 = vsel %vm445, 0.0, %v653
      %v703 = vsel %vm446, 0.0, %v652
      %v704 = vsel %vm447, 0.0, %v651
      %v705 = vsel %vm448, 0.0, %v650
      %v706 = vsel %vm449, 0.0, %v649
      %v707 = vsel %vm450, 0.0, %v648
      %v708 = vsel %vm451, 0.0, %v647
      %v709 = vsel %vm452, 0.0, %v646
      %v710 = vsel %vm453, 0.0, %v645
      %v711 = vsel %vm454, 0.0, %v644
      %v712 = vsel %vm455, 0.0, %v643
      %v713 = vsel %vm456, 0.0, %v642
      %v714 = vsel %vm457, 0.0, %v641
      %v715 = vsel %vm458, 0.0, %v640
      %v716 = vsel %vm459, 0.0, %v639
      %v717 = vsel %vm460, 0.0, %v638
      %v718 = vsel %vm461, 0.0, %v637
      %v719 = vsel %vm462, 0.0, %v636
      %v720 = vsel %vm463, 0.0, %v635
      %v721 = vsel %vm464, 0.0, %v634
      %v722 = vsel %vm465, 0.0, %v633
      %v723 = vsel %vm466, 0.0, %v632
      %v724 = vsel %vm467, 0.0, %v631
      %v725 = vsel %vm468, 0.0, %v630
      %v726 = vsel %vm469, 0.0, %v629
      %v727 = vsel %vm470, 0.0, %v628
      %v728 = vsel %vm471, 0.0, %v627
      %v729 = vsel %vm472, 0.0, %v626
      %v730 = vsel %vm473, 0.0, %v625
      %v731 = vsel %vm474, 0.0, %v624
      %v732 = vsel %vm475, 0.0, %v623
      %v733 = vsel %vm476, 0.0, %v622
      %v734 = vsel %vm477, 0.0, %v621
      %v735 = vsel %vm478, 0.0, %v620
      %v736 = vsel %vm479, 0.0, %v619
      %v737 = vsel %vm480, 0.0, %v618
      %v738 = vsel %vm481, 0.0, %v617
      %v739 = vsel %vm482, 0.0, %v616
      %v740 = vsel %vm483, 0.0, %v615
      %v741 = vsel %vm484, 0.0, %v614
      %v742 = vrot.slane %v228, 1
      %v743 = vrot.slane %v229, 1
      %v744 = vrot.slane %v230, 1
      %v745 = vrot.slane %v231, 1
      %v746 = vrot.slane %v232, 1
      %v747 = vrot.slane %v233, 1
      %v748 = vrot.slane %v234, 1
      %v749 = vrot.slane %v235, 1
      %v750 = vrot.slane %v236, 1
      %v751 = vrot.slane %v237, 1
      %v752 = vrot.slane %v238, 1
      %v753 = vrot.slane %v239, 1
      %v754 = vrot.slane %v240, 1
      %v755 = vrot.slane %v241, 1
      %v756 = vrot.slane %v242, 1
      %v757 = vrot.slane %v243, 1
      %v758 = vrot.slane %v244, 1
      %v759 = vrot.slane %v245, 1
      %v760 = vrot.slane %v246, 1
      %v761 = vrot.slane %v247, 1
      %v762 = vrot.slane %v248, 1
      %v763 = vrot.slane %v249, 1
      %v764 = vrot.slane %v250, 1
      %v765 = vrot.slane %v251, 1
      %v766 = vrot.slane %v252, 1
      %v767 = vrot.slane %v253, 1
      %v768 = vrot.slane %v254, 1
      %v769 = vrot.slane %v255, 1
      %v770 = vrot.slane %v256, 1
      %v771 = vrot.slane %v257, 1
      %v772 = vrot.slane %v258, 1
      %v773 = vrot.slane %v259, 1
      %v774 = vrot.slane %v260, 1
      %v775 = vrot.slane %v261, 1
      %v776 = vrot.slane %v262, 1
      %v777 = vrot.slane %v263, 1
      %v778 = vrot.slane %v264, 1
      %v779 = vrot.slane %v265, 1
      %v780 = vrot.slane %v266, 1
      %v781 = vrot.slane %v267, 1
      %v782 = vrot.slane %v268, 1
      %v783 = vrot.slane %v269, 1
      %v784 = vrot.slane %v270, 1
      %v785 = vrot.slane %v271, 1
      %v786 = vrot.slane %v272, 1
      %v787 = vrot.slane %v273, 1
      %v788 = vrot.slane %v274, 1
      %v789 = vrot.slane %v275, 1
      %v790 = vrot.slane %v276, 1
      %v791 = vrot.slane %v277, 1
      %v792 = vrot.slane %v278, 1
      %v793 = vrot.slane %v279, 1
      %v794 = vrot.slane %v280, 1
      %v795 = vrot.slane %v281, 1
      %v796 = vrot.slane %v282, 1
      %v797 = vrot.slane %v283, 1
      %v798 = vrot.slane %v284, 1
      %v799 = vrot.slane %v285, 1
      %v800 = vrot.slane %v286, 1
      %v801 = vrot.slane %v287, 1
      %v802 = vrot.slane %v288, 1
      %v803 = vrot.slane %v289, 1
      %v804 = vrot.slane %v290, 1
      %v805 = vrot.slane %v291, 1
      %vm806 = vcmp.lt.s32.totalorder %v293, 7
      %v807 = vsel %vm806, %v804, %v805
      %v808 = vsel %vm806, %v803, %v804
      %v809 = vsel %vm806, %v802, %v803
      %v810 = vsel %vm806, %v801, %v802
      %v811 = vsel %vm806, %v800, %v801
      %v812 = vsel %vm806, %v799, %v800
      %v813 = vsel %vm806, %v798, %v799
      %v814 = vsel %vm806, %v797, %v798
      %v815 = vsel %vm806, %v796, %v797
      %v816 = vsel %vm806, %v795, %v796
      %v817 = vsel %vm806, %v794, %v795
      %v818 = vsel %vm806, %v793, %v794
      %v819 = vsel %vm806, %v792, %v793
      %v820 = vsel %vm806, %v791, %v792
      %v821 = vsel %vm806, %v790, %v791
      %v822 = vsel %vm806, %v789, %v790
      %v823 = vsel %vm806, %v788, %v789
      %v824 = vsel %vm806, %v787, %v788
      %v825 = vsel %vm806, %v786, %v787
      %v826 = vsel %vm806, %v785, %v786
      %v827 = vsel %vm806, %v784, %v785
      %v828 = vsel %vm806, %v783, %v784
      %v829 = vsel %vm806, %v782, %v783
      %v830 = vsel %vm806, %v781, %v782
      %v831 = vsel %vm806, %v780, %v781
      %v832 = vsel %vm806, %v779, %v780
      %v833 = vsel %vm806, %v778, %v779
      %v834 = vsel %vm806, %v777, %v778
      %v835 = vsel %vm806, %v776, %v777
      %v836 = vsel %vm806, %v775, %v776
      %v837 = vsel %vm806, %v774, %v775
      %v838 = vsel %vm806, %v773, %v774
      %v839 = vsel %vm806, %v772, %v773
      %v840 = vsel %vm806, %v771, %v772
      %v841 = vsel %vm806, %v770, %v771
      %v842 = vsel %vm806, %v769, %v770
      %v843 = vsel %vm806, %v768, %v769
      %v844 = vsel %vm806, %v767, %v768
      %v845 = vsel %vm806, %v766, %v767
      %v846 = vsel %vm806, %v765, %v766
      %v847 = vsel %vm806, %v764, %v765
      %v848 = vsel %vm806, %v763, %v764
      %v849 = vsel %vm806, %v762, %v763
      %v850 = vsel %vm806, %v761, %v762
      %v851 = vsel %vm806, %v760, %v761
      %v852 = vsel %vm806, %v759, %v760
      %v853 = vsel %vm806, %v758, %v759
      %v854 = vsel %vm806, %v757, %v758
      %v855 = vsel %vm806, %v756, %v757
      %v856 = vsel %vm806, %v755, %v756
      %v857 = vsel %vm806, %v754, %v755
      %v858 = vsel %vm806, %v753, %v754
      %v859 = vsel %vm806, %v752, %v753
      %v860 = vsel %vm806, %v751, %v752
      %v861 = vsel %vm806, %v750, %v751
      %v862 = vsel %vm806, %v749, %v750
      %v863 = vsel %vm806, %v748, %v749
      %v864 = vsel %vm806, %v747, %v748
      %v865 = vsel %vm806, %v746, %v747
      %v866 = vsel %vm806, %v745, %v746
      %v867 = vsel %vm806, %v744, %v745
      %v868 = vsel %vm806, %v743, %v744
      %v869 = vsel %vm806, %v742, %v743
      %v870 = vsel %vm806, %v805, %v742
      %v871 = vsel %vm485, 0.0, %v869
      %v872 = vsel %vm486, 0.0, %v868
      %v873 = vsel %vm487, 0.0, %v867
      %v874 = vsel %vm488, 0.0, %v866
      %v875 = vsel %vm489, 0.0, %v865
      %v876 = vsel %vm490, 0.0, %v864
      %v877 = vsel %vm491, 0.0, %v863
      %v878 = vsel %vm492, 0.0, %v862
      %v879 = vsel %vm493, 0.0, %v861
      %v880 = vsel %vm494, 0.0, %v860
      %v881 = vsel %vm495, 0.0, %v859
      %v882 = vsel %vm496, 0.0, %v858
      %v883 = vsel %vm497, 0.0, %v857
      %v884 = vsel %vm498, 0.0, %v856
      %v885 = vsel %vm499, 0.0, %v855
      %v886 = vsel %vm500, 0.0, %v854
      %v887 = vsel %vm501, 0.0, %v853
      %v888 = vsel %vm502, 0.0, %v852
      %v889 = vsel %vm503, 0.0, %v851
      %v890 = vsel %vm504, 0.0, %v850
      %v891 = vsel %vm505, 0.0, %v849
      %v892 = vsel %vm506, 0.0, %v848
      %v893 = vsel %vm507, 0.0, %v847
      %v894 = vsel %vm508, 0.0, %v846
      %v895 = vsel %vm509, 0.0, %v845
      %v896 = vsel %vm510, 0.0, %v844
      %v897 = vsel %vm511, 0.0, %v843
      %v898 = vsel %vm512, 0.0, %v842
      %v899 = vsel %vm513, 0.0, %v841
      %v900 = vsel %vm514, 0.0, %v840
      %v901 = vsel %vm515, 0.0, %v839
      %v902 = vsel %vm516, 0.0, %v838
      %v903 = vsel %vm517, 0.0, %v837
      %v904 = vsel %vm518, 0.0, %v836
      %v905 = vsel %vm519, 0.0, %v835
      %v906 = vsel %vm520, 0.0, %v834
      %v907 = vsel %vm521, 0.0, %v833
      %v908 = vsel %vm522, 0.0, %v832
      %v909 = vsel %vm523, 0.0, %v831
      %v910 = vsel %vm524, 0.0, %v830
      %v911 = vsel %vm525, 0.0, %v829
      %v912 = vsel %vm526, 0.0, %v828
      %v913 = vsel %vm527, 0.0, %v827
      %v914 = vsel %vm528, 0.0, %v826
      %v915 = vsel %vm529, 0.0, %v825
      %v916 = vsel %vm530, 0.0, %v824
      %v917 = vsel %vm531, 0.0, %v823
      %v918 = vsel %vm532, 0.0, %v822
      %v919 = vsel %vm533, 0.0, %v821
      %v920 = vsel %vm534, 0.0, %v820
      %v921 = vsel %vm535, 0.0, %v819
      %v922 = vsel %vm536, 0.0, %v818
      %v923 = vsel %vm537, 0.0, %v817
      %v924 = vsel %vm538, 0.0, %v816
      %v925 = vsel %vm539, 0.0, %v815
      %v926 = vsel %vm540, 0.0, %v814
      %v927 = vsel %vm541, 0.0, %v813
      %v928 = vsel %vm542, 0.0, %v812
      %v929 = vsel %vm543, 0.0, %v811
      %v930 = vsel %vm544, 0.0, %v810
      %v931 = vsel %vm545, 0.0, %v809
      %v932 = vsel %vm546, 0.0, %v808
      %v933 = vsel %vm547, 0.0, %v807
      %v934 = vsel %vm548, 0.0, %v870
      %999 = vrot.lane.b32.xlu0 %v228, 32
      %v1000 = vpop.permute.xlu0 %999
      %1001 = vrot.lane.b32.xlu0 %v229, 32
      %v1002 = vpop.permute.xlu0 %1001
      %1003 = vrot.lane.b32.xlu0 %v230, 32
      %v1004 = vpop.permute.xlu0 %1003
      %1005 = vrot.lane.b32.xlu0 %v231, 32
      %v1006 = vpop.permute.xlu0 %1005
      %1007 = vrot.lane.b32.xlu0 %v232, 32
      %v1008 = vpop.permute.xlu0 %1007
      %1009 = vrot.lane.b32.xlu0 %v233, 32
      %v1010 = vpop.permute.xlu0 %1009
      %1011 = vrot.lane.b32.xlu0 %v234, 32
      %v1012 = vpop.permute.xlu0 %1011
      %1013 = vrot.lane.b32.xlu0 %v235, 32
      %v1014 = vpop.permute.xlu0 %1013
      %1015 = vrot.lane.b32.xlu0 %v236, 32
      %v1016 = vpop.permute.xlu0 %1015
      %1017 = vrot.lane.b32.xlu0 %v237, 32
      %v1018 = vpop.permute.xlu0 %1017
      %1019 = vrot.lane.b32.xlu0 %v238, 32
      %v1020 = vpop.permute.xlu0 %1019
      %1021 = vrot.lane.b32.xlu0 %v239, 32
      %v1022 = vpop.permute.xlu0 %1021
      %1023 = vrot.lane.b32.xlu0 %v240, 32
      %v1024 = vpop.permute.xlu0 %1023
      %1025 = vrot.lane.b32.xlu0 %v241, 32
      %v1026 = vpop.permute.xlu0 %1025
      %1027 = vrot.lane.b32.xlu0 %v242, 32
      %v1028 = vpop.permute.xlu0 %1027
      %1029 = vrot.lane.b32.xlu0 %v243, 32
      %v1030 = vpop.permute.xlu0 %1029
      %1031 = vrot.lane.b32.xlu0 %v244, 32
      %v1032 = vpop.permute.xlu0 %1031
      %1033 = vrot.lane.b32.xlu0 %v245, 32
      %v1034 = vpop.permute.xlu0 %1033
      %1035 = vrot.lane.b32.xlu0 %v246, 32
      %v1036 = vpop.permute.xlu0 %1035
      %1037 = vrot.lane.b32.xlu0 %v247, 32
      %v1038 = vpop.permute.xlu0 %1037
      %1039 = vrot.lane.b32.xlu0 %v248, 32
      %v1040 = vpop.permute.xlu0 %1039
      %1041 = vrot.lane.b32.xlu0 %v249, 32
      %v1042 = vpop.permute.xlu0 %1041
      %1043 = vrot.lane.b32.xlu0 %v250, 32
      %v1044 = vpop.permute.xlu0 %1043
      %1045 = vrot.lane.b32.xlu0 %v251, 32
      %v1046 = vpop.permute.xlu0 %1045
      %1047 = vrot.lane.b32.xlu0 %v252, 32
      %v1048 = vpop.permute.xlu0 %1047
      %1049 = vrot.lane.b32.xlu0 %v253, 32
      %v1050 = vpop.permute.xlu0 %1049
      %1051 = vrot.lane.b32.xlu0 %v254, 32
      %v1052 = vpop.permute.xlu0 %1051
      %1053 = vrot.lane.b32.xlu0 %v255, 32
      %v1054 = vpop.permute.xlu0 %1053
      %1055 = vrot.lane.b32.xlu0 %v256, 32
      %v1056 = vpop.permute.xlu0 %1055
      %1057 = vrot.lane.b32.xlu0 %v257, 32
      %v1058 = vpop.permute.xlu0 %1057
      %1059 = vrot.lane.b32.xlu0 %v258, 32
      %v1060 = vpop.permute.xlu0 %1059
      %1061 = vrot.lane.b32.xlu0 %v259, 32
      %v1062 = vpop.permute.xlu0 %1061
      %1063 = vrot.lane.b32.xlu0 %v260, 32
      %v1064 = vpop.permute.xlu0 %1063
      %1065 = vrot.lane.b32.xlu0 %v261, 32
      %v1066 = vpop.permute.xlu0 %1065
      %1067 = vrot.lane.b32.xlu0 %v262, 32
      %v1068 = vpop.permute.xlu0 %1067
      %1069 = vrot.lane.b32.xlu0 %v263, 32
      %v1070 = vpop.permute.xlu0 %1069
      %1071 = vrot.lane.b32.xlu0 %v264, 32
      %v1072 = vpop.permute.xlu0 %1071
      %1073 = vrot.lane.b32.xlu0 %v265, 32
      %v1074 = vpop.permute.xlu0 %1073
      %1075 = vrot.lane.b32.xlu0 %v266, 32
      %v1076 = vpop.permute.xlu0 %1075
      %1077 = vrot.lane.b32.xlu0 %v267, 32
      %v1078 = vpop.permute.xlu0 %1077
      %1079 = vrot.lane.b32.xlu0 %v268, 32
      %v1080 = vpop.permute.xlu0 %1079
      %1081 = vrot.lane.b32.xlu0 %v269, 32
      %v1082 = vpop.permute.xlu0 %1081
      %1083 = vrot.lane.b32.xlu0 %v270, 32
      %v1084 = vpop.permute.xlu0 %1083
      %1085 = vrot.lane.b32.xlu0 %v271, 32
      %v1086 = vpop.permute.xlu0 %1085
      %1087 = vrot.lane.b32.xlu0 %v272, 32
      %v1088 = vpop.permute.xlu0 %1087
      %1089 = vrot.lane.b32.xlu0 %v273, 32
      %v1090 = vpop.permute.xlu0 %1089
      %1091 = vrot.lane.b32.xlu0 %v274, 32
      %v1092 = vpop.permute.xlu0 %1091
      %1093 = vrot.lane.b32.xlu0 %v275, 32
      %v1094 = vpop.permute.xlu0 %1093
      %1095 = vrot.lane.b32.xlu0 %v276, 32
      %v1096 = vpop.permute.xlu0 %1095
      %1097 = vrot.lane.b32.xlu0 %v277, 32
      %v1098 = vpop.permute.xlu0 %1097
      %1099 = vrot.lane.b32.xlu0 %v278, 32
      %v1100 = vpop.permute.xlu0 %1099
      %1101 = vrot.lane.b32.xlu0 %v279, 32
      %v1102 = vpop.permute.xlu0 %1101
      %1103 = vrot.lane.b32.xlu0 %v280, 32
      %v1104 = vpop.permute.xlu0 %1103
      %1105 = vrot.lane.b32.xlu0 %v281, 32
      %v1106 = vpop.permute.xlu0 %1105
      %1107 = vrot.lane.b32.xlu0 %v282, 32
      %v1108 = vpop.permute.xlu0 %1107
      %1109 = vrot.lane.b32.xlu0 %v283, 32
      %v1110 = vpop.permute.xlu0 %1109
      %1111 = vrot.lane.b32.xlu0 %v284, 32
      %v1112 = vpop.permute.xlu0 %1111
      %1113 = vrot.lane.b32.xlu0 %v285, 32
      %v1114 = vpop.permute.xlu0 %1113
      %1115 = vrot.lane.b32.xlu0 %v286, 32
      %v1116 = vpop.permute.xlu0 %1115
      %1117 = vrot.lane.b32.xlu0 %v287, 32
      %v1118 = vpop.permute.xlu0 %1117
      %1119 = vrot.lane.b32.xlu0 %v288, 32
      %v1120 = vpop.permute.xlu0 %1119
      %1121 = vrot.lane.b32.xlu0 %v289, 32
      %v1122 = vpop.permute.xlu0 %1121
      %1123 = vrot.lane.b32.xlu0 %v290, 32
      %v1124 = vpop.permute.xlu0 %1123
      %1125 = vrot.lane.b32.xlu0 %v291, 32
      %v1126 = vpop.permute.xlu0 %1125
      %1255 = vrot.lane.b32.xlu0 %v871, 64
      %v1256 = vpop.permute.xlu0 %1255
      %1257 = vrot.lane.b32.xlu0 %v872, 64
      %v1258 = vpop.permute.xlu0 %1257
      %1259 = vrot.lane.b32.xlu0 %v873, 64
      %v1260 = vpop.permute.xlu0 %1259
      %1261 = vrot.lane.b32.xlu0 %v874, 64
      %v1262 = vpop.permute.xlu0 %1261
      %1263 = vrot.lane.b32.xlu0 %v875, 64
      %v1264 = vpop.permute.xlu0 %1263
      %1265 = vrot.lane.b32.xlu0 %v876, 64
      %v1266 = vpop.permute.xlu0 %1265
      %1267 = vrot.lane.b32.xlu0 %v877, 64
      %v1268 = vpop.permute.xlu0 %1267
      %1269 = vrot.lane.b32.xlu0 %v878, 64
      %v1270 = vpop.permute.xlu0 %1269
      %1271 = vrot.lane.b32.xlu0 %v879, 64
      %v1272 = vpop.permute.xlu0 %1271
      %1273 = vrot.lane.b32.xlu0 %v880, 64
      %v1274 = vpop.permute.xlu0 %1273
      %1275 = vrot.lane.b32.xlu0 %v881, 64
      %v1276 = vpop.permute.xlu0 %1275
      %1277 = vrot.lane.b32.xlu0 %v882, 64
      %v1278 = vpop.permute.xlu0 %1277
      %1279 = vrot.lane.b32.xlu0 %v883, 64
      %v1280 = vpop.permute.xlu0 %1279
      %1281 = vrot.lane.b32.xlu0 %v884, 64
      %v1282 = vpop.permute.xlu0 %1281
      %1283 = vrot.lane.b32.xlu0 %v885, 64
      %v1284 = vpop.permute.xlu0 %1283
      %1285 = vrot.lane.b32.xlu0 %v886, 64
      %v1286 = vpop.permute.xlu0 %1285
      %1287 = vrot.lane.b32.xlu0 %v887, 64
      %v1288 = vpop.permute.xlu0 %1287
      %1289 = vrot.lane.b32.xlu0 %v888, 64
      %v1290 = vpop.permute.xlu0 %1289
      %1291 = vrot.lane.b32.xlu0 %v889, 64
      %v1292 = vpop.permute.xlu0 %1291
      %1293 = vrot.lane.b32.xlu0 %v890, 64
      %v1294 = vpop.permute.xlu0 %1293
      %1295 = vrot.lane.b32.xlu0 %v891, 64
      %v1296 = vpop.permute.xlu0 %1295
      %1297 = vrot.lane.b32.xlu0 %v892, 64
      %v1298 = vpop.permute.xlu0 %1297
      %1299 = vrot.lane.b32.xlu0 %v893, 64
      %v1300 = vpop.permute.xlu0 %1299
      %1301 = vrot.lane.b32.xlu0 %v894, 64
      %v1302 = vpop.permute.xlu0 %1301
      %1303 = vrot.lane.b32.xlu0 %v895, 64
      %v1304 = vpop.permute.xlu0 %1303
      %1305 = vrot.lane.b32.xlu0 %v896, 64
      %v1306 = vpop.permute.xlu0 %1305
      %1307 = vrot.lane.b32.xlu0 %v897, 64
      %v1308 = vpop.permute.xlu0 %1307
      %1309 = vrot.lane.b32.xlu0 %v898, 64
      %v1310 = vpop.permute.xlu0 %1309
      %1311 = vrot.lane.b32.xlu0 %v899, 64
      %v1312 = vpop.permute.xlu0 %1311
      %1313 = vrot.lane.b32.xlu0 %v900, 64
      %v1314 = vpop.permute.xlu0 %1313
      %1315 = vrot.lane.b32.xlu0 %v901, 64
      %v1316 = vpop.permute.xlu0 %1315
      %1317 = vrot.lane.b32.xlu0 %v902, 64
      %v1318 = vpop.permute.xlu0 %1317
      %1319 = vrot.lane.b32.xlu0 %v903, 64
      %v1320 = vpop.permute.xlu0 %1319
      %1321 = vrot.lane.b32.xlu0 %v904, 64
      %v1322 = vpop.permute.xlu0 %1321
      %1323 = vrot.lane.b32.xlu0 %v905, 64
      %v1324 = vpop.permute.xlu0 %1323
      %1325 = vrot.lane.b32.xlu0 %v906, 64
      %v1326 = vpop.permute.xlu0 %1325
      %1327 = vrot.lane.b32.xlu0 %v907, 64
      %v1328 = vpop.permute.xlu0 %1327
      %1329 = vrot.lane.b32.xlu0 %v908, 64
      %v1330 = vpop.permute.xlu0 %1329
      %1331 = vrot.lane.b32.xlu0 %v909, 64
      %v1332 = vpop.permute.xlu0 %1331
      %1333 = vrot.lane.b32.xlu0 %v910, 64
      %v1334 = vpop.permute.xlu0 %1333
      %1335 = vrot.lane.b32.xlu0 %v911, 64
      %v1336 = vpop.permute.xlu0 %1335
      %1337 = vrot.lane.b32.xlu0 %v912, 64
      %v1338 = vpop.permute.xlu0 %1337
      %1339 = vrot.lane.b32.xlu0 %v913, 64
      %v1340 = vpop.permute.xlu0 %1339
      %1341 = vrot.lane.b32.xlu0 %v914, 64
      %v1342 = vpop.permute.xlu0 %1341
      %1343 = vrot.lane.b32.xlu0 %v915, 64
      %v1344 = vpop.permute.xlu0 %1343
      %1345 = vrot.lane.b32.xlu0 %v916, 64
      %v1346 = vpop.permute.xlu0 %1345
      %1347 = vrot.lane.b32.xlu0 %v917, 64
      %v1348 = vpop.permute.xlu0 %1347
      %1349 = vrot.lane.b32.xlu0 %v918, 64
      %v1350 = vpop.permute.xlu0 %1349
      %1351 = vrot.lane.b32.xlu0 %v919, 64
      %v1352 = vpop.permute.xlu0 %1351
      %1353 = vrot.lane.b32.xlu0 %v920, 64
      %v1354 = vpop.permute.xlu0 %1353
      %1355 = vrot.lane.b32.xlu0 %v921, 64
      %v1356 = vpop.permute.xlu0 %1355
      %1357 = vrot.lane.b32.xlu0 %v922, 64
      %v1358 = vpop.permute.xlu0 %1357
      %1359 = vrot.lane.b32.xlu0 %v923, 64
      %v1360 = vpop.permute.xlu0 %1359
      %1361 = vrot.lane.b32.xlu0 %v924, 64
      %v1362 = vpop.permute.xlu0 %1361
      %1363 = vrot.lane.b32.xlu0 %v925, 64
      %v1364 = vpop.permute.xlu0 %1363
      %1365 = vrot.lane.b32.xlu0 %v926, 64
      %v1366 = vpop.permute.xlu0 %1365
      %1367 = vrot.lane.b32.xlu0 %v927, 64
      %v1368 = vpop.permute.xlu0 %1367
      %1369 = vrot.lane.b32.xlu0 %v928, 64
      %v1370 = vpop.permute.xlu0 %1369
      %1371 = vrot.lane.b32.xlu0 %v929, 64
      %v1372 = vpop.permute.xlu0 %1371
      %1373 = vrot.lane.b32.xlu0 %v930, 64
      %v1374 = vpop.permute.xlu0 %1373
      %1375 = vrot.lane.b32.xlu0 %v931, 64
      %v1376 = vpop.permute.xlu0 %1375
      %1377 = vrot.lane.b32.xlu0 %v932, 64
      %v1378 = vpop.permute.xlu0 %1377
      %1379 = vrot.lane.b32.xlu0 %v933, 64
      %v1380 = vpop.permute.xlu0 %1379
      %1381 = vrot.lane.b32.xlu0 %v934, 64
      %v1382 = vpop.permute.xlu0 %1381
      %vm1447 = vcmask 261120
      %v1448 = vsel %vm1447, %v678, %v1000
      %v1449 = vsel %vm1447, %v679, %v1002
      %v1450 = vsel %vm1447, %v680, %v1004
      %v1451 = vsel %vm1447, %v681, %v1006
      %v1452 = vsel %vm1447, %v682, %v1008
      %v1453 = vsel %vm1447, %v683, %v1010
      %v1454 = vsel %vm1447, %v684, %v1012
      %v1455 = vsel %vm1447, %v685, %v1014
      %v1456 = vsel %vm1447, %v686, %v1016
      %v1457 = vsel %vm1447, %v687, %v1018
      %v1458 = vsel %vm1447, %v688, %v1020
      %v1459 = vsel %vm1447, %v689, %v1022
      %v1460 = vsel %vm1447, %v690, %v1024
      %v1461 = vsel %vm1447, %v691, %v1026
      %v1462 = vsel %vm1447, %v692, %v1028
      %v1463 = vsel %vm1447, %v693, %v1030
      %v1464 = vsel %vm1447, %v694, %v1032
      %v1465 = vsel %vm1447, %v695, %v1034
      %v1466 = vsel %vm1447, %v696, %v1036
      %v1467 = vsel %vm1447, %v697, %v1038
      %v1468 = vsel %vm1447, %v698, %v1040
      %v1469 = vsel %vm1447, %v699, %v1042
      %v1470 = vsel %vm1447, %v700, %v1044
      %v1471 = vsel %vm1447, %v701, %v1046
      %v1472 = vsel %vm1447, %v702, %v1048
      %v1473 = vsel %vm1447, %v703, %v1050
      %v1474 = vsel %vm1447, %v704, %v1052
      %v1475 = vsel %vm1447, %v705, %v1054
      %v1476 = vsel %vm1447, %v706, %v1056
      %v1477 = vsel %vm1447, %v707, %v1058
      %v1478 = vsel %vm1447, %v708, %v1060
      %v1479 = vsel %vm1447, %v709, %v1062
      %v1480 = vsel %vm1447, %v710, %v1064
      %v1481 = vsel %vm1447, %v711, %v1066
      %v1482 = vsel %vm1447, %v712, %v1068
      %v1483 = vsel %vm1447, %v713, %v1070
      %v1484 = vsel %vm1447, %v714, %v1072
      %v1485 = vsel %vm1447, %v715, %v1074
      %v1486 = vsel %vm1447, %v716, %v1076
      %v1487 = vsel %vm1447, %v717, %v1078
      %v1488 = vsel %vm1447, %v718, %v1080
      %v1489 = vsel %vm1447, %v719, %v1082
      %v1490 = vsel %vm1447, %v720, %v1084
      %v1491 = vsel %vm1447, %v721, %v1086
      %v1492 = vsel %vm1447, %v722, %v1088
      %v1493 = vsel %vm1447, %v723, %v1090
      %v1494 = vsel %vm1447, %v724, %v1092
      %v1495 = vsel %vm1447, %v725, %v1094
      %v1496 = vsel %vm1447, %v726, %v1096
      %v1497 = vsel %vm1447, %v727, %v1098
      %v1498 = vsel %vm1447, %v728, %v1100
      %v1499 = vsel %vm1447, %v729, %v1102
      %v1500 = vsel %vm1447, %v730, %v1104
      %v1501 = vsel %vm1447, %v731, %v1106
      %v1502 = vsel %vm1447, %v732, %v1108
      %v1503 = vsel %vm1447, %v733, %v1110
      %v1504 = vsel %vm1447, %v734, %v1112
      %v1505 = vsel %vm1447, %v735, %v1114
      %v1506 = vsel %vm1447, %v736, %v1116
      %v1507 = vsel %vm1447, %v737, %v1118
      %v1508 = vsel %vm1447, %v738, %v1120
      %v1509 = vsel %vm1447, %v739, %v1122
      %v1510 = vsel %vm1447, %v740, %v1124
      %v1511 = vsel %vm1447, %v741, %v1126
      %vm1512 = vcmask 523264
      %v1513 = vsel %vm1512, %v1448, %v1256
      %v1514 = vsel %vm1512, %v1449, %v1258
      %v1515 = vsel %vm1512, %v1450, %v1260
      %v1516 = vsel %vm1512, %v1451, %v1262
      %v1517 = vsel %vm1512, %v1452, %v1264
      %v1518 = vsel %vm1512, %v1453, %v1266
      %v1519 = vsel %vm1512, %v1454, %v1268
      %v1520 = vsel %vm1512, %v1455, %v1270
      %v1521 = vsel %vm1512, %v1456, %v1272
      %v1522 = vsel %vm1512, %v1457, %v1274
      %v1523 = vsel %vm1512, %v1458, %v1276
      %v1524 = vsel %vm1512, %v1459, %v1278
      %v1525 = vsel %vm1512, %v1460, %v1280
      %v1526 = vsel %vm1512, %v1461, %v1282
      %v1527 = vsel %vm1512, %v1462, %v1284
      %v1528 = vsel %vm1512, %v1463, %v1286
      %v1529 = vsel %vm1512, %v1464, %v1288
      %v1530 = vsel %vm1512, %v1465, %v1290
      %v1531 = vsel %vm1512, %v1466, %v1292
      %v1532 = vsel %vm1512, %v1467, %v1294
      %v1533 = vsel %vm1512, %v1468, %v1296
      %v1534 = vsel %vm1512, %v1469, %v1298
      %v1535 = vsel %vm1512, %v1470, %v1300
      %v1536 = vsel %vm1512, %v1471, %v1302
      %v1537 = vsel %vm1512, %v1472, %v1304
      %v1538 = vsel %vm1512, %v1473, %v1306
      %v1539 = vsel %vm1512, %v1474, %v1308
      %v1540 = vsel %vm1512, %v1475, %v1310
      %v1541 = vsel %vm1512, %v1476, %v1312
      %v1542 = vsel %vm1512, %v1477, %v1314
      %v1543 = vsel %vm1512, %v1478, %v1316
      %v1544 = vsel %vm1512, %v1479, %v1318
      %v1545 = vsel %vm1512, %v1480, %v1320
      %v1546 = vsel %vm1512, %v1481, %v1322
      %v1547 = vsel %vm1512, %v1482, %v1324
      %v1548 = vsel %vm1512, %v1483, %v1326
      %v1549 = vsel %vm1512, %v1484, %v1328
      %v1550 = vsel %vm1512, %v1485, %v1330
      %v1551 = vsel %vm1512, %v1486, %v1332
      %v1552 = vsel %vm1512, %v1487, %v1334
      %v1553 = vsel %vm1512, %v1488, %v1336
      %v1554 = vsel %vm1512, %v1489, %v1338
      %v1555 = vsel %vm1512, %v1490, %v1340
      %v1556 = vsel %vm1512, %v1491, %v1342
      %v1557 = vsel %vm1512, %v1492, %v1344
      %v1558 = vsel %vm1512, %v1493, %v1346
      %v1559 = vsel %vm1512, %v1494, %v1348
      %v1560 = vsel %vm1512, %v1495, %v1350
      %v1561 = vsel %vm1512, %v1496, %v1352
      %v1562 = vsel %vm1512, %v1497, %v1354
      %v1563 = vsel %vm1512, %v1498, %v1356
      %v1564 = vsel %vm1512, %v1499, %v1358
      %v1565 = vsel %vm1512, %v1500, %v1360
      %v1566 = vsel %vm1512, %v1501, %v1362
      %v1567 = vsel %vm1512, %v1502, %v1364
      %v1568 = vsel %vm1512, %v1503, %v1366
      %v1569 = vsel %vm1512, %v1504, %v1368
      %v1570 = vsel %vm1512, %v1505, %v1370
      %v1571 = vsel %vm1512, %v1506, %v1372
      %v1572 = vsel %vm1512, %v1507, %v1374
      %v1573 = vsel %vm1512, %v1508, %v1376
      %v1574 = vsel %vm1512, %v1509, %v1378
      %v1575 = vsel %vm1512, %v1510, %v1380
      %v1576 = vsel %vm1512, %v1511, %v1382
      %v1577 = vpack.c.bf16 %v1514, %v1513
      %v1578 = vpack.c.bf16 %v1516, %v1515
      %v1579 = vpack.c.bf16 %v1518, %v1517
      %v1580 = vpack.c.bf16 %v1520, %v1519
      %v1581 = vpack.c.bf16 %v1522, %v1521
      %v1582 = vpack.c.bf16 %v1524, %v1523
      %v1583 = vpack.c.bf16 %v1526, %v1525
      %v1584 = vpack.c.bf16 %v1528, %v1527
      %v1585 = vpack.c.bf16 %v1530, %v1529
      %v1586 = vpack.c.bf16 %v1532, %v1531
      %v1587 = vpack.c.bf16 %v1534, %v1533
      %v1588 = vpack.c.bf16 %v1536, %v1535
      %v1589 = vpack.c.bf16 %v1538, %v1537
      %v1590 = vpack.c.bf16 %v1540, %v1539
      %v1591 = vpack.c.bf16 %v1542, %v1541
      %v1592 = vpack.c.bf16 %v1544, %v1543
      %v1593 = vpack.c.bf16 %v1546, %v1545
      %v1594 = vpack.c.bf16 %v1548, %v1547
      %v1595 = vpack.c.bf16 %v1550, %v1549
      %v1596 = vpack.c.bf16 %v1552, %v1551
      %v1597 = vpack.c.bf16 %v1554, %v1553
      %v1598 = vpack.c.bf16 %v1556, %v1555
      %v1599 = vpack.c.bf16 %v1558, %v1557
      %v1600 = vpack.c.bf16 %v1560, %v1559
      %v1601 = vpack.c.bf16 %v1562, %v1561
      %v1602 = vpack.c.bf16 %v1564, %v1563
      %v1603 = vpack.c.bf16 %v1566, %v1565
      %v1604 = vpack.c.bf16 %v1568, %v1567
      %v1605 = vpack.c.bf16 %v1570, %v1569
      %v1606 = vpack.c.bf16 %v1572, %v1571
      %v1607 = vpack.c.bf16 %v1574, %v1573
      %v1608 = vpack.c.bf16 %v1576, %v1575
      %v1609 = vld [vmem:[%s1] sm:$0xf]
      %v1610 = vld [vmem:[%s1 + $0x4] sm:$0xf]
      %v1611 = vld [vmem:[%s1 + $0x8] sm:$0xf]
      %v1612 = vld [vmem:[%s1 + $0xc] sm:$0xf]
      %v1613 = vld [vmem:[%s1 + $0x10] sm:$0xf]
      %v1614 = vld [vmem:[%s1 + $0x14] sm:$0xf]
      %v1615 = vld [vmem:[%s1 + $0x18] sm:$0xf]
      %v1616 = vld [vmem:[%s1 + $0x1c] sm:$0xf]
      %v1617 = vld [vmem:[%s1 + $0x20] sm:$0xf]
      %v1618 = vld [vmem:[%s1 + $0x24] sm:$0xf]
      %v1619 = vld [vmem:[%s1 + $0x28] sm:$0xf]
      %v1620 = vld [vmem:[%s1 + $0x2c] sm:$0xf]
      %v1621 = vlaneseq
      %v1622 = vshrl.u32 %v1621, 7
      %v1623 = vsub.s32 0, %v1622
      %v1624 = vrot.slane %v226, %v1623
      %v1637 = vunpack.c.l.b16 %v1609
      %v1638 = vunpack.c.l.b16 %v1610
      %v1639 = vunpack.c.l.b16 %v1611
      %v1640 = vunpack.c.l.b16 %v1612
      %v1641 = vunpack.c.l.b16 %v1613
      %v1642 = vunpack.c.l.b16 %v1614
      %v1643 = vunpack.c.l.b16 %v1615
      %v1644 = vunpack.c.l.b16 %v1616
      %v1645 = vunpack.c.l.b16 %v1617
      %v1646 = vunpack.c.l.b16 %v1618
      %v1647 = vunpack.c.l.b16 %v1619
      %v1648 = vunpack.c.l.b16 %v1620
      %v1649 = vpack.c.b16 %v1638, %v1637
      %v1650 = vpack.c.b16 %v1640, %v1639
      %v1651 = vpack.c.b16 %v1642, %v1641
      %v1652 = vpack.c.b16 %v1644, %v1643
      %v1653 = vpack.c.b16 %v1646, %v1645
      %v1654 = vpack.c.b16 %v1648, %v1647
      %vm1661 = vcmask 785408
      %v1663 = vsel %vm1661, %v1577, 0
      %v1666 = vsel %vm1661, %v1578, 0
      %v1669 = vsel %vm1661, %v1579, 0
      %v1672 = vsel %vm1661, %v1580, 0
      %v1675 = vsel %vm1661, %v1581, 0
      %v1678 = vsel %vm1661, %v1582, 0
      %v1681 = vsel %vm1661, %v1583, 0
      %v1684 = vsel %vm1661, %v1584, 0
      %v1687 = vsel %vm1661, %v1585, 0
      %v1690 = vsel %vm1661, %v1586, 0
      %v1693 = vsel %vm1661, %v1587, 0
      %v1696 = vsel %vm1661, %v1588, 0
      %v1699 = vsel %vm1661, %v1589, 0
      %v1702 = vsel %vm1661, %v1590, 0
      %v1705 = vsel %vm1661, %v1591, 0
      %v1708 = vsel %vm1661, %v1592, 0
      %v1711 = vsel %vm1661, %v1593, 0
      %v1714 = vsel %vm1661, %v1594, 0
      %v1717 = vsel %vm1661, %v1595, 0
      %v1720 = vsel %vm1661, %v1596, 0
      %v1723 = vsel %vm1661, %v1597, 0
      %v1726 = vsel %vm1661, %v1598, 0
      %v1729 = vsel %vm1661, %v1599, 0
      %v1732 = vsel %vm1661, %v1600, 0
      %v1735 = vsel %vm1661, %v1601, 0
      %v1738 = vsel %vm1661, %v1602, 0
      %v1741 = vsel %vm1661, %v1603, 0
      %v1744 = vsel %vm1661, %v1604, 0
      %v1747 = vsel %vm1661, %v1605, 0
      %v1750 = vsel %vm1661, %v1606, 0
      %v1753 = vsel %vm1661, %v1607, 0
      %v1756 = vsel %vm1661, %v1608, 0
      %1758 = vmatprep.subr.bf16.mxu0 0
      %1759 = vmatpush1.bf16.msra.mxu0 %v1649
      %1760 = vmatprep.subr.bf16.mxu0 0
      %1761 = vmatpush1.bf16.msra.mxu0 %v1650
      %1762 = vmatprep.subr.bf16.mxu0 0
      %1763 = vmatpush1.bf16.msra.mxu0 %v1651
      %1764 = vmatprep.subr.bf16.mxu0 0
      %1765 = vmatpush1.bf16.msra.mxu0 %v1652
      %1766 = vmatprep.subr.bf16.mxu0 0
      %1767 = vmatpush1.bf16.msra.mxu0 %v1653
      %1768 = vmatprep.subr.bf16.mxu0 0
      %1769 = vmatpush1.bf16.msra.mxu0 %v1654
      %1770 = vmatprep.subr.bf16.mxu0 0
      %1771 = vmatpush1.bf16.msra.mxu0 0
      %1772 = vmatprep.subr.bf16.mxu0 0
      %1773 = vmatpush1.bf16.msra.mxu0 0
      %1774 = vmatprep.subr.bf16.mxu0 0
      %1775 = vmatpush1.bf16.msra.mxu0 0
      %1776 = vmatprep.subr.bf16.mxu0 0
      %1777 = vmatpush1.bf16.msra.mxu0 0
      %1778 = vmatprep.subr.bf16.mxu0 0
      %1779 = vmatpush1.bf16.msra.mxu0 0
      %1780 = vmatprep.subr.bf16.mxu0 0
      %1781 = vmatpush1.bf16.msra.mxu0 0
      %1782 = vmatprep.subr.bf16.mxu0 0
      %1783 = vmatpush1.bf16.msra.mxu0 0
      %1784 = vmatprep.subr.bf16.mxu0 0
      %1785 = vmatpush1.bf16.msra.mxu0 0
      %1786 = vmatprep.subr.bf16.mxu0 0
      %1787 = vmatpush1.bf16.msra.mxu0 0
      %1788 = vmatprep.subr.bf16.mxu0 0
      %1789 = vmatpush1.bf16.msra.mxu0 0
      %1790 = vmatprep.mubr.bf16.mxu0 0
      %1791 = vmatmul.mubr.bf16.gmra.mrb[0].mxu0 %v1663
      %v1792 = vpop.f32.mrb[0].mxu0
      %v1793 = vadd.f32 %v1624, %v1792
      %v1794 = vpop.f32.mrb[0].mxu0
      %v1795 = vpop.f32.mrb[0].mxu0
      %v1796 = vadd.f32 %v1624, %v1795
      %v1797 = vpop.f32.mrb[0].mxu0
      %1798 = vmatprep.mubr.bf16.mxu0 0
      %1799 = vmatmul.mubr.bf16.gmra.mrb[0].mxu0 %v1666
      %v1800 = vpop.f32.mrb[0].mxu0
      %v1801 = vadd.f32 %v1624, %v1800
      %v1802 = vpop.f32.mrb[0].mxu0
      %v1803 = vpop.f32.mrb[0].mxu0
      %v1804 = vadd.f32 %v1624, %v1803
      %v1805 = vpop.f32.mrb[0].mxu0
      %1806 = vmatprep.mubr.bf16.mxu0 0
      %1807 = vmatmul.mubr.bf16.gmra.mrb[0].mxu0 %v1669
      %v1808 = vpop.f32.mrb[0].mxu0
      %v1809 = vadd.f32 %v1624, %v1808
      %v1810 = vpop.f32.mrb[0].mxu0
      %v1811 = vpop.f32.mrb[0].mxu0
      %v1812 = vadd.f32 %v1624, %v1811
      %v1813 = vpop.f32.mrb[0].mxu0
      %1814 = vmatprep.mubr.bf16.mxu0 0
      %1815 = vmatmul.mubr.bf16.gmra.mrb[0].mxu0 %v1672
      %v1816 = vpop.f32.mrb[0].mxu0
      %v1817 = vadd.f32 %v1624, %v1816
      %v1818 = vpop.f32.mrb[0].mxu0
      %v1819 = vpop.f32.mrb[0].mxu0
      %v1820 = vadd.f32 %v1624, %v1819
      %v1821 = vpop.f32.mrb[0].mxu0
      %1822 = vmatprep.mubr.bf16.mxu0 0
      %1823 = vmatmul.mubr.bf16.gmra.mrb[0].mxu0 %v1675
      %v1824 = vpop.f32.mrb[0].mxu0
      %v1825 = vadd.f32 %v1624, %v1824
      %v1826 = vpop.f32.mrb[0].mxu0
      %v1827 = vpop.f32.mrb[0].mxu0
      %v1828 = vadd.f32 %v1624, %v1827
      %v1829 = vpop.f32.mrb[0].mxu0
      %1830 = vmatprep.mubr.bf16.mxu0 0
      %1831 = vmatmul.mubr.bf16.gmra.mrb[0].mxu0 %v1678
      %v1832 = vpop.f32.mrb[0].mxu0
      %v1833 = vadd.f32 %v1624, %v1832
      %v1834 = vpop.f32.mrb[0].mxu0
      %v1835 = vpop.f32.mrb[0].mxu0
      %v1836 = vadd.f32 %v1624, %v1835
      %v1837 = vpop.f32.mrb[0].mxu0
      %1838 = vmatprep.mubr.bf16.mxu0 0
      %1839 = vmatmul.mubr.bf16.gmra.mrb[0].mxu0 %v1681
      %v1840 = vpop.f32.mrb[0].mxu0
      %v1841 = vadd.f32 %v1624, %v1840
      %v1842 = vpop.f32.mrb[0].mxu0
      %v1843 = vpop.f32.mrb[0].mxu0
      %v1844 = vadd.f32 %v1624, %v1843
      %v1845 = vpop.f32.mrb[0].mxu0
      %1846 = vmatprep.mubr.bf16.mxu0 0
      %1847 = vmatmul.mubr.bf16.gmra.mrb[0].mxu0 %v1684
      %v1848 = vpop.f32.mrb[0].mxu0
      %v1849 = vadd.f32 %v1624, %v1848
      %v1850 = vpop.f32.mrb[0].mxu0
      %v1851 = vpop.f32.mrb[0].mxu0
      %v1852 = vadd.f32 %v1624, %v1851
      %v1853 = vpop.f32.mrb[0].mxu0
      %1854 = vmatprep.mubr.bf16.mxu0 0
      %1855 = vmatmul.mubr.bf16.gmra.mrb[0].mxu0 %v1687
      %v1856 = vpop.f32.mrb[0].mxu0
      %v1857 = vadd.f32 %v1624, %v1856
      %v1858 = vpop.f32.mrb[0].mxu0
      %v1859 = vpop.f32.mrb[0].mxu0
      %v1860 = vadd.f32 %v1624, %v1859
      %v1861 = vpop.f32.mrb[0].mxu0
      %1862 = vmatprep.mubr.bf16.mxu0 0
      %1863 = vmatmul.mubr.bf16.gmra.mrb[0].mxu0 %v1690
      %v1864 = vpop.f32.mrb[0].mxu0
      %v1865 = vadd.f32 %v1624, %v1864
      %v1866 = vpop.f32.mrb[0].mxu0
      %v1867 = vpop.f32.mrb[0].mxu0
      %v1868 = vadd.f32 %v1624, %v1867
      %v1869 = vpop.f32.mrb[0].mxu0
      %1870 = vmatprep.mubr.bf16.mxu0 0
      %1871 = vmatmul.mubr.bf16.gmra.mrb[0].mxu0 %v1693
      %v1872 = vpop.f32.mrb[0].mxu0
      %v1873 = vadd.f32 %v1624, %v1872
      %v1874 = vpop.f32.mrb[0].mxu0
      %v1875 = vpop.f32.mrb[0].mxu0
      %v1876 = vadd.f32 %v1624, %v1875
      %v1877 = vpop.f32.mrb[0].mxu0
      %1878 = vmatprep.mubr.bf16.mxu0 0
      %1879 = vmatmul.mubr.bf16.gmra.mrb[0].mxu0 %v1696
      %v1880 = vpop.f32.mrb[0].mxu0
      %v1881 = vadd.f32 %v1624, %v1880
      %v1882 = vpop.f32.mrb[0].mxu0
      %v1883 = vpop.f32.mrb[0].mxu0
      %v1884 = vadd.f32 %v1624, %v1883
      %v1885 = vpop.f32.mrb[0].mxu0
      %1886 = vmatprep.mubr.bf16.mxu0 0
      %1887 = vmatmul.mubr.bf16.gmra.mrb[0].mxu0 %v1699
      %v1888 = vpop.f32.mrb[0].mxu0
      %v1889 = vadd.f32 %v1624, %v1888
      %v1890 = vpop.f32.mrb[0].mxu0
      %v1891 = vpop.f32.mrb[0].mxu0
      %v1892 = vadd.f32 %v1624, %v1891
      %v1893 = vpop.f32.mrb[0].mxu0
      %1894 = vmatprep.mubr.bf16.mxu0 0
      %1895 = vmatmul.mubr.bf16.gmra.mrb[0].mxu0 %v1702
      %v1896 = vpop.f32.mrb[0].mxu0
      %v1897 = vadd.f32 %v1624, %v1896
      %v1898 = vpop.f32.mrb[0].mxu0
      %v1899 = vpop.f32.mrb[0].mxu0
      %v1900 = vadd.f32 %v1624, %v1899
      %v1901 = vpop.f32.mrb[0].mxu0
      %1902 = vmatprep.mubr.bf16.mxu0 0
      %1903 = vmatmul.mubr.bf16.gmra.mrb[0].mxu0 %v1705
      %v1904 = vpop.f32.mrb[0].mxu0
      %v1905 = vadd.f32 %v1624, %v1904
      %v1906 = vpop.f32.mrb[0].mxu0
      %v1907 = vpop.f32.mrb[0].mxu0
      %v1908 = vadd.f32 %v1624, %v1907
      %v1909 = vpop.f32.mrb[0].mxu0
      %1910 = vmatprep.mubr.bf16.mxu0 0
      %1911 = vmatmul.mubr.bf16.gmra.mrb[0].mxu0 %v1708
      %v1912 = vpop.f32.mrb[0].mxu0
      %v1913 = vadd.f32 %v1624, %v1912
      %v1914 = vpop.f32.mrb[0].mxu0
      %v1915 = vpop.f32.mrb[0].mxu0
      %v1916 = vadd.f32 %v1624, %v1915
      %v1917 = vpop.f32.mrb[0].mxu0
      %1918 = vmatprep.mubr.bf16.mxu0 0
      %1919 = vmatmul.mubr.bf16.gmra.mrb[0].mxu0 %v1711
      %v1920 = vpop.f32.mrb[0].mxu0
      %v1921 = vadd.f32 %v1624, %v1920
      %v1922 = vpop.f32.mrb[0].mxu0
      %v1923 = vpop.f32.mrb[0].mxu0
      %v1924 = vadd.f32 %v1624, %v1923
      %v1925 = vpop.f32.mrb[0].mxu0
      %1926 = vmatprep.mubr.bf16.mxu0 0
      %1927 = vmatmul.mubr.bf16.gmra.mrb[0].mxu0 %v1714
      %v1928 = vpop.f32.mrb[0].mxu0
      %v1929 = vadd.f32 %v1624, %v1928
      %v1930 = vpop.f32.mrb[0].mxu0
      %v1931 = vpop.f32.mrb[0].mxu0
      %v1932 = vadd.f32 %v1624, %v1931
      %v1933 = vpop.f32.mrb[0].mxu0
      %1934 = vmatprep.mubr.bf16.mxu0 0
      %1935 = vmatmul.mubr.bf16.gmra.mrb[0].mxu0 %v1717
      %v1936 = vpop.f32.mrb[0].mxu0
      %v1937 = vadd.f32 %v1624, %v1936
      %v1938 = vpop.f32.mrb[0].mxu0
      %v1939 = vpop.f32.mrb[0].mxu0
      %v1940 = vadd.f32 %v1624, %v1939
      %v1941 = vpop.f32.mrb[0].mxu0
      %1942 = vmatprep.mubr.bf16.mxu0 0
      %1943 = vmatmul.mubr.bf16.gmra.mrb[0].mxu0 %v1720
      %v1944 = vpop.f32.mrb[0].mxu0
      %v1945 = vadd.f32 %v1624, %v1944
      %v1946 = vpop.f32.mrb[0].mxu0
      %v1947 = vpop.f32.mrb[0].mxu0
      %v1948 = vadd.f32 %v1624, %v1947
      %v1949 = vpop.f32.mrb[0].mxu0
      %1950 = vmatprep.mubr.bf16.mxu0 0
      %1951 = vmatmul.mubr.bf16.gmra.mrb[0].mxu0 %v1723
      %v1952 = vpop.f32.mrb[0].mxu0
      %v1953 = vadd.f32 %v1624, %v1952
      %v1954 = vpop.f32.mrb[0].mxu0
      %v1955 = vpop.f32.mrb[0].mxu0
      %v1956 = vadd.f32 %v1624, %v1955
      %v1957 = vpop.f32.mrb[0].mxu0
      %1958 = vmatprep.mubr.bf16.mxu0 0
      %1959 = vmatmul.mubr.bf16.gmra.mrb[0].mxu0 %v1726
      %v1960 = vpop.f32.mrb[0].mxu0
      %v1961 = vadd.f32 %v1624, %v1960
      %v1962 = vpop.f32.mrb[0].mxu0
      %v1963 = vpop.f32.mrb[0].mxu0
      %v1964 = vadd.f32 %v1624, %v1963
      %v1965 = vpop.f32.mrb[0].mxu0
      %1966 = vmatprep.mubr.bf16.mxu0 0
      %1967 = vmatmul.mubr.bf16.gmra.mrb[0].mxu0 %v1729
      %v1968 = vpop.f32.mrb[0].mxu0
      %v1969 = vadd.f32 %v1624, %v1968
      %v1970 = vpop.f32.mrb[0].mxu0
      %v1971 = vpop.f32.mrb[0].mxu0
      %v1972 = vadd.f32 %v1624, %v1971
      %v1973 = vpop.f32.mrb[0].mxu0
      %1974 = vmatprep.mubr.bf16.mxu0 0
      %1975 = vmatmul.mubr.bf16.gmra.mrb[0].mxu0 %v1732
      %v1976 = vpop.f32.mrb[0].mxu0
      %v1977 = vadd.f32 %v1624, %v1976
      %v1978 = vpop.f32.mrb[0].mxu0
      %v1979 = vpop.f32.mrb[0].mxu0
      %v1980 = vadd.f32 %v1624, %v1979
      %v1981 = vpop.f32.mrb[0].mxu0
      %1982 = vmatprep.mubr.bf16.mxu0 0
      %1983 = vmatmul.mubr.bf16.gmra.mrb[0].mxu0 %v1735
      %v1984 = vpop.f32.mrb[0].mxu0
      %v1985 = vadd.f32 %v1624, %v1984
      %v1986 = vpop.f32.mrb[0].mxu0
      %v1987 = vpop.f32.mrb[0].mxu0
      %v1988 = vadd.f32 %v1624, %v1987
      %v1989 = vpop.f32.mrb[0].mxu0
      %1990 = vmatprep.mubr.bf16.mxu0 0
      %1991 = vmatmul.mubr.bf16.gmra.mrb[0].mxu0 %v1738
      %v1992 = vpop.f32.mrb[0].mxu0
      %v1993 = vadd.f32 %v1624, %v1992
      %v1994 = vpop.f32.mrb[0].mxu0
      %v1995 = vpop.f32.mrb[0].mxu0
      %v1996 = vadd.f32 %v1624, %v1995
      %v1997 = vpop.f32.mrb[0].mxu0
      %1998 = vmatprep.mubr.bf16.mxu0 0
      %1999 = vmatmul.mubr.bf16.gmra.mrb[0].mxu0 %v1741
      %v2000 = vpop.f32.mrb[0].mxu0
      %v2001 = vadd.f32 %v1624, %v2000
      %v2002 = vpop.f32.mrb[0].mxu0
      %v2003 = vpop.f32.mrb[0].mxu0
      %v2004 = vadd.f32 %v1624, %v2003
      %v2005 = vpop.f32.mrb[0].mxu0
      %2006 = vmatprep.mubr.bf16.mxu0 0
      %2007 = vmatmul.mubr.bf16.gmra.mrb[0].mxu0 %v1744
      %v2008 = vpop.f32.mrb[0].mxu0
      %v2009 = vadd.f32 %v1624, %v2008
      %v2010 = vpop.f32.mrb[0].mxu0
      %v2011 = vpop.f32.mrb[0].mxu0
      %v2012 = vadd.f32 %v1624, %v2011
      %v2013 = vpop.f32.mrb[0].mxu0
      %2014 = vmatprep.mubr.bf16.mxu0 0
      %2015 = vmatmul.mubr.bf16.gmra.mrb[0].mxu0 %v1747
      %v2016 = vpop.f32.mrb[0].mxu0
      %v2017 = vadd.f32 %v1624, %v2016
      %v2018 = vpop.f32.mrb[0].mxu0
      %v2019 = vpop.f32.mrb[0].mxu0
      %v2020 = vadd.f32 %v1624, %v2019
      %v2021 = vpop.f32.mrb[0].mxu0
      %2022 = vmatprep.mubr.bf16.mxu0 0
      %2023 = vmatmul.mubr.bf16.gmra.mrb[0].mxu0 %v1750
      %v2024 = vpop.f32.mrb[0].mxu0
      %v2025 = vadd.f32 %v1624, %v2024
      %v2026 = vpop.f32.mrb[0].mxu0
      %v2027 = vpop.f32.mrb[0].mxu0
      %v2028 = vadd.f32 %v1624, %v2027
      %v2029 = vpop.f32.mrb[0].mxu0
      %2030 = vmatprep.mubr.bf16.mxu0 0
      %2031 = vmatmul.mubr.bf16.gmra.mrb[0].mxu0 %v1753
      %v2032 = vpop.f32.mrb[0].mxu0
      %v2033 = vadd.f32 %v1624, %v2032
      %v2034 = vpop.f32.mrb[0].mxu0
      %v2035 = vpop.f32.mrb[0].mxu0
      %v2036 = vadd.f32 %v1624, %v2035
      %v2037 = vpop.f32.mrb[0].mxu0
      %2038 = vmatprep.mubr.bf16.mxu0 0
      %2039 = vmatmul.mubr.bf16.gmra.mrb[0].mxu0 %v1756
      %v2040 = vpop.f32.mrb[0].mxu0
      %v2041 = vadd.f32 %v1624, %v2040
      %v2042 = vpop.f32.mrb[0].mxu0
      %v2043 = vpop.f32.mrb[0].mxu0
      %v2044 = vadd.f32 %v1624, %v2043
      %v2045 = vpop.f32.mrb[0].mxu0
      %2046 = vdwg.mxu0
      %v2047 = vmax.f32 %v1793, 0.0
      %v2048 = vmax.f32 %v1796, 0.0
      %v2049 = vmax.f32 %v1801, 0.0
      %v2050 = vmax.f32 %v1804, 0.0
      %v2051 = vmax.f32 %v1809, 0.0
      %v2052 = vmax.f32 %v1812, 0.0
      %v2053 = vmax.f32 %v1817, 0.0
      %v2054 = vmax.f32 %v1820, 0.0
      %v2055 = vmax.f32 %v1825, 0.0
      %v2056 = vmax.f32 %v1828, 0.0
      %v2057 = vmax.f32 %v1833, 0.0
      %v2058 = vmax.f32 %v1836, 0.0
      %v2059 = vmax.f32 %v1841, 0.0
      %v2060 = vmax.f32 %v1844, 0.0
      %v2061 = vmax.f32 %v1849, 0.0
      %v2062 = vmax.f32 %v1852, 0.0
      %v2063 = vmax.f32 %v1857, 0.0
      %v2064 = vmax.f32 %v1860, 0.0
      %v2065 = vmax.f32 %v1865, 0.0
      %v2066 = vmax.f32 %v1868, 0.0
      %v2067 = vmax.f32 %v1873, 0.0
      %v2068 = vmax.f32 %v1876, 0.0
      %v2069 = vmax.f32 %v1881, 0.0
      %v2070 = vmax.f32 %v1884, 0.0
      %v2071 = vmax.f32 %v1889, 0.0
      %v2072 = vmax.f32 %v1892, 0.0
      %v2073 = vmax.f32 %v1897, 0.0
      %v2074 = vmax.f32 %v1900, 0.0
      %v2075 = vmax.f32 %v1905, 0.0
      %v2076 = vmax.f32 %v1908, 0.0
      %v2077 = vmax.f32 %v1913, 0.0
      %v2078 = vmax.f32 %v1916, 0.0
      %v2079 = vmax.f32 %v1921, 0.0
      %v2080 = vmax.f32 %v1924, 0.0
      %v2081 = vmax.f32 %v1929, 0.0
      %v2082 = vmax.f32 %v1932, 0.0
      %v2083 = vmax.f32 %v1937, 0.0
      %v2084 = vmax.f32 %v1940, 0.0
      %v2085 = vmax.f32 %v1945, 0.0
      %v2086 = vmax.f32 %v1948, 0.0
      %v2087 = vmax.f32 %v1953, 0.0
      %v2088 = vmax.f32 %v1956, 0.0
      %v2089 = vmax.f32 %v1961, 0.0
      %v2090 = vmax.f32 %v1964, 0.0
      %v2091 = vmax.f32 %v1969, 0.0
      %v2092 = vmax.f32 %v1972, 0.0
      %v2093 = vmax.f32 %v1977, 0.0
      %v2094 = vmax.f32 %v1980, 0.0
      %v2095 = vmax.f32 %v1985, 0.0
      %v2096 = vmax.f32 %v1988, 0.0
      %v2097 = vmax.f32 %v1993, 0.0
      %v2098 = vmax.f32 %v1996, 0.0
      %v2099 = vmax.f32 %v2001, 0.0
      %v2100 = vmax.f32 %v2004, 0.0
      %v2101 = vmax.f32 %v2009, 0.0
      %v2102 = vmax.f32 %v2012, 0.0
      %v2103 = vmax.f32 %v2017, 0.0
      %v2104 = vmax.f32 %v2020, 0.0
      %v2105 = vmax.f32 %v2025, 0.0
      %v2106 = vmax.f32 %v2028, 0.0
      %v2107 = vmax.f32 %v2033, 0.0
      %v2108 = vmax.f32 %v2036, 0.0
      %v2109 = vmax.f32 %v2041, 0.0
      %v2110 = vmax.f32 %v2044, 0.0
      %v2111 = vrot.slane %v2047, 7
      %v2112 = vrot.slane %v2048, 7
      %v2113 = vrot.slane %v2049, 7
      %v2114 = vrot.slane %v2050, 7
      %v2115 = vrot.slane %v2051, 7
      %v2116 = vrot.slane %v2052, 7
      %v2117 = vrot.slane %v2053, 7
      %v2118 = vrot.slane %v2054, 7
      %v2119 = vrot.slane %v2055, 7
      %v2120 = vrot.slane %v2056, 7
      %v2121 = vrot.slane %v2057, 7
      %v2122 = vrot.slane %v2058, 7
      %v2123 = vrot.slane %v2059, 7
      %v2124 = vrot.slane %v2060, 7
      %v2125 = vrot.slane %v2061, 7
      %v2126 = vrot.slane %v2062, 7
      %v2127 = vrot.slane %v2063, 7
      %v2128 = vrot.slane %v2064, 7
      %v2129 = vrot.slane %v2065, 7
      %v2130 = vrot.slane %v2066, 7
      %v2131 = vrot.slane %v2067, 7
      %v2132 = vrot.slane %v2068, 7
      %v2133 = vrot.slane %v2069, 7
      %v2134 = vrot.slane %v2070, 7
      %v2135 = vrot.slane %v2071, 7
      %v2136 = vrot.slane %v2072, 7
      %v2137 = vrot.slane %v2073, 7
      %v2138 = vrot.slane %v2074, 7
      %v2139 = vrot.slane %v2075, 7
      %v2140 = vrot.slane %v2076, 7
      %v2141 = vrot.slane %v2077, 7
      %v2142 = vrot.slane %v2078, 7
      %v2143 = vrot.slane %v2079, 7
      %v2144 = vrot.slane %v2080, 7
      %v2145 = vrot.slane %v2081, 7
      %v2146 = vrot.slane %v2082, 7
      %v2147 = vrot.slane %v2083, 7
      %v2148 = vrot.slane %v2084, 7
      %v2149 = vrot.slane %v2085, 7
      %v2150 = vrot.slane %v2086, 7
      %v2151 = vrot.slane %v2087, 7
      %v2152 = vrot.slane %v2088, 7
      %v2153 = vrot.slane %v2089, 7
      %v2154 = vrot.slane %v2090, 7
      %v2155 = vrot.slane %v2091, 7
      %v2156 = vrot.slane %v2092, 7
      %v2157 = vrot.slane %v2093, 7
      %v2158 = vrot.slane %v2094, 7
      %v2159 = vrot.slane %v2095, 7
      %v2160 = vrot.slane %v2096, 7
      %v2161 = vrot.slane %v2097, 7
      %v2162 = vrot.slane %v2098, 7
      %v2163 = vrot.slane %v2099, 7
      %v2164 = vrot.slane %v2100, 7
      %v2165 = vrot.slane %v2101, 7
      %v2166 = vrot.slane %v2102, 7
      %v2167 = vrot.slane %v2103, 7
      %v2168 = vrot.slane %v2104, 7
      %v2169 = vrot.slane %v2105, 7
      %v2170 = vrot.slane %v2106, 7
      %v2171 = vrot.slane %v2107, 7
      %v2172 = vrot.slane %v2108, 7
      %v2173 = vrot.slane %v2109, 7
      %v2174 = vrot.slane %v2110, 7
      %v2175 = vsel %vm613, %v2173, %v2174
      %v2176 = vsel %vm613, %v2172, %v2173
      %v2177 = vsel %vm613, %v2171, %v2172
      %v2178 = vsel %vm613, %v2170, %v2171
      %v2179 = vsel %vm613, %v2169, %v2170
      %v2180 = vsel %vm613, %v2168, %v2169
      %v2181 = vsel %vm613, %v2167, %v2168
      %v2182 = vsel %vm613, %v2166, %v2167
      %v2183 = vsel %vm613, %v2165, %v2166
      %v2184 = vsel %vm613, %v2164, %v2165
      %v2185 = vsel %vm613, %v2163, %v2164
      %v2186 = vsel %vm613, %v2162, %v2163
      %v2187 = vsel %vm613, %v2161, %v2162
      %v2188 = vsel %vm613, %v2160, %v2161
      %v2189 = vsel %vm613, %v2159, %v2160
      %v2190 = vsel %vm613, %v2158, %v2159
      %v2191 = vsel %vm613, %v2157, %v2158
      %v2192 = vsel %vm613, %v2156, %v2157
      %v2193 = vsel %vm613, %v2155, %v2156
      %v2194 = vsel %vm613, %v2154, %v2155
      %v2195 = vsel %vm613, %v2153, %v2154
      %v2196 = vsel %vm613, %v2152, %v2153
      %v2197 = vsel %vm613, %v2151, %v2152
      %v2198 = vsel %vm613, %v2150, %v2151
      %v2199 = vsel %vm613, %v2149, %v2150
      %v2200 = vsel %vm613, %v2148, %v2149
      %v2201 = vsel %vm613, %v2147, %v2148
      %v2202 = vsel %vm613, %v2146, %v2147
      %v2203 = vsel %vm613, %v2145, %v2146
      %v2204 = vsel %vm613, %v2144, %v2145
      %v2205 = vsel %vm613, %v2143, %v2144
      %v2206 = vsel %vm613, %v2142, %v2143
      %v2207 = vsel %vm613, %v2141, %v2142
      %v2208 = vsel %vm613, %v2140, %v2141
      %v2209 = vsel %vm613, %v2139, %v2140
      %v2210 = vsel %vm613, %v2138, %v2139
      %v2211 = vsel %vm613, %v2137, %v2138
      %v2212 = vsel %vm613, %v2136, %v2137
      %v2213 = vsel %vm613, %v2135, %v2136
      %v2214 = vsel %vm613, %v2134, %v2135
      %v2215 = vsel %vm613, %v2133, %v2134
      %v2216 = vsel %vm613, %v2132, %v2133
      %v2217 = vsel %vm613, %v2131, %v2132
      %v2218 = vsel %vm613, %v2130, %v2131
      %v2219 = vsel %vm613, %v2129, %v2130
      %v2220 = vsel %vm613, %v2128, %v2129
      %v2221 = vsel %vm613, %v2127, %v2128
      %v2222 = vsel %vm613, %v2126, %v2127
      %v2223 = vsel %vm613, %v2125, %v2126
      %v2224 = vsel %vm613, %v2124, %v2125
      %v2225 = vsel %vm613, %v2123, %v2124
      %v2226 = vsel %vm613, %v2122, %v2123
      %v2227 = vsel %vm613, %v2121, %v2122
      %v2228 = vsel %vm613, %v2120, %v2121
      %v2229 = vsel %vm613, %v2119, %v2120
      %v2230 = vsel %vm613, %v2118, %v2119
      %v2231 = vsel %vm613, %v2117, %v2118
      %v2232 = vsel %vm613, %v2116, %v2117
      %v2233 = vsel %vm613, %v2115, %v2116
      %v2234 = vsel %vm613, %v2114, %v2115
      %v2235 = vsel %vm613, %v2113, %v2114
      %v2236 = vsel %vm613, %v2112, %v2113
      %v2237 = vsel %vm613, %v2111, %v2112
      %v2238 = vsel %vm613, %v2174, %v2111
      %v2239 = vsel %vm421, 0.0, %v2238
      %v2240 = vsel %vm422, 0.0, %v2237
      %v2241 = vsel %vm423, 0.0, %v2236
      %v2242 = vsel %vm424, 0.0, %v2235
      %v2243 = vsel %vm425, 0.0, %v2234
      %v2244 = vsel %vm426, 0.0, %v2233
      %v2245 = vsel %vm427, 0.0, %v2232
      %v2246 = vsel %vm428, 0.0, %v2231
      %v2247 = vsel %vm429, 0.0, %v2230
      %v2248 = vsel %vm430, 0.0, %v2229
      %v2249 = vsel %vm431, 0.0, %v2228
      %v2250 = vsel %vm432, 0.0, %v2227
      %v2251 = vsel %vm433, 0.0, %v2226
      %v2252 = vsel %vm434, 0.0, %v2225
      %v2253 = vsel %vm435, 0.0, %v2224
      %v2254 = vsel %vm436, 0.0, %v2223
      %v2255 = vsel %vm437, 0.0, %v2222
      %v2256 = vsel %vm438, 0.0, %v2221
      %v2257 = vsel %vm439, 0.0, %v2220
      %v2258 = vsel %vm440, 0.0, %v2219
      %v2259 = vsel %vm441, 0.0, %v2218
      %v2260 = vsel %vm442, 0.0, %v2217
      %v2261 = vsel %vm443, 0.0, %v2216
      %v2262 = vsel %vm444, 0.0, %v2215
      %v2263 = vsel %vm445, 0.0, %v2214
      %v2264 = vsel %vm446, 0.0, %v2213
      %v2265 = vsel %vm447, 0.0, %v2212
      %v2266 = vsel %vm448, 0.0, %v2211
      %v2267 = vsel %vm449, 0.0, %v2210
      %v2268 = vsel %vm450, 0.0, %v2209
      %v2269 = vsel %vm451, 0.0, %v2208
      %v2270 = vsel %vm452, 0.0, %v2207
      %v2271 = vsel %vm453, 0.0, %v2206
      %v2272 = vsel %vm454, 0.0, %v2205
      %v2273 = vsel %vm455, 0.0, %v2204
      %v2274 = vsel %vm456, 0.0, %v2203
      %v2275 = vsel %vm457, 0.0, %v2202
      %v2276 = vsel %vm458, 0.0, %v2201
      %v2277 = vsel %vm459, 0.0, %v2200
      %v2278 = vsel %vm460, 0.0, %v2199
      %v2279 = vsel %vm461, 0.0, %v2198
      %v2280 = vsel %vm462, 0.0, %v2197
      %v2281 = vsel %vm463, 0.0, %v2196
      %v2282 = vsel %vm464, 0.0, %v2195
      %v2283 = vsel %vm465, 0.0, %v2194
      %v2284 = vsel %vm466, 0.0, %v2193
      %v2285 = vsel %vm467, 0.0, %v2192
      %v2286 = vsel %vm468, 0.0, %v2191
      %v2287 = vsel %vm469, 0.0, %v2190
      %v2288 = vsel %vm470, 0.0, %v2189
      %v2289 = vsel %vm471, 0.0, %v2188
      %v2290 = vsel %vm472, 0.0, %v2187
      %v2291 = vsel %vm473, 0.0, %v2186
      %v2292 = vsel %vm474, 0.0, %v2185
      %v2293 = vsel %vm475, 0.0, %v2184
      %v2294 = vsel %vm476, 0.0, %v2183
      %v2295 = vsel %vm477, 0.0, %v2182
      %v2296 = vsel %vm478, 0.0, %v2181
      %v2297 = vsel %vm479, 0.0, %v2180
      %v2298 = vsel %vm480, 0.0, %v2179
      %v2299 = vsel %vm481, 0.0, %v2178
      %v2300 = vsel %vm482, 0.0, %v2177
      %v2301 = vsel %vm483, 0.0, %v2176
      %v2302 = vsel %vm484, 0.0, %v2175
      %v2303 = vrot.slane %v2047, 1
      %v2304 = vrot.slane %v2048, 1
      %v2305 = vrot.slane %v2049, 1
      %v2306 = vrot.slane %v2050, 1
      %v2307 = vrot.slane %v2051, 1
      %v2308 = vrot.slane %v2052, 1
      %v2309 = vrot.slane %v2053, 1
      %v2310 = vrot.slane %v2054, 1
      %v2311 = vrot.slane %v2055, 1
      %v2312 = vrot.slane %v2056, 1
      %v2313 = vrot.slane %v2057, 1
      %v2314 = vrot.slane %v2058, 1
      %v2315 = vrot.slane %v2059, 1
      %v2316 = vrot.slane %v2060, 1
      %v2317 = vrot.slane %v2061, 1
      %v2318 = vrot.slane %v2062, 1
      %v2319 = vrot.slane %v2063, 1
      %v2320 = vrot.slane %v2064, 1
      %v2321 = vrot.slane %v2065, 1
      %v2322 = vrot.slane %v2066, 1
      %v2323 = vrot.slane %v2067, 1
      %v2324 = vrot.slane %v2068, 1
      %v2325 = vrot.slane %v2069, 1
      %v2326 = vrot.slane %v2070, 1
      %v2327 = vrot.slane %v2071, 1
      %v2328 = vrot.slane %v2072, 1
      %v2329 = vrot.slane %v2073, 1
      %v2330 = vrot.slane %v2074, 1
      %v2331 = vrot.slane %v2075, 1
      %v2332 = vrot.slane %v2076, 1
      %v2333 = vrot.slane %v2077, 1
      %v2334 = vrot.slane %v2078, 1
      %v2335 = vrot.slane %v2079, 1
      %v2336 = vrot.slane %v2080, 1
      %v2337 = vrot.slane %v2081, 1
      %v2338 = vrot.slane %v2082, 1
      %v2339 = vrot.slane %v2083, 1
      %v2340 = vrot.slane %v2084, 1
      %v2341 = vrot.slane %v2085, 1
      %v2342 = vrot.slane %v2086, 1
      %v2343 = vrot.slane %v2087, 1
      %v2344 = vrot.slane %v2088, 1
      %v2345 = vrot.slane %v2089, 1
      %v2346 = vrot.slane %v2090, 1
      %v2347 = vrot.slane %v2091, 1
      %v2348 = vrot.slane %v2092, 1
      %v2349 = vrot.slane %v2093, 1
      %v2350 = vrot.slane %v2094, 1
      %v2351 = vrot.slane %v2095, 1
      %v2352 = vrot.slane %v2096, 1
      %v2353 = vrot.slane %v2097, 1
      %v2354 = vrot.slane %v2098, 1
      %v2355 = vrot.slane %v2099, 1
      %v2356 = vrot.slane %v2100, 1
      %v2357 = vrot.slane %v2101, 1
      %v2358 = vrot.slane %v2102, 1
      %v2359 = vrot.slane %v2103, 1
      %v2360 = vrot.slane %v2104, 1
      %v2361 = vrot.slane %v2105, 1
      %v2362 = vrot.slane %v2106, 1
      %v2363 = vrot.slane %v2107, 1
      %v2364 = vrot.slane %v2108, 1
      %v2365 = vrot.slane %v2109, 1
      %v2366 = vrot.slane %v2110, 1
      %v2367 = vsel %vm806, %v2365, %v2366
      %v2368 = vsel %vm806, %v2364, %v2365
      %v2369 = vsel %vm806, %v2363, %v2364
      %v2370 = vsel %vm806, %v2362, %v2363
      %v2371 = vsel %vm806, %v2361, %v2362
      %v2372 = vsel %vm806, %v2360, %v2361
      %v2373 = vsel %vm806, %v2359, %v2360
      %v2374 = vsel %vm806, %v2358, %v2359
      %v2375 = vsel %vm806, %v2357, %v2358
      %v2376 = vsel %vm806, %v2356, %v2357
      %v2377 = vsel %vm806, %v2355, %v2356
      %v2378 = vsel %vm806, %v2354, %v2355
      %v2379 = vsel %vm806, %v2353, %v2354
      %v2380 = vsel %vm806, %v2352, %v2353
      %v2381 = vsel %vm806, %v2351, %v2352
      %v2382 = vsel %vm806, %v2350, %v2351
      %v2383 = vsel %vm806, %v2349, %v2350
      %v2384 = vsel %vm806, %v2348, %v2349
      %v2385 = vsel %vm806, %v2347, %v2348
      %v2386 = vsel %vm806, %v2346, %v2347
      %v2387 = vsel %vm806, %v2345, %v2346
      %v2388 = vsel %vm806, %v2344, %v2345
      %v2389 = vsel %vm806, %v2343, %v2344
      %v2390 = vsel %vm806, %v2342, %v2343
      %v2391 = vsel %vm806, %v2341, %v2342
      %v2392 = vsel %vm806, %v2340, %v2341
      %v2393 = vsel %vm806, %v2339, %v2340
      %v2394 = vsel %vm806, %v2338, %v2339
      %v2395 = vsel %vm806, %v2337, %v2338
      %v2396 = vsel %vm806, %v2336, %v2337
      %v2397 = vsel %vm806, %v2335, %v2336
      %v2398 = vsel %vm806, %v2334, %v2335
      %v2399 = vsel %vm806, %v2333, %v2334
      %v2400 = vsel %vm806, %v2332, %v2333
      %v2401 = vsel %vm806, %v2331, %v2332
      %v2402 = vsel %vm806, %v2330, %v2331
      %v2403 = vsel %vm806, %v2329, %v2330
      %v2404 = vsel %vm806, %v2328, %v2329
      %v2405 = vsel %vm806, %v2327, %v2328
      %v2406 = vsel %vm806, %v2326, %v2327
      %v2407 = vsel %vm806, %v2325, %v2326
      %v2408 = vsel %vm806, %v2324, %v2325
      %v2409 = vsel %vm806, %v2323, %v2324
      %v2410 = vsel %vm806, %v2322, %v2323
      %v2411 = vsel %vm806, %v2321, %v2322
      %v2412 = vsel %vm806, %v2320, %v2321
      %v2413 = vsel %vm806, %v2319, %v2320
      %v2414 = vsel %vm806, %v2318, %v2319
      %v2415 = vsel %vm806, %v2317, %v2318
      %v2416 = vsel %vm806, %v2316, %v2317
      %v2417 = vsel %vm806, %v2315, %v2316
      %v2418 = vsel %vm806, %v2314, %v2315
      %v2419 = vsel %vm806, %v2313, %v2314
      %v2420 = vsel %vm806, %v2312, %v2313
      %v2421 = vsel %vm806, %v2311, %v2312
      %v2422 = vsel %vm806, %v2310, %v2311
      %v2423 = vsel %vm806, %v2309, %v2310
      %v2424 = vsel %vm806, %v2308, %v2309
      %v2425 = vsel %vm806, %v2307, %v2308
      %v2426 = vsel %vm806, %v2306, %v2307
      %v2427 = vsel %vm806, %v2305, %v2306
      %v2428 = vsel %vm806, %v2304, %v2305
      %v2429 = vsel %vm806, %v2303, %v2304
      %v2430 = vsel %vm806, %v2366, %v2303
      %v2431 = vsel %vm485, 0.0, %v2429
      %v2432 = vsel %vm486, 0.0, %v2428
      %v2433 = vsel %vm487, 0.0, %v2427
      %v2434 = vsel %vm488, 0.0, %v2426
      %v2435 = vsel %vm489, 0.0, %v2425
      %v2436 = vsel %vm490, 0.0, %v2424
      %v2437 = vsel %vm491, 0.0, %v2423
      %v2438 = vsel %vm492, 0.0, %v2422
      %v2439 = vsel %vm493, 0.0, %v2421
      %v2440 = vsel %vm494, 0.0, %v2420
      %v2441 = vsel %vm495, 0.0, %v2419
      %v2442 = vsel %vm496, 0.0, %v2418
      %v2443 = vsel %vm497, 0.0, %v2417
      %v2444 = vsel %vm498, 0.0, %v2416
      %v2445 = vsel %vm499, 0.0, %v2415
      %v2446 = vsel %vm500, 0.0, %v2414
      %v2447 = vsel %vm501, 0.0, %v2413
      %v2448 = vsel %vm502, 0.0, %v2412
      %v2449 = vsel %vm503, 0.0, %v2411
      %v2450 = vsel %vm504, 0.0, %v2410
      %v2451 = vsel %vm505, 0.0, %v2409
      %v2452 = vsel %vm506, 0.0, %v2408
      %v2453 = vsel %vm507, 0.0, %v2407
      %v2454 = vsel %vm508, 0.0, %v2406
      %v2455 = vsel %vm509, 0.0, %v2405
      %v2456 = vsel %vm510, 0.0, %v2404
      %v2457 = vsel %vm511, 0.0, %v2403
      %v2458 = vsel %vm512, 0.0, %v2402
      %v2459 = vsel %vm513, 0.0, %v2401
      %v2460 = vsel %vm514, 0.0, %v2400
      %v2461 = vsel %vm515, 0.0, %v2399
      %v2462 = vsel %vm516, 0.0, %v2398
      %v2463 = vsel %vm517, 0.0, %v2397
      %v2464 = vsel %vm518, 0.0, %v2396
      %v2465 = vsel %vm519, 0.0, %v2395
      %v2466 = vsel %vm520, 0.0, %v2394
      %v2467 = vsel %vm521, 0.0, %v2393
      %v2468 = vsel %vm522, 0.0, %v2392
      %v2469 = vsel %vm523, 0.0, %v2391
      %v2470 = vsel %vm524, 0.0, %v2390
      %v2471 = vsel %vm525, 0.0, %v2389
      %v2472 = vsel %vm526, 0.0, %v2388
      %v2473 = vsel %vm527, 0.0, %v2387
      %v2474 = vsel %vm528, 0.0, %v2386
      %v2475 = vsel %vm529, 0.0, %v2385
      %v2476 = vsel %vm530, 0.0, %v2384
      %v2477 = vsel %vm531, 0.0, %v2383
      %v2478 = vsel %vm532, 0.0, %v2382
      %v2479 = vsel %vm533, 0.0, %v2381
      %v2480 = vsel %vm534, 0.0, %v2380
      %v2481 = vsel %vm535, 0.0, %v2379
      %v2482 = vsel %vm536, 0.0, %v2378
      %v2483 = vsel %vm537, 0.0, %v2377
      %v2484 = vsel %vm538, 0.0, %v2376
      %v2485 = vsel %vm539, 0.0, %v2375
      %v2486 = vsel %vm540, 0.0, %v2374
      %v2487 = vsel %vm541, 0.0, %v2373
      %v2488 = vsel %vm542, 0.0, %v2372
      %v2489 = vsel %vm543, 0.0, %v2371
      %v2490 = vsel %vm544, 0.0, %v2370
      %v2491 = vsel %vm545, 0.0, %v2369
      %v2492 = vsel %vm546, 0.0, %v2368
      %v2493 = vsel %vm547, 0.0, %v2367
      %v2494 = vsel %vm548, 0.0, %v2430
      %2559 = vrot.lane.b32.xlu0 %v2047, 32
      %v2560 = vpop.permute.xlu0 %2559
      %2561 = vrot.lane.b32.xlu0 %v2048, 32
      %v2562 = vpop.permute.xlu0 %2561
      %2563 = vrot.lane.b32.xlu0 %v2049, 32
      %v2564 = vpop.permute.xlu0 %2563
      %2565 = vrot.lane.b32.xlu0 %v2050, 32
      %v2566 = vpop.permute.xlu0 %2565
      %2567 = vrot.lane.b32.xlu0 %v2051, 32
      %v2568 = vpop.permute.xlu0 %2567
      %2569 = vrot.lane.b32.xlu0 %v2052, 32
      %v2570 = vpop.permute.xlu0 %2569
      %2571 = vrot.lane.b32.xlu0 %v2053, 32
      %v2572 = vpop.permute.xlu0 %2571
      %2573 = vrot.lane.b32.xlu0 %v2054, 32
      %v2574 = vpop.permute.xlu0 %2573
      %2575 = vrot.lane.b32.xlu0 %v2055, 32
      %v2576 = vpop.permute.xlu0 %2575
      %2577 = vrot.lane.b32.xlu0 %v2056, 32
      %v2578 = vpop.permute.xlu0 %2577
      %2579 = vrot.lane.b32.xlu0 %v2057, 32
      %v2580 = vpop.permute.xlu0 %2579
      %2581 = vrot.lane.b32.xlu0 %v2058, 32
      %v2582 = vpop.permute.xlu0 %2581
      %2583 = vrot.lane.b32.xlu0 %v2059, 32
      %v2584 = vpop.permute.xlu0 %2583
      %2585 = vrot.lane.b32.xlu0 %v2060, 32
      %v2586 = vpop.permute.xlu0 %2585
      %2587 = vrot.lane.b32.xlu0 %v2061, 32
      %v2588 = vpop.permute.xlu0 %2587
      %2589 = vrot.lane.b32.xlu0 %v2062, 32
      %v2590 = vpop.permute.xlu0 %2589
      %2591 = vrot.lane.b32.xlu0 %v2063, 32
      %v2592 = vpop.permute.xlu0 %2591
      %2593 = vrot.lane.b32.xlu0 %v2064, 32
      %v2594 = vpop.permute.xlu0 %2593
      %2595 = vrot.lane.b32.xlu0 %v2065, 32
      %v2596 = vpop.permute.xlu0 %2595
      %2597 = vrot.lane.b32.xlu0 %v2066, 32
      %v2598 = vpop.permute.xlu0 %2597
      %2599 = vrot.lane.b32.xlu0 %v2067, 32
      %v2600 = vpop.permute.xlu0 %2599
      %2601 = vrot.lane.b32.xlu0 %v2068, 32
      %v2602 = vpop.permute.xlu0 %2601
      %2603 = vrot.lane.b32.xlu0 %v2069, 32
      %v2604 = vpop.permute.xlu0 %2603
      %2605 = vrot.lane.b32.xlu0 %v2070, 32
      %v2606 = vpop.permute.xlu0 %2605
      %2607 = vrot.lane.b32.xlu0 %v2071, 32
      %v2608 = vpop.permute.xlu0 %2607
      %2609 = vrot.lane.b32.xlu0 %v2072, 32
      %v2610 = vpop.permute.xlu0 %2609
      %2611 = vrot.lane.b32.xlu0 %v2073, 32
      %v2612 = vpop.permute.xlu0 %2611
      %2613 = vrot.lane.b32.xlu0 %v2074, 32
      %v2614 = vpop.permute.xlu0 %2613
      %2615 = vrot.lane.b32.xlu0 %v2075, 32
      %v2616 = vpop.permute.xlu0 %2615
      %2617 = vrot.lane.b32.xlu0 %v2076, 32
      %v2618 = vpop.permute.xlu0 %2617
      %2619 = vrot.lane.b32.xlu0 %v2077, 32
      %v2620 = vpop.permute.xlu0 %2619
      %2621 = vrot.lane.b32.xlu0 %v2078, 32
      %v2622 = vpop.permute.xlu0 %2621
      %2623 = vrot.lane.b32.xlu0 %v2079, 32
      %v2624 = vpop.permute.xlu0 %2623
      %2625 = vrot.lane.b32.xlu0 %v2080, 32
      %v2626 = vpop.permute.xlu0 %2625
      %2627 = vrot.lane.b32.xlu0 %v2081, 32
      %v2628 = vpop.permute.xlu0 %2627
      %2629 = vrot.lane.b32.xlu0 %v2082, 32
      %v2630 = vpop.permute.xlu0 %2629
      %2631 = vrot.lane.b32.xlu0 %v2083, 32
      %v2632 = vpop.permute.xlu0 %2631
      %2633 = vrot.lane.b32.xlu0 %v2084, 32
      %v2634 = vpop.permute.xlu0 %2633
      %2635 = vrot.lane.b32.xlu0 %v2085, 32
      %v2636 = vpop.permute.xlu0 %2635
      %2637 = vrot.lane.b32.xlu0 %v2086, 32
      %v2638 = vpop.permute.xlu0 %2637
      %2639 = vrot.lane.b32.xlu0 %v2087, 32
      %v2640 = vpop.permute.xlu0 %2639
      %2641 = vrot.lane.b32.xlu0 %v2088, 32
      %v2642 = vpop.permute.xlu0 %2641
      %2643 = vrot.lane.b32.xlu0 %v2089, 32
      %v2644 = vpop.permute.xlu0 %2643
      %2645 = vrot.lane.b32.xlu0 %v2090, 32
      %v2646 = vpop.permute.xlu0 %2645
      %2647 = vrot.lane.b32.xlu0 %v2091, 32
      %v2648 = vpop.permute.xlu0 %2647
      %2649 = vrot.lane.b32.xlu0 %v2092, 32
      %v2650 = vpop.permute.xlu0 %2649
      %2651 = vrot.lane.b32.xlu0 %v2093, 32
      %v2652 = vpop.permute.xlu0 %2651
      %2653 = vrot.lane.b32.xlu0 %v2094, 32
      %v2654 = vpop.permute.xlu0 %2653
      %2655 = vrot.lane.b32.xlu0 %v2095, 32
      %v2656 = vpop.permute.xlu0 %2655
      %2657 = vrot.lane.b32.xlu0 %v2096, 32
      %v2658 = vpop.permute.xlu0 %2657
      %2659 = vrot.lane.b32.xlu0 %v2097, 32
      %v2660 = vpop.permute.xlu0 %2659
      %2661 = vrot.lane.b32.xlu0 %v2098, 32
      %v2662 = vpop.permute.xlu0 %2661
      %2663 = vrot.lane.b32.xlu0 %v2099, 32
      %v2664 = vpop.permute.xlu0 %2663
      %2665 = vrot.lane.b32.xlu0 %v2100, 32
      %v2666 = vpop.permute.xlu0 %2665
      %2667 = vrot.lane.b32.xlu0 %v2101, 32
      %v2668 = vpop.permute.xlu0 %2667
      %2669 = vrot.lane.b32.xlu0 %v2102, 32
      %v2670 = vpop.permute.xlu0 %2669
      %2671 = vrot.lane.b32.xlu0 %v2103, 32
      %v2672 = vpop.permute.xlu0 %2671
      %2673 = vrot.lane.b32.xlu0 %v2104, 32
      %v2674 = vpop.permute.xlu0 %2673
      %2675 = vrot.lane.b32.xlu0 %v2105, 32
      %v2676 = vpop.permute.xlu0 %2675
      %2677 = vrot.lane.b32.xlu0 %v2106, 32
      %v2678 = vpop.permute.xlu0 %2677
      %2679 = vrot.lane.b32.xlu0 %v2107, 32
      %v2680 = vpop.permute.xlu0 %2679
      %2681 = vrot.lane.b32.xlu0 %v2108, 32
      %v2682 = vpop.permute.xlu0 %2681
      %2683 = vrot.lane.b32.xlu0 %v2109, 32
      %v2684 = vpop.permute.xlu0 %2683
      %2685 = vrot.lane.b32.xlu0 %v2110, 32
      %v2686 = vpop.permute.xlu0 %2685
      %2815 = vrot.lane.b32.xlu0 %v2431, 64
      %v2816 = vpop.permute.xlu0 %2815
      %2817 = vrot.lane.b32.xlu0 %v2432, 64
      %v2818 = vpop.permute.xlu0 %2817
      %2819 = vrot.lane.b32.xlu0 %v2433, 64
      %v2820 = vpop.permute.xlu0 %2819
      %2821 = vrot.lane.b32.xlu0 %v2434, 64
      %v2822 = vpop.permute.xlu0 %2821
      %2823 = vrot.lane.b32.xlu0 %v2435, 64
      %v2824 = vpop.permute.xlu0 %2823
      %2825 = vrot.lane.b32.xlu0 %v2436, 64
      %v2826 = vpop.permute.xlu0 %2825
      %2827 = vrot.lane.b32.xlu0 %v2437, 64
      %v2828 = vpop.permute.xlu0 %2827
      %2829 = vrot.lane.b32.xlu0 %v2438, 64
      %v2830 = vpop.permute.xlu0 %2829
      %2831 = vrot.lane.b32.xlu0 %v2439, 64
      %v2832 = vpop.permute.xlu0 %2831
      %2833 = vrot.lane.b32.xlu0 %v2440, 64
      %v2834 = vpop.permute.xlu0 %2833
      %2835 = vrot.lane.b32.xlu0 %v2441, 64
      %v2836 = vpop.permute.xlu0 %2835
      %2837 = vrot.lane.b32.xlu0 %v2442, 64
      %v2838 = vpop.permute.xlu0 %2837
      %2839 = vrot.lane.b32.xlu0 %v2443, 64
      %v2840 = vpop.permute.xlu0 %2839
      %2841 = vrot.lane.b32.xlu0 %v2444, 64
      %v2842 = vpop.permute.xlu0 %2841
      %2843 = vrot.lane.b32.xlu0 %v2445, 64
      %v2844 = vpop.permute.xlu0 %2843
      %2845 = vrot.lane.b32.xlu0 %v2446, 64
      %v2846 = vpop.permute.xlu0 %2845
      %2847 = vrot.lane.b32.xlu0 %v2447, 64
      %v2848 = vpop.permute.xlu0 %2847
      %2849 = vrot.lane.b32.xlu0 %v2448, 64
      %v2850 = vpop.permute.xlu0 %2849
      %2851 = vrot.lane.b32.xlu0 %v2449, 64
      %v2852 = vpop.permute.xlu0 %2851
      %2853 = vrot.lane.b32.xlu0 %v2450, 64
      %v2854 = vpop.permute.xlu0 %2853
      %2855 = vrot.lane.b32.xlu0 %v2451, 64
      %v2856 = vpop.permute.xlu0 %2855
      %2857 = vrot.lane.b32.xlu0 %v2452, 64
      %v2858 = vpop.permute.xlu0 %2857
      %2859 = vrot.lane.b32.xlu0 %v2453, 64
      %v2860 = vpop.permute.xlu0 %2859
      %2861 = vrot.lane.b32.xlu0 %v2454, 64
      %v2862 = vpop.permute.xlu0 %2861
      %2863 = vrot.lane.b32.xlu0 %v2455, 64
      %v2864 = vpop.permute.xlu0 %2863
      %2865 = vrot.lane.b32.xlu0 %v2456, 64
      %v2866 = vpop.permute.xlu0 %2865
      %2867 = vrot.lane.b32.xlu0 %v2457, 64
      %v2868 = vpop.permute.xlu0 %2867
      %2869 = vrot.lane.b32.xlu0 %v2458, 64
      %v2870 = vpop.permute.xlu0 %2869
      %2871 = vrot.lane.b32.xlu0 %v2459, 64
      %v2872 = vpop.permute.xlu0 %2871
      %2873 = vrot.lane.b32.xlu0 %v2460, 64
      %v2874 = vpop.permute.xlu0 %2873
      %2875 = vrot.lane.b32.xlu0 %v2461, 64
      %v2876 = vpop.permute.xlu0 %2875
      %2877 = vrot.lane.b32.xlu0 %v2462, 64
      %v2878 = vpop.permute.xlu0 %2877
      %2879 = vrot.lane.b32.xlu0 %v2463, 64
      %v2880 = vpop.permute.xlu0 %2879
      %2881 = vrot.lane.b32.xlu0 %v2464, 64
      %v2882 = vpop.permute.xlu0 %2881
      %2883 = vrot.lane.b32.xlu0 %v2465, 64
      %v2884 = vpop.permute.xlu0 %2883
      %2885 = vrot.lane.b32.xlu0 %v2466, 64
      %v2886 = vpop.permute.xlu0 %2885
      %2887 = vrot.lane.b32.xlu0 %v2467, 64
      %v2888 = vpop.permute.xlu0 %2887
      %2889 = vrot.lane.b32.xlu0 %v2468, 64
      %v2890 = vpop.permute.xlu0 %2889
      %2891 = vrot.lane.b32.xlu0 %v2469, 64
      %v2892 = vpop.permute.xlu0 %2891
      %2893 = vrot.lane.b32.xlu0 %v2470, 64
      %v2894 = vpop.permute.xlu0 %2893
      %2895 = vrot.lane.b32.xlu0 %v2471, 64
      %v2896 = vpop.permute.xlu0 %2895
      %2897 = vrot.lane.b32.xlu0 %v2472, 64
      %v2898 = vpop.permute.xlu0 %2897
      %2899 = vrot.lane.b32.xlu0 %v2473, 64
      %v2900 = vpop.permute.xlu0 %2899
      %2901 = vrot.lane.b32.xlu0 %v2474, 64
      %v2902 = vpop.permute.xlu0 %2901
      %2903 = vrot.lane.b32.xlu0 %v2475, 64
      %v2904 = vpop.permute.xlu0 %2903
      %2905 = vrot.lane.b32.xlu0 %v2476, 64
      %v2906 = vpop.permute.xlu0 %2905
      %2907 = vrot.lane.b32.xlu0 %v2477, 64
      %v2908 = vpop.permute.xlu0 %2907
      %2909 = vrot.lane.b32.xlu0 %v2478, 64
      %v2910 = vpop.permute.xlu0 %2909
      %2911 = vrot.lane.b32.xlu0 %v2479, 64
      %v2912 = vpop.permute.xlu0 %2911
      %2913 = vrot.lane.b32.xlu0 %v2480, 64
      %v2914 = vpop.permute.xlu0 %2913
      %2915 = vrot.lane.b32.xlu0 %v2481, 64
      %v2916 = vpop.permute.xlu0 %2915
      %2917 = vrot.lane.b32.xlu0 %v2482, 64
      %v2918 = vpop.permute.xlu0 %2917
      %2919 = vrot.lane.b32.xlu0 %v2483, 64
      %v2920 = vpop.permute.xlu0 %2919
      %2921 = vrot.lane.b32.xlu0 %v2484, 64
      %v2922 = vpop.permute.xlu0 %2921
      %2923 = vrot.lane.b32.xlu0 %v2485, 64
      %v2924 = vpop.permute.xlu0 %2923
      %2925 = vrot.lane.b32.xlu0 %v2486, 64
      %v2926 = vpop.permute.xlu0 %2925
      %2927 = vrot.lane.b32.xlu0 %v2487, 64
      %v2928 = vpop.permute.xlu0 %2927
      %2929 = vrot.lane.b32.xlu0 %v2488, 64
      %v2930 = vpop.permute.xlu0 %2929
      %2931 = vrot.lane.b32.xlu0 %v2489, 64
      %v2932 = vpop.permute.xlu0 %2931
      %2933 = vrot.lane.b32.xlu0 %v2490, 64
      %v2934 = vpop.permute.xlu0 %2933
      %2935 = vrot.lane.b32.xlu0 %v2491, 64
      %v2936 = vpop.permute.xlu0 %2935
      %2937 = vrot.lane.b32.xlu0 %v2492, 64
      %v2938 = vpop.permute.xlu0 %2937
      %2939 = vrot.lane.b32.xlu0 %v2493, 64
      %v2940 = vpop.permute.xlu0 %2939
      %2941 = vrot.lane.b32.xlu0 %v2494, 64
      %v2942 = vpop.permute.xlu0 %2941
      %v3007 = vsel %vm1447, %v2239, %v2560
      %v3008 = vsel %vm1447, %v2240, %v2562
      %v3009 = vsel %vm1447, %v2241, %v2564
      %v3010 = vsel %vm1447, %v2242, %v2566
      %v3011 = vsel %vm1447, %v2243, %v2568
      %v3012 = vsel %vm1447, %v2244, %v2570
      %v3013 = vsel %vm1447, %v2245, %v2572
      %v3014 = vsel %vm1447, %v2246, %v2574
      %v3015 = vsel %vm1447, %v2247, %v2576
      %v3016 = vsel %vm1447, %v2248, %v2578
      %v3017 = vsel %vm1447, %v2249, %v2580
      %v3018 = vsel %vm1447, %v2250, %v2582
      %v3019 = vsel %vm1447, %v2251, %v2584
      %v3020 = vsel %vm1447, %v2252, %v2586
      %v3021 = vsel %vm1447, %v2253, %v2588
      %v3022 = vsel %vm1447, %v2254, %v2590
      %v3023 = vsel %vm1447, %v2255, %v2592
      %v3024 = vsel %vm1447, %v2256, %v2594
      %v3025 = vsel %vm1447, %v2257, %v2596
      %v3026 = vsel %vm1447, %v2258, %v2598
      %v3027 = vsel %vm1447, %v2259, %v2600
      %v3028 = vsel %vm1447, %v2260, %v2602
      %v3029 = vsel %vm1447, %v2261, %v2604
      %v3030 = vsel %vm1447, %v2262, %v2606
      %v3031 = vsel %vm1447, %v2263, %v2608
      %v3032 = vsel %vm1447, %v2264, %v2610
      %v3033 = vsel %vm1447, %v2265, %v2612
      %v3034 = vsel %vm1447, %v2266, %v2614
      %v3035 = vsel %vm1447, %v2267, %v2616
      %v3036 = vsel %vm1447, %v2268, %v2618
      %v3037 = vsel %vm1447, %v2269, %v2620
      %v3038 = vsel %vm1447, %v2270, %v2622
      %v3039 = vsel %vm1447, %v2271, %v2624
      %v3040 = vsel %vm1447, %v2272, %v2626
      %v3041 = vsel %vm1447, %v2273, %v2628
      %v3042 = vsel %vm1447, %v2274, %v2630
      %v3043 = vsel %vm1447, %v2275, %v2632
      %v3044 = vsel %vm1447, %v2276, %v2634
      %v3045 = vsel %vm1447, %v2277, %v2636
      %v3046 = vsel %vm1447, %v2278, %v2638
      %v3047 = vsel %vm1447, %v2279, %v2640
      %v3048 = vsel %vm1447, %v2280, %v2642
      %v3049 = vsel %vm1447, %v2281, %v2644
      %v3050 = vsel %vm1447, %v2282, %v2646
      %v3051 = vsel %vm1447, %v2283, %v2648
      %v3052 = vsel %vm1447, %v2284, %v2650
      %v3053 = vsel %vm1447, %v2285, %v2652
      %v3054 = vsel %vm1447, %v2286, %v2654
      %v3055 = vsel %vm1447, %v2287, %v2656
      %v3056 = vsel %vm1447, %v2288, %v2658
      %v3057 = vsel %vm1447, %v2289, %v2660
      %v3058 = vsel %vm1447, %v2290, %v2662
      %v3059 = vsel %vm1447, %v2291, %v2664
      %v3060 = vsel %vm1447, %v2292, %v2666
      %v3061 = vsel %vm1447, %v2293, %v2668
      %v3062 = vsel %vm1447, %v2294, %v2670
      %v3063 = vsel %vm1447, %v2295, %v2672
      %v3064 = vsel %vm1447, %v2296, %v2674
      %v3065 = vsel %vm1447, %v2297, %v2676
      %v3066 = vsel %vm1447, %v2298, %v2678
      %v3067 = vsel %vm1447, %v2299, %v2680
      %v3068 = vsel %vm1447, %v2300, %v2682
      %v3069 = vsel %vm1447, %v2301, %v2684
      %v3070 = vsel %vm1447, %v2302, %v2686
      %v3071 = vsel %vm1512, %v3007, %v2816
      %v3072 = vsel %vm1512, %v3008, %v2818
      %v3073 = vsel %vm1512, %v3009, %v2820
      %v3074 = vsel %vm1512, %v3010, %v2822
      %v3075 = vsel %vm1512, %v3011, %v2824
      %v3076 = vsel %vm1512, %v3012, %v2826
      %v3077 = vsel %vm1512, %v3013, %v2828
      %v3078 = vsel %vm1512, %v3014, %v2830
      %v3079 = vsel %vm1512, %v3015, %v2832
      %v3080 = vsel %vm1512, %v3016, %v2834
      %v3081 = vsel %vm1512, %v3017, %v2836
      %v3082 = vsel %vm1512, %v3018, %v2838
      %v3083 = vsel %vm1512, %v3019, %v2840
      %v3084 = vsel %vm1512, %v3020, %v2842
      %v3085 = vsel %vm1512, %v3021, %v2844
      %v3086 = vsel %vm1512, %v3022, %v2846
      %v3087 = vsel %vm1512, %v3023, %v2848
      %v3088 = vsel %vm1512, %v3024, %v2850
      %v3089 = vsel %vm1512, %v3025, %v2852
      %v3090 = vsel %vm1512, %v3026, %v2854
      %v3091 = vsel %vm1512, %v3027, %v2856
      %v3092 = vsel %vm1512, %v3028, %v2858
      %v3093 = vsel %vm1512, %v3029, %v2860
      %v3094 = vsel %vm1512, %v3030, %v2862
      %v3095 = vsel %vm1512, %v3031, %v2864
      %v3096 = vsel %vm1512, %v3032, %v2866
      %v3097 = vsel %vm1512, %v3033, %v2868
      %v3098 = vsel %vm1512, %v3034, %v2870
      %v3099 = vsel %vm1512, %v3035, %v2872
      %v3100 = vsel %vm1512, %v3036, %v2874
      %v3101 = vsel %vm1512, %v3037, %v2876
      %v3102 = vsel %vm1512, %v3038, %v2878
      %v3103 = vsel %vm1512, %v3039, %v2880
      %v3104 = vsel %vm1512, %v3040, %v2882
      %v3105 = vsel %vm1512, %v3041, %v2884
      %v3106 = vsel %vm1512, %v3042, %v2886
      %v3107 = vsel %vm1512, %v3043, %v2888
      %v3108 = vsel %vm1512, %v3044, %v2890
      %v3109 = vsel %vm1512, %v3045, %v2892
      %v3110 = vsel %vm1512, %v3046, %v2894
      %v3111 = vsel %vm1512, %v3047, %v2896
      %v3112 = vsel %vm1512, %v3048, %v2898
      %v3113 = vsel %vm1512, %v3049, %v2900
      %v3114 = vsel %vm1512, %v3050, %v2902
      %v3115 = vsel %vm1512, %v3051, %v2904
      %v3116 = vsel %vm1512, %v3052, %v2906
      %v3117 = vsel %vm1512, %v3053, %v2908
      %v3118 = vsel %vm1512, %v3054, %v2910
      %v3119 = vsel %vm1512, %v3055, %v2912
      %v3120 = vsel %vm1512, %v3056, %v2914
      %v3121 = vsel %vm1512, %v3057, %v2916
      %v3122 = vsel %vm1512, %v3058, %v2918
      %v3123 = vsel %vm1512, %v3059, %v2920
      %v3124 = vsel %vm1512, %v3060, %v2922
      %v3125 = vsel %vm1512, %v3061, %v2924
      %v3126 = vsel %vm1512, %v3062, %v2926
      %v3127 = vsel %vm1512, %v3063, %v2928
      %v3128 = vsel %vm1512, %v3064, %v2930
      %v3129 = vsel %vm1512, %v3065, %v2932
      %v3130 = vsel %vm1512, %v3066, %v2934
      %v3131 = vsel %vm1512, %v3067, %v2936
      %v3132 = vsel %vm1512, %v3068, %v2938
      %v3133 = vsel %vm1512, %v3069, %v2940
      %v3134 = vsel %vm1512, %v3070, %v2942
      %v3135 = vpack.c.bf16 %v3072, %v3071
      %v3136 = vpack.c.bf16 %v3074, %v3073
      %v3137 = vpack.c.bf16 %v3076, %v3075
      %v3138 = vpack.c.bf16 %v3078, %v3077
      %v3139 = vpack.c.bf16 %v3080, %v3079
      %v3140 = vpack.c.bf16 %v3082, %v3081
      %v3141 = vpack.c.bf16 %v3084, %v3083
      %v3142 = vpack.c.bf16 %v3086, %v3085
      %v3143 = vpack.c.bf16 %v3088, %v3087
      %v3144 = vpack.c.bf16 %v3090, %v3089
      %v3145 = vpack.c.bf16 %v3092, %v3091
      %v3146 = vpack.c.bf16 %v3094, %v3093
      %v3147 = vpack.c.bf16 %v3096, %v3095
      %v3148 = vpack.c.bf16 %v3098, %v3097
      %v3149 = vpack.c.bf16 %v3100, %v3099
      %v3150 = vpack.c.bf16 %v3102, %v3101
      %v3151 = vpack.c.bf16 %v3104, %v3103
      %v3152 = vpack.c.bf16 %v3106, %v3105
      %v3153 = vpack.c.bf16 %v3108, %v3107
      %v3154 = vpack.c.bf16 %v3110, %v3109
      %v3155 = vpack.c.bf16 %v3112, %v3111
      %v3156 = vpack.c.bf16 %v3114, %v3113
      %v3157 = vpack.c.bf16 %v3116, %v3115
      %v3158 = vpack.c.bf16 %v3118, %v3117
      %v3159 = vpack.c.bf16 %v3120, %v3119
      %v3160 = vpack.c.bf16 %v3122, %v3121
      %v3161 = vpack.c.bf16 %v3124, %v3123
      %v3162 = vpack.c.bf16 %v3126, %v3125
      %v3163 = vpack.c.bf16 %v3128, %v3127
      %v3164 = vpack.c.bf16 %v3130, %v3129
      %v3165 = vpack.c.bf16 %v3132, %v3131
      %v3166 = vpack.c.bf16 %v3134, %v3133
      %s3167 = scalar_lea.vmem %s1, 48
      %v3168 = vld [vmem:[%s3167] sm:$0xf]
      %v3169 = vld [vmem:[%s3167 + $0x4] sm:$0xf]
      %v3170 = vld [vmem:[%s3167 + $0x8] sm:$0xf]
      %v3171 = vld [vmem:[%s3167 + $0xc] sm:$0xf]
      %v3172 = vld [vmem:[%s3167 + $0x10] sm:$0xf]
      %v3173 = vld [vmem:[%s3167 + $0x14] sm:$0xf]
      %v3174 = vld [vmem:[%s3167 + $0x18] sm:$0xf]
      %v3175 = vld [vmem:[%s3167 + $0x1c] sm:$0xf]
      %v3176 = vld [vmem:[%s3167 + $0x20] sm:$0xf]
      %v3177 = vld [vmem:[%s3167 + $0x24] sm:$0xf]
      %v3178 = vld [vmem:[%s3167 + $0x28] sm:$0xf]
      %v3179 = vld [vmem:[%s3167 + $0x2c] sm:$0xf]
      %v3180 = vlaneseq
      %v3181 = vshrl.u32 %v3180, 7
      %v3182 = vsub.s32 1, %v3181
      %v3183 = vrot.slane %v226, %v3182
      %v3196 = vunpack.c.l.b16 %v3168
      %v3197 = vunpack.c.l.b16 %v3169
      %v3198 = vunpack.c.l.b16 %v3170
      %v3199 = vunpack.c.l.b16 %v3171
      %v3200 = vunpack.c.l.b16 %v3172
      %v3201 = vunpack.c.l.b16 %v3173
      %v3202 = vunpack.c.l.b16 %v3174
      %v3203 = vunpack.c.l.b16 %v3175
      %v3204 = vunpack.c.l.b16 %v3176
      %v3205 = vunpack.c.l.b16 %v3177
      %v3206 = vunpack.c.l.b16 %v3178
      %v3207 = vunpack.c.l.b16 %v3179
      %v3208 = vpack.c.b16 %v3197, %v3196
      %v3209 = vpack.c.b16 %v3199, %v3198
      %v3210 = vpack.c.b16 %v3201, %v3200
      %v3211 = vpack.c.b16 %v3203, %v3202
      %v3212 = vpack.c.b16 %v3205, %v3204
      %v3213 = vpack.c.b16 %v3207, %v3206
      %v3221 = vsel %vm1661, %v3135, 0
      %v3224 = vsel %vm1661, %v3136, 0
      %v3227 = vsel %vm1661, %v3137, 0
      %v3230 = vsel %vm1661, %v3138, 0
      %v3233 = vsel %vm1661, %v3139, 0
      %v3236 = vsel %vm1661, %v3140, 0
      %v3239 = vsel %vm1661, %v3141, 0
      %v3242 = vsel %vm1661, %v3142, 0
      %v3245 = vsel %vm1661, %v3143, 0
      %v3248 = vsel %vm1661, %v3144, 0
      %v3251 = vsel %vm1661, %v3145, 0
      %v3254 = vsel %vm1661, %v3146, 0
      %v3257 = vsel %vm1661, %v3147, 0
      %v3260 = vsel %vm1661, %v3148, 0
      %v3263 = vsel %vm1661, %v3149, 0
      %v3266 = vsel %vm1661, %v3150, 0
      %v3269 = vsel %vm1661, %v3151, 0
      %v3272 = vsel %vm1661, %v3152, 0
      %v3275 = vsel %vm1661, %v3153, 0
      %v3278 = vsel %vm1661, %v3154, 0
      %v3281 = vsel %vm1661, %v3155, 0
      %v3284 = vsel %vm1661, %v3156, 0
      %v3287 = vsel %vm1661, %v3157, 0
      %v3290 = vsel %vm1661, %v3158, 0
      %v3293 = vsel %vm1661, %v3159, 0
      %v3296 = vsel %vm1661, %v3160, 0
      %v3299 = vsel %vm1661, %v3161, 0
      %v3302 = vsel %vm1661, %v3162, 0
      %v3305 = vsel %vm1661, %v3163, 0
      %v3308 = vsel %vm1661, %v3164, 0
      %v3311 = vsel %vm1661, %v3165, 0
      %v3314 = vsel %vm1661, %v3166, 0
      %3316 = vmatprep.subr.bf16.mxu0 0
      %3317 = vmatpush1.bf16.msra.mxu0 %v3208
      %3318 = vmatprep.subr.bf16.mxu0 0
      %3319 = vmatpush1.bf16.msra.mxu0 %v3209
      %3320 = vmatprep.subr.bf16.mxu0 0
      %3321 = vmatpush1.bf16.msra.mxu0 %v3210
      %3322 = vmatprep.subr.bf16.mxu0 0
      %3323 = vmatpush1.bf16.msra.mxu0 %v3211
      %3324 = vmatprep.subr.bf16.mxu0 0
      %3325 = vmatpush1.bf16.msra.mxu0 %v3212
      %3326 = vmatprep.subr.bf16.mxu0 0
      %3327 = vmatpush1.bf16.msra.mxu0 %v3213
      %3328 = vmatprep.subr.bf16.mxu0 0
      %3329 = vmatpush1.bf16.msra.mxu0 0
      %3330 = vmatprep.subr.bf16.mxu0 0
      %3331 = vmatpush1.bf16.msra.mxu0 0
      %3332 = vmatprep.subr.bf16.mxu0 0
      %3333 = vmatpush1.bf16.msra.mxu0 0
      %3334 = vmatprep.subr.bf16.mxu0 0
      %3335 = vmatpush1.bf16.msra.mxu0 0
      %3336 = vmatprep.subr.bf16.mxu0 0
      %3337 = vmatpush1.bf16.msra.mxu0 0
      %3338 = vmatprep.subr.bf16.mxu0 0
      %3339 = vmatpush1.bf16.msra.mxu0 0
      %3340 = vmatprep.subr.bf16.mxu0 0
      %3341 = vmatpush1.bf16.msra.mxu0 0
      %3342 = vmatprep.subr.bf16.mxu0 0
      %3343 = vmatpush1.bf16.msra.mxu0 0
      %3344 = vmatprep.subr.bf16.mxu0 0
      %3345 = vmatpush1.bf16.msra.mxu0 0
      %3346 = vmatprep.subr.bf16.mxu0 0
      %3347 = vmatpush1.bf16.msra.mxu0 0
      %3348 = vmatprep.mubr.bf16.mxu0 0
      %3349 = vmatmul.mubr.bf16.gmra.mrb[0].mxu0 %v3221
      %v3350 = vpop.f32.mrb[0].mxu0
      %v3351 = vadd.f32 %v3183, %v3350
      %v3352 = vpop.f32.mrb[0].mxu0
      %v3353 = vpop.f32.mrb[0].mxu0
      %v3354 = vadd.f32 %v3183, %v3353
      %v3355 = vpop.f32.mrb[0].mxu0
      %3356 = vmatprep.mubr.bf16.mxu0 0
      %3357 = vmatmul.mubr.bf16.gmra.mrb[0].mxu0 %v3224
      %v3358 = vpop.f32.mrb[0].mxu0
      %v3359 = vadd.f32 %v3183, %v3358
      %v3360 = vpop.f32.mrb[0].mxu0
      %v3361 = vpop.f32.mrb[0].mxu0
      %v3362 = vadd.f32 %v3183, %v3361
      %v3363 = vpop.f32.mrb[0].mxu0
      %3364 = vmatprep.mubr.bf16.mxu0 0
      %3365 = vmatmul.mubr.bf16.gmra.mrb[0].mxu0 %v3227
      %v3366 = vpop.f32.mrb[0].mxu0
      %v3367 = vadd.f32 %v3183, %v3366
      %v3368 = vpop.f32.mrb[0].mxu0
      %v3369 = vpop.f32.mrb[0].mxu0
      %v3370 = vadd.f32 %v3183, %v3369
      %v3371 = vpop.f32.mrb[0].mxu0
      %3372 = vmatprep.mubr.bf16.mxu0 0
      %3373 = vmatmul.mubr.bf16.gmra.mrb[0].mxu0 %v3230
      %v3374 = vpop.f32.mrb[0].mxu0
      %v3375 = vadd.f32 %v3183, %v3374
      %v3376 = vpop.f32.mrb[0].mxu0
      %v3377 = vpop.f32.mrb[0].mxu0
      %v3378 = vadd.f32 %v3183, %v3377
      %v3379 = vpop.f32.mrb[0].mxu0
      %3380 = vmatprep.mubr.bf16.mxu0 0
      %3381 = vmatmul.mubr.bf16.gmra.mrb[0].mxu0 %v3233
      %v3382 = vpop.f32.mrb[0].mxu0
      %v3383 = vadd.f32 %v3183, %v3382
      %v3384 = vpop.f32.mrb[0].mxu0
      %v3385 = vpop.f32.mrb[0].mxu0
      %v3386 = vadd.f32 %v3183, %v3385
      %v3387 = vpop.f32.mrb[0].mxu0
      %3388 = vmatprep.mubr.bf16.mxu0 0
      %3389 = vmatmul.mubr.bf16.gmra.mrb[0].mxu0 %v3236
      %v3390 = vpop.f32.mrb[0].mxu0
      %v3391 = vadd.f32 %v3183, %v3390
      %v3392 = vpop.f32.mrb[0].mxu0
      %v3393 = vpop.f32.mrb[0].mxu0
      %v3394 = vadd.f32 %v3183, %v3393
      %v3395 = vpop.f32.mrb[0].mxu0
      %3396 = vmatprep.mubr.bf16.mxu0 0
      %3397 = vmatmul.mubr.bf16.gmra.mrb[0].mxu0 %v3239
      %v3398 = vpop.f32.mrb[0].mxu0
      %v3399 = vadd.f32 %v3183, %v3398
      %v3400 = vpop.f32.mrb[0].mxu0
      %v3401 = vpop.f32.mrb[0].mxu0
      %v3402 = vadd.f32 %v3183, %v3401
      %v3403 = vpop.f32.mrb[0].mxu0
      %3404 = vmatprep.mubr.bf16.mxu0 0
      %3405 = vmatmul.mubr.bf16.gmra.mrb[0].mxu0 %v3242
      %v3406 = vpop.f32.mrb[0].mxu0
      %v3407 = vadd.f32 %v3183, %v3406
      %v3408 = vpop.f32.mrb[0].mxu0
      %v3409 = vpop.f32.mrb[0].mxu0
      %v3410 = vadd.f32 %v3183, %v3409
      %v3411 = vpop.f32.mrb[0].mxu0
      %3412 = vmatprep.mubr.bf16.mxu0 0
      %3413 = vmatmul.mubr.bf16.gmra.mrb[0].mxu0 %v3245
      %v3414 = vpop.f32.mrb[0].mxu0
      %v3415 = vadd.f32 %v3183, %v3414
      %v3416 = vpop.f32.mrb[0].mxu0
      %v3417 = vpop.f32.mrb[0].mxu0
      %v3418 = vadd.f32 %v3183, %v3417
      %v3419 = vpop.f32.mrb[0].mxu0
      %3420 = vmatprep.mubr.bf16.mxu0 0
      %3421 = vmatmul.mubr.bf16.gmra.mrb[0].mxu0 %v3248
      %v3422 = vpop.f32.mrb[0].mxu0
      %v3423 = vadd.f32 %v3183, %v3422
      %v3424 = vpop.f32.mrb[0].mxu0
      %v3425 = vpop.f32.mrb[0].mxu0
      %v3426 = vadd.f32 %v3183, %v3425
      %v3427 = vpop.f32.mrb[0].mxu0
      %3428 = vmatprep.mubr.bf16.mxu0 0
      %3429 = vmatmul.mubr.bf16.gmra.mrb[0].mxu0 %v3251
      %v3430 = vpop.f32.mrb[0].mxu0
      %v3431 = vadd.f32 %v3183, %v3430
      %v3432 = vpop.f32.mrb[0].mxu0
      %v3433 = vpop.f32.mrb[0].mxu0
      %v3434 = vadd.f32 %v3183, %v3433
      %v3435 = vpop.f32.mrb[0].mxu0
      %3436 = vmatprep.mubr.bf16.mxu0 0
      %3437 = vmatmul.mubr.bf16.gmra.mrb[0].mxu0 %v3254
      %v3438 = vpop.f32.mrb[0].mxu0
      %v3439 = vadd.f32 %v3183, %v3438
      %v3440 = vpop.f32.mrb[0].mxu0
      %v3441 = vpop.f32.mrb[0].mxu0
      %v3442 = vadd.f32 %v3183, %v3441
      %v3443 = vpop.f32.mrb[0].mxu0
      %3444 = vmatprep.mubr.bf16.mxu0 0
      %3445 = vmatmul.mubr.bf16.gmra.mrb[0].mxu0 %v3257
      %v3446 = vpop.f32.mrb[0].mxu0
      %v3447 = vadd.f32 %v3183, %v3446
      %v3448 = vpop.f32.mrb[0].mxu0
      %v3449 = vpop.f32.mrb[0].mxu0
      %v3450 = vadd.f32 %v3183, %v3449
      %v3451 = vpop.f32.mrb[0].mxu0
      %3452 = vmatprep.mubr.bf16.mxu0 0
      %3453 = vmatmul.mubr.bf16.gmra.mrb[0].mxu0 %v3260
      %v3454 = vpop.f32.mrb[0].mxu0
      %v3455 = vadd.f32 %v3183, %v3454
      %v3456 = vpop.f32.mrb[0].mxu0
      %v3457 = vpop.f32.mrb[0].mxu0
      %v3458 = vadd.f32 %v3183, %v3457
      %v3459 = vpop.f32.mrb[0].mxu0
      %3460 = vmatprep.mubr.bf16.mxu0 0
      %3461 = vmatmul.mubr.bf16.gmra.mrb[0].mxu0 %v3263
      %v3462 = vpop.f32.mrb[0].mxu0
      %v3463 = vadd.f32 %v3183, %v3462
      %v3464 = vpop.f32.mrb[0].mxu0
      %v3465 = vpop.f32.mrb[0].mxu0
      %v3466 = vadd.f32 %v3183, %v3465
      %v3467 = vpop.f32.mrb[0].mxu0
      %3468 = vmatprep.mubr.bf16.mxu0 0
      %3469 = vmatmul.mubr.bf16.gmra.mrb[0].mxu0 %v3266
      %v3470 = vpop.f32.mrb[0].mxu0
      %v3471 = vadd.f32 %v3183, %v3470
      %v3472 = vpop.f32.mrb[0].mxu0
      %v3473 = vpop.f32.mrb[0].mxu0
      %v3474 = vadd.f32 %v3183, %v3473
      %v3475 = vpop.f32.mrb[0].mxu0
      %3476 = vmatprep.mubr.bf16.mxu0 0
      %3477 = vmatmul.mubr.bf16.gmra.mrb[0].mxu0 %v3269
      %v3478 = vpop.f32.mrb[0].mxu0
      %v3479 = vadd.f32 %v3183, %v3478
      %v3480 = vpop.f32.mrb[0].mxu0
      %v3481 = vpop.f32.mrb[0].mxu0
      %v3482 = vadd.f32 %v3183, %v3481
      %v3483 = vpop.f32.mrb[0].mxu0
      %3484 = vmatprep.mubr.bf16.mxu0 0
      %3485 = vmatmul.mubr.bf16.gmra.mrb[0].mxu0 %v3272
      %v3486 = vpop.f32.mrb[0].mxu0
      %v3487 = vadd.f32 %v3183, %v3486
      %v3488 = vpop.f32.mrb[0].mxu0
      %v3489 = vpop.f32.mrb[0].mxu0
      %v3490 = vadd.f32 %v3183, %v3489
      %v3491 = vpop.f32.mrb[0].mxu0
      %3492 = vmatprep.mubr.bf16.mxu0 0
      %3493 = vmatmul.mubr.bf16.gmra.mrb[0].mxu0 %v3275
      %v3494 = vpop.f32.mrb[0].mxu0
      %v3495 = vadd.f32 %v3183, %v3494
      %v3496 = vpop.f32.mrb[0].mxu0
      %v3497 = vpop.f32.mrb[0].mxu0
      %v3498 = vadd.f32 %v3183, %v3497
      %v3499 = vpop.f32.mrb[0].mxu0
      %3500 = vmatprep.mubr.bf16.mxu0 0
      %3501 = vmatmul.mubr.bf16.gmra.mrb[0].mxu0 %v3278
      %v3502 = vpop.f32.mrb[0].mxu0
      %v3503 = vadd.f32 %v3183, %v3502
      %v3504 = vpop.f32.mrb[0].mxu0
      %v3505 = vpop.f32.mrb[0].mxu0
      %v3506 = vadd.f32 %v3183, %v3505
      %v3507 = vpop.f32.mrb[0].mxu0
      %3508 = vmatprep.mubr.bf16.mxu0 0
      %3509 = vmatmul.mubr.bf16.gmra.mrb[0].mxu0 %v3281
      %v3510 = vpop.f32.mrb[0].mxu0
      %v3511 = vadd.f32 %v3183, %v3510
      %v3512 = vpop.f32.mrb[0].mxu0
      %v3513 = vpop.f32.mrb[0].mxu0
      %v3514 = vadd.f32 %v3183, %v3513
      %v3515 = vpop.f32.mrb[0].mxu0
      %3516 = vmatprep.mubr.bf16.mxu0 0
      %3517 = vmatmul.mubr.bf16.gmra.mrb[0].mxu0 %v3284
      %v3518 = vpop.f32.mrb[0].mxu0
      %v3519 = vadd.f32 %v3183, %v3518
      %v3520 = vpop.f32.mrb[0].mxu0
      %v3521 = vpop.f32.mrb[0].mxu0
      %v3522 = vadd.f32 %v3183, %v3521
      %v3523 = vpop.f32.mrb[0].mxu0
      %3524 = vmatprep.mubr.bf16.mxu0 0
      %3525 = vmatmul.mubr.bf16.gmra.mrb[0].mxu0 %v3287
      %v3526 = vpop.f32.mrb[0].mxu0
      %v3527 = vadd.f32 %v3183, %v3526
      %v3528 = vpop.f32.mrb[0].mxu0
      %v3529 = vpop.f32.mrb[0].mxu0
      %v3530 = vadd.f32 %v3183, %v3529
      %v3531 = vpop.f32.mrb[0].mxu0
      %3532 = vmatprep.mubr.bf16.mxu0 0
      %3533 = vmatmul.mubr.bf16.gmra.mrb[0].mxu0 %v3290
      %v3534 = vpop.f32.mrb[0].mxu0
      %v3535 = vadd.f32 %v3183, %v3534
      %v3536 = vpop.f32.mrb[0].mxu0
      %v3537 = vpop.f32.mrb[0].mxu0
      %v3538 = vadd.f32 %v3183, %v3537
      %v3539 = vpop.f32.mrb[0].mxu0
      %3540 = vmatprep.mubr.bf16.mxu0 0
      %3541 = vmatmul.mubr.bf16.gmra.mrb[0].mxu0 %v3293
      %v3542 = vpop.f32.mrb[0].mxu0
      %v3543 = vadd.f32 %v3183, %v3542
      %v3544 = vpop.f32.mrb[0].mxu0
      %v3545 = vpop.f32.mrb[0].mxu0
      %v3546 = vadd.f32 %v3183, %v3545
      %v3547 = vpop.f32.mrb[0].mxu0
      %3548 = vmatprep.mubr.bf16.mxu0 0
      %3549 = vmatmul.mubr.bf16.gmra.mrb[0].mxu0 %v3296
      %v3550 = vpop.f32.mrb[0].mxu0
      %v3551 = vadd.f32 %v3183, %v3550
      %v3552 = vpop.f32.mrb[0].mxu0
      %v3553 = vpop.f32.mrb[0].mxu0
      %v3554 = vadd.f32 %v3183, %v3553
      %v3555 = vpop.f32.mrb[0].mxu0
      %3556 = vmatprep.mubr.bf16.mxu0 0
      %3557 = vmatmul.mubr.bf16.gmra.mrb[0].mxu0 %v3299
      %v3558 = vpop.f32.mrb[0].mxu0
      %v3559 = vadd.f32 %v3183, %v3558
      %v3560 = vpop.f32.mrb[0].mxu0
      %v3561 = vpop.f32.mrb[0].mxu0
      %v3562 = vadd.f32 %v3183, %v3561
      %v3563 = vpop.f32.mrb[0].mxu0
      %3564 = vmatprep.mubr.bf16.mxu0 0
      %3565 = vmatmul.mubr.bf16.gmra.mrb[0].mxu0 %v3302
      %v3566 = vpop.f32.mrb[0].mxu0
      %v3567 = vadd.f32 %v3183, %v3566
      %v3568 = vpop.f32.mrb[0].mxu0
      %v3569 = vpop.f32.mrb[0].mxu0
      %v3570 = vadd.f32 %v3183, %v3569
      %v3571 = vpop.f32.mrb[0].mxu0
      %3572 = vmatprep.mubr.bf16.mxu0 0
      %3573 = vmatmul.mubr.bf16.gmra.mrb[0].mxu0 %v3305
      %v3574 = vpop.f32.mrb[0].mxu0
      %v3575 = vadd.f32 %v3183, %v3574
      %v3576 = vpop.f32.mrb[0].mxu0
      %v3577 = vpop.f32.mrb[0].mxu0
      %v3578 = vadd.f32 %v3183, %v3577
      %v3579 = vpop.f32.mrb[0].mxu0
      %3580 = vmatprep.mubr.bf16.mxu0 0
      %3581 = vmatmul.mubr.bf16.gmra.mrb[0].mxu0 %v3308
      %v3582 = vpop.f32.mrb[0].mxu0
      %v3583 = vadd.f32 %v3183, %v3582
      %v3584 = vpop.f32.mrb[0].mxu0
      %v3585 = vpop.f32.mrb[0].mxu0
      %v3586 = vadd.f32 %v3183, %v3585
      %v3587 = vpop.f32.mrb[0].mxu0
      %3588 = vmatprep.mubr.bf16.mxu0 0
      %3589 = vmatmul.mubr.bf16.gmra.mrb[0].mxu0 %v3311
      %v3590 = vpop.f32.mrb[0].mxu0
      %v3591 = vadd.f32 %v3183, %v3590
      %v3592 = vpop.f32.mrb[0].mxu0
      %v3593 = vpop.f32.mrb[0].mxu0
      %v3594 = vadd.f32 %v3183, %v3593
      %v3595 = vpop.f32.mrb[0].mxu0
      %3596 = vmatprep.mubr.bf16.mxu0 0
      %3597 = vmatmul.mubr.bf16.gmra.mrb[0].mxu0 %v3314
      %v3598 = vpop.f32.mrb[0].mxu0
      %v3599 = vadd.f32 %v3183, %v3598
      %v3600 = vpop.f32.mrb[0].mxu0
      %v3601 = vpop.f32.mrb[0].mxu0
      %v3602 = vadd.f32 %v3183, %v3601
      %v3603 = vpop.f32.mrb[0].mxu0
      %3604 = vdwg.mxu0
      %v3605 = vmax.f32 %v3351, 0.0
      %v3606 = vmax.f32 %v3354, 0.0
      %v3607 = vmax.f32 %v3359, 0.0
      %v3608 = vmax.f32 %v3362, 0.0
      %v3609 = vmax.f32 %v3367, 0.0
      %v3610 = vmax.f32 %v3370, 0.0
      %v3611 = vmax.f32 %v3375, 0.0
      %v3612 = vmax.f32 %v3378, 0.0
      %v3613 = vmax.f32 %v3383, 0.0
      %v3614 = vmax.f32 %v3386, 0.0
      %v3615 = vmax.f32 %v3391, 0.0
      %v3616 = vmax.f32 %v3394, 0.0
      %v3617 = vmax.f32 %v3399, 0.0
      %v3618 = vmax.f32 %v3402, 0.0
      %v3619 = vmax.f32 %v3407, 0.0
      %v3620 = vmax.f32 %v3410, 0.0
      %v3621 = vmax.f32 %v3415, 0.0
      %v3622 = vmax.f32 %v3418, 0.0
      %v3623 = vmax.f32 %v3423, 0.0
      %v3624 = vmax.f32 %v3426, 0.0
      %v3625 = vmax.f32 %v3431, 0.0
      %v3626 = vmax.f32 %v3434, 0.0
      %v3627 = vmax.f32 %v3439, 0.0
      %v3628 = vmax.f32 %v3442, 0.0
      %v3629 = vmax.f32 %v3447, 0.0
      %v3630 = vmax.f32 %v3450, 0.0
      %v3631 = vmax.f32 %v3455, 0.0
      %v3632 = vmax.f32 %v3458, 0.0
      %v3633 = vmax.f32 %v3463, 0.0
      %v3634 = vmax.f32 %v3466, 0.0
      %v3635 = vmax.f32 %v3471, 0.0
      %v3636 = vmax.f32 %v3474, 0.0
      %v3637 = vmax.f32 %v3479, 0.0
      %v3638 = vmax.f32 %v3482, 0.0
      %v3639 = vmax.f32 %v3487, 0.0
      %v3640 = vmax.f32 %v3490, 0.0
      %v3641 = vmax.f32 %v3495, 0.0
      %v3642 = vmax.f32 %v3498, 0.0
      %v3643 = vmax.f32 %v3503, 0.0
      %v3644 = vmax.f32 %v3506, 0.0
      %v3645 = vmax.f32 %v3511, 0.0
      %v3646 = vmax.f32 %v3514, 0.0
      %v3647 = vmax.f32 %v3519, 0.0
      %v3648 = vmax.f32 %v3522, 0.0
      %v3649 = vmax.f32 %v3527, 0.0
      %v3650 = vmax.f32 %v3530, 0.0
      %v3651 = vmax.f32 %v3535, 0.0
      %v3652 = vmax.f32 %v3538, 0.0
      %v3653 = vmax.f32 %v3543, 0.0
      %v3654 = vmax.f32 %v3546, 0.0
      %v3655 = vmax.f32 %v3551, 0.0
      %v3656 = vmax.f32 %v3554, 0.0
      %v3657 = vmax.f32 %v3559, 0.0
      %v3658 = vmax.f32 %v3562, 0.0
      %v3659 = vmax.f32 %v3567, 0.0
      %v3660 = vmax.f32 %v3570, 0.0
      %v3661 = vmax.f32 %v3575, 0.0
      %v3662 = vmax.f32 %v3578, 0.0
      %v3663 = vmax.f32 %v3583, 0.0
      %v3664 = vmax.f32 %v3586, 0.0
      %v3665 = vmax.f32 %v3591, 0.0
      %v3666 = vmax.f32 %v3594, 0.0
      %v3667 = vmax.f32 %v3599, 0.0
      %v3668 = vmax.f32 %v3602, 0.0
      %v3669 = vadd.f32 %v3605, %v228
      %v3670 = vadd.f32 %v3606, %v229
      %v3671 = vadd.f32 %v3607, %v230
      %v3672 = vadd.f32 %v3608, %v231
      %v3673 = vadd.f32 %v3609, %v232
      %v3674 = vadd.f32 %v3610, %v233
      %v3675 = vadd.f32 %v3611, %v234
      %v3676 = vadd.f32 %v3612, %v235
      %v3677 = vadd.f32 %v3613, %v236
      %v3678 = vadd.f32 %v3614, %v237
      %v3679 = vadd.f32 %v3615, %v238
      %v3680 = vadd.f32 %v3616, %v239
      %v3681 = vadd.f32 %v3617, %v240
      %v3682 = vadd.f32 %v3618, %v241
      %v3683 = vadd.f32 %v3619, %v242
      %v3684 = vadd.f32 %v3620, %v243
      %v3685 = vadd.f32 %v3621, %v244
      %v3686 = vadd.f32 %v3622, %v245
      %v3687 = vadd.f32 %v3623, %v246
      %v3688 = vadd.f32 %v3624, %v247
      %v3689 = vadd.f32 %v3625, %v248
      %v3690 = vadd.f32 %v3626, %v249
      %v3691 = vadd.f32 %v3627, %v250
      %v3692 = vadd.f32 %v3628, %v251
      %v3693 = vadd.f32 %v3629, %v252
      %v3694 = vadd.f32 %v3630, %v253
      %v3695 = vadd.f32 %v3631, %v254
      %v3696 = vadd.f32 %v3632, %v255
      %v3697 = vadd.f32 %v3633, %v256
      %v3698 = vadd.f32 %v3634, %v257
      %v3699 = vadd.f32 %v3635, %v258
      %v3700 = vadd.f32 %v3636, %v259
      %v3701 = vadd.f32 %v3637, %v260
      %v3702 = vadd.f32 %v3638, %v261
      %v3703 = vadd.f32 %v3639, %v262
      %v3704 = vadd.f32 %v3640, %v263
      %v3705 = vadd.f32 %v3641, %v264
      %v3706 = vadd.f32 %v3642, %v265
      %v3707 = vadd.f32 %v3643, %v266
      %v3708 = vadd.f32 %v3644, %v267
      %v3709 = vadd.f32 %v3645, %v268
      %v3710 = vadd.f32 %v3646, %v269
      %v3711 = vadd.f32 %v3647, %v270
      %v3712 = vadd.f32 %v3648, %v271
      %v3713 = vadd.f32 %v3649, %v272
      %v3714 = vadd.f32 %v3650, %v273
      %v3715 = vadd.f32 %v3651, %v274
      %v3716 = vadd.f32 %v3652, %v275
      %v3717 = vadd.f32 %v3653, %v276
      %v3718 = vadd.f32 %v3654, %v277
      %v3719 = vadd.f32 %v3655, %v278
      %v3720 = vadd.f32 %v3656, %v279
      %v3721 = vadd.f32 %v3657, %v280
      %v3722 = vadd.f32 %v3658, %v281
      %v3723 = vadd.f32 %v3659, %v282
      %v3724 = vadd.f32 %v3660, %v283
      %v3725 = vadd.f32 %v3661, %v284
      %v3726 = vadd.f32 %v3662, %v285
      %v3727 = vadd.f32 %v3663, %v286
      %v3728 = vadd.f32 %v3664, %v287
      %v3729 = vadd.f32 %v3665, %v288
      %v3730 = vadd.f32 %v3666, %v289
      %v3731 = vadd.f32 %v3667, %v290
      %v3732 = vadd.f32 %v3668, %v291
      %v3733 = vrot.slane %v3669, 7
      %v3734 = vrot.slane %v3670, 7
      %v3735 = vrot.slane %v3671, 7
      %v3736 = vrot.slane %v3672, 7
      %v3737 = vrot.slane %v3673, 7
      %v3738 = vrot.slane %v3674, 7
      %v3739 = vrot.slane %v3675, 7
      %v3740 = vrot.slane %v3676, 7
      %v3741 = vrot.slane %v3677, 7
      %v3742 = vrot.slane %v3678, 7
      %v3743 = vrot.slane %v3679, 7
      %v3744 = vrot.slane %v3680, 7
      %v3745 = vrot.slane %v3681, 7
      %v3746 = vrot.slane %v3682, 7
      %v3747 = vrot.slane %v3683, 7
      %v3748 = vrot.slane %v3684, 7
      %v3749 = vrot.slane %v3685, 7
      %v3750 = vrot.slane %v3686, 7
      %v3751 = vrot.slane %v3687, 7
      %v3752 = vrot.slane %v3688, 7
      %v3753 = vrot.slane %v3689, 7
      %v3754 = vrot.slane %v3690, 7
      %v3755 = vrot.slane %v3691, 7
      %v3756 = vrot.slane %v3692, 7
      %v3757 = vrot.slane %v3693, 7
      %v3758 = vrot.slane %v3694, 7
      %v3759 = vrot.slane %v3695, 7
      %v3760 = vrot.slane %v3696, 7
      %v3761 = vrot.slane %v3697, 7
      %v3762 = vrot.slane %v3698, 7
      %v3763 = vrot.slane %v3699, 7
      %v3764 = vrot.slane %v3700, 7
      %v3765 = vrot.slane %v3701, 7
      %v3766 = vrot.slane %v3702, 7
      %v3767 = vrot.slane %v3703, 7
      %v3768 = vrot.slane %v3704, 7
      %v3769 = vrot.slane %v3705, 7
      %v3770 = vrot.slane %v3706, 7
      %v3771 = vrot.slane %v3707, 7
      %v3772 = vrot.slane %v3708, 7
      %v3773 = vrot.slane %v3709, 7
      %v3774 = vrot.slane %v3710, 7
      %v3775 = vrot.slane %v3711, 7
      %v3776 = vrot.slane %v3712, 7
      %v3777 = vrot.slane %v3713, 7
      %v3778 = vrot.slane %v3714, 7
      %v3779 = vrot.slane %v3715, 7
      %v3780 = vrot.slane %v3716, 7
      %v3781 = vrot.slane %v3717, 7
      %v3782 = vrot.slane %v3718, 7
      %v3783 = vrot.slane %v3719, 7
      %v3784 = vrot.slane %v3720, 7
      %v3785 = vrot.slane %v3721, 7
      %v3786 = vrot.slane %v3722, 7
      %v3787 = vrot.slane %v3723, 7
      %v3788 = vrot.slane %v3724, 7
      %v3789 = vrot.slane %v3725, 7
      %v3790 = vrot.slane %v3726, 7
      %v3791 = vrot.slane %v3727, 7
      %v3792 = vrot.slane %v3728, 7
      %v3793 = vrot.slane %v3729, 7
      %v3794 = vrot.slane %v3730, 7
      %v3795 = vrot.slane %v3731, 7
      %v3796 = vrot.slane %v3732, 7
      %v3797 = vsel %vm613, %v3795, %v3796
      %v3798 = vsel %vm613, %v3794, %v3795
      %v3799 = vsel %vm613, %v3793, %v3794
      %v3800 = vsel %vm613, %v3792, %v3793
      %v3801 = vsel %vm613, %v3791, %v3792
      %v3802 = vsel %vm613, %v3790, %v3791
      %v3803 = vsel %vm613, %v3789, %v3790
      %v3804 = vsel %vm613, %v3788, %v3789
      %v3805 = vsel %vm613, %v3787, %v3788
      %v3806 = vsel %vm613, %v3786, %v3787
      %v3807 = vsel %vm613, %v3785, %v3786
      %v3808 = vsel %vm613, %v3784, %v3785
      %v3809 = vsel %vm613, %v3783, %v3784
      %v3810 = vsel %vm613, %v3782, %v3783
      %v3811 = vsel %vm613, %v3781, %v3782
      %v3812 = vsel %vm613, %v3780, %v3781
      %v3813 = vsel %vm613, %v3779, %v3780
      %v3814 = vsel %vm613, %v3778, %v3779
      %v3815 = vsel %vm613, %v3777, %v3778
      %v3816 = vsel %vm613, %v3776, %v3777
      %v3817 = vsel %vm613, %v3775, %v3776
      %v3818 = vsel %vm613, %v3774, %v3775
      %v3819 = vsel %vm613, %v3773, %v3774
      %v3820 = vsel %vm613, %v3772, %v3773
      %v3821 = vsel %vm613, %v3771, %v3772
      %v3822 = vsel %vm613, %v3770, %v3771
      %v3823 = vsel %vm613, %v3769, %v3770
      %v3824 = vsel %vm613, %v3768, %v3769
      %v3825 = vsel %vm613, %v3767, %v3768
      %v3826 = vsel %vm613, %v3766, %v3767
      %v3827 = vsel %vm613, %v3765, %v3766
      %v3828 = vsel %vm613, %v3764, %v3765
      %v3829 = vsel %vm613, %v3763, %v3764
      %v3830 = vsel %vm613, %v3762, %v3763
      %v3831 = vsel %vm613, %v3761, %v3762
      %v3832 = vsel %vm613, %v3760, %v3761
      %v3833 = vsel %vm613, %v3759, %v3760
      %v3834 = vsel %vm613, %v3758, %v3759
      %v3835 = vsel %vm613, %v3757, %v3758
      %v3836 = vsel %vm613, %v3756, %v3757
      %v3837 = vsel %vm613, %v3755, %v3756
      %v3838 = vsel %vm613, %v3754, %v3755
      %v3839 = vsel %vm613, %v3753, %v3754
      %v3840 = vsel %vm613, %v3752, %v3753
      %v3841 = vsel %vm613, %v3751, %v3752
      %v3842 = vsel %vm613, %v3750, %v3751
      %v3843 = vsel %vm613, %v3749, %v3750
      %v3844 = vsel %vm613, %v3748, %v3749
      %v3845 = vsel %vm613, %v3747, %v3748
      %v3846 = vsel %vm613, %v3746, %v3747
      %v3847 = vsel %vm613, %v3745, %v3746
      %v3848 = vsel %vm613, %v3744, %v3745
      %v3849 = vsel %vm613, %v3743, %v3744
      %v3850 = vsel %vm613, %v3742, %v3743
      %v3851 = vsel %vm613, %v3741, %v3742
      %v3852 = vsel %vm613, %v3740, %v3741
      %v3853 = vsel %vm613, %v3739, %v3740
      %v3854 = vsel %vm613, %v3738, %v3739
      %v3855 = vsel %vm613, %v3737, %v3738
      %v3856 = vsel %vm613, %v3736, %v3737
      %v3857 = vsel %vm613, %v3735, %v3736
      %v3858 = vsel %vm613, %v3734, %v3735
      %v3859 = vsel %vm613, %v3733, %v3734
      %v3860 = vsel %vm613, %v3796, %v3733
      %v3861 = vsel %vm421, -inf, %v3860
      %v3862 = vsel %vm422, -inf, %v3859
      %v3863 = vsel %vm423, -inf, %v3858
      %v3864 = vsel %vm424, -inf, %v3857
      %v3865 = vsel %vm425, -inf, %v3856
      %v3866 = vsel %vm426, -inf, %v3855
      %v3867 = vsel %vm427, -inf, %v3854
      %v3868 = vsel %vm428, -inf, %v3853
      %v3869 = vsel %vm429, -inf, %v3852
      %v3870 = vsel %vm430, -inf, %v3851
      %v3871 = vsel %vm431, -inf, %v3850
      %v3872 = vsel %vm432, -inf, %v3849
      %v3873 = vsel %vm433, -inf, %v3848
      %v3874 = vsel %vm434, -inf, %v3847
      %v3875 = vsel %vm435, -inf, %v3846
      %v3876 = vsel %vm436, -inf, %v3845
      %v3877 = vsel %vm437, -inf, %v3844
      %v3878 = vsel %vm438, -inf, %v3843
      %v3879 = vsel %vm439, -inf, %v3842
      %v3880 = vsel %vm440, -inf, %v3841
      %v3881 = vsel %vm441, -inf, %v3840
      %v3882 = vsel %vm442, -inf, %v3839
      %v3883 = vsel %vm443, -inf, %v3838
      %v3884 = vsel %vm444, -inf, %v3837
      %v3885 = vsel %vm445, -inf, %v3836
      %v3886 = vsel %vm446, -inf, %v3835
      %v3887 = vsel %vm447, -inf, %v3834
      %v3888 = vsel %vm448, -inf, %v3833
      %v3889 = vsel %vm449, -inf, %v3832
      %v3890 = vsel %vm450, -inf, %v3831
      %v3891 = vsel %vm451, -inf, %v3830
      %v3892 = vsel %vm452, -inf, %v3829
      %v3893 = vsel %vm453, -inf, %v3828
      %v3894 = vsel %vm454, -inf, %v3827
      %v3895 = vsel %vm455, -inf, %v3826
      %v3896 = vsel %vm456, -inf, %v3825
      %v3897 = vsel %vm457, -inf, %v3824
      %v3898 = vsel %vm458, -inf, %v3823
      %v3899 = vsel %vm459, -inf, %v3822
      %v3900 = vsel %vm460, -inf, %v3821
      %v3901 = vsel %vm461, -inf, %v3820
      %v3902 = vsel %vm462, -inf, %v3819
      %v3903 = vsel %vm463, -inf, %v3818
      %v3904 = vsel %vm464, -inf, %v3817
      %v3905 = vsel %vm465, -inf, %v3816
      %v3906 = vsel %vm466, -inf, %v3815
      %v3907 = vsel %vm467, -inf, %v3814
      %v3908 = vsel %vm468, -inf, %v3813
      %v3909 = vsel %vm469, -inf, %v3812
      %v3910 = vsel %vm470, -inf, %v3811
      %v3911 = vsel %vm471, -inf, %v3810
      %v3912 = vsel %vm472, -inf, %v3809
      %v3913 = vsel %vm473, -inf, %v3808
      %v3914 = vsel %vm474, -inf, %v3807
      %v3915 = vsel %vm475, -inf, %v3806
      %v3916 = vsel %vm476, -inf, %v3805
      %v3917 = vsel %vm477, -inf, %v3804
      %v3918 = vsel %vm478, -inf, %v3803
      %v3919 = vsel %vm479, -inf, %v3802
      %v3920 = vsel %vm480, -inf, %v3801
      %v3921 = vsel %vm481, -inf, %v3800
      %v3922 = vsel %vm482, -inf, %v3799
      %v3923 = vsel %vm483, -inf, %v3798
      %v3924 = vsel %vm484, -inf, %v3797
      %v3925 = vrot.slane %v3669, 1
      %v3926 = vrot.slane %v3670, 1
      %v3927 = vrot.slane %v3671, 1
      %v3928 = vrot.slane %v3672, 1
      %v3929 = vrot.slane %v3673, 1
      %v3930 = vrot.slane %v3674, 1
      %v3931 = vrot.slane %v3675, 1
      %v3932 = vrot.slane %v3676, 1
      %v3933 = vrot.slane %v3677, 1
      %v3934 = vrot.slane %v3678, 1
      %v3935 = vrot.slane %v3679, 1
      %v3936 = vrot.slane %v3680, 1
      %v3937 = vrot.slane %v3681, 1
      %v3938 = vrot.slane %v3682, 1
      %v3939 = vrot.slane %v3683, 1
      %v3940 = vrot.slane %v3684, 1
      %v3941 = vrot.slane %v3685, 1
      %v3942 = vrot.slane %v3686, 1
      %v3943 = vrot.slane %v3687, 1
      %v3944 = vrot.slane %v3688, 1
      %v3945 = vrot.slane %v3689, 1
      %v3946 = vrot.slane %v3690, 1
      %v3947 = vrot.slane %v3691, 1
      %v3948 = vrot.slane %v3692, 1
      %v3949 = vrot.slane %v3693, 1
      %v3950 = vrot.slane %v3694, 1
      %v3951 = vrot.slane %v3695, 1
      %v3952 = vrot.slane %v3696, 1
      %v3953 = vrot.slane %v3697, 1
      %v3954 = vrot.slane %v3698, 1
      %v3955 = vrot.slane %v3699, 1
      %v3956 = vrot.slane %v3700, 1
      %v3957 = vrot.slane %v3701, 1
      %v3958 = vrot.slane %v3702, 1
      %v3959 = vrot.slane %v3703, 1
      %v3960 = vrot.slane %v3704, 1
      %v3961 = vrot.slane %v3705, 1
      %v3962 = vrot.slane %v3706, 1
      %v3963 = vrot.slane %v3707, 1
      %v3964 = vrot.slane %v3708, 1
      %v3965 = vrot.slane %v3709, 1
      %v3966 = vrot.slane %v3710, 1
      %v3967 = vrot.slane %v3711, 1
      %v3968 = vrot.slane %v3712, 1
      %v3969 = vrot.slane %v3713, 1
      %v3970 = vrot.slane %v3714, 1
      %v3971 = vrot.slane %v3715, 1
      %v3972 = vrot.slane %v3716, 1
      %v3973 = vrot.slane %v3717, 1
      %v3974 = vrot.slane %v3718, 1
      %v3975 = vrot.slane %v3719, 1
      %v3976 = vrot.slane %v3720, 1
      %v3977 = vrot.slane %v3721, 1
      %v3978 = vrot.slane %v3722, 1
      %v3979 = vrot.slane %v3723, 1
      %v3980 = vrot.slane %v3724, 1
      %v3981 = vrot.slane %v3725, 1
      %v3982 = vrot.slane %v3726, 1
      %v3983 = vrot.slane %v3727, 1
      %v3984 = vrot.slane %v3728, 1
      %v3985 = vrot.slane %v3729, 1
      %v3986 = vrot.slane %v3730, 1
      %v3987 = vrot.slane %v3731, 1
      %v3988 = vrot.slane %v3732, 1
      %v3989 = vsel %vm806, %v3987, %v3988
      %v3990 = vsel %vm806, %v3986, %v3987
      %v3991 = vsel %vm806, %v3985, %v3986
      %v3992 = vsel %vm806, %v3984, %v3985
      %v3993 = vsel %vm806, %v3983, %v3984
      %v3994 = vsel %vm806, %v3982, %v3983
      %v3995 = vsel %vm806, %v3981, %v3982
      %v3996 = vsel %vm806, %v3980, %v3981
      %v3997 = vsel %vm806, %v3979, %v3980
      %v3998 = vsel %vm806, %v3978, %v3979
      %v3999 = vsel %vm806, %v3977, %v3978
      %v4000 = vsel %vm806, %v3976, %v3977
      %v4001 = vsel %vm806, %v3975, %v3976
      %v4002 = vsel %vm806, %v3974, %v3975
      %v4003 = vsel %vm806, %v3973, %v3974
      %v4004 = vsel %vm806, %v3972, %v3973
      %v4005 = vsel %vm806, %v3971, %v3972
      %v4006 = vsel %vm806, %v3970, %v3971
      %v4007 = vsel %vm806, %v3969, %v3970
      %v4008 = vsel %vm806, %v3968, %v3969
      %v4009 = vsel %vm806, %v3967, %v3968
      %v4010 = vsel %vm806, %v3966, %v3967
      %v4011 = vsel %vm806, %v3965, %v3966
      %v4012 = vsel %vm806, %v3964, %v3965
      %v4013 = vsel %vm806, %v3963, %v3964
      %v4014 = vsel %vm806, %v3962, %v3963
      %v4015 = vsel %vm806, %v3961, %v3962
      %v4016 = vsel %vm806, %v3960, %v3961
      %v4017 = vsel %vm806, %v3959, %v3960
      %v4018 = vsel %vm806, %v3958, %v3959
      %v4019 = vsel %vm806, %v3957, %v3958
      %v4020 = vsel %vm806, %v3956, %v3957
      %v4021 = vsel %vm806, %v3955, %v3956
      %v4022 = vsel %vm806, %v3954, %v3955
      %v4023 = vsel %vm806, %v3953, %v3954
      %v4024 = vsel %vm806, %v3952, %v3953
      %v4025 = vsel %vm806, %v3951, %v3952
      %v4026 = vsel %vm806, %v3950, %v3951
      %v4027 = vsel %vm806, %v3949, %v3950
      %v4028 = vsel %vm806, %v3948, %v3949
      %v4029 = vsel %vm806, %v3947, %v3948
      %v4030 = vsel %vm806, %v3946, %v3947
      %v4031 = vsel %vm806, %v3945, %v3946
      %v4032 = vsel %vm806, %v3944, %v3945
      %v4033 = vsel %vm806, %v3943, %v3944
      %v4034 = vsel %vm806, %v3942, %v3943
      %v4035 = vsel %vm806, %v3941, %v3942
      %v4036 = vsel %vm806, %v3940, %v3941
      %v4037 = vsel %vm806, %v3939, %v3940
      %v4038 = vsel %vm806, %v3938, %v3939
      %v4039 = vsel %vm806, %v3937, %v3938
      %v4040 = vsel %vm806, %v3936, %v3937
      %v4041 = vsel %vm806, %v3935, %v3936
      %v4042 = vsel %vm806, %v3934, %v3935
      %v4043 = vsel %vm806, %v3933, %v3934
      %v4044 = vsel %vm806, %v3932, %v3933
      %v4045 = vsel %vm806, %v3931, %v3932
      %v4046 = vsel %vm806, %v3930, %v3931
      %v4047 = vsel %vm806, %v3929, %v3930
      %v4048 = vsel %vm806, %v3928, %v3929
      %v4049 = vsel %vm806, %v3927, %v3928
      %v4050 = vsel %vm806, %v3926, %v3927
      %v4051 = vsel %vm806, %v3925, %v3926
      %v4052 = vsel %vm806, %v3988, %v3925
      %v4053 = vmax.f32 %v3861, %v3669
      %v4054 = vmax.f32 %v3862, %v3670
      %v4055 = vmax.f32 %v3863, %v3671
      %v4056 = vmax.f32 %v3864, %v3672
      %v4057 = vmax.f32 %v3865, %v3673
      %v4058 = vmax.f32 %v3866, %v3674
      %v4059 = vmax.f32 %v3867, %v3675
      %v4060 = vmax.f32 %v3868, %v3676
      %v4061 = vmax.f32 %v3869, %v3677
      %v4062 = vmax.f32 %v3870, %v3678
      %v4063 = vmax.f32 %v3871, %v3679
      %v4064 = vmax.f32 %v3872, %v3680
      %v4065 = vmax.f32 %v3873, %v3681
      %v4066 = vmax.f32 %v3874, %v3682
      %v4067 = vmax.f32 %v3875, %v3683
      %v4068 = vmax.f32 %v3876, %v3684
      %v4069 = vmax.f32 %v3877, %v3685
      %v4070 = vmax.f32 %v3878, %v3686
      %v4071 = vmax.f32 %v3879, %v3687
      %v4072 = vmax.f32 %v3880, %v3688
      %v4073 = vmax.f32 %v3881, %v3689
      %v4074 = vmax.f32 %v3882, %v3690
      %v4075 = vmax.f32 %v3883, %v3691
      %v4076 = vmax.f32 %v3884, %v3692
      %v4077 = vmax.f32 %v3885, %v3693
      %v4078 = vmax.f32 %v3886, %v3694
      %v4079 = vmax.f32 %v3887, %v3695
      %v4080 = vmax.f32 %v3888, %v3696
      %v4081 = vmax.f32 %v3889, %v3697
      %v4082 = vmax.f32 %v3890, %v3698
      %v4083 = vmax.f32 %v3891, %v3699
      %v4084 = vmax.f32 %v3892, %v3700
      %v4085 = vmax.f32 %v3893, %v3701
      %v4086 = vmax.f32 %v3894, %v3702
      %v4087 = vmax.f32 %v3895, %v3703
      %v4088 = vmax.f32 %v3896, %v3704
      %v4089 = vmax.f32 %v3897, %v3705
      %v4090 = vmax.f32 %v3898, %v3706
      %v4091 = vmax.f32 %v3899, %v3707
      %v4092 = vmax.f32 %v3900, %v3708
      %v4093 = vmax.f32 %v3901, %v3709
      %v4094 = vmax.f32 %v3902, %v3710
      %v4095 = vmax.f32 %v3903, %v3711
      %v4096 = vmax.f32 %v3904, %v3712
      %v4097 = vmax.f32 %v3905, %v3713
      %v4098 = vmax.f32 %v3906, %v3714
      %v4099 = vmax.f32 %v3907, %v3715
      %v4100 = vmax.f32 %v3908, %v3716
      %v4101 = vmax.f32 %v3909, %v3717
      %v4102 = vmax.f32 %v3910, %v3718
      %v4103 = vmax.f32 %v3911, %v3719
      %v4104 = vmax.f32 %v3912, %v3720
      %v4105 = vmax.f32 %v3913, %v3721
      %v4106 = vmax.f32 %v3914, %v3722
      %v4107 = vmax.f32 %v3915, %v3723
      %v4108 = vmax.f32 %v3916, %v3724
      %v4109 = vmax.f32 %v3917, %v3725
      %v4110 = vmax.f32 %v3918, %v3726
      %v4111 = vmax.f32 %v3919, %v3727
      %v4112 = vmax.f32 %v3920, %v3728
      %v4113 = vmax.f32 %v3921, %v3729
      %v4114 = vmax.f32 %v3922, %v3730
      %v4115 = vmax.f32 %v3923, %v3731
      %v4116 = vmax.f32 %v3924, %v3732
      %v4117 = vmax.f32 %v4053, %v4051
      %v4118 = vmax.f32 %v4054, %v4050
      %v4119 = vmax.f32 %v4055, %v4049
      %v4120 = vmax.f32 %v4056, %v4048
      %v4121 = vmax.f32 %v4057, %v4047
      %v4122 = vmax.f32 %v4058, %v4046
      %v4123 = vmax.f32 %v4059, %v4045
      %v4124 = vmax.f32 %v4060, %v4044
      %v4125 = vmax.f32 %v4061, %v4043
      %v4126 = vmax.f32 %v4062, %v4042
      %v4127 = vmax.f32 %v4063, %v4041
      %v4128 = vmax.f32 %v4064, %v4040
      %v4129 = vmax.f32 %v4065, %v4039
      %v4130 = vmax.f32 %v4066, %v4038
      %v4131 = vmax.f32 %v4067, %v4037
      %v4132 = vmax.f32 %v4068, %v4036
      %v4133 = vmax.f32 %v4069, %v4035
      %v4134 = vmax.f32 %v4070, %v4034
      %v4135 = vmax.f32 %v4071, %v4033
      %v4136 = vmax.f32 %v4072, %v4032
      %v4137 = vmax.f32 %v4073, %v4031
      %v4138 = vmax.f32 %v4074, %v4030
      %v4139 = vmax.f32 %v4075, %v4029
      %v4140 = vmax.f32 %v4076, %v4028
      %v4141 = vmax.f32 %v4077, %v4027
      %v4142 = vmax.f32 %v4078, %v4026
      %v4143 = vmax.f32 %v4079, %v4025
      %v4144 = vmax.f32 %v4080, %v4024
      %v4145 = vmax.f32 %v4081, %v4023
      %v4146 = vmax.f32 %v4082, %v4022
      %v4147 = vmax.f32 %v4083, %v4021
      %v4148 = vmax.f32 %v4084, %v4020
      %v4149 = vmax.f32 %v4085, %v4019
      %v4150 = vmax.f32 %v4086, %v4018
      %v4151 = vmax.f32 %v4087, %v4017
      %v4152 = vmax.f32 %v4088, %v4016
      %v4153 = vmax.f32 %v4089, %v4015
      %v4154 = vmax.f32 %v4090, %v4014
      %v4155 = vmax.f32 %v4091, %v4013
      %v4156 = vmax.f32 %v4092, %v4012
      %v4157 = vmax.f32 %v4093, %v4011
      %v4158 = vmax.f32 %v4094, %v4010
      %v4159 = vmax.f32 %v4095, %v4009
      %v4160 = vmax.f32 %v4096, %v4008
      %v4161 = vmax.f32 %v4097, %v4007
      %v4162 = vmax.f32 %v4098, %v4006
      %v4163 = vmax.f32 %v4099, %v4005
      %v4164 = vmax.f32 %v4100, %v4004
      %v4165 = vmax.f32 %v4101, %v4003
      %v4166 = vmax.f32 %v4102, %v4002
      %v4167 = vmax.f32 %v4103, %v4001
      %v4168 = vmax.f32 %v4104, %v4000
      %v4169 = vmax.f32 %v4105, %v3999
      %v4170 = vmax.f32 %v4106, %v3998
      %v4171 = vmax.f32 %v4107, %v3997
      %v4172 = vmax.f32 %v4108, %v3996
      %v4173 = vmax.f32 %v4109, %v3995
      %v4174 = vmax.f32 %v4110, %v3994
      %v4175 = vmax.f32 %v4111, %v3993
      %v4176 = vmax.f32 %v4112, %v3992
      %v4177 = vmax.f32 %v4113, %v3991
      %v4178 = vmax.f32 %v4114, %v3990
      %v4179 = vmax.f32 %v4115, %v3989
      %v4180 = vmax.f32 %v4116, %v4052
      %4181 = vst.msk [vmem:[#allocation2] sm:$0xff] %vm1447, %v4117
      %4182 = vst.msk [vmem:[#allocation2 + $0x8] sm:$0xff] %vm1447, %v4118
      %4183 = vst.msk [vmem:[#allocation2 + $0x10] sm:$0xff] %vm1447, %v4119
      %4184 = vst.msk [vmem:[#allocation2 + $0x18] sm:$0xff] %vm1447, %v4120
      %4185 = vst.msk [vmem:[#allocation2 + $0x20] sm:$0xff] %vm1447, %v4121
      %4186 = vst.msk [vmem:[#allocation2 + $0x28] sm:$0xff] %vm1447, %v4122
      %4187 = vst.msk [vmem:[#allocation2 + $0x30] sm:$0xff] %vm1447, %v4123
      %4188 = vst.msk [vmem:[#allocation2 + $0x38] sm:$0xff] %vm1447, %v4124
      %4189 = vst.msk [vmem:[#allocation2 + $0x40] sm:$0xff] %vm1447, %v4125
      %4190 = vst.msk [vmem:[#allocation2 + $0x48] sm:$0xff] %vm1447, %v4126
      %4191 = vst.msk [vmem:[#allocation2 + $0x50] sm:$0xff] %vm1447, %v4127
      %4192 = vst.msk [vmem:[#allocation2 + $0x58] sm:$0xff] %vm1447, %v4128
      %4193 = vst.msk [vmem:[#allocation2 + $0x60] sm:$0xff] %vm1447, %v4129
      %4194 = vst.msk [vmem:[#allocation2 + $0x68] sm:$0xff] %vm1447, %v4130
      %4195 = vst.msk [vmem:[#allocation2 + $0x70] sm:$0xff] %vm1447, %v4131
      %4196 = vst.msk [vmem:[#allocation2 + $0x78] sm:$0xff] %vm1447, %v4132
      %4197 = vst.msk [vmem:[#allocation2 + $0x80] sm:$0xff] %vm1447, %v4133
      %4198 = vst.msk [vmem:[#allocation2 + $0x88] sm:$0xff] %vm1447, %v4134
      %4199 = vst.msk [vmem:[#allocation2 + $0x90] sm:$0xff] %vm1447, %v4135
      %4200 = vst.msk [vmem:[#allocation2 + $0x98] sm:$0xff] %vm1447, %v4136
      %4201 = vst.msk [vmem:[#allocation2 + $0xa0] sm:$0xff] %vm1447, %v4137
      %4202 = vst.msk [vmem:[#allocation2 + $0xa8] sm:$0xff] %vm1447, %v4138
      %4203 = vst.msk [vmem:[#allocation2 + $0xb0] sm:$0xff] %vm1447, %v4139
      %4204 = vst.msk [vmem:[#allocation2 + $0xb8] sm:$0xff] %vm1447, %v4140
      %4205 = vst.msk [vmem:[#allocation2 + $0xc0] sm:$0xff] %vm1447, %v4141
      %4206 = vst.msk [vmem:[#allocation2 + $0xc8] sm:$0xff] %vm1447, %v4142
      %4207 = vst.msk [vmem:[#allocation2 + $0xd0] sm:$0xff] %vm1447, %v4143
      %4208 = vst.msk [vmem:[#allocation2 + $0xd8] sm:$0xff] %vm1447, %v4144
      %4209 = vst.msk [vmem:[#allocation2 + $0xe0] sm:$0xff] %vm1447, %v4145
      %4210 = vst.msk [vmem:[#allocation2 + $0xe8] sm:$0xff] %vm1447, %v4146
      %4211 = vst.msk [vmem:[#allocation2 + $0xf0] sm:$0xff] %vm1447, %v4147
      %4212 = vst.msk [vmem:[#allocation2 + $0xf8] sm:$0xff] %vm1447, %v4148
      %4213 = vst.msk [vmem:[#allocation2 + $0x100] sm:$0xff] %vm1447, %v4149
      %4214 = vst.msk [vmem:[#allocation2 + $0x108] sm:$0xff] %vm1447, %v4150
      %4215 = vst.msk [vmem:[#allocation2 + $0x110] sm:$0xff] %vm1447, %v4151
      %4216 = vst.msk [vmem:[#allocation2 + $0x118] sm:$0xff] %vm1447, %v4152
      %4217 = vst.msk [vmem:[#allocation2 + $0x120] sm:$0xff] %vm1447, %v4153
      %4218 = vst.msk [vmem:[#allocation2 + $0x128] sm:$0xff] %vm1447, %v4154
      %4219 = vst.msk [vmem:[#allocation2 + $0x130] sm:$0xff] %vm1447, %v4155
      %4220 = vst.msk [vmem:[#allocation2 + $0x138] sm:$0xff] %vm1447, %v4156
      %4221 = vst.msk [vmem:[#allocation2 + $0x140] sm:$0xff] %vm1447, %v4157
      %4222 = vst.msk [vmem:[#allocation2 + $0x148] sm:$0xff] %vm1447, %v4158
      %4223 = vst.msk [vmem:[#allocation2 + $0x150] sm:$0xff] %vm1447, %v4159
      %4224 = vst.msk [vmem:[#allocation2 + $0x158] sm:$0xff] %vm1447, %v4160
      %4225 = vst.msk [vmem:[#allocation2 + $0x160] sm:$0xff] %vm1447, %v4161
      %4226 = vst.msk [vmem:[#allocation2 + $0x168] sm:$0xff] %vm1447, %v4162
      %4227 = vst.msk [vmem:[#allocation2 + $0x170] sm:$0xff] %vm1447, %v4163
      %4228 = vst.msk [vmem:[#allocation2 + $0x178] sm:$0xff] %vm1447, %v4164
      %4229 = vst.msk [vmem:[#allocation2 + $0x180] sm:$0xff] %vm1447, %v4165
      %4230 = vst.msk [vmem:[#allocation2 + $0x188] sm:$0xff] %vm1447, %v4166
      %4231 = vst.msk [vmem:[#allocation2 + $0x190] sm:$0xff] %vm1447, %v4167
      %4232 = vst.msk [vmem:[#allocation2 + $0x198] sm:$0xff] %vm1447, %v4168
      %4233 = vst.msk [vmem:[#allocation2 + $0x1a0] sm:$0xff] %vm1447, %v4169
      %4234 = vst.msk [vmem:[#allocation2 + $0x1a8] sm:$0xff] %vm1447, %v4170
      %4235 = vst.msk [vmem:[#allocation2 + $0x1b0] sm:$0xff] %vm1447, %v4171
      %4236 = vst.msk [vmem:[#allocation2 + $0x1b8] sm:$0xff] %vm1447, %v4172
      %4237 = vst.msk [vmem:[#allocation2 + $0x1c0] sm:$0xff] %vm1447, %v4173
      %4238 = vst.msk [vmem:[#allocation2 + $0x1c8] sm:$0xff] %vm1447, %v4174
      %4239 = vst.msk [vmem:[#allocation2 + $0x1d0] sm:$0xff] %vm1447, %v4175
      %4240 = vst.msk [vmem:[#allocation2 + $0x1d8] sm:$0xff] %vm1447, %v4176
      %4241 = vst.msk [vmem:[#allocation2 + $0x1e0] sm:$0xff] %vm1447, %v4177
      %4242 = vst.msk [vmem:[#allocation2 + $0x1e8] sm:$0xff] %vm1447, %v4178
      %4243 = vst.msk [vmem:[#allocation2 + $0x1f0] sm:$0xff] %vm1447, %v4179
      %4244 = vst.msk [vmem:[#allocation2 + $0x1f8] sm:$0xff] %vm1447, %v4180
      %v4245 = vld [vmem:[#allocation2] ss:$2 sm:$0xff]
      %s4246 = scalar_lea.vmem [#allocation2], 16
      %v4247 = vld [vmem:[%s4246] ss:$2 sm:$0xff]
      %s4248 = scalar_lea.vmem [#allocation2], 32
      %v4249 = vld [vmem:[%s4248] ss:$2 sm:$0xff]
      %s4250 = scalar_lea.vmem [#allocation2], 48
      %v4251 = vld [vmem:[%s4250] ss:$2 sm:$0xff]
      %s4252 = scalar_lea.vmem [#allocation2], 64
      %v4253 = vld [vmem:[%s4252] ss:$2 sm:$0xff]
      %s4254 = scalar_lea.vmem [#allocation2], 80
      %v4255 = vld [vmem:[%s4254] ss:$2 sm:$0xff]
      %s4256 = scalar_lea.vmem [#allocation2], 96
      %v4257 = vld [vmem:[%s4256] ss:$2 sm:$0xff]
      %s4258 = scalar_lea.vmem [#allocation2], 112
      %v4259 = vld [vmem:[%s4258] ss:$2 sm:$0xff]
      %s4260 = scalar_lea.vmem [#allocation2], 128
      %v4261 = vld [vmem:[%s4260] ss:$2 sm:$0xff]
      %s4262 = scalar_lea.vmem [#allocation2], 144
      %v4263 = vld [vmem:[%s4262] ss:$2 sm:$0xff]
      %s4264 = scalar_lea.vmem [#allocation2], 160
      %v4265 = vld [vmem:[%s4264] ss:$2 sm:$0xff]
      %s4266 = scalar_lea.vmem [#allocation2], 176
      %v4267 = vld [vmem:[%s4266] ss:$2 sm:$0xff]
      %s4268 = scalar_lea.vmem [#allocation2], 192
      %v4269 = vld [vmem:[%s4268] ss:$2 sm:$0xff]
      %s4270 = scalar_lea.vmem [#allocation2], 208
      %v4271 = vld [vmem:[%s4270] ss:$2 sm:$0xff]
      %s4272 = scalar_lea.vmem [#allocation2], 224
      %v4273 = vld [vmem:[%s4272] ss:$2 sm:$0xff]
      %s4274 = scalar_lea.vmem [#allocation2], 240
      %v4275 = vld [vmem:[%s4274] ss:$2 sm:$0xff]
      %s4276 = scalar_lea.vmem [#allocation2], 256
      %v4277 = vld [vmem:[%s4276] ss:$2 sm:$0xff]
      %s4278 = scalar_lea.vmem [#allocation2], 272
      %v4279 = vld [vmem:[%s4278] ss:$2 sm:$0xff]
      %s4280 = scalar_lea.vmem [#allocation2], 288
      %v4281 = vld [vmem:[%s4280] ss:$2 sm:$0xff]
      %s4282 = scalar_lea.vmem [#allocation2], 304
      %v4283 = vld [vmem:[%s4282] ss:$2 sm:$0xff]
      %s4284 = scalar_lea.vmem [#allocation2], 320
      %v4285 = vld [vmem:[%s4284] ss:$2 sm:$0xff]
      %s4286 = scalar_lea.vmem [#allocation2], 336
      %v4287 = vld [vmem:[%s4286] ss:$2 sm:$0xff]
      %s4288 = scalar_lea.vmem [#allocation2], 352
      %v4289 = vld [vmem:[%s4288] ss:$2 sm:$0xff]
      %s4290 = scalar_lea.vmem [#allocation2], 368
      %v4291 = vld [vmem:[%s4290] ss:$2 sm:$0xff]
      %s4292 = scalar_lea.vmem [#allocation2], 384
      %v4293 = vld [vmem:[%s4292] ss:$2 sm:$0xff]
      %s4294 = scalar_lea.vmem [#allocation2], 400
      %v4295 = vld [vmem:[%s4294] ss:$2 sm:$0xff]
      %s4296 = scalar_lea.vmem [#allocation2], 416
      %v4297 = vld [vmem:[%s4296] ss:$2 sm:$0xff]
      %s4298 = scalar_lea.vmem [#allocation2], 432
      %v4299 = vld [vmem:[%s4298] ss:$2 sm:$0xff]
      %s4300 = scalar_lea.vmem [#allocation2], 448
      %v4301 = vld [vmem:[%s4300] ss:$2 sm:$0xff]
      %s4302 = scalar_lea.vmem [#allocation2], 464
      %v4303 = vld [vmem:[%s4302] ss:$2 sm:$0xff]
      %s4304 = scalar_lea.vmem [#allocation2], 480
      %v4305 = vld [vmem:[%s4304] ss:$2 sm:$0xff]
      %s4306 = scalar_lea.vmem [#allocation2], 496
      %v4307 = vld [vmem:[%s4306] ss:$2 sm:$0xff]
      %v4308 = vand.u32 %v293, 63
      %v4309 = vand.u32 %v294, 63
      %v4310 = vand.u32 %v295, 63
      %v4311 = vand.u32 %v296, 63
      %v4312 = vand.u32 %v297, 63
      %v4313 = vand.u32 %v298, 63
      %v4314 = vand.u32 %v299, 63
      %v4315 = vand.u32 %v300, 63
      %v4316 = vand.u32 %v301, 63
      %v4317 = vand.u32 %v302, 63
      %v4318 = vand.u32 %v303, 63
      %v4319 = vand.u32 %v304, 63
      %v4320 = vand.u32 %v305, 63
      %v4321 = vand.u32 %v306, 63
      %v4322 = vand.u32 %v307, 63
      %v4323 = vand.u32 %v308, 63
      %v4324 = vand.u32 %v309, 63
      %v4325 = vand.u32 %v310, 63
      %v4326 = vand.u32 %v311, 63
      %v4327 = vand.u32 %v312, 63
      %v4328 = vand.u32 %v313, 63
      %v4329 = vand.u32 %v314, 63
      %v4330 = vand.u32 %v315, 63
      %v4331 = vand.u32 %v316, 63
      %v4332 = vand.u32 %v317, 63
      %v4333 = vand.u32 %v318, 63
      %v4334 = vand.u32 %v319, 63
      %v4335 = vand.u32 %v320, 63
      %v4336 = vand.u32 %v321, 63
      %v4337 = vand.u32 %v322, 63
      %v4338 = vand.u32 %v323, 63
      %v4339 = vand.u32 %v324, 63
      %vm4340 = vcmp.eq.s32.totalorder %v4308, 0
      %vm4341 = vcmp.eq.s32.totalorder %v4309, 0
      %vm4342 = vcmp.eq.s32.totalorder %v4310, 0
      %vm4343 = vcmp.eq.s32.totalorder %v4311, 0
      %vm4344 = vcmp.eq.s32.totalorder %v4312, 0
      %vm4345 = vcmp.eq.s32.totalorder %v4313, 0
      %vm4346 = vcmp.eq.s32.totalorder %v4314, 0
      %vm4347 = vcmp.eq.s32.totalorder %v4315, 0
      %vm4348 = vcmp.eq.s32.totalorder %v4316, 0
      %vm4349 = vcmp.eq.s32.totalorder %v4317, 0
      %vm4350 = vcmp.eq.s32.totalorder %v4318, 0
      %vm4351 = vcmp.eq.s32.totalorder %v4319, 0
      %vm4352 = vcmp.eq.s32.totalorder %v4320, 0
      %vm4353 = vcmp.eq.s32.totalorder %v4321, 0
      %vm4354 = vcmp.eq.s32.totalorder %v4322, 0
      %vm4355 = vcmp.eq.s32.totalorder %v4323, 0
      %vm4356 = vcmp.eq.s32.totalorder %v4324, 0
      %vm4357 = vcmp.eq.s32.totalorder %v4325, 0
      %vm4358 = vcmp.eq.s32.totalorder %v4326, 0
      %vm4359 = vcmp.eq.s32.totalorder %v4327, 0
      %vm4360 = vcmp.eq.s32.totalorder %v4328, 0
      %vm4361 = vcmp.eq.s32.totalorder %v4329, 0
      %vm4362 = vcmp.eq.s32.totalorder %v4330, 0
      %vm4363 = vcmp.eq.s32.totalorder %v4331, 0
      %vm4364 = vcmp.eq.s32.totalorder %v4332, 0
      %vm4365 = vcmp.eq.s32.totalorder %v4333, 0
      %vm4366 = vcmp.eq.s32.totalorder %v4334, 0
      %vm4367 = vcmp.eq.s32.totalorder %v4335, 0
      %vm4368 = vcmp.eq.s32.totalorder %v4336, 0
      %vm4369 = vcmp.eq.s32.totalorder %v4337, 0
      %vm4370 = vcmp.eq.s32.totalorder %v4338, 0
      %vm4371 = vcmp.eq.s32.totalorder %v4339, 0
      %vm4372 = vcmp.eq.s32.totalorder %v4308, 63
      %vm4373 = vcmp.eq.s32.totalorder %v4309, 63
      %vm4374 = vcmp.eq.s32.totalorder %v4310, 63
      %vm4375 = vcmp.eq.s32.totalorder %v4311, 63
      %vm4376 = vcmp.eq.s32.totalorder %v4312, 63
      %vm4377 = vcmp.eq.s32.totalorder %v4313, 63
      %vm4378 = vcmp.eq.s32.totalorder %v4314, 63
      %vm4379 = vcmp.eq.s32.totalorder %v4315, 63
      %vm4380 = vcmp.eq.s32.totalorder %v4316, 63
      %vm4381 = vcmp.eq.s32.totalorder %v4317, 63
      %vm4382 = vcmp.eq.s32.totalorder %v4318, 63
      %vm4383 = vcmp.eq.s32.totalorder %v4319, 63
      %vm4384 = vcmp.eq.s32.totalorder %v4320, 63
      %vm4385 = vcmp.eq.s32.totalorder %v4321, 63
      %vm4386 = vcmp.eq.s32.totalorder %v4322, 63
      %vm4387 = vcmp.eq.s32.totalorder %v4323, 63
      %vm4388 = vcmp.eq.s32.totalorder %v4324, 63
      %vm4389 = vcmp.eq.s32.totalorder %v4325, 63
      %vm4390 = vcmp.eq.s32.totalorder %v4326, 63
      %vm4391 = vcmp.eq.s32.totalorder %v4327, 63
      %vm4392 = vcmp.eq.s32.totalorder %v4328, 63
      %vm4393 = vcmp.eq.s32.totalorder %v4329, 63
      %vm4394 = vcmp.eq.s32.totalorder %v4330, 63
      %vm4395 = vcmp.eq.s32.totalorder %v4331, 63
      %vm4396 = vcmp.eq.s32.totalorder %v4332, 63
      %vm4397 = vcmp.eq.s32.totalorder %v4333, 63
      %vm4398 = vcmp.eq.s32.totalorder %v4334, 63
      %vm4399 = vcmp.eq.s32.totalorder %v4335, 63
      %vm4400 = vcmp.eq.s32.totalorder %v4336, 63
      %vm4401 = vcmp.eq.s32.totalorder %v4337, 63
      %vm4402 = vcmp.eq.s32.totalorder %v4338, 63
      %vm4403 = vcmp.eq.s32.totalorder %v4339, 63
      %v4404 = vrot.slane %v4245, 7
      %v4405 = vrot.slane %v4247, 7
      %v4406 = vrot.slane %v4249, 7
      %v4407 = vrot.slane %v4251, 7
      %v4408 = vrot.slane %v4253, 7
      %v4409 = vrot.slane %v4255, 7
      %v4410 = vrot.slane %v4257, 7
      %v4411 = vrot.slane %v4259, 7
      %v4412 = vrot.slane %v4261, 7
      %v4413 = vrot.slane %v4263, 7
      %v4414 = vrot.slane %v4265, 7
      %v4415 = vrot.slane %v4267, 7
      %v4416 = vrot.slane %v4269, 7
      %v4417 = vrot.slane %v4271, 7
      %v4418 = vrot.slane %v4273, 7
      %v4419 = vrot.slane %v4275, 7
      %v4420 = vrot.slane %v4277, 7
      %v4421 = vrot.slane %v4279, 7
      %v4422 = vrot.slane %v4281, 7
      %v4423 = vrot.slane %v4283, 7
      %v4424 = vrot.slane %v4285, 7
      %v4425 = vrot.slane %v4287, 7
      %v4426 = vrot.slane %v4289, 7
      %v4427 = vrot.slane %v4291, 7
      %v4428 = vrot.slane %v4293, 7
      %v4429 = vrot.slane %v4295, 7
      %v4430 = vrot.slane %v4297, 7
      %v4431 = vrot.slane %v4299, 7
      %v4432 = vrot.slane %v4301, 7
      %v4433 = vrot.slane %v4303, 7
      %v4434 = vrot.slane %v4305, 7
      %v4435 = vrot.slane %v4307, 7
      %v4436 = vsel %vm613, %v4434, %v4435
      %v4437 = vsel %vm613, %v4433, %v4434
      %v4438 = vsel %vm613, %v4432, %v4433
      %v4439 = vsel %vm613, %v4431, %v4432
      %v4440 = vsel %vm613, %v4430, %v4431
      %v4441 = vsel %vm613, %v4429, %v4430
      %v4442 = vsel %vm613, %v4428, %v4429
      %v4443 = vsel %vm613, %v4427, %v4428
      %v4444 = vsel %vm613, %v4426, %v4427
      %v4445 = vsel %vm613, %v4425, %v4426
      %v4446 = vsel %vm613, %v4424, %v4425
      %v4447 = vsel %vm613, %v4423, %v4424
      %v4448 = vsel %vm613, %v4422, %v4423
      %v4449 = vsel %vm613, %v4421, %v4422
      %v4450 = vsel %vm613, %v4420, %v4421
      %v4451 = vsel %vm613, %v4419, %v4420
      %v4452 = vsel %vm613, %v4418, %v4419
      %v4453 = vsel %vm613, %v4417, %v4418
      %v4454 = vsel %vm613, %v4416, %v4417
      %v4455 = vsel %vm613, %v4415, %v4416
      %v4456 = vsel %vm613, %v4414, %v4415
      %v4457 = vsel %vm613, %v4413, %v4414
      %v4458 = vsel %vm613, %v4412, %v4413
      %v4459 = vsel %vm613, %v4411, %v4412
      %v4460 = vsel %vm613, %v4410, %v4411
      %v4461 = vsel %vm613, %v4409, %v4410
      %v4462 = vsel %vm613, %v4408, %v4409
      %v4463 = vsel %vm613, %v4407, %v4408
      %v4464 = vsel %vm613, %v4406, %v4407
      %v4465 = vsel %vm613, %v4405, %v4406
      %v4466 = vsel %vm613, %v4404, %v4405
      %v4467 = vsel %vm613, %v4435, %v4404
      %v4468 = vsel %vm4340, 0.0, %v4467
      %v4469 = vsel %vm4341, 0.0, %v4466
      %v4470 = vsel %vm4342, 0.0, %v4465
      %v4471 = vsel %vm4343, 0.0, %v4464
      %v4472 = vsel %vm4344, 0.0, %v4463
      %v4473 = vsel %vm4345, 0.0, %v4462
      %v4474 = vsel %vm4346, 0.0, %v4461
      %v4475 = vsel %vm4347, 0.0, %v4460
      %v4476 = vsel %vm4348, 0.0, %v4459
      %v4477 = vsel %vm4349, 0.0, %v4458
      %v4478 = vsel %vm4350, 0.0, %v4457
      %v4479 = vsel %vm4351, 0.0, %v4456
      %v4480 = vsel %vm4352, 0.0, %v4455
      %v4481 = vsel %vm4353, 0.0, %v4454
      %v4482 = vsel %vm4354, 0.0, %v4453
      %v4483 = vsel %vm4355, 0.0, %v4452
      %v4484 = vsel %vm4356, 0.0, %v4451
      %v4485 = vsel %vm4357, 0.0, %v4450
      %v4486 = vsel %vm4358, 0.0, %v4449
      %v4487 = vsel %vm4359, 0.0, %v4448
      %v4488 = vsel %vm4360, 0.0, %v4447
      %v4489 = vsel %vm4361, 0.0, %v4446
      %v4490 = vsel %vm4362, 0.0, %v4445
      %v4491 = vsel %vm4363, 0.0, %v4444
      %v4492 = vsel %vm4364, 0.0, %v4443
      %v4493 = vsel %vm4365, 0.0, %v4442
      %v4494 = vsel %vm4366, 0.0, %v4441
      %v4495 = vsel %vm4367, 0.0, %v4440
      %v4496 = vsel %vm4368, 0.0, %v4439
      %v4497 = vsel %vm4369, 0.0, %v4438
      %v4498 = vsel %vm4370, 0.0, %v4437
      %v4499 = vsel %vm4371, 0.0, %v4436
      %v4500 = vrot.slane %v4245, 1
      %v4501 = vrot.slane %v4247, 1
      %v4502 = vrot.slane %v4249, 1
      %v4503 = vrot.slane %v4251, 1
      %v4504 = vrot.slane %v4253, 1
      %v4505 = vrot.slane %v4255, 1
      %v4506 = vrot.slane %v4257, 1
      %v4507 = vrot.slane %v4259, 1
      %v4508 = vrot.slane %v4261, 1
      %v4509 = vrot.slane %v4263, 1
      %v4510 = vrot.slane %v4265, 1
      %v4511 = vrot.slane %v4267, 1
      %v4512 = vrot.slane %v4269, 1
      %v4513 = vrot.slane %v4271, 1
      %v4514 = vrot.slane %v4273, 1
      %v4515 = vrot.slane %v4275, 1
      %v4516 = vrot.slane %v4277, 1
      %v4517 = vrot.slane %v4279, 1
      %v4518 = vrot.slane %v4281, 1
      %v4519 = vrot.slane %v4283, 1
      %v4520 = vrot.slane %v4285, 1
      %v4521 = vrot.slane %v4287, 1
      %v4522 = vrot.slane %v4289, 1
      %v4523 = vrot.slane %v4291, 1
      %v4524 = vrot.slane %v4293, 1
      %v4525 = vrot.slane %v4295, 1
      %v4526 = vrot.slane %v4297, 1
      %v4527 = vrot.slane %v4299, 1
      %v4528 = vrot.slane %v4301, 1
      %v4529 = vrot.slane %v4303, 1
      %v4530 = vrot.slane %v4305, 1
      %v4531 = vrot.slane %v4307, 1
      %v4532 = vsel %vm806, %v4530, %v4531
      %v4533 = vsel %vm806, %v4529, %v4530
      %v4534 = vsel %vm806, %v4528, %v4529
      %v4535 = vsel %vm806, %v4527, %v4528
      %v4536 = vsel %vm806, %v4526, %v4527
      %v4537 = vsel %vm806, %v4525, %v4526
      %v4538 = vsel %vm806, %v4524, %v4525
      %v4539 = vsel %vm806, %v4523, %v4524
      %v4540 = vsel %vm806, %v4522, %v4523
      %v4541 = vsel %vm806, %v4521, %v4522
      %v4542 = vsel %vm806, %v4520, %v4521
      %v4543 = vsel %vm806, %v4519, %v4520
      %v4544 = vsel %vm806, %v4518, %v4519
      %v4545 = vsel %vm806, %v4517, %v4518
      %v4546 = vsel %vm806, %v4516, %v4517
      %v4547 = vsel %vm806, %v4515, %v4516
      %v4548 = vsel %vm806, %v4514, %v4515
      %v4549 = vsel %vm806, %v4513, %v4514
      %v4550 = vsel %vm806, %v4512, %v4513
      %v4551 = vsel %vm806, %v4511, %v4512
      %v4552 = vsel %vm806, %v4510, %v4511
      %v4553 = vsel %vm806, %v4509, %v4510
      %v4554 = vsel %vm806, %v4508, %v4509
      %v4555 = vsel %vm806, %v4507, %v4508
      %v4556 = vsel %vm806, %v4506, %v4507
      %v4557 = vsel %vm806, %v4505, %v4506
      %v4558 = vsel %vm806, %v4504, %v4505
      %v4559 = vsel %vm806, %v4503, %v4504
      %v4560 = vsel %vm806, %v4502, %v4503
      %v4561 = vsel %vm806, %v4501, %v4502
      %v4562 = vsel %vm806, %v4500, %v4501
      %v4563 = vsel %vm806, %v4531, %v4500
      %v4564 = vsel %vm4372, 0.0, %v4562
      %v4565 = vsel %vm4373, 0.0, %v4561
      %v4566 = vsel %vm4374, 0.0, %v4560
      %v4567 = vsel %vm4375, 0.0, %v4559
      %v4568 = vsel %vm4376, 0.0, %v4558
      %v4569 = vsel %vm4377, 0.0, %v4557
      %v4570 = vsel %vm4378, 0.0, %v4556
      %v4571 = vsel %vm4379, 0.0, %v4555
      %v4572 = vsel %vm4380, 0.0, %v4554
      %v4573 = vsel %vm4381, 0.0, %v4553
      %v4574 = vsel %vm4382, 0.0, %v4552
      %v4575 = vsel %vm4383, 0.0, %v4551
      %v4576 = vsel %vm4384, 0.0, %v4550
      %v4577 = vsel %vm4385, 0.0, %v4549
      %v4578 = vsel %vm4386, 0.0, %v4548
      %v4579 = vsel %vm4387, 0.0, %v4547
      %v4580 = vsel %vm4388, 0.0, %v4546
      %v4581 = vsel %vm4389, 0.0, %v4545
      %v4582 = vsel %vm4390, 0.0, %v4544
      %v4583 = vsel %vm4391, 0.0, %v4543
      %v4584 = vsel %vm4392, 0.0, %v4542
      %v4585 = vsel %vm4393, 0.0, %v4541
      %v4586 = vsel %vm4394, 0.0, %v4540
      %v4587 = vsel %vm4395, 0.0, %v4539
      %v4588 = vsel %vm4396, 0.0, %v4538
      %v4589 = vsel %vm4397, 0.0, %v4537
      %v4590 = vsel %vm4398, 0.0, %v4536
      %v4591 = vsel %vm4399, 0.0, %v4535
      %v4592 = vsel %vm4400, 0.0, %v4534
      %v4593 = vsel %vm4401, 0.0, %v4533
      %v4594 = vsel %vm4402, 0.0, %v4532
      %v4595 = vsel %vm4403, 0.0, %v4563
      %4628 = vrot.lane.b32.xlu0 %v4245, 32
      %v4629 = vpop.permute.xlu0 %4628
      %4630 = vrot.lane.b32.xlu0 %v4247, 32
      %v4631 = vpop.permute.xlu0 %4630
      %4632 = vrot.lane.b32.xlu0 %v4249, 32
      %v4633 = vpop.permute.xlu0 %4632
      %4634 = vrot.lane.b32.xlu0 %v4251, 32
      %v4635 = vpop.permute.xlu0 %4634
      %4636 = vrot.lane.b32.xlu0 %v4253, 32
      %v4637 = vpop.permute.xlu0 %4636
      %4638 = vrot.lane.b32.xlu0 %v4255, 32
      %v4639 = vpop.permute.xlu0 %4638
      %4640 = vrot.lane.b32.xlu0 %v4257, 32
      %v4641 = vpop.permute.xlu0 %4640
      %4642 = vrot.lane.b32.xlu0 %v4259, 32
      %v4643 = vpop.permute.xlu0 %4642
      %4644 = vrot.lane.b32.xlu0 %v4261, 32
      %v4645 = vpop.permute.xlu0 %4644
      %4646 = vrot.lane.b32.xlu0 %v4263, 32
      %v4647 = vpop.permute.xlu0 %4646
      %4648 = vrot.lane.b32.xlu0 %v4265, 32
      %v4649 = vpop.permute.xlu0 %4648
      %4650 = vrot.lane.b32.xlu0 %v4267, 32
      %v4651 = vpop.permute.xlu0 %4650
      %4652 = vrot.lane.b32.xlu0 %v4269, 32
      %v4653 = vpop.permute.xlu0 %4652
      %4654 = vrot.lane.b32.xlu0 %v4271, 32
      %v4655 = vpop.permute.xlu0 %4654
      %4656 = vrot.lane.b32.xlu0 %v4273, 32
      %v4657 = vpop.permute.xlu0 %4656
      %4658 = vrot.lane.b32.xlu0 %v4275, 32
      %v4659 = vpop.permute.xlu0 %4658
      %4660 = vrot.lane.b32.xlu0 %v4277, 32
      %v4661 = vpop.permute.xlu0 %4660
      %4662 = vrot.lane.b32.xlu0 %v4279, 32
      %v4663 = vpop.permute.xlu0 %4662
      %4664 = vrot.lane.b32.xlu0 %v4281, 32
      %v4665 = vpop.permute.xlu0 %4664
      %4666 = vrot.lane.b32.xlu0 %v4283, 32
      %v4667 = vpop.permute.xlu0 %4666
      %4668 = vrot.lane.b32.xlu0 %v4285, 32
      %v4669 = vpop.permute.xlu0 %4668
      %4670 = vrot.lane.b32.xlu0 %v4287, 32
      %v4671 = vpop.permute.xlu0 %4670
      %4672 = vrot.lane.b32.xlu0 %v4289, 32
      %v4673 = vpop.permute.xlu0 %4672
      %4674 = vrot.lane.b32.xlu0 %v4291, 32
      %v4675 = vpop.permute.xlu0 %4674
      %4676 = vrot.lane.b32.xlu0 %v4293, 32
      %v4677 = vpop.permute.xlu0 %4676
      %4678 = vrot.lane.b32.xlu0 %v4295, 32
      %v4679 = vpop.permute.xlu0 %4678
      %4680 = vrot.lane.b32.xlu0 %v4297, 32
      %v4681 = vpop.permute.xlu0 %4680
      %4682 = vrot.lane.b32.xlu0 %v4299, 32
      %v4683 = vpop.permute.xlu0 %4682
      %4684 = vrot.lane.b32.xlu0 %v4301, 32
      %v4685 = vpop.permute.xlu0 %4684
      %4686 = vrot.lane.b32.xlu0 %v4303, 32
      %v4687 = vpop.permute.xlu0 %4686
      %4688 = vrot.lane.b32.xlu0 %v4305, 32
      %v4689 = vpop.permute.xlu0 %4688
      %4690 = vrot.lane.b32.xlu0 %v4307, 32
      %v4691 = vpop.permute.xlu0 %4690
      %4756 = vrot.lane.b32.xlu0 %v4564, 64
      %v4757 = vpop.permute.xlu0 %4756
      %4758 = vrot.lane.b32.xlu0 %v4565, 64
      %v4759 = vpop.permute.xlu0 %4758
      %4760 = vrot.lane.b32.xlu0 %v4566, 64
      %v4761 = vpop.permute.xlu0 %4760
      %4762 = vrot.lane.b32.xlu0 %v4567, 64
      %v4763 = vpop.permute.xlu0 %4762
      %4764 = vrot.lane.b32.xlu0 %v4568, 64
      %v4765 = vpop.permute.xlu0 %4764
      %4766 = vrot.lane.b32.xlu0 %v4569, 64
      %v4767 = vpop.permute.xlu0 %4766
      %4768 = vrot.lane.b32.xlu0 %v4570, 64
      %v4769 = vpop.permute.xlu0 %4768
      %4770 = vrot.lane.b32.xlu0 %v4571, 64
      %v4771 = vpop.permute.xlu0 %4770
      %4772 = vrot.lane.b32.xlu0 %v4572, 64
      %v4773 = vpop.permute.xlu0 %4772
      %4774 = vrot.lane.b32.xlu0 %v4573, 64
      %v4775 = vpop.permute.xlu0 %4774
      %4776 = vrot.lane.b32.xlu0 %v4574, 64
      %v4777 = vpop.permute.xlu0 %4776
      %4778 = vrot.lane.b32.xlu0 %v4575, 64
      %v4779 = vpop.permute.xlu0 %4778
      %4780 = vrot.lane.b32.xlu0 %v4576, 64
      %v4781 = vpop.permute.xlu0 %4780
      %4782 = vrot.lane.b32.xlu0 %v4577, 64
      %v4783 = vpop.permute.xlu0 %4782
      %4784 = vrot.lane.b32.xlu0 %v4578, 64
      %v4785 = vpop.permute.xlu0 %4784
      %4786 = vrot.lane.b32.xlu0 %v4579, 64
      %v4787 = vpop.permute.xlu0 %4786
      %4788 = vrot.lane.b32.xlu0 %v4580, 64
      %v4789 = vpop.permute.xlu0 %4788
      %4790 = vrot.lane.b32.xlu0 %v4581, 64
      %v4791 = vpop.permute.xlu0 %4790
      %4792 = vrot.lane.b32.xlu0 %v4582, 64
      %v4793 = vpop.permute.xlu0 %4792
      %4794 = vrot.lane.b32.xlu0 %v4583, 64
      %v4795 = vpop.permute.xlu0 %4794
      %4796 = vrot.lane.b32.xlu0 %v4584, 64
      %v4797 = vpop.permute.xlu0 %4796
      %4798 = vrot.lane.b32.xlu0 %v4585, 64
      %v4799 = vpop.permute.xlu0 %4798
      %4800 = vrot.lane.b32.xlu0 %v4586, 64
      %v4801 = vpop.permute.xlu0 %4800
      %4802 = vrot.lane.b32.xlu0 %v4587, 64
      %v4803 = vpop.permute.xlu0 %4802
      %4804 = vrot.lane.b32.xlu0 %v4588, 64
      %v4805 = vpop.permute.xlu0 %4804
      %4806 = vrot.lane.b32.xlu0 %v4589, 64
      %v4807 = vpop.permute.xlu0 %4806
      %4808 = vrot.lane.b32.xlu0 %v4590, 64
      %v4809 = vpop.permute.xlu0 %4808
      %4810 = vrot.lane.b32.xlu0 %v4591, 64
      %v4811 = vpop.permute.xlu0 %4810
      %4812 = vrot.lane.b32.xlu0 %v4592, 64
      %v4813 = vpop.permute.xlu0 %4812
      %4814 = vrot.lane.b32.xlu0 %v4593, 64
      %v4815 = vpop.permute.xlu0 %4814
      %4816 = vrot.lane.b32.xlu0 %v4594, 64
      %v4817 = vpop.permute.xlu0 %4816
      %4818 = vrot.lane.b32.xlu0 %v4595, 64
      %v4819 = vpop.permute.xlu0 %4818
      %v4852 = vsel %vm1447, %v4468, %v4629
      %v4853 = vsel %vm1447, %v4469, %v4631
      %v4854 = vsel %vm1447, %v4470, %v4633
      %v4855 = vsel %vm1447, %v4471, %v4635
      %v4856 = vsel %vm1447, %v4472, %v4637
      %v4857 = vsel %vm1447, %v4473, %v4639
      %v4858 = vsel %vm1447, %v4474, %v4641
      %v4859 = vsel %vm1447, %v4475, %v4643
      %v4860 = vsel %vm1447, %v4476, %v4645
      %v4861 = vsel %vm1447, %v4477, %v4647
      %v4862 = vsel %vm1447, %v4478, %v4649
      %v4863 = vsel %vm1447, %v4479, %v4651
      %v4864 = vsel %vm1447, %v4480, %v4653
      %v4865 = vsel %vm1447, %v4481, %v4655
      %v4866 = vsel %vm1447, %v4482, %v4657
      %v4867 = vsel %vm1447, %v4483, %v4659
      %v4868 = vsel %vm1447, %v4484, %v4661
      %v4869 = vsel %vm1447, %v4485, %v4663
      %v4870 = vsel %vm1447, %v4486, %v4665
      %v4871 = vsel %vm1447, %v4487, %v4667
      %v4872 = vsel %vm1447, %v4488, %v4669
      %v4873 = vsel %vm1447, %v4489, %v4671
      %v4874 = vsel %vm1447, %v4490, %v4673
      %v4875 = vsel %vm1447, %v4491, %v4675
      %v4876 = vsel %vm1447, %v4492, %v4677
      %v4877 = vsel %vm1447, %v4493, %v4679
      %v4878 = vsel %vm1447, %v4494, %v4681
      %v4879 = vsel %vm1447, %v4495, %v4683
      %v4880 = vsel %vm1447, %v4496, %v4685
      %v4881 = vsel %vm1447, %v4497, %v4687
      %v4882 = vsel %vm1447, %v4498, %v4689
      %v4883 = vsel %vm1447, %v4499, %v4691
      %v4884 = vsel %vm1512, %v4852, %v4757
      %v4885 = vsel %vm1512, %v4853, %v4759
      %v4886 = vsel %vm1512, %v4854, %v4761
      %v4887 = vsel %vm1512, %v4855, %v4763
      %v4888 = vsel %vm1512, %v4856, %v4765
      %v4889 = vsel %vm1512, %v4857, %v4767
      %v4890 = vsel %vm1512, %v4858, %v4769
      %v4891 = vsel %vm1512, %v4859, %v4771
      %v4892 = vsel %vm1512, %v4860, %v4773
      %v4893 = vsel %vm1512, %v4861, %v4775
      %v4894 = vsel %vm1512, %v4862, %v4777
      %v4895 = vsel %vm1512, %v4863, %v4779
      %v4896 = vsel %vm1512, %v4864, %v4781
      %v4897 = vsel %vm1512, %v4865, %v4783
      %v4898 = vsel %vm1512, %v4866, %v4785
      %v4899 = vsel %vm1512, %v4867, %v4787
      %v4900 = vsel %vm1512, %v4868, %v4789
      %v4901 = vsel %vm1512, %v4869, %v4791
      %v4902 = vsel %vm1512, %v4870, %v4793
      %v4903 = vsel %vm1512, %v4871, %v4795
      %v4904 = vsel %vm1512, %v4872, %v4797
      %v4905 = vsel %vm1512, %v4873, %v4799
      %v4906 = vsel %vm1512, %v4874, %v4801
      %v4907 = vsel %vm1512, %v4875, %v4803
      %v4908 = vsel %vm1512, %v4876, %v4805
      %v4909 = vsel %vm1512, %v4877, %v4807
      %v4910 = vsel %vm1512, %v4878, %v4809
      %v4911 = vsel %vm1512, %v4879, %v4811
      %v4912 = vsel %vm1512, %v4880, %v4813
      %v4913 = vsel %vm1512, %v4881, %v4815
      %v4914 = vsel %vm1512, %v4882, %v4817
      %v4915 = vsel %vm1512, %v4883, %v4819
      %v4916 = vpack.c.bf16 %v4885, %v4884
      %v4917 = vpack.c.bf16 %v4887, %v4886
      %v4918 = vpack.c.bf16 %v4889, %v4888
      %v4919 = vpack.c.bf16 %v4891, %v4890
      %v4920 = vpack.c.bf16 %v4893, %v4892
      %v4921 = vpack.c.bf16 %v4895, %v4894
      %v4922 = vpack.c.bf16 %v4897, %v4896
      %v4923 = vpack.c.bf16 %v4899, %v4898
      %v4924 = vpack.c.bf16 %v4901, %v4900
      %v4925 = vpack.c.bf16 %v4903, %v4902
      %v4926 = vpack.c.bf16 %v4905, %v4904
      %v4927 = vpack.c.bf16 %v4907, %v4906
      %v4928 = vpack.c.bf16 %v4909, %v4908
      %v4929 = vpack.c.bf16 %v4911, %v4910
      %v4930 = vpack.c.bf16 %v4913, %v4912
      %v4931 = vpack.c.bf16 %v4915, %v4914
      %s4932 = scalar_lea.vmem %s1, 96
      %v4933 = vld [vmem:[%s4932] sm:$0xf]
      %v4934 = vld [vmem:[%s4932 + $0x4] sm:$0xf]
      %v4935 = vld [vmem:[%s4932 + $0x8] sm:$0xf]
      %v4936 = vld [vmem:[%s4932 + $0xc] sm:$0xf]
      %v4937 = vld [vmem:[%s4932 + $0x10] sm:$0xf]
      %v4938 = vld [vmem:[%s4932 + $0x14] sm:$0xf]
      %v4939 = vld [vmem:[%s4932 + $0x18] sm:$0xf]
      %v4940 = vld [vmem:[%s4932 + $0x1c] sm:$0xf]
      %v4941 = vld [vmem:[%s4932 + $0x20] sm:$0xf]
      %v4942 = vld [vmem:[%s4932 + $0x24] sm:$0xf]
      %v4943 = vld [vmem:[%s4932 + $0x28] sm:$0xf]
      %v4944 = vld [vmem:[%s4932 + $0x2c] sm:$0xf]
      %v4945 = vlaneseq
      %v4946 = vshrl.u32 %v4945, 7
      %v4947 = vsub.s32 2, %v4946
      %v4948 = vrot.slane %v226, %v4947
      %v4961 = vunpack.c.l.b16 %v4933
      %v4962 = vunpack.c.l.b16 %v4934
      %v4963 = vunpack.c.l.b16 %v4935
      %v4964 = vunpack.c.l.b16 %v4936
      %v4965 = vunpack.c.l.b16 %v4937
      %v4966 = vunpack.c.l.b16 %v4938
      %v4967 = vunpack.c.l.b16 %v4939
      %v4968 = vunpack.c.l.b16 %v4940
      %v4969 = vunpack.c.l.b16 %v4941
      %v4970 = vunpack.c.l.b16 %v4942
      %v4971 = vunpack.c.l.b16 %v4943
      %v4972 = vunpack.c.l.b16 %v4944
      %v4973 = vpack.c.b16 %v4962, %v4961
      %v4974 = vpack.c.b16 %v4964, %v4963
      %v4975 = vpack.c.b16 %v4966, %v4965
      %v4976 = vpack.c.b16 %v4968, %v4967
      %v4977 = vpack.c.b16 %v4970, %v4969
      %v4978 = vpack.c.b16 %v4972, %v4971
      %v4986 = vsel %vm1661, %v4916, 0
      %v4989 = vsel %vm1661, %v4917, 0
      %v4992 = vsel %vm1661, %v4918, 0
      %v4995 = vsel %vm1661, %v4919, 0
      %v4998 = vsel %vm1661, %v4920, 0
      %v5001 = vsel %vm1661, %v4921, 0
      %v5004 = vsel %vm1661, %v4922, 0
      %v5007 = vsel %vm1661, %v4923, 0
      %v5010 = vsel %vm1661, %v4924, 0
      %v5013 = vsel %vm1661, %v4925, 0
      %v5016 = vsel %vm1661, %v4926, 0
      %v5019 = vsel %vm1661, %v4927, 0
      %v5022 = vsel %vm1661, %v4928, 0
      %v5025 = vsel %vm1661, %v4929, 0
      %v5028 = vsel %vm1661, %v4930, 0
      %v5031 = vsel %vm1661, %v4931, 0
      %5033 = vmatprep.subr.bf16.mxu0 0
      %5034 = vmatpush1.bf16.msra.mxu0 %v4973
      %5035 = vmatprep.subr.bf16.mxu0 0
      %5036 = vmatpush1.bf16.msra.mxu0 %v4974
      %5037 = vmatprep.subr.bf16.mxu0 0
      %5038 = vmatpush1.bf16.msra.mxu0 %v4975
      %5039 = vmatprep.subr.bf16.mxu0 0
      %5040 = vmatpush1.bf16.msra.mxu0 %v4976
      %5041 = vmatprep.subr.bf16.mxu0 0
      %5042 = vmatpush1.bf16.msra.mxu0 %v4977
      %5043 = vmatprep.subr.bf16.mxu0 0
      %5044 = vmatpush1.bf16.msra.mxu0 %v4978
      %5045 = vmatprep.subr.bf16.mxu0 0
      %5046 = vmatpush1.bf16.msra.mxu0 0
      %5047 = vmatprep.subr.bf16.mxu0 0
      %5048 = vmatpush1.bf16.msra.mxu0 0
      %5049 = vmatprep.subr.bf16.mxu0 0
      %5050 = vmatpush1.bf16.msra.mxu0 0
      %5051 = vmatprep.subr.bf16.mxu0 0
      %5052 = vmatpush1.bf16.msra.mxu0 0
      %5053 = vmatprep.subr.bf16.mxu0 0
      %5054 = vmatpush1.bf16.msra.mxu0 0
      %5055 = vmatprep.subr.bf16.mxu0 0
      %5056 = vmatpush1.bf16.msra.mxu0 0
      %5057 = vmatprep.subr.bf16.mxu0 0
      %5058 = vmatpush1.bf16.msra.mxu0 0
      %5059 = vmatprep.subr.bf16.mxu0 0
      %5060 = vmatpush1.bf16.msra.mxu0 0
      %5061 = vmatprep.subr.bf16.mxu0 0
      %5062 = vmatpush1.bf16.msra.mxu0 0
      %5063 = vmatprep.subr.bf16.mxu0 0
      %5064 = vmatpush1.bf16.msra.mxu0 0
      %5065 = vmatprep.mubr.bf16.mxu0 0
      %5066 = vmatmul.mubr.bf16.gmra.mrb[0].mxu0 %v4986
      %v5067 = vpop.f32.mrb[0].mxu0
      %v5068 = vadd.f32 %v4948, %v5067
      %v5069 = vpop.f32.mrb[0].mxu0
      %v5070 = vpop.f32.mrb[0].mxu0
      %v5071 = vadd.f32 %v4948, %v5070
      %v5072 = vpop.f32.mrb[0].mxu0
      %5073 = vmatprep.mubr.bf16.mxu0 0
      %5074 = vmatmul.mubr.bf16.gmra.mrb[0].mxu0 %v4989
      %v5075 = vpop.f32.mrb[0].mxu0
      %v5076 = vadd.f32 %v4948, %v5075
      %v5077 = vpop.f32.mrb[0].mxu0
      %v5078 = vpop.f32.mrb[0].mxu0
      %v5079 = vadd.f32 %v4948, %v5078
      %v5080 = vpop.f32.mrb[0].mxu0
      %5081 = vmatprep.mubr.bf16.mxu0 0
      %5082 = vmatmul.mubr.bf16.gmra.mrb[0].mxu0 %v4992
      %v5083 = vpop.f32.mrb[0].mxu0
      %v5084 = vadd.f32 %v4948, %v5083
      %v5085 = vpop.f32.mrb[0].mxu0
      %v5086 = vpop.f32.mrb[0].mxu0
      %v5087 = vadd.f32 %v4948, %v5086
      %v5088 = vpop.f32.mrb[0].mxu0
      %5089 = vmatprep.mubr.bf16.mxu0 0
      %5090 = vmatmul.mubr.bf16.gmra.mrb[0].mxu0 %v4995
      %v5091 = vpop.f32.mrb[0].mxu0
      %v5092 = vadd.f32 %v4948, %v5091
      %v5093 = vpop.f32.mrb[0].mxu0
      %v5094 = vpop.f32.mrb[0].mxu0
      %v5095 = vadd.f32 %v4948, %v5094
      %v5096 = vpop.f32.mrb[0].mxu0
      %5097 = vmatprep.mubr.bf16.mxu0 0
      %5098 = vmatmul.mubr.bf16.gmra.mrb[0].mxu0 %v4998
      %v5099 = vpop.f32.mrb[0].mxu0
      %v5100 = vadd.f32 %v4948, %v5099
      %v5101 = vpop.f32.mrb[0].mxu0
      %v5102 = vpop.f32.mrb[0].mxu0
      %v5103 = vadd.f32 %v4948, %v5102
      %v5104 = vpop.f32.mrb[0].mxu0
      %5105 = vmatprep.mubr.bf16.mxu0 0
      %5106 = vmatmul.mubr.bf16.gmra.mrb[0].mxu0 %v5001
      %v5107 = vpop.f32.mrb[0].mxu0
      %v5108 = vadd.f32 %v4948, %v5107
      %v5109 = vpop.f32.mrb[0].mxu0
      %v5110 = vpop.f32.mrb[0].mxu0
      %v5111 = vadd.f32 %v4948, %v5110
      %v5112 = vpop.f32.mrb[0].mxu0
      %5113 = vmatprep.mubr.bf16.mxu0 0
      %5114 = vmatmul.mubr.bf16.gmra.mrb[0].mxu0 %v5004
      %v5115 = vpop.f32.mrb[0].mxu0
      %v5116 = vadd.f32 %v4948, %v5115
      %v5117 = vpop.f32.mrb[0].mxu0
      %v5118 = vpop.f32.mrb[0].mxu0
      %v5119 = vadd.f32 %v4948, %v5118
      %v5120 = vpop.f32.mrb[0].mxu0
      %5121 = vmatprep.mubr.bf16.mxu0 0
      %5122 = vmatmul.mubr.bf16.gmra.mrb[0].mxu0 %v5007
      %v5123 = vpop.f32.mrb[0].mxu0
      %v5124 = vadd.f32 %v4948, %v5123
      %v5125 = vpop.f32.mrb[0].mxu0
      %v5126 = vpop.f32.mrb[0].mxu0
      %v5127 = vadd.f32 %v4948, %v5126
      %v5128 = vpop.f32.mrb[0].mxu0
      %5129 = vmatprep.mubr.bf16.mxu0 0
      %5130 = vmatmul.mubr.bf16.gmra.mrb[0].mxu0 %v5010
      %v5131 = vpop.f32.mrb[0].mxu0
      %v5132 = vadd.f32 %v4948, %v5131
      %v5133 = vpop.f32.mrb[0].mxu0
      %v5134 = vpop.f32.mrb[0].mxu0
      %v5135 = vadd.f32 %v4948, %v5134
      %v5136 = vpop.f32.mrb[0].mxu0
      %5137 = vmatprep.mubr.bf16.mxu0 0
      %5138 = vmatmul.mubr.bf16.gmra.mrb[0].mxu0 %v5013
      %v5139 = vpop.f32.mrb[0].mxu0
      %v5140 = vadd.f32 %v4948, %v5139
      %v5141 = vpop.f32.mrb[0].mxu0
      %v5142 = vpop.f32.mrb[0].mxu0
      %v5143 = vadd.f32 %v4948, %v5142
      %v5144 = vpop.f32.mrb[0].mxu0
      %5145 = vmatprep.mubr.bf16.mxu0 0
      %5146 = vmatmul.mubr.bf16.gmra.mrb[0].mxu0 %v5016
      %v5147 = vpop.f32.mrb[0].mxu0
      %v5148 = vadd.f32 %v4948, %v5147
      %v5149 = vpop.f32.mrb[0].mxu0
      %v5150 = vpop.f32.mrb[0].mxu0
      %v5151 = vadd.f32 %v4948, %v5150
      %v5152 = vpop.f32.mrb[0].mxu0
      %5153 = vmatprep.mubr.bf16.mxu0 0
      %5154 = vmatmul.mubr.bf16.gmra.mrb[0].mxu0 %v5019
      %v5155 = vpop.f32.mrb[0].mxu0
      %v5156 = vadd.f32 %v4948, %v5155
      %v5157 = vpop.f32.mrb[0].mxu0
      %v5158 = vpop.f32.mrb[0].mxu0
      %v5159 = vadd.f32 %v4948, %v5158
      %v5160 = vpop.f32.mrb[0].mxu0
      %5161 = vmatprep.mubr.bf16.mxu0 0
      %5162 = vmatmul.mubr.bf16.gmra.mrb[0].mxu0 %v5022
      %v5163 = vpop.f32.mrb[0].mxu0
      %v5164 = vadd.f32 %v4948, %v5163
      %v5165 = vpop.f32.mrb[0].mxu0
      %v5166 = vpop.f32.mrb[0].mxu0
      %v5167 = vadd.f32 %v4948, %v5166
      %v5168 = vpop.f32.mrb[0].mxu0
      %5169 = vmatprep.mubr.bf16.mxu0 0
      %5170 = vmatmul.mubr.bf16.gmra.mrb[0].mxu0 %v5025
      %v5171 = vpop.f32.mrb[0].mxu0
      %v5172 = vadd.f32 %v4948, %v5171
      %v5173 = vpop.f32.mrb[0].mxu0
      %v5174 = vpop.f32.mrb[0].mxu0
      %v5175 = vadd.f32 %v4948, %v5174
      %v5176 = vpop.f32.mrb[0].mxu0
      %5177 = vmatprep.mubr.bf16.mxu0 0
      %5178 = vmatmul.mubr.bf16.gmra.mrb[0].mxu0 %v5028
      %v5179 = vpop.f32.mrb[0].mxu0
      %v5180 = vadd.f32 %v4948, %v5179
      %v5181 = vpop.f32.mrb[0].mxu0
      %v5182 = vpop.f32.mrb[0].mxu0
      %v5183 = vadd.f32 %v4948, %v5182
      %v5184 = vpop.f32.mrb[0].mxu0
      %5185 = vmatprep.mubr.bf16.mxu0 0
      %5186 = vmatmul.mubr.bf16.gmra.mrb[0].mxu0 %v5031
      %v5187 = vpop.f32.mrb[0].mxu0
      %v5188 = vadd.f32 %v4948, %v5187
      %v5189 = vpop.f32.mrb[0].mxu0
      %v5190 = vpop.f32.mrb[0].mxu0
      %v5191 = vadd.f32 %v4948, %v5190
      %v5192 = vpop.f32.mrb[0].mxu0
      %5193 = vdwg.mxu0
      %v5194 = vmax.f32 %v5068, 0.0
      %v5195 = vmax.f32 %v5071, 0.0
      %v5196 = vmax.f32 %v5076, 0.0
      %v5197 = vmax.f32 %v5079, 0.0
      %v5198 = vmax.f32 %v5084, 0.0
      %v5199 = vmax.f32 %v5087, 0.0
      %v5200 = vmax.f32 %v5092, 0.0
      %v5201 = vmax.f32 %v5095, 0.0
      %v5202 = vmax.f32 %v5100, 0.0
      %v5203 = vmax.f32 %v5103, 0.0
      %v5204 = vmax.f32 %v5108, 0.0
      %v5205 = vmax.f32 %v5111, 0.0
      %v5206 = vmax.f32 %v5116, 0.0
      %v5207 = vmax.f32 %v5119, 0.0
      %v5208 = vmax.f32 %v5124, 0.0
      %v5209 = vmax.f32 %v5127, 0.0
      %v5210 = vmax.f32 %v5132, 0.0
      %v5211 = vmax.f32 %v5135, 0.0
      %v5212 = vmax.f32 %v5140, 0.0
      %v5213 = vmax.f32 %v5143, 0.0
      %v5214 = vmax.f32 %v5148, 0.0
      %v5215 = vmax.f32 %v5151, 0.0
      %v5216 = vmax.f32 %v5156, 0.0
      %v5217 = vmax.f32 %v5159, 0.0
      %v5218 = vmax.f32 %v5164, 0.0
      %v5219 = vmax.f32 %v5167, 0.0
      %v5220 = vmax.f32 %v5172, 0.0
      %v5221 = vmax.f32 %v5175, 0.0
      %v5222 = vmax.f32 %v5180, 0.0
      %v5223 = vmax.f32 %v5183, 0.0
      %v5224 = vmax.f32 %v5188, 0.0
      %v5225 = vmax.f32 %v5191, 0.0
      %v5226 = vrot.slane %v5194, 7
      %v5227 = vrot.slane %v5195, 7
      %v5228 = vrot.slane %v5196, 7
      %v5229 = vrot.slane %v5197, 7
      %v5230 = vrot.slane %v5198, 7
      %v5231 = vrot.slane %v5199, 7
      %v5232 = vrot.slane %v5200, 7
      %v5233 = vrot.slane %v5201, 7
      %v5234 = vrot.slane %v5202, 7
      %v5235 = vrot.slane %v5203, 7
      %v5236 = vrot.slane %v5204, 7
      %v5237 = vrot.slane %v5205, 7
      %v5238 = vrot.slane %v5206, 7
      %v5239 = vrot.slane %v5207, 7
      %v5240 = vrot.slane %v5208, 7
      %v5241 = vrot.slane %v5209, 7
      %v5242 = vrot.slane %v5210, 7
      %v5243 = vrot.slane %v5211, 7
      %v5244 = vrot.slane %v5212, 7
      %v5245 = vrot.slane %v5213, 7
      %v5246 = vrot.slane %v5214, 7
      %v5247 = vrot.slane %v5215, 7
      %v5248 = vrot.slane %v5216, 7
      %v5249 = vrot.slane %v5217, 7
      %v5250 = vrot.slane %v5218, 7
      %v5251 = vrot.slane %v5219, 7
      %v5252 = vrot.slane %v5220, 7
      %v5253 = vrot.slane %v5221, 7
      %v5254 = vrot.slane %v5222, 7
      %v5255 = vrot.slane %v5223, 7
      %v5256 = vrot.slane %v5224, 7
      %v5257 = vrot.slane %v5225, 7
      %v5258 = vsel %vm613, %v5256, %v5257
      %v5259 = vsel %vm613, %v5255, %v5256
      %v5260 = vsel %vm613, %v5254, %v5255
      %v5261 = vsel %vm613, %v5253, %v5254
      %v5262 = vsel %vm613, %v5252, %v5253
      %v5263 = vsel %vm613, %v5251, %v5252
      %v5264 = vsel %vm613, %v5250, %v5251
      %v5265 = vsel %vm613, %v5249, %v5250
      %v5266 = vsel %vm613, %v5248, %v5249
      %v5267 = vsel %vm613, %v5247, %v5248
      %v5268 = vsel %vm613, %v5246, %v5247
      %v5269 = vsel %vm613, %v5245, %v5246
      %v5270 = vsel %vm613, %v5244, %v5245
      %v5271 = vsel %vm613, %v5243, %v5244
      %v5272 = vsel %vm613, %v5242, %v5243
      %v5273 = vsel %vm613, %v5241, %v5242
      %v5274 = vsel %vm613, %v5240, %v5241
      %v5275 = vsel %vm613, %v5239, %v5240
      %v5276 = vsel %vm613, %v5238, %v5239
      %v5277 = vsel %vm613, %v5237, %v5238
      %v5278 = vsel %vm613, %v5236, %v5237
      %v5279 = vsel %vm613, %v5235, %v5236
      %v5280 = vsel %vm613, %v5234, %v5235
      %v5281 = vsel %vm613, %v5233, %v5234
      %v5282 = vsel %vm613, %v5232, %v5233
      %v5283 = vsel %vm613, %v5231, %v5232
      %v5284 = vsel %vm613, %v5230, %v5231
      %v5285 = vsel %vm613, %v5229, %v5230
      %v5286 = vsel %vm613, %v5228, %v5229
      %v5287 = vsel %vm613, %v5227, %v5228
      %v5288 = vsel %vm613, %v5226, %v5227
      %v5289 = vsel %vm613, %v5257, %v5226
      %v5290 = vsel %vm4340, 0.0, %v5289
      %v5291 = vsel %vm4341, 0.0, %v5288
      %v5292 = vsel %vm4342, 0.0, %v5287
      %v5293 = vsel %vm4343, 0.0, %v5286
      %v5294 = vsel %vm4344, 0.0, %v5285
      %v5295 = vsel %vm4345, 0.0, %v5284
      %v5296 = vsel %vm4346, 0.0, %v5283
      %v5297 = vsel %vm4347, 0.0, %v5282
      %v5298 = vsel %vm4348, 0.0, %v5281
      %v5299 = vsel %vm4349, 0.0, %v5280
      %v5300 = vsel %vm4350, 0.0, %v5279
      %v5301 = vsel %vm4351, 0.0, %v5278
      %v5302 = vsel %vm4352, 0.0, %v5277
      %v5303 = vsel %vm4353, 0.0, %v5276
      %v5304 = vsel %vm4354, 0.0, %v5275
      %v5305 = vsel %vm4355, 0.0, %v5274
      %v5306 = vsel %vm4356, 0.0, %v5273
      %v5307 = vsel %vm4357, 0.0, %v5272
      %v5308 = vsel %vm4358, 0.0, %v5271
      %v5309 = vsel %vm4359, 0.0, %v5270
      %v5310 = vsel %vm4360, 0.0, %v5269
      %v5311 = vsel %vm4361, 0.0, %v5268
      %v5312 = vsel %vm4362, 0.0, %v5267
      %v5313 = vsel %vm4363, 0.0, %v5266
      %v5314 = vsel %vm4364, 0.0, %v5265
      %v5315 = vsel %vm4365, 0.0, %v5264
      %v5316 = vsel %vm4366, 0.0, %v5263
      %v5317 = vsel %vm4367, 0.0, %v5262
      %v5318 = vsel %vm4368, 0.0, %v5261
      %v5319 = vsel %vm4369, 0.0, %v5260
      %v5320 = vsel %vm4370, 0.0, %v5259
      %v5321 = vsel %vm4371, 0.0, %v5258
      %v5322 = vrot.slane %v5194, 1
      %v5323 = vrot.slane %v5195, 1
      %v5324 = vrot.slane %v5196, 1
      %v5325 = vrot.slane %v5197, 1
      %v5326 = vrot.slane %v5198, 1
      %v5327 = vrot.slane %v5199, 1
      %v5328 = vrot.slane %v5200, 1
      %v5329 = vrot.slane %v5201, 1
      %v5330 = vrot.slane %v5202, 1
      %v5331 = vrot.slane %v5203, 1
      %v5332 = vrot.slane %v5204, 1
      %v5333 = vrot.slane %v5205, 1
      %v5334 = vrot.slane %v5206, 1
      %v5335 = vrot.slane %v5207, 1
      %v5336 = vrot.slane %v5208, 1
      %v5337 = vrot.slane %v5209, 1
      %v5338 = vrot.slane %v5210, 1
      %v5339 = vrot.slane %v5211, 1
      %v5340 = vrot.slane %v5212, 1
      %v5341 = vrot.slane %v5213, 1
      %v5342 = vrot.slane %v5214, 1
      %v5343 = vrot.slane %v5215, 1
      %v5344 = vrot.slane %v5216, 1
      %v5345 = vrot.slane %v5217, 1
      %v5346 = vrot.slane %v5218, 1
      %v5347 = vrot.slane %v5219, 1
      %v5348 = vrot.slane %v5220, 1
      %v5349 = vrot.slane %v5221, 1
      %v5350 = vrot.slane %v5222, 1
      %v5351 = vrot.slane %v5223, 1
      %v5352 = vrot.slane %v5224, 1
      %v5353 = vrot.slane %v5225, 1
      %v5354 = vsel %vm806, %v5352, %v5353
      %v5355 = vsel %vm806, %v5351, %v5352
      %v5356 = vsel %vm806, %v5350, %v5351
      %v5357 = vsel %vm806, %v5349, %v5350
      %v5358 = vsel %vm806, %v5348, %v5349
      %v5359 = vsel %vm806, %v5347, %v5348
      %v5360 = vsel %vm806, %v5346, %v5347
      %v5361 = vsel %vm806, %v5345, %v5346
      %v5362 = vsel %vm806, %v5344, %v5345
      %v5363 = vsel %vm806, %v5343, %v5344
      %v5364 = vsel %vm806, %v5342, %v5343
      %v5365 = vsel %vm806, %v5341, %v5342
      %v5366 = vsel %vm806, %v5340, %v5341
      %v5367 = vsel %vm806, %v5339, %v5340
      %v5368 = vsel %vm806, %v5338, %v5339
      %v5369 = vsel %vm806, %v5337, %v5338
      %v5370 = vsel %vm806, %v5336, %v5337
      %v5371 = vsel %vm806, %v5335, %v5336
      %v5372 = vsel %vm806, %v5334, %v5335
      %v5373 = vsel %vm806, %v5333, %v5334
      %v5374 = vsel %vm806, %v5332, %v5333
      %v5375 = vsel %vm806, %v5331, %v5332
      %v5376 = vsel %vm806, %v5330, %v5331
      %v5377 = vsel %vm806, %v5329, %v5330
      %v5378 = vsel %vm806, %v5328, %v5329
      %v5379 = vsel %vm806, %v5327, %v5328
      %v5380 = vsel %vm806, %v5326, %v5327
      %v5381 = vsel %vm806, %v5325, %v5326
      %v5382 = vsel %vm806, %v5324, %v5325
      %v5383 = vsel %vm806, %v5323, %v5324
      %v5384 = vsel %vm806, %v5322, %v5323
      %v5385 = vsel %vm806, %v5353, %v5322
      %v5386 = vsel %vm4372, 0.0, %v5384
      %v5387 = vsel %vm4373, 0.0, %v5383
      %v5388 = vsel %vm4374, 0.0, %v5382
      %v5389 = vsel %vm4375, 0.0, %v5381
      %v5390 = vsel %vm4376, 0.0, %v5380
      %v5391 = vsel %vm4377, 0.0, %v5379
      %v5392 = vsel %vm4378, 0.0, %v5378
      %v5393 = vsel %vm4379, 0.0, %v5377
      %v5394 = vsel %vm4380, 0.0, %v5376
      %v5395 = vsel %vm4381, 0.0, %v5375
      %v5396 = vsel %vm4382, 0.0, %v5374
      %v5397 = vsel %vm4383, 0.0, %v5373
      %v5398 = vsel %vm4384, 0.0, %v5372
      %v5399 = vsel %vm4385, 0.0, %v5371
      %v5400 = vsel %vm4386, 0.0, %v5370
      %v5401 = vsel %vm4387, 0.0, %v5369
      %v5402 = vsel %vm4388, 0.0, %v5368
      %v5403 = vsel %vm4389, 0.0, %v5367
      %v5404 = vsel %vm4390, 0.0, %v5366
      %v5405 = vsel %vm4391, 0.0, %v5365
      %v5406 = vsel %vm4392, 0.0, %v5364
      %v5407 = vsel %vm4393, 0.0, %v5363
      %v5408 = vsel %vm4394, 0.0, %v5362
      %v5409 = vsel %vm4395, 0.0, %v5361
      %v5410 = vsel %vm4396, 0.0, %v5360
      %v5411 = vsel %vm4397, 0.0, %v5359
      %v5412 = vsel %vm4398, 0.0, %v5358
      %v5413 = vsel %vm4399, 0.0, %v5357
      %v5414 = vsel %vm4400, 0.0, %v5356
      %v5415 = vsel %vm4401, 0.0, %v5355
      %v5416 = vsel %vm4402, 0.0, %v5354
      %v5417 = vsel %vm4403, 0.0, %v5385
      %5450 = vrot.lane.b32.xlu0 %v5194, 32
      %v5451 = vpop.permute.xlu0 %5450
      %5452 = vrot.lane.b32.xlu0 %v5195, 32
      %v5453 = vpop.permute.xlu0 %5452
      %5454 = vrot.lane.b32.xlu0 %v5196, 32
      %v5455 = vpop.permute.xlu0 %5454
      %5456 = vrot.lane.b32.xlu0 %v5197, 32
      %v5457 = vpop.permute.xlu0 %5456
      %5458 = vrot.lane.b32.xlu0 %v5198, 32
      %v5459 = vpop.permute.xlu0 %5458
      %5460 = vrot.lane.b32.xlu0 %v5199, 32
      %v5461 = vpop.permute.xlu0 %5460
      %5462 = vrot.lane.b32.xlu0 %v5200, 32
      %v5463 = vpop.permute.xlu0 %5462
      %5464 = vrot.lane.b32.xlu0 %v5201, 32
      %v5465 = vpop.permute.xlu0 %5464
      %5466 = vrot.lane.b32.xlu0 %v5202, 32
      %v5467 = vpop.permute.xlu0 %5466
      %5468 = vrot.lane.b32.xlu0 %v5203, 32
      %v5469 = vpop.permute.xlu0 %5468
      %5470 = vrot.lane.b32.xlu0 %v5204, 32
      %v5471 = vpop.permute.xlu0 %5470
      %5472 = vrot.lane.b32.xlu0 %v5205, 32
      %v5473 = vpop.permute.xlu0 %5472
      %5474 = vrot.lane.b32.xlu0 %v5206, 32
      %v5475 = vpop.permute.xlu0 %5474
      %5476 = vrot.lane.b32.xlu0 %v5207, 32
      %v5477 = vpop.permute.xlu0 %5476
      %5478 = vrot.lane.b32.xlu0 %v5208, 32
      %v5479 = vpop.permute.xlu0 %5478
      %5480 = vrot.lane.b32.xlu0 %v5209, 32
      %v5481 = vpop.permute.xlu0 %5480
      %5482 = vrot.lane.b32.xlu0 %v5210, 32
      %v5483 = vpop.permute.xlu0 %5482
      %5484 = vrot.lane.b32.xlu0 %v5211, 32
      %v5485 = vpop.permute.xlu0 %5484
      %5486 = vrot.lane.b32.xlu0 %v5212, 32
      %v5487 = vpop.permute.xlu0 %5486
      %5488 = vrot.lane.b32.xlu0 %v5213, 32
      %v5489 = vpop.permute.xlu0 %5488
      %5490 = vrot.lane.b32.xlu0 %v5214, 32
      %v5491 = vpop.permute.xlu0 %5490
      %5492 = vrot.lane.b32.xlu0 %v5215, 32
      %v5493 = vpop.permute.xlu0 %5492
      %5494 = vrot.lane.b32.xlu0 %v5216, 32
      %v5495 = vpop.permute.xlu0 %5494
      %5496 = vrot.lane.b32.xlu0 %v5217, 32
      %v5497 = vpop.permute.xlu0 %5496
      %5498 = vrot.lane.b32.xlu0 %v5218, 32
      %v5499 = vpop.permute.xlu0 %5498
      %5500 = vrot.lane.b32.xlu0 %v5219, 32
      %v5501 = vpop.permute.xlu0 %5500
      %5502 = vrot.lane.b32.xlu0 %v5220, 32
      %v5503 = vpop.permute.xlu0 %5502
      %5504 = vrot.lane.b32.xlu0 %v5221, 32
      %v5505 = vpop.permute.xlu0 %5504
      %5506 = vrot.lane.b32.xlu0 %v5222, 32
      %v5507 = vpop.permute.xlu0 %5506
      %5508 = vrot.lane.b32.xlu0 %v5223, 32
      %v5509 = vpop.permute.xlu0 %5508
      %5510 = vrot.lane.b32.xlu0 %v5224, 32
      %v5511 = vpop.permute.xlu0 %5510
      %5512 = vrot.lane.b32.xlu0 %v5225, 32
      %v5513 = vpop.permute.xlu0 %5512
      %5578 = vrot.lane.b32.xlu0 %v5386, 64
      %v5579 = vpop.permute.xlu0 %5578
      %5580 = vrot.lane.b32.xlu0 %v5387, 64
      %v5581 = vpop.permute.xlu0 %5580
      %5582 = vrot.lane.b32.xlu0 %v5388, 64
      %v5583 = vpop.permute.xlu0 %5582
      %5584 = vrot.lane.b32.xlu0 %v5389, 64
      %v5585 = vpop.permute.xlu0 %5584
      %5586 = vrot.lane.b32.xlu0 %v5390, 64
      %v5587 = vpop.permute.xlu0 %5586
      %5588 = vrot.lane.b32.xlu0 %v5391, 64
      %v5589 = vpop.permute.xlu0 %5588
      %5590 = vrot.lane.b32.xlu0 %v5392, 64
      %v5591 = vpop.permute.xlu0 %5590
      %5592 = vrot.lane.b32.xlu0 %v5393, 64
      %v5593 = vpop.permute.xlu0 %5592
      %5594 = vrot.lane.b32.xlu0 %v5394, 64
      %v5595 = vpop.permute.xlu0 %5594
      %5596 = vrot.lane.b32.xlu0 %v5395, 64
      %v5597 = vpop.permute.xlu0 %5596
      %5598 = vrot.lane.b32.xlu0 %v5396, 64
      %v5599 = vpop.permute.xlu0 %5598
      %5600 = vrot.lane.b32.xlu0 %v5397, 64
      %v5601 = vpop.permute.xlu0 %5600
      %5602 = vrot.lane.b32.xlu0 %v5398, 64
      %v5603 = vpop.permute.xlu0 %5602
      %5604 = vrot.lane.b32.xlu0 %v5399, 64
      %v5605 = vpop.permute.xlu0 %5604
      %5606 = vrot.lane.b32.xlu0 %v5400, 64
      %v5607 = vpop.permute.xlu0 %5606
      %5608 = vrot.lane.b32.xlu0 %v5401, 64
      %v5609 = vpop.permute.xlu0 %5608
      %5610 = vrot.lane.b32.xlu0 %v5402, 64
      %v5611 = vpop.permute.xlu0 %5610
      %5612 = vrot.lane.b32.xlu0 %v5403, 64
      %v5613 = vpop.permute.xlu0 %5612
      %5614 = vrot.lane.b32.xlu0 %v5404, 64
      %v5615 = vpop.permute.xlu0 %5614
      %5616 = vrot.lane.b32.xlu0 %v5405, 64
      %v5617 = vpop.permute.xlu0 %5616
      %5618 = vrot.lane.b32.xlu0 %v5406, 64
      %v5619 = vpop.permute.xlu0 %5618
      %5620 = vrot.lane.b32.xlu0 %v5407, 64
      %v5621 = vpop.permute.xlu0 %5620
      %5622 = vrot.lane.b32.xlu0 %v5408, 64
      %v5623 = vpop.permute.xlu0 %5622
      %5624 = vrot.lane.b32.xlu0 %v5409, 64
      %v5625 = vpop.permute.xlu0 %5624
      %5626 = vrot.lane.b32.xlu0 %v5410, 64
      %v5627 = vpop.permute.xlu0 %5626
      %5628 = vrot.lane.b32.xlu0 %v5411, 64
      %v5629 = vpop.permute.xlu0 %5628
      %5630 = vrot.lane.b32.xlu0 %v5412, 64
      %v5631 = vpop.permute.xlu0 %5630
      %5632 = vrot.lane.b32.xlu0 %v5413, 64
      %v5633 = vpop.permute.xlu0 %5632
      %5634 = vrot.lane.b32.xlu0 %v5414, 64
      %v5635 = vpop.permute.xlu0 %5634
      %5636 = vrot.lane.b32.xlu0 %v5415, 64
      %v5637 = vpop.permute.xlu0 %5636
      %5638 = vrot.lane.b32.xlu0 %v5416, 64
      %v5639 = vpop.permute.xlu0 %5638
      %5640 = vrot.lane.b32.xlu0 %v5417, 64
      %v5641 = vpop.permute.xlu0 %5640
      %v5674 = vsel %vm1447, %v5290, %v5451
      %v5675 = vsel %vm1447, %v5291, %v5453
      %v5676 = vsel %vm1447, %v5292, %v5455
      %v5677 = vsel %vm1447, %v5293, %v5457
      %v5678 = vsel %vm1447, %v5294, %v5459
      %v5679 = vsel %vm1447, %v5295, %v5461
      %v5680 = vsel %vm1447, %v5296, %v5463
      %v5681 = vsel %vm1447, %v5297, %v5465
      %v5682 = vsel %vm1447, %v5298, %v5467
      %v5683 = vsel %vm1447, %v5299, %v5469
      %v5684 = vsel %vm1447, %v5300, %v5471
      %v5685 = vsel %vm1447, %v5301, %v5473
      %v5686 = vsel %vm1447, %v5302, %v5475
      %v5687 = vsel %vm1447, %v5303, %v5477
      %v5688 = vsel %vm1447, %v5304, %v5479
      %v5689 = vsel %vm1447, %v5305, %v5481
      %v5690 = vsel %vm1447, %v5306, %v5483
      %v5691 = vsel %vm1447, %v5307, %v5485
      %v5692 = vsel %vm1447, %v5308, %v5487
      %v5693 = vsel %vm1447, %v5309, %v5489
      %v5694 = vsel %vm1447, %v5310, %v5491
      %v5695 = vsel %vm1447, %v5311, %v5493
      %v5696 = vsel %vm1447, %v5312, %v5495
      %v5697 = vsel %vm1447, %v5313, %v5497
      %v5698 = vsel %vm1447, %v5314, %v5499
      %v5699 = vsel %vm1447, %v5315, %v5501
      %v5700 = vsel %vm1447, %v5316, %v5503
      %v5701 = vsel %vm1447, %v5317, %v5505
      %v5702 = vsel %vm1447, %v5318, %v5507
      %v5703 = vsel %vm1447, %v5319, %v5509
      %v5704 = vsel %vm1447, %v5320, %v5511
      %v5705 = vsel %vm1447, %v5321, %v5513
      %v5706 = vsel %vm1512, %v5674, %v5579
      %v5707 = vsel %vm1512, %v5675, %v5581
      %v5708 = vsel %vm1512, %v5676, %v5583
      %v5709 = vsel %vm1512, %v5677, %v5585
      %v5710 = vsel %vm1512, %v5678, %v5587
      %v5711 = vsel %vm1512, %v5679, %v5589
      %v5712 = vsel %vm1512, %v5680, %v5591
      %v5713 = vsel %vm1512, %v5681, %v5593
      %v5714 = vsel %vm1512, %v5682, %v5595
      %v5715 = vsel %vm1512, %v5683, %v5597
      %v5716 = vsel %vm1512, %v5684, %v5599
      %v5717 = vsel %vm1512, %v5685, %v5601
      %v5718 = vsel %vm1512, %v5686, %v5603
      %v5719 = vsel %vm1512, %v5687, %v5605
      %v5720 = vsel %vm1512, %v5688, %v5607
      %v5721 = vsel %vm1512, %v5689, %v5609
      %v5722 = vsel %vm1512, %v5690, %v5611
      %v5723 = vsel %vm1512, %v5691, %v5613
      %v5724 = vsel %vm1512, %v5692, %v5615
      %v5725 = vsel %vm1512, %v5693, %v5617
      %v5726 = vsel %vm1512, %v5694, %v5619
      %v5727 = vsel %vm1512, %v5695, %v5621
      %v5728 = vsel %vm1512, %v5696, %v5623
      %v5729 = vsel %vm1512, %v5697, %v5625
      %v5730 = vsel %vm1512, %v5698, %v5627
      %v5731 = vsel %vm1512, %v5699, %v5629
      %v5732 = vsel %vm1512, %v5700, %v5631
      %v5733 = vsel %vm1512, %v5701, %v5633
      %v5734 = vsel %vm1512, %v5702, %v5635
      %v5735 = vsel %vm1512, %v5703, %v5637
      %v5736 = vsel %vm1512, %v5704, %v5639
      %v5737 = vsel %vm1512, %v5705, %v5641
      %v5738 = vpack.c.bf16 %v5707, %v5706
      %v5739 = vpack.c.bf16 %v5709, %v5708
      %v5740 = vpack.c.bf16 %v5711, %v5710
      %v5741 = vpack.c.bf16 %v5713, %v5712
      %v5742 = vpack.c.bf16 %v5715, %v5714
      %v5743 = vpack.c.bf16 %v5717, %v5716
      %v5744 = vpack.c.bf16 %v5719, %v5718
      %v5745 = vpack.c.bf16 %v5721, %v5720
      %v5746 = vpack.c.bf16 %v5723, %v5722
      %v5747 = vpack.c.bf16 %v5725, %v5724
      %v5748 = vpack.c.bf16 %v5727, %v5726
      %v5749 = vpack.c.bf16 %v5729, %v5728
      %v5750 = vpack.c.bf16 %v5731, %v5730
      %v5751 = vpack.c.bf16 %v5733, %v5732
      %v5752 = vpack.c.bf16 %v5735, %v5734
      %v5753 = vpack.c.bf16 %v5737, %v5736
      %s5754 = scalar_lea.vmem %s1, 144
      %v5755 = vld [vmem:[%s5754] sm:$0xf]
      %v5756 = vld [vmem:[%s5754 + $0x4] sm:$0xf]
      %v5757 = vld [vmem:[%s5754 + $0x8] sm:$0xf]
      %v5758 = vld [vmem:[%s5754 + $0xc] sm:$0xf]
      %v5759 = vld [vmem:[%s5754 + $0x10] sm:$0xf]
      %v5760 = vld [vmem:[%s5754 + $0x14] sm:$0xf]
      %v5761 = vld [vmem:[%s5754 + $0x18] sm:$0xf]
      %v5762 = vld [vmem:[%s5754 + $0x1c] sm:$0xf]
      %v5763 = vld [vmem:[%s5754 + $0x20] sm:$0xf]
      %v5764 = vld [vmem:[%s5754 + $0x24] sm:$0xf]
      %v5765 = vld [vmem:[%s5754 + $0x28] sm:$0xf]
      %v5766 = vld [vmem:[%s5754 + $0x2c] sm:$0xf]
      %v5767 = vlaneseq
      %v5768 = vshrl.u32 %v5767, 7
      %v5769 = vsub.s32 3, %v5768
      %v5770 = vrot.slane %v226, %v5769
      %v5783 = vunpack.c.l.b16 %v5755
      %v5784 = vunpack.c.l.b16 %v5756
      %v5785 = vunpack.c.l.b16 %v5757
      %v5786 = vunpack.c.l.b16 %v5758
      %v5787 = vunpack.c.l.b16 %v5759
      %v5788 = vunpack.c.l.b16 %v5760
      %v5789 = vunpack.c.l.b16 %v5761
      %v5790 = vunpack.c.l.b16 %v5762
      %v5791 = vunpack.c.l.b16 %v5763
      %v5792 = vunpack.c.l.b16 %v5764
      %v5793 = vunpack.c.l.b16 %v5765
      %v5794 = vunpack.c.l.b16 %v5766
      %v5795 = vpack.c.b16 %v5784, %v5783
      %v5796 = vpack.c.b16 %v5786, %v5785
      %v5797 = vpack.c.b16 %v5788, %v5787
      %v5798 = vpack.c.b16 %v5790, %v5789
      %v5799 = vpack.c.b16 %v5792, %v5791
      %v5800 = vpack.c.b16 %v5794, %v5793
      %v5808 = vsel %vm1661, %v5738, 0
      %v5811 = vsel %vm1661, %v5739, 0
      %v5814 = vsel %vm1661, %v5740, 0
      %v5817 = vsel %vm1661, %v5741, 0
      %v5820 = vsel %vm1661, %v5742, 0
      %v5823 = vsel %vm1661, %v5743, 0
      %v5826 = vsel %vm1661, %v5744, 0
      %v5829 = vsel %vm1661, %v5745, 0
      %v5832 = vsel %vm1661, %v5746, 0
      %v5835 = vsel %vm1661, %v5747, 0
      %v5838 = vsel %vm1661, %v5748, 0
      %v5841 = vsel %vm1661, %v5749, 0
      %v5844 = vsel %vm1661, %v5750, 0
      %v5847 = vsel %vm1661, %v5751, 0
      %v5850 = vsel %vm1661, %v5752, 0
      %v5853 = vsel %vm1661, %v5753, 0
      %5855 = vmatprep.subr.bf16.mxu0 0
      %5856 = vmatpush1.bf16.msra.mxu0 %v5795
      %5857 = vmatprep.subr.bf16.mxu0 0
      %5858 = vmatpush1.bf16.msra.mxu0 %v5796
      %5859 = vmatprep.subr.bf16.mxu0 0
      %5860 = vmatpush1.bf16.msra.mxu0 %v5797
      %5861 = vmatprep.subr.bf16.mxu0 0
      %5862 = vmatpush1.bf16.msra.mxu0 %v5798
      %5863 = vmatprep.subr.bf16.mxu0 0
      %5864 = vmatpush1.bf16.msra.mxu0 %v5799
      %5865 = vmatprep.subr.bf16.mxu0 0
      %5866 = vmatpush1.bf16.msra.mxu0 %v5800
      %5867 = vmatprep.subr.bf16.mxu0 0
      %5868 = vmatpush1.bf16.msra.mxu0 0
      %5869 = vmatprep.subr.bf16.mxu0 0
      %5870 = vmatpush1.bf16.msra.mxu0 0
      %5871 = vmatprep.subr.bf16.mxu0 0
      %5872 = vmatpush1.bf16.msra.mxu0 0
      %5873 = vmatprep.subr.bf16.mxu0 0
      %5874 = vmatpush1.bf16.msra.mxu0 0
      %5875 = vmatprep.subr.bf16.mxu0 0
      %5876 = vmatpush1.bf16.msra.mxu0 0
      %5877 = vmatprep.subr.bf16.mxu0 0
      %5878 = vmatpush1.bf16.msra.mxu0 0
      %5879 = vmatprep.subr.bf16.mxu0 0
      %5880 = vmatpush1.bf16.msra.mxu0 0
      %5881 = vmatprep.subr.bf16.mxu0 0
      %5882 = vmatpush1.bf16.msra.mxu0 0
      %5883 = vmatprep.subr.bf16.mxu0 0
      %5884 = vmatpush1.bf16.msra.mxu0 0
      %5885 = vmatprep.subr.bf16.mxu0 0
      %5886 = vmatpush1.bf16.msra.mxu0 0
      %5887 = vmatprep.mubr.bf16.mxu0 0
      %5888 = vmatmul.mubr.bf16.gmra.mrb[0].mxu0 %v5808
      %v5889 = vpop.f32.mrb[0].mxu0
      %v5890 = vadd.f32 %v5770, %v5889
      %v5891 = vpop.f32.mrb[0].mxu0
      %v5892 = vpop.f32.mrb[0].mxu0
      %v5893 = vadd.f32 %v5770, %v5892
      %v5894 = vpop.f32.mrb[0].mxu0
      %5895 = vmatprep.mubr.bf16.mxu0 0
      %5896 = vmatmul.mubr.bf16.gmra.mrb[0].mxu0 %v5811
      %v5897 = vpop.f32.mrb[0].mxu0
      %v5898 = vadd.f32 %v5770, %v5897
      %v5899 = vpop.f32.mrb[0].mxu0
      %v5900 = vpop.f32.mrb[0].mxu0
      %v5901 = vadd.f32 %v5770, %v5900
      %v5902 = vpop.f32.mrb[0].mxu0
      %5903 = vmatprep.mubr.bf16.mxu0 0
      %5904 = vmatmul.mubr.bf16.gmra.mrb[0].mxu0 %v5814
      %v5905 = vpop.f32.mrb[0].mxu0
      %v5906 = vadd.f32 %v5770, %v5905
      %v5907 = vpop.f32.mrb[0].mxu0
      %v5908 = vpop.f32.mrb[0].mxu0
      %v5909 = vadd.f32 %v5770, %v5908
      %v5910 = vpop.f32.mrb[0].mxu0
      %5911 = vmatprep.mubr.bf16.mxu0 0
      %5912 = vmatmul.mubr.bf16.gmra.mrb[0].mxu0 %v5817
      %v5913 = vpop.f32.mrb[0].mxu0
      %v5914 = vadd.f32 %v5770, %v5913
      %v5915 = vpop.f32.mrb[0].mxu0
      %v5916 = vpop.f32.mrb[0].mxu0
      %v5917 = vadd.f32 %v5770, %v5916
      %v5918 = vpop.f32.mrb[0].mxu0
      %5919 = vmatprep.mubr.bf16.mxu0 0
      %5920 = vmatmul.mubr.bf16.gmra.mrb[0].mxu0 %v5820
      %v5921 = vpop.f32.mrb[0].mxu0
      %v5922 = vadd.f32 %v5770, %v5921
      %v5923 = vpop.f32.mrb[0].mxu0
      %v5924 = vpop.f32.mrb[0].mxu0
      %v5925 = vadd.f32 %v5770, %v5924
      %v5926 = vpop.f32.mrb[0].mxu0
      %5927 = vmatprep.mubr.bf16.mxu0 0
      %5928 = vmatmul.mubr.bf16.gmra.mrb[0].mxu0 %v5823
      %v5929 = vpop.f32.mrb[0].mxu0
      %v5930 = vadd.f32 %v5770, %v5929
      %v5931 = vpop.f32.mrb[0].mxu0
      %v5932 = vpop.f32.mrb[0].mxu0
      %v5933 = vadd.f32 %v5770, %v5932
      %v5934 = vpop.f32.mrb[0].mxu0
      %5935 = vmatprep.mubr.bf16.mxu0 0
      %5936 = vmatmul.mubr.bf16.gmra.mrb[0].mxu0 %v5826
      %v5937 = vpop.f32.mrb[0].mxu0
      %v5938 = vadd.f32 %v5770, %v5937
      %v5939 = vpop.f32.mrb[0].mxu0
      %v5940 = vpop.f32.mrb[0].mxu0
      %v5941 = vadd.f32 %v5770, %v5940
      %v5942 = vpop.f32.mrb[0].mxu0
      %5943 = vmatprep.mubr.bf16.mxu0 0
      %5944 = vmatmul.mubr.bf16.gmra.mrb[0].mxu0 %v5829
      %v5945 = vpop.f32.mrb[0].mxu0
      %v5946 = vadd.f32 %v5770, %v5945
      %v5947 = vpop.f32.mrb[0].mxu0
      %v5948 = vpop.f32.mrb[0].mxu0
      %v5949 = vadd.f32 %v5770, %v5948
      %v5950 = vpop.f32.mrb[0].mxu0
      %5951 = vmatprep.mubr.bf16.mxu0 0
      %5952 = vmatmul.mubr.bf16.gmra.mrb[0].mxu0 %v5832
      %v5953 = vpop.f32.mrb[0].mxu0
      %v5954 = vadd.f32 %v5770, %v5953
      %v5955 = vpop.f32.mrb[0].mxu0
      %v5956 = vpop.f32.mrb[0].mxu0
      %v5957 = vadd.f32 %v5770, %v5956
      %v5958 = vpop.f32.mrb[0].mxu0
      %5959 = vmatprep.mubr.bf16.mxu0 0
      %5960 = vmatmul.mubr.bf16.gmra.mrb[0].mxu0 %v5835
      %v5961 = vpop.f32.mrb[0].mxu0
      %v5962 = vadd.f32 %v5770, %v5961
      %v5963 = vpop.f32.mrb[0].mxu0
      %v5964 = vpop.f32.mrb[0].mxu0
      %v5965 = vadd.f32 %v5770, %v5964
      %v5966 = vpop.f32.mrb[0].mxu0
      %5967 = vmatprep.mubr.bf16.mxu0 0
      %5968 = vmatmul.mubr.bf16.gmra.mrb[0].mxu0 %v5838
      %v5969 = vpop.f32.mrb[0].mxu0
      %v5970 = vadd.f32 %v5770, %v5969
      %v5971 = vpop.f32.mrb[0].mxu0
      %v5972 = vpop.f32.mrb[0].mxu0
      %v5973 = vadd.f32 %v5770, %v5972
      %v5974 = vpop.f32.mrb[0].mxu0
      %5975 = vmatprep.mubr.bf16.mxu0 0
      %5976 = vmatmul.mubr.bf16.gmra.mrb[0].mxu0 %v5841
      %v5977 = vpop.f32.mrb[0].mxu0
      %v5978 = vadd.f32 %v5770, %v5977
      %v5979 = vpop.f32.mrb[0].mxu0
      %v5980 = vpop.f32.mrb[0].mxu0
      %v5981 = vadd.f32 %v5770, %v5980
      %v5982 = vpop.f32.mrb[0].mxu0
      %5983 = vmatprep.mubr.bf16.mxu0 0
      %5984 = vmatmul.mubr.bf16.gmra.mrb[0].mxu0 %v5844
      %v5985 = vpop.f32.mrb[0].mxu0
      %v5986 = vadd.f32 %v5770, %v5985
      %v5987 = vpop.f32.mrb[0].mxu0
      %v5988 = vpop.f32.mrb[0].mxu0
      %v5989 = vadd.f32 %v5770, %v5988
      %v5990 = vpop.f32.mrb[0].mxu0
      %5991 = vmatprep.mubr.bf16.mxu0 0
      %5992 = vmatmul.mubr.bf16.gmra.mrb[0].mxu0 %v5847
      %v5993 = vpop.f32.mrb[0].mxu0
      %v5994 = vadd.f32 %v5770, %v5993
      %v5995 = vpop.f32.mrb[0].mxu0
      %v5996 = vpop.f32.mrb[0].mxu0
      %v5997 = vadd.f32 %v5770, %v5996
      %v5998 = vpop.f32.mrb[0].mxu0
      %5999 = vmatprep.mubr.bf16.mxu0 0
      %6000 = vmatmul.mubr.bf16.gmra.mrb[0].mxu0 %v5850
      %v6001 = vpop.f32.mrb[0].mxu0
      %v6002 = vadd.f32 %v5770, %v6001
      %v6003 = vpop.f32.mrb[0].mxu0
      %v6004 = vpop.f32.mrb[0].mxu0
      %v6005 = vadd.f32 %v5770, %v6004
      %v6006 = vpop.f32.mrb[0].mxu0
      %6007 = vmatprep.mubr.bf16.mxu0 0
      %6008 = vmatmul.mubr.bf16.gmra.mrb[0].mxu0 %v5853
      %v6009 = vpop.f32.mrb[0].mxu0
      %v6010 = vadd.f32 %v5770, %v6009
      %v6011 = vpop.f32.mrb[0].mxu0
      %v6012 = vpop.f32.mrb[0].mxu0
      %v6013 = vadd.f32 %v5770, %v6012
      %v6014 = vpop.f32.mrb[0].mxu0
      %6015 = vdwg.mxu0
      %v6016 = vmax.f32 %v5890, 0.0
      %v6017 = vmax.f32 %v5893, 0.0
      %v6018 = vmax.f32 %v5898, 0.0
      %v6019 = vmax.f32 %v5901, 0.0
      %v6020 = vmax.f32 %v5906, 0.0
      %v6021 = vmax.f32 %v5909, 0.0
      %v6022 = vmax.f32 %v5914, 0.0
      %v6023 = vmax.f32 %v5917, 0.0
      %v6024 = vmax.f32 %v5922, 0.0
      %v6025 = vmax.f32 %v5925, 0.0
      %v6026 = vmax.f32 %v5930, 0.0
      %v6027 = vmax.f32 %v5933, 0.0
      %v6028 = vmax.f32 %v5938, 0.0
      %v6029 = vmax.f32 %v5941, 0.0
      %v6030 = vmax.f32 %v5946, 0.0
      %v6031 = vmax.f32 %v5949, 0.0
      %v6032 = vmax.f32 %v5954, 0.0
      %v6033 = vmax.f32 %v5957, 0.0
      %v6034 = vmax.f32 %v5962, 0.0
      %v6035 = vmax.f32 %v5965, 0.0
      %v6036 = vmax.f32 %v5970, 0.0
      %v6037 = vmax.f32 %v5973, 0.0
      %v6038 = vmax.f32 %v5978, 0.0
      %v6039 = vmax.f32 %v5981, 0.0
      %v6040 = vmax.f32 %v5986, 0.0
      %v6041 = vmax.f32 %v5989, 0.0
      %v6042 = vmax.f32 %v5994, 0.0
      %v6043 = vmax.f32 %v5997, 0.0
      %v6044 = vmax.f32 %v6002, 0.0
      %v6045 = vmax.f32 %v6005, 0.0
      %v6046 = vmax.f32 %v6010, 0.0
      %v6047 = vmax.f32 %v6013, 0.0
      %v6048 = vadd.f32 %v6016, %v4245
      %v6049 = vadd.f32 %v6017, %v4247
      %v6050 = vadd.f32 %v6018, %v4249
      %v6051 = vadd.f32 %v6019, %v4251
      %v6052 = vadd.f32 %v6020, %v4253
      %v6053 = vadd.f32 %v6021, %v4255
      %v6054 = vadd.f32 %v6022, %v4257
      %v6055 = vadd.f32 %v6023, %v4259
      %v6056 = vadd.f32 %v6024, %v4261
      %v6057 = vadd.f32 %v6025, %v4263
      %v6058 = vadd.f32 %v6026, %v4265
      %v6059 = vadd.f32 %v6027, %v4267
      %v6060 = vadd.f32 %v6028, %v4269
      %v6061 = vadd.f32 %v6029, %v4271
      %v6062 = vadd.f32 %v6030, %v4273
      %v6063 = vadd.f32 %v6031, %v4275
      %v6064 = vadd.f32 %v6032, %v4277
      %v6065 = vadd.f32 %v6033, %v4279
      %v6066 = vadd.f32 %v6034, %v4281
      %v6067 = vadd.f32 %v6035, %v4283
      %v6068 = vadd.f32 %v6036, %v4285
      %v6069 = vadd.f32 %v6037, %v4287
      %v6070 = vadd.f32 %v6038, %v4289
      %v6071 = vadd.f32 %v6039, %v4291
      %v6072 = vadd.f32 %v6040, %v4293
      %v6073 = vadd.f32 %v6041, %v4295
      %v6074 = vadd.f32 %v6042, %v4297
      %v6075 = vadd.f32 %v6043, %v4299
      %v6076 = vadd.f32 %v6044, %v4301
      %v6077 = vadd.f32 %v6045, %v4303
      %v6078 = vadd.f32 %v6046, %v4305
      %v6079 = vadd.f32 %v6047, %v4307
      %v6080 = vrot.slane %v6048, 7
      %v6081 = vrot.slane %v6049, 7
      %v6082 = vrot.slane %v6050, 7
      %v6083 = vrot.slane %v6051, 7
      %v6084 = vrot.slane %v6052, 7
      %v6085 = vrot.slane %v6053, 7
      %v6086 = vrot.slane %v6054, 7
      %v6087 = vrot.slane %v6055, 7
      %v6088 = vrot.slane %v6056, 7
      %v6089 = vrot.slane %v6057, 7
      %v6090 = vrot.slane %v6058, 7
      %v6091 = vrot.slane %v6059, 7
      %v6092 = vrot.slane %v6060, 7
      %v6093 = vrot.slane %v6061, 7
      %v6094 = vrot.slane %v6062, 7
      %v6095 = vrot.slane %v6063, 7
      %v6096 = vrot.slane %v6064, 7
      %v6097 = vrot.slane %v6065, 7
      %v6098 = vrot.slane %v6066, 7
      %v6099 = vrot.slane %v6067, 7
      %v6100 = vrot.slane %v6068, 7
      %v6101 = vrot.slane %v6069, 7
      %v6102 = vrot.slane %v6070, 7
      %v6103 = vrot.slane %v6071, 7
      %v6104 = vrot.slane %v6072, 7
      %v6105 = vrot.slane %v6073, 7
      %v6106 = vrot.slane %v6074, 7
      %v6107 = vrot.slane %v6075, 7
      %v6108 = vrot.slane %v6076, 7
      %v6109 = vrot.slane %v6077, 7
      %v6110 = vrot.slane %v6078, 7
      %v6111 = vrot.slane %v6079, 7
      %v6112 = vsel %vm613, %v6110, %v6111
      %v6113 = vsel %vm613, %v6109, %v6110
      %v6114 = vsel %vm613, %v6108, %v6109
      %v6115 = vsel %vm613, %v6107, %v6108
      %v6116 = vsel %vm613, %v6106, %v6107
      %v6117 = vsel %vm613, %v6105, %v6106
      %v6118 = vsel %vm613, %v6104, %v6105
      %v6119 = vsel %vm613, %v6103, %v6104
      %v6120 = vsel %vm613, %v6102, %v6103
      %v6121 = vsel %vm613, %v6101, %v6102
      %v6122 = vsel %vm613, %v6100, %v6101
      %v6123 = vsel %vm613, %v6099, %v6100
      %v6124 = vsel %vm613, %v6098, %v6099
      %v6125 = vsel %vm613, %v6097, %v6098
      %v6126 = vsel %vm613, %v6096, %v6097
      %v6127 = vsel %vm613, %v6095, %v6096
      %v6128 = vsel %vm613, %v6094, %v6095
      %v6129 = vsel %vm613, %v6093, %v6094
      %v6130 = vsel %vm613, %v6092, %v6093
      %v6131 = vsel %vm613, %v6091, %v6092
      %v6132 = vsel %vm613, %v6090, %v6091
      %v6133 = vsel %vm613, %v6089, %v6090
      %v6134 = vsel %vm613, %v6088, %v6089
      %v6135 = vsel %vm613, %v6087, %v6088
      %v6136 = vsel %vm613, %v6086, %v6087
      %v6137 = vsel %vm613, %v6085, %v6086
      %v6138 = vsel %vm613, %v6084, %v6085
      %v6139 = vsel %vm613, %v6083, %v6084
      %v6140 = vsel %vm613, %v6082, %v6083
      %v6141 = vsel %vm613, %v6081, %v6082
      %v6142 = vsel %vm613, %v6080, %v6081
      %v6143 = vsel %vm613, %v6111, %v6080
      %v6144 = vsel %vm4340, -inf, %v6143
      %v6145 = vsel %vm4341, -inf, %v6142
      %v6146 = vsel %vm4342, -inf, %v6141
      %v6147 = vsel %vm4343, -inf, %v6140
      %v6148 = vsel %vm4344, -inf, %v6139
      %v6149 = vsel %vm4345, -inf, %v6138
      %v6150 = vsel %vm4346, -inf, %v6137
      %v6151 = vsel %vm4347, -inf, %v6136
      %v6152 = vsel %vm4348, -inf, %v6135
      %v6153 = vsel %vm4349, -inf, %v6134
      %v6154 = vsel %vm4350, -inf, %v6133
      %v6155 = vsel %vm4351, -inf, %v6132
      %v6156 = vsel %vm4352, -inf, %v6131
      %v6157 = vsel %vm4353, -inf, %v6130
      %v6158 = vsel %vm4354, -inf, %v6129
      %v6159 = vsel %vm4355, -inf, %v6128
      %v6160 = vsel %vm4356, -inf, %v6127
      %v6161 = vsel %vm4357, -inf, %v6126
      %v6162 = vsel %vm4358, -inf, %v6125
      %v6163 = vsel %vm4359, -inf, %v6124
      %v6164 = vsel %vm4360, -inf, %v6123
      %v6165 = vsel %vm4361, -inf, %v6122
      %v6166 = vsel %vm4362, -inf, %v6121
      %v6167 = vsel %vm4363, -inf, %v6120
      %v6168 = vsel %vm4364, -inf, %v6119
      %v6169 = vsel %vm4365, -inf, %v6118
      %v6170 = vsel %vm4366, -inf, %v6117
      %v6171 = vsel %vm4367, -inf, %v6116
      %v6172 = vsel %vm4368, -inf, %v6115
      %v6173 = vsel %vm4369, -inf, %v6114
      %v6174 = vsel %vm4370, -inf, %v6113
      %v6175 = vsel %vm4371, -inf, %v6112
      %v6176 = vrot.slane %v6048, 1
      %v6177 = vrot.slane %v6049, 1
      %v6178 = vrot.slane %v6050, 1
      %v6179 = vrot.slane %v6051, 1
      %v6180 = vrot.slane %v6052, 1
      %v6181 = vrot.slane %v6053, 1
      %v6182 = vrot.slane %v6054, 1
      %v6183 = vrot.slane %v6055, 1
      %v6184 = vrot.slane %v6056, 1
      %v6185 = vrot.slane %v6057, 1
      %v6186 = vrot.slane %v6058, 1
      %v6187 = vrot.slane %v6059, 1
      %v6188 = vrot.slane %v6060, 1
      %v6189 = vrot.slane %v6061, 1
      %v6190 = vrot.slane %v6062, 1
      %v6191 = vrot.slane %v6063, 1
      %v6192 = vrot.slane %v6064, 1
      %v6193 = vrot.slane %v6065, 1
      %v6194 = vrot.slane %v6066, 1
      %v6195 = vrot.slane %v6067, 1
      %v6196 = vrot.slane %v6068, 1
      %v6197 = vrot.slane %v6069, 1
      %v6198 = vrot.slane %v6070, 1
      %v6199 = vrot.slane %v6071, 1
      %v6200 = vrot.slane %v6072, 1
      %v6201 = vrot.slane %v6073, 1
      %v6202 = vrot.slane %v6074, 1
      %v6203 = vrot.slane %v6075, 1
      %v6204 = vrot.slane %v6076, 1
      %v6205 = vrot.slane %v6077, 1
      %v6206 = vrot.slane %v6078, 1
      %v6207 = vrot.slane %v6079, 1
      %v6208 = vsel %vm806, %v6206, %v6207
      %v6209 = vsel %vm806, %v6205, %v6206
      %v6210 = vsel %vm806, %v6204, %v6205
      %v6211 = vsel %vm806, %v6203, %v6204
      %v6212 = vsel %vm806, %v6202, %v6203
      %v6213 = vsel %vm806, %v6201, %v6202
      %v6214 = vsel %vm806, %v6200, %v6201
      %v6215 = vsel %vm806, %v6199, %v6200
      %v6216 = vsel %vm806, %v6198, %v6199
      %v6217 = vsel %vm806, %v6197, %v6198
      %v6218 = vsel %vm806, %v6196, %v6197
      %v6219 = vsel %vm806, %v6195, %v6196
      %v6220 = vsel %vm806, %v6194, %v6195
      %v6221 = vsel %vm806, %v6193, %v6194
      %v6222 = vsel %vm806, %v6192, %v6193
      %v6223 = vsel %vm806, %v6191, %v6192
      %v6224 = vsel %vm806, %v6190, %v6191
      %v6225 = vsel %vm806, %v6189, %v6190
      %v6226 = vsel %vm806, %v6188, %v6189
      %v6227 = vsel %vm806, %v6187, %v6188
      %v6228 = vsel %vm806, %v6186, %v6187
      %v6229 = vsel %vm806, %v6185, %v6186
      %v6230 = vsel %vm806, %v6184, %v6185
      %v6231 = vsel %vm806, %v6183, %v6184
      %v6232 = vsel %vm806, %v6182, %v6183
      %v6233 = vsel %vm806, %v6181, %v6182
      %v6234 = vsel %vm806, %v6180, %v6181
      %v6235 = vsel %vm806, %v6179, %v6180
      %v6236 = vsel %vm806, %v6178, %v6179
      %v6237 = vsel %vm806, %v6177, %v6178
      %v6238 = vsel %vm806, %v6176, %v6177
      %v6239 = vsel %vm806, %v6207, %v6176
      %v6240 = vmax.f32 %v6144, %v6048
      %v6241 = vmax.f32 %v6145, %v6049
      %v6242 = vmax.f32 %v6146, %v6050
      %v6243 = vmax.f32 %v6147, %v6051
      %v6244 = vmax.f32 %v6148, %v6052
      %v6245 = vmax.f32 %v6149, %v6053
      %v6246 = vmax.f32 %v6150, %v6054
      %v6247 = vmax.f32 %v6151, %v6055
      %v6248 = vmax.f32 %v6152, %v6056
      %v6249 = vmax.f32 %v6153, %v6057
      %v6250 = vmax.f32 %v6154, %v6058
      %v6251 = vmax.f32 %v6155, %v6059
      %v6252 = vmax.f32 %v6156, %v6060
      %v6253 = vmax.f32 %v6157, %v6061
      %v6254 = vmax.f32 %v6158, %v6062
      %v6255 = vmax.f32 %v6159, %v6063
      %v6256 = vmax.f32 %v6160, %v6064
      %v6257 = vmax.f32 %v6161, %v6065
      %v6258 = vmax.f32 %v6162, %v6066
      %v6259 = vmax.f32 %v6163, %v6067
      %v6260 = vmax.f32 %v6164, %v6068
      %v6261 = vmax.f32 %v6165, %v6069
      %v6262 = vmax.f32 %v6166, %v6070
      %v6263 = vmax.f32 %v6167, %v6071
      %v6264 = vmax.f32 %v6168, %v6072
      %v6265 = vmax.f32 %v6169, %v6073
      %v6266 = vmax.f32 %v6170, %v6074
      %v6267 = vmax.f32 %v6171, %v6075
      %v6268 = vmax.f32 %v6172, %v6076
      %v6269 = vmax.f32 %v6173, %v6077
      %v6270 = vmax.f32 %v6174, %v6078
      %v6271 = vmax.f32 %v6175, %v6079
      %v6272 = vmax.f32 %v6240, %v6238
      %v6273 = vmax.f32 %v6241, %v6237
      %v6274 = vmax.f32 %v6242, %v6236
      %v6275 = vmax.f32 %v6243, %v6235
      %v6276 = vmax.f32 %v6244, %v6234
      %v6277 = vmax.f32 %v6245, %v6233
      %v6278 = vmax.f32 %v6246, %v6232
      %v6279 = vmax.f32 %v6247, %v6231
      %v6280 = vmax.f32 %v6248, %v6230
      %v6281 = vmax.f32 %v6249, %v6229
      %v6282 = vmax.f32 %v6250, %v6228
      %v6283 = vmax.f32 %v6251, %v6227
      %v6284 = vmax.f32 %v6252, %v6226
      %v6285 = vmax.f32 %v6253, %v6225
      %v6286 = vmax.f32 %v6254, %v6224
      %v6287 = vmax.f32 %v6255, %v6223
      %v6288 = vmax.f32 %v6256, %v6222
      %v6289 = vmax.f32 %v6257, %v6221
      %v6290 = vmax.f32 %v6258, %v6220
      %v6291 = vmax.f32 %v6259, %v6219
      %v6292 = vmax.f32 %v6260, %v6218
      %v6293 = vmax.f32 %v6261, %v6217
      %v6294 = vmax.f32 %v6262, %v6216
      %v6295 = vmax.f32 %v6263, %v6215
      %v6296 = vmax.f32 %v6264, %v6214
      %v6297 = vmax.f32 %v6265, %v6213
      %v6298 = vmax.f32 %v6266, %v6212
      %v6299 = vmax.f32 %v6267, %v6211
      %v6300 = vmax.f32 %v6268, %v6210
      %v6301 = vmax.f32 %v6269, %v6209
      %v6302 = vmax.f32 %v6270, %v6208
      %v6303 = vmax.f32 %v6271, %v6239
      %6304 = vst.msk [vmem:[#allocation2] sm:$0xff] %vm1447, %v6272
      %6305 = vst.msk [vmem:[#allocation2 + $0x8] sm:$0xff] %vm1447, %v6273
      %6306 = vst.msk [vmem:[#allocation2 + $0x10] sm:$0xff] %vm1447, %v6274
      %6307 = vst.msk [vmem:[#allocation2 + $0x18] sm:$0xff] %vm1447, %v6275
      %6308 = vst.msk [vmem:[#allocation2 + $0x20] sm:$0xff] %vm1447, %v6276
      %6309 = vst.msk [vmem:[#allocation2 + $0x28] sm:$0xff] %vm1447, %v6277
      %6310 = vst.msk [vmem:[#allocation2 + $0x30] sm:$0xff] %vm1447, %v6278
      %6311 = vst.msk [vmem:[#allocation2 + $0x38] sm:$0xff] %vm1447, %v6279
      %6312 = vst.msk [vmem:[#allocation2 + $0x40] sm:$0xff] %vm1447, %v6280
      %6313 = vst.msk [vmem:[#allocation2 + $0x48] sm:$0xff] %vm1447, %v6281
      %6314 = vst.msk [vmem:[#allocation2 + $0x50] sm:$0xff] %vm1447, %v6282
      %6315 = vst.msk [vmem:[#allocation2 + $0x58] sm:$0xff] %vm1447, %v6283
      %6316 = vst.msk [vmem:[#allocation2 + $0x60] sm:$0xff] %vm1447, %v6284
      %6317 = vst.msk [vmem:[#allocation2 + $0x68] sm:$0xff] %vm1447, %v6285
      %6318 = vst.msk [vmem:[#allocation2 + $0x70] sm:$0xff] %vm1447, %v6286
      %6319 = vst.msk [vmem:[#allocation2 + $0x78] sm:$0xff] %vm1447, %v6287
      %6320 = vst.msk [vmem:[#allocation2 + $0x80] sm:$0xff] %vm1447, %v6288
      %6321 = vst.msk [vmem:[#allocation2 + $0x88] sm:$0xff] %vm1447, %v6289
      %6322 = vst.msk [vmem:[#allocation2 + $0x90] sm:$0xff] %vm1447, %v6290
      %6323 = vst.msk [vmem:[#allocation2 + $0x98] sm:$0xff] %vm1447, %v6291
      %6324 = vst.msk [vmem:[#allocation2 + $0xa0] sm:$0xff] %vm1447, %v6292
      %6325 = vst.msk [vmem:[#allocation2 + $0xa8] sm:$0xff] %vm1447, %v6293
      %6326 = vst.msk [vmem:[#allocation2 + $0xb0] sm:$0xff] %vm1447, %v6294
      %6327 = vst.msk [vmem:[#allocation2 + $0xb8] sm:$0xff] %vm1447, %v6295
      %6328 = vst.msk [vmem:[#allocation2 + $0xc0] sm:$0xff] %vm1447, %v6296
      %6329 = vst.msk [vmem:[#allocation2 + $0xc8] sm:$0xff] %vm1447, %v6297
      %6330 = vst.msk [vmem:[#allocation2 + $0xd0] sm:$0xff] %vm1447, %v6298
      %6331 = vst.msk [vmem:[#allocation2 + $0xd8] sm:$0xff] %vm1447, %v6299
      %6332 = vst.msk [vmem:[#allocation2 + $0xe0] sm:$0xff] %vm1447, %v6300
      %6333 = vst.msk [vmem:[#allocation2 + $0xe8] sm:$0xff] %vm1447, %v6301
      %6334 = vst.msk [vmem:[#allocation2 + $0xf0] sm:$0xff] %vm1447, %v6302
      %6335 = vst.msk [vmem:[#allocation2 + $0xf8] sm:$0xff] %vm1447, %v6303
      %v6336 = vld [vmem:[#allocation2] ss:$2 sm:$0xff]
      %v6337 = vld [vmem:[%s4246] ss:$2 sm:$0xff]
      %v6338 = vld [vmem:[%s4248] ss:$2 sm:$0xff]
      %v6339 = vld [vmem:[%s4250] ss:$2 sm:$0xff]
      %v6340 = vld [vmem:[%s4252] ss:$2 sm:$0xff]
      %v6341 = vld [vmem:[%s4254] ss:$2 sm:$0xff]
      %v6342 = vld [vmem:[%s4256] ss:$2 sm:$0xff]
      %v6343 = vld [vmem:[%s4258] ss:$2 sm:$0xff]
      %v6344 = vld [vmem:[%s4260] ss:$2 sm:$0xff]
      %v6345 = vld [vmem:[%s4262] ss:$2 sm:$0xff]
      %v6346 = vld [vmem:[%s4264] ss:$2 sm:$0xff]
      %v6347 = vld [vmem:[%s4266] ss:$2 sm:$0xff]
      %v6348 = vld [vmem:[%s4268] ss:$2 sm:$0xff]
      %v6349 = vld [vmem:[%s4270] ss:$2 sm:$0xff]
      %v6350 = vld [vmem:[%s4272] ss:$2 sm:$0xff]
      %v6351 = vld [vmem:[%s4274] ss:$2 sm:$0xff]
      %v6352 = vand.u32 %v293, 31
      %v6353 = vand.u32 %v294, 31
      %v6354 = vand.u32 %v295, 31
      %v6355 = vand.u32 %v296, 31
      %v6356 = vand.u32 %v297, 31
      %v6357 = vand.u32 %v298, 31
      %v6358 = vand.u32 %v299, 31
      %v6359 = vand.u32 %v300, 31
      %v6360 = vand.u32 %v301, 31
      %v6361 = vand.u32 %v302, 31
      %v6362 = vand.u32 %v303, 31
      %v6363 = vand.u32 %v304, 31
      %v6364 = vand.u32 %v305, 31
      %v6365 = vand.u32 %v306, 31
      %v6366 = vand.u32 %v307, 31
      %v6367 = vand.u32 %v308, 31
      %vm6368 = vcmp.eq.s32.totalorder %v6352, 0
      %vm6369 = vcmp.eq.s32.totalorder %v6353, 0
      %vm6370 = vcmp.eq.s32.totalorder %v6354, 0
      %vm6371 = vcmp.eq.s32.totalorder %v6355, 0
      %vm6372 = vcmp.eq.s32.totalorder %v6356, 0
      %vm6373 = vcmp.eq.s32.totalorder %v6357, 0
      %vm6374 = vcmp.eq.s32.totalorder %v6358, 0
      %vm6375 = vcmp.eq.s32.totalorder %v6359, 0
      %vm6376 = vcmp.eq.s32.totalorder %v6360, 0
      %vm6377 = vcmp.eq.s32.totalorder %v6361, 0
      %vm6378 = vcmp.eq.s32.totalorder %v6362, 0
      %vm6379 = vcmp.eq.s32.totalorder %v6363, 0
      %vm6380 = vcmp.eq.s32.totalorder %v6364, 0
      %vm6381 = vcmp.eq.s32.totalorder %v6365, 0
      %vm6382 = vcmp.eq.s32.totalorder %v6366, 0
      %vm6383 = vcmp.eq.s32.totalorder %v6367, 0
      %vm6384 = vcmp.eq.s32.totalorder %v6352, 31
      %vm6385 = vcmp.eq.s32.totalorder %v6353, 31
      %vm6386 = vcmp.eq.s32.totalorder %v6354, 31
      %vm6387 = vcmp.eq.s32.totalorder %v6355, 31
      %vm6388 = vcmp.eq.s32.totalorder %v6356, 31
      %vm6389 = vcmp.eq.s32.totalorder %v6357, 31
      %vm6390 = vcmp.eq.s32.totalorder %v6358, 31
      %vm6391 = vcmp.eq.s32.totalorder %v6359, 31
      %vm6392 = vcmp.eq.s32.totalorder %v6360, 31
      %vm6393 = vcmp.eq.s32.totalorder %v6361, 31
      %vm6394 = vcmp.eq.s32.totalorder %v6362, 31
      %vm6395 = vcmp.eq.s32.totalorder %v6363, 31
      %vm6396 = vcmp.eq.s32.totalorder %v6364, 31
      %vm6397 = vcmp.eq.s32.totalorder %v6365, 31
      %vm6398 = vcmp.eq.s32.totalorder %v6366, 31
      %vm6399 = vcmp.eq.s32.totalorder %v6367, 31
      %v6400 = vrot.slane %v6336, 7
      %v6401 = vrot.slane %v6337, 7
      %v6402 = vrot.slane %v6338, 7
      %v6403 = vrot.slane %v6339, 7
      %v6404 = vrot.slane %v6340, 7
      %v6405 = vrot.slane %v6341, 7
      %v6406 = vrot.slane %v6342, 7
      %v6407 = vrot.slane %v6343, 7
      %v6408 = vrot.slane %v6344, 7
      %v6409 = vrot.slane %v6345, 7
      %v6410 = vrot.slane %v6346, 7
      %v6411 = vrot.slane %v6347, 7
      %v6412 = vrot.slane %v6348, 7
      %v6413 = vrot.slane %v6349, 7
      %v6414 = vrot.slane %v6350, 7
      %v6415 = vrot.slane %v6351, 7
      %v6416 = vsel %vm613, %v6414, %v6415
      %v6417 = vsel %vm613, %v6413, %v6414
      %v6418 = vsel %vm613, %v6412, %v6413
      %v6419 = vsel %vm613, %v6411, %v6412
      %v6420 = vsel %vm613, %v6410, %v6411
      %v6421 = vsel %vm613, %v6409, %v6410
      %v6422 = vsel %vm613, %v6408, %v6409
      %v6423 = vsel %vm613, %v6407, %v6408
      %v6424 = vsel %vm613, %v6406, %v6407
      %v6425 = vsel %vm613, %v6405, %v6406
      %v6426 = vsel %vm613, %v6404, %v6405
      %v6427 = vsel %vm613, %v6403, %v6404
      %v6428 = vsel %vm613, %v6402, %v6403
      %v6429 = vsel %vm613, %v6401, %v6402
      %v6430 = vsel %vm613, %v6400, %v6401
      %v6431 = vsel %vm613, %v6415, %v6400
      %v6432 = vsel %vm6368, 0.0, %v6431
      %v6433 = vsel %vm6369, 0.0, %v6430
      %v6434 = vsel %vm6370, 0.0, %v6429
      %v6435 = vsel %vm6371, 0.0, %v6428
      %v6436 = vsel %vm6372, 0.0, %v6427
      %v6437 = vsel %vm6373, 0.0, %v6426
      %v6438 = vsel %vm6374, 0.0, %v6425
      %v6439 = vsel %vm6375, 0.0, %v6424
      %v6440 = vsel %vm6376, 0.0, %v6423
      %v6441 = vsel %vm6377, 0.0, %v6422
      %v6442 = vsel %vm6378, 0.0, %v6421
      %v6443 = vsel %vm6379, 0.0, %v6420
      %v6444 = vsel %vm6380, 0.0, %v6419
      %v6445 = vsel %vm6381, 0.0, %v6418
      %v6446 = vsel %vm6382, 0.0, %v6417
      %v6447 = vsel %vm6383, 0.0, %v6416
      %v6448 = vrot.slane %v6336, 1
      %v6449 = vrot.slane %v6337, 1
      %v6450 = vrot.slane %v6338, 1
      %v6451 = vrot.slane %v6339, 1
      %v6452 = vrot.slane %v6340, 1
      %v6453 = vrot.slane %v6341, 1
      %v6454 = vrot.slane %v6342, 1
      %v6455 = vrot.slane %v6343, 1
      %v6456 = vrot.slane %v6344, 1
      %v6457 = vrot.slane %v6345, 1
      %v6458 = vrot.slane %v6346, 1
      %v6459 = vrot.slane %v6347, 1
      %v6460 = vrot.slane %v6348, 1
      %v6461 = vrot.slane %v6349, 1
      %v6462 = vrot.slane %v6350, 1
      %v6463 = vrot.slane %v6351, 1
      %v6464 = vsel %vm806, %v6462, %v6463
      %v6465 = vsel %vm806, %v6461, %v6462
      %v6466 = vsel %vm806, %v6460, %v6461
      %v6467 = vsel %vm806, %v6459, %v6460
      %v6468 = vsel %vm806, %v6458, %v6459
      %v6469 = vsel %vm806, %v6457, %v6458
      %v6470 = vsel %vm806, %v6456, %v6457
      %v6471 = vsel %vm806, %v6455, %v6456
      %v6472 = vsel %vm806, %v6454, %v6455
      %v6473 = vsel %vm806, %v6453, %v6454
      %v6474 = vsel %vm806, %v6452, %v6453
      %v6475 = vsel %vm806, %v6451, %v6452
      %v6476 = vsel %vm806, %v6450, %v6451
      %v6477 = vsel %vm806, %v6449, %v6450
      %v6478 = vsel %vm806, %v6448, %v6449
      %v6479 = vsel %vm806, %v6463, %v6448
      %v6480 = vsel %vm6384, 0.0, %v6478
      %v6481 = vsel %vm6385, 0.0, %v6477
      %v6482 = vsel %vm6386, 0.0, %v6476
      %v6483 = vsel %vm6387, 0.0, %v6475
      %v6484 = vsel %vm6388, 0.0, %v6474
      %v6485 = vsel %vm6389, 0.0, %v6473
      %v6486 = vsel %vm6390, 0.0, %v6472
      %v6487 = vsel %vm6391, 0.0, %v6471
      %v6488 = vsel %vm6392, 0.0, %v6470
      %v6489 = vsel %vm6393, 0.0, %v6469
      %v6490 = vsel %vm6394, 0.0, %v6468
      %v6491 = vsel %vm6395, 0.0, %v6467
      %v6492 = vsel %vm6396, 0.0, %v6466
      %v6493 = vsel %vm6397, 0.0, %v6465
      %v6494 = vsel %vm6398, 0.0, %v6464
      %v6495 = vsel %vm6399, 0.0, %v6479
      %6512 = vrot.lane.b32.xlu0 %v6336, 32
      %v6513 = vpop.permute.xlu0 %6512
      %6514 = vrot.lane.b32.xlu0 %v6337, 32
      %v6515 = vpop.permute.xlu0 %6514
      %6516 = vrot.lane.b32.xlu0 %v6338, 32
      %v6517 = vpop.permute.xlu0 %6516
      %6518 = vrot.lane.b32.xlu0 %v6339, 32
      %v6519 = vpop.permute.xlu0 %6518
      %6520 = vrot.lane.b32.xlu0 %v6340, 32
      %v6521 = vpop.permute.xlu0 %6520
      %6522 = vrot.lane.b32.xlu0 %v6341, 32
      %v6523 = vpop.permute.xlu0 %6522
      %6524 = vrot.lane.b32.xlu0 %v6342, 32
      %v6525 = vpop.permute.xlu0 %6524
      %6526 = vrot.lane.b32.xlu0 %v6343, 32
      %v6527 = vpop.permute.xlu0 %6526
      %6528 = vrot.lane.b32.xlu0 %v6344, 32
      %v6529 = vpop.permute.xlu0 %6528
      %6530 = vrot.lane.b32.xlu0 %v6345, 32
      %v6531 = vpop.permute.xlu0 %6530
      %6532 = vrot.lane.b32.xlu0 %v6346, 32
      %v6533 = vpop.permute.xlu0 %6532
      %6534 = vrot.lane.b32.xlu0 %v6347, 32
      %v6535 = vpop.permute.xlu0 %6534
      %6536 = vrot.lane.b32.xlu0 %v6348, 32
      %v6537 = vpop.permute.xlu0 %6536
      %6538 = vrot.lane.b32.xlu0 %v6349, 32
      %v6539 = vpop.permute.xlu0 %6538
      %6540 = vrot.lane.b32.xlu0 %v6350, 32
      %v6541 = vpop.permute.xlu0 %6540
      %6542 = vrot.lane.b32.xlu0 %v6351, 32
      %v6543 = vpop.permute.xlu0 %6542
      %6576 = vrot.lane.b32.xlu0 %v6480, 64
      %v6577 = vpop.permute.xlu0 %6576
      %6578 = vrot.lane.b32.xlu0 %v6481, 64
      %v6579 = vpop.permute.xlu0 %6578
      %6580 = vrot.lane.b32.xlu0 %v6482, 64
      %v6581 = vpop.permute.xlu0 %6580
      %6582 = vrot.lane.b32.xlu0 %v6483, 64
      %v6583 = vpop.permute.xlu0 %6582
      %6584 = vrot.lane.b32.xlu0 %v6484, 64
      %v6585 = vpop.permute.xlu0 %6584
      %6586 = vrot.lane.b32.xlu0 %v6485, 64
      %v6587 = vpop.permute.xlu0 %6586
      %6588 = vrot.lane.b32.xlu0 %v6486, 64
      %v6589 = vpop.permute.xlu0 %6588
      %6590 = vrot.lane.b32.xlu0 %v6487, 64
      %v6591 = vpop.permute.xlu0 %6590
      %6592 = vrot.lane.b32.xlu0 %v6488, 64
      %v6593 = vpop.permute.xlu0 %6592
      %6594 = vrot.lane.b32.xlu0 %v6489, 64
      %v6595 = vpop.permute.xlu0 %6594
      %6596 = vrot.lane.b32.xlu0 %v6490, 64
      %v6597 = vpop.permute.xlu0 %6596
      %6598 = vrot.lane.b32.xlu0 %v6491, 64
      %v6599 = vpop.permute.xlu0 %6598
      %6600 = vrot.lane.b32.xlu0 %v6492, 64
      %v6601 = vpop.permute.xlu0 %6600
      %6602 = vrot.lane.b32.xlu0 %v6493, 64
      %v6603 = vpop.permute.xlu0 %6602
      %6604 = vrot.lane.b32.xlu0 %v6494, 64
      %v6605 = vpop.permute.xlu0 %6604
      %6606 = vrot.lane.b32.xlu0 %v6495, 64
      %v6607 = vpop.permute.xlu0 %6606
      %v6624 = vsel %vm1447, %v6432, %v6513
      %v6625 = vsel %vm1447, %v6433, %v6515
      %v6626 = vsel %vm1447, %v6434, %v6517
      %v6627 = vsel %vm1447, %v6435, %v6519
      %v6628 = vsel %vm1447, %v6436, %v6521
      %v6629 = vsel %vm1447, %v6437, %v6523
      %v6630 = vsel %vm1447, %v6438, %v6525
      %v6631 = vsel %vm1447, %v6439, %v6527
      %v6632 = vsel %vm1447, %v6440, %v6529
      %v6633 = vsel %vm1447, %v6441, %v6531
      %v6634 = vsel %vm1447, %v6442, %v6533
      %v6635 = vsel %vm1447, %v6443, %v6535
      %v6636 = vsel %vm1447, %v6444, %v6537
      %v6637 = vsel %vm1447, %v6445, %v6539
      %v6638 = vsel %vm1447, %v6446, %v6541
      %v6639 = vsel %vm1447, %v6447, %v6543
      %v6640 = vsel %vm1512, %v6624, %v6577
      %v6641 = vsel %vm1512, %v6625, %v6579
      %v6642 = vsel %vm1512, %v6626, %v6581
      %v6643 = vsel %vm1512, %v6627, %v6583
      %v6644 = vsel %vm1512, %v6628, %v6585
      %v6645 = vsel %vm1512, %v6629, %v6587
      %v6646 = vsel %vm1512, %v6630, %v6589
      %v6647 = vsel %vm1512, %v6631, %v6591
      %v6648 = vsel %vm1512, %v6632, %v6593
      %v6649 = vsel %vm1512, %v6633, %v6595
      %v6650 = vsel %vm1512, %v6634, %v6597
      %v6651 = vsel %vm1512, %v6635, %v6599
      %v6652 = vsel %vm1512, %v6636, %v6601
      %v6653 = vsel %vm1512, %v6637, %v6603
      %v6654 = vsel %vm1512, %v6638, %v6605
      %v6655 = vsel %vm1512, %v6639, %v6607
      %v6656 = vpack.c.bf16 %v6641, %v6640
      %v6657 = vpack.c.bf16 %v6643, %v6642
      %v6658 = vpack.c.bf16 %v6645, %v6644
      %v6659 = vpack.c.bf16 %v6647, %v6646
      %v6660 = vpack.c.bf16 %v6649, %v6648
      %v6661 = vpack.c.bf16 %v6651, %v6650
      %v6662 = vpack.c.bf16 %v6653, %v6652
      %v6663 = vpack.c.bf16 %v6655, %v6654
      %s6664 = scalar_lea.vmem %s1, 192
      %v6665 = vld [vmem:[%s6664] sm:$0xf]
      %v6666 = vld [vmem:[%s6664 + $0x4] sm:$0xf]
      %v6667 = vld [vmem:[%s6664 + $0x8] sm:$0xf]
      %v6668 = vld [vmem:[%s6664 + $0xc] sm:$0xf]
      %v6669 = vld [vmem:[%s6664 + $0x10] sm:$0xf]
      %v6670 = vld [vmem:[%s6664 + $0x14] sm:$0xf]
      %v6671 = vld [vmem:[%s6664 + $0x18] sm:$0xf]
      %v6672 = vld [vmem:[%s6664 + $0x1c] sm:$0xf]
      %v6673 = vld [vmem:[%s6664 + $0x20] sm:$0xf]
      %v6674 = vld [vmem:[%s6664 + $0x24] sm:$0xf]
      %v6675 = vld [vmem:[%s6664 + $0x28] sm:$0xf]
      %v6676 = vld [vmem:[%s6664 + $0x2c] sm:$0xf]
      %v6677 = vlaneseq
      %v6678 = vshrl.u32 %v6677, 7
      %v6679 = vsub.s32 4, %v6678
      %v6680 = vrot.slane %v226, %v6679
      %v6693 = vunpack.c.l.b16 %v6665
      %v6694 = vunpack.c.l.b16 %v6666
      %v6695 = vunpack.c.l.b16 %v6667
      %v6696 = vunpack.c.l.b16 %v6668
      %v6697 = vunpack.c.l.b16 %v6669
      %v6698 = vunpack.c.l.b16 %v6670
      %v6699 = vunpack.c.l.b16 %v6671
      %v6700 = vunpack.c.l.b16 %v6672
      %v6701 = vunpack.c.l.b16 %v6673
      %v6702 = vunpack.c.l.b16 %v6674
      %v6703 = vunpack.c.l.b16 %v6675
      %v6704 = vunpack.c.l.b16 %v6676
      %v6705 = vpack.c.b16 %v6694, %v6693
      %v6706 = vpack.c.b16 %v6696, %v6695
      %v6707 = vpack.c.b16 %v6698, %v6697
      %v6708 = vpack.c.b16 %v6700, %v6699
      %v6709 = vpack.c.b16 %v6702, %v6701
      %v6710 = vpack.c.b16 %v6704, %v6703
      %v6718 = vsel %vm1661, %v6656, 0
      %v6721 = vsel %vm1661, %v6657, 0
      %v6724 = vsel %vm1661, %v6658, 0
      %v6727 = vsel %vm1661, %v6659, 0
      %v6730 = vsel %vm1661, %v6660, 0
      %v6733 = vsel %vm1661, %v6661, 0
      %v6736 = vsel %vm1661, %v6662, 0
      %v6739 = vsel %vm1661, %v6663, 0
      %6741 = vmatprep.subr.bf16.mxu0 0
      %6742 = vmatpush1.bf16.msra.mxu0 %v6705
      %6743 = vmatprep.subr.bf16.mxu0 0
      %6744 = vmatpush1.bf16.msra.mxu0 %v6706
      %6745 = vmatprep.subr.bf16.mxu0 0
      %6746 = vmatpush1.bf16.msra.mxu0 %v6707
      %6747 = vmatprep.subr.bf16.mxu0 0
      %6748 = vmatpush1.bf16.msra.mxu0 %v6708
      %6749 = vmatprep.subr.bf16.mxu0 0
      %6750 = vmatpush1.bf16.msra.mxu0 %v6709
      %6751 = vmatprep.subr.bf16.mxu0 0
      %6752 = vmatpush1.bf16.msra.mxu0 %v6710
      %6753 = vmatprep.subr.bf16.mxu0 0
      %6754 = vmatpush1.bf16.msra.mxu0 0
      %6755 = vmatprep.subr.bf16.mxu0 0
      %6756 = vmatpush1.bf16.msra.mxu0 0
      %6757 = vmatprep.subr.bf16.mxu0 0
      %6758 = vmatpush1.bf16.msra.mxu0 0
      %6759 = vmatprep.subr.bf16.mxu0 0
      %6760 = vmatpush1.bf16.msra.mxu0 0
      %6761 = vmatprep.subr.bf16.mxu0 0
      %6762 = vmatpush1.bf16.msra.mxu0 0
      %6763 = vmatprep.subr.bf16.mxu0 0
      %6764 = vmatpush1.bf16.msra.mxu0 0
      %6765 = vmatprep.subr.bf16.mxu0 0
      %6766 = vmatpush1.bf16.msra.mxu0 0
      %6767 = vmatprep.subr.bf16.mxu0 0
      %6768 = vmatpush1.bf16.msra.mxu0 0
      %6769 = vmatprep.subr.bf16.mxu0 0
      %6770 = vmatpush1.bf16.msra.mxu0 0
      %6771 = vmatprep.subr.bf16.mxu0 0
      %6772 = vmatpush1.bf16.msra.mxu0 0
      %6773 = vmatprep.mubr.bf16.mxu0 0
      %6774 = vmatmul.mubr.bf16.gmra.mrb[0].mxu0 %v6718
      %v6775 = vpop.f32.mrb[0].mxu0
      %v6776 = vadd.f32 %v6680, %v6775
      %v6777 = vpop.f32.mrb[0].mxu0
      %v6778 = vpop.f32.mrb[0].mxu0
      %v6779 = vadd.f32 %v6680, %v6778
      %v6780 = vpop.f32.mrb[0].mxu0
      %6781 = vmatprep.mubr.bf16.mxu0 0
      %6782 = vmatmul.mubr.bf16.gmra.mrb[0].mxu0 %v6721
      %v6783 = vpop.f32.mrb[0].mxu0
      %v6784 = vadd.f32 %v6680, %v6783
      %v6785 = vpop.f32.mrb[0].mxu0
      %v6786 = vpop.f32.mrb[0].mxu0
      %v6787 = vadd.f32 %v6680, %v6786
      %v6788 = vpop.f32.mrb[0].mxu0
      %6789 = vmatprep.mubr.bf16.mxu0 0
      %6790 = vmatmul.mubr.bf16.gmra.mrb[0].mxu0 %v6724
      %v6791 = vpop.f32.mrb[0].mxu0
      %v6792 = vadd.f32 %v6680, %v6791
      %v6793 = vpop.f32.mrb[0].mxu0
      %v6794 = vpop.f32.mrb[0].mxu0
      %v6795 = vadd.f32 %v6680, %v6794
      %v6796 = vpop.f32.mrb[0].mxu0
      %6797 = vmatprep.mubr.bf16.mxu0 0
      %6798 = vmatmul.mubr.bf16.gmra.mrb[0].mxu0 %v6727
      %v6799 = vpop.f32.mrb[0].mxu0
      %v6800 = vadd.f32 %v6680, %v6799
      %v6801 = vpop.f32.mrb[0].mxu0
      %v6802 = vpop.f32.mrb[0].mxu0
      %v6803 = vadd.f32 %v6680, %v6802
      %v6804 = vpop.f32.mrb[0].mxu0
      %6805 = vmatprep.mubr.bf16.mxu0 0
      %6806 = vmatmul.mubr.bf16.gmra.mrb[0].mxu0 %v6730
      %v6807 = vpop.f32.mrb[0].mxu0
      %v6808 = vadd.f32 %v6680, %v6807
      %v6809 = vpop.f32.mrb[0].mxu0
      %v6810 = vpop.f32.mrb[0].mxu0
      %v6811 = vadd.f32 %v6680, %v6810
      %v6812 = vpop.f32.mrb[0].mxu0
      %6813 = vmatprep.mubr.bf16.mxu0 0
      %6814 = vmatmul.mubr.bf16.gmra.mrb[0].mxu0 %v6733
      %v6815 = vpop.f32.mrb[0].mxu0
      %v6816 = vadd.f32 %v6680, %v6815
      %v6817 = vpop.f32.mrb[0].mxu0
      %v6818 = vpop.f32.mrb[0].mxu0
      %v6819 = vadd.f32 %v6680, %v6818
      %v6820 = vpop.f32.mrb[0].mxu0
      %6821 = vmatprep.mubr.bf16.mxu0 0
      %6822 = vmatmul.mubr.bf16.gmra.mrb[0].mxu0 %v6736
      %v6823 = vpop.f32.mrb[0].mxu0
      %v6824 = vadd.f32 %v6680, %v6823
      %v6825 = vpop.f32.mrb[0].mxu0
      %v6826 = vpop.f32.mrb[0].mxu0
      %v6827 = vadd.f32 %v6680, %v6826
      %v6828 = vpop.f32.mrb[0].mxu0
      %6829 = vmatprep.mubr.bf16.mxu0 0
      %6830 = vmatmul.mubr.bf16.gmra.mrb[0].mxu0 %v6739
      %v6831 = vpop.f32.mrb[0].mxu0
      %v6832 = vadd.f32 %v6680, %v6831
      %v6833 = vpop.f32.mrb[0].mxu0
      %v6834 = vpop.f32.mrb[0].mxu0
      %v6835 = vadd.f32 %v6680, %v6834
      %v6836 = vpop.f32.mrb[0].mxu0
      %6837 = vdwg.mxu0
      %v6838 = vmax.f32 %v6776, 0.0
      %v6839 = vmax.f32 %v6779, 0.0
      %v6840 = vmax.f32 %v6784, 0.0
      %v6841 = vmax.f32 %v6787, 0.0
      %v6842 = vmax.f32 %v6792, 0.0
      %v6843 = vmax.f32 %v6795, 0.0
      %v6844 = vmax.f32 %v6800, 0.0
      %v6845 = vmax.f32 %v6803, 0.0
      %v6846 = vmax.f32 %v6808, 0.0
      %v6847 = vmax.f32 %v6811, 0.0
      %v6848 = vmax.f32 %v6816, 0.0
      %v6849 = vmax.f32 %v6819, 0.0
      %v6850 = vmax.f32 %v6824, 0.0
      %v6851 = vmax.f32 %v6827, 0.0
      %v6852 = vmax.f32 %v6832, 0.0
      %v6853 = vmax.f32 %v6835, 0.0
      %v6854 = vrot.slane %v6838, 7
      %v6855 = vrot.slane %v6839, 7
      %v6856 = vrot.slane %v6840, 7
      %v6857 = vrot.slane %v6841, 7
      %v6858 = vrot.slane %v6842, 7
      %v6859 = vrot.slane %v6843, 7
      %v6860 = vrot.slane %v6844, 7
      %v6861 = vrot.slane %v6845, 7
      %v6862 = vrot.slane %v6846, 7
      %v6863 = vrot.slane %v6847, 7
      %v6864 = vrot.slane %v6848, 7
      %v6865 = vrot.slane %v6849, 7
      %v6866 = vrot.slane %v6850, 7
      %v6867 = vrot.slane %v6851, 7
      %v6868 = vrot.slane %v6852, 7
      %v6869 = vrot.slane %v6853, 7
      %v6870 = vsel %vm613, %v6868, %v6869
      %v6871 = vsel %vm613, %v6867, %v6868
      %v6872 = vsel %vm613, %v6866, %v6867
      %v6873 = vsel %vm613, %v6865, %v6866
      %v6874 = vsel %vm613, %v6864, %v6865
      %v6875 = vsel %vm613, %v6863, %v6864
      %v6876 = vsel %vm613, %v6862, %v6863
      %v6877 = vsel %vm613, %v6861, %v6862
      %v6878 = vsel %vm613, %v6860, %v6861
      %v6879 = vsel %vm613, %v6859, %v6860
      %v6880 = vsel %vm613, %v6858, %v6859
      %v6881 = vsel %vm613, %v6857, %v6858
      %v6882 = vsel %vm613, %v6856, %v6857
      %v6883 = vsel %vm613, %v6855, %v6856
      %v6884 = vsel %vm613, %v6854, %v6855
      %v6885 = vsel %vm613, %v6869, %v6854
      %v6886 = vsel %vm6368, 0.0, %v6885
      %v6887 = vsel %vm6369, 0.0, %v6884
      %v6888 = vsel %vm6370, 0.0, %v6883
      %v6889 = vsel %vm6371, 0.0, %v6882
      %v6890 = vsel %vm6372, 0.0, %v6881
      %v6891 = vsel %vm6373, 0.0, %v6880
      %v6892 = vsel %vm6374, 0.0, %v6879
      %v6893 = vsel %vm6375, 0.0, %v6878
      %v6894 = vsel %vm6376, 0.0, %v6877
      %v6895 = vsel %vm6377, 0.0, %v6876
      %v6896 = vsel %vm6378, 0.0, %v6875
      %v6897 = vsel %vm6379, 0.0, %v6874
      %v6898 = vsel %vm6380, 0.0, %v6873
      %v6899 = vsel %vm6381, 0.0, %v6872
      %v6900 = vsel %vm6382, 0.0, %v6871
      %v6901 = vsel %vm6383, 0.0, %v6870
      %v6902 = vrot.slane %v6838, 1
      %v6903 = vrot.slane %v6839, 1
      %v6904 = vrot.slane %v6840, 1
      %v6905 = vrot.slane %v6841, 1
      %v6906 = vrot.slane %v6842, 1
      %v6907 = vrot.slane %v6843, 1
      %v6908 = vrot.slane %v6844, 1
      %v6909 = vrot.slane %v6845, 1
      %v6910 = vrot.slane %v6846, 1
      %v6911 = vrot.slane %v6847, 1
      %v6912 = vrot.slane %v6848, 1
      %v6913 = vrot.slane %v6849, 1
      %v6914 = vrot.slane %v6850, 1
      %v6915 = vrot.slane %v6851, 1
      %v6916 = vrot.slane %v6852, 1
      %v6917 = vrot.slane %v6853, 1
      %v6918 = vsel %vm806, %v6916, %v6917
      %v6919 = vsel %vm806, %v6915, %v6916
      %v6920 = vsel %vm806, %v6914, %v6915
      %v6921 = vsel %vm806, %v6913, %v6914
      %v6922 = vsel %vm806, %v6912, %v6913
      %v6923 = vsel %vm806, %v6911, %v6912
      %v6924 = vsel %vm806, %v6910, %v6911
      %v6925 = vsel %vm806, %v6909, %v6910
      %v6926 = vsel %vm806, %v6908, %v6909
      %v6927 = vsel %vm806, %v6907, %v6908
      %v6928 = vsel %vm806, %v6906, %v6907
      %v6929 = vsel %vm806, %v6905, %v6906
      %v6930 = vsel %vm806, %v6904, %v6905
      %v6931 = vsel %vm806, %v6903, %v6904
      %v6932 = vsel %vm806, %v6902, %v6903
      %v6933 = vsel %vm806, %v6917, %v6902
      %v6934 = vsel %vm6384, 0.0, %v6932
      %v6935 = vsel %vm6385, 0.0, %v6931
      %v6936 = vsel %vm6386, 0.0, %v6930
      %v6937 = vsel %vm6387, 0.0, %v6929
      %v6938 = vsel %vm6388, 0.0, %v6928
      %v6939 = vsel %vm6389, 0.0, %v6927
      %v6940 = vsel %vm6390, 0.0, %v6926
      %v6941 = vsel %vm6391, 0.0, %v6925
      %v6942 = vsel %vm6392, 0.0, %v6924
      %v6943 = vsel %vm6393, 0.0, %v6923
      %v6944 = vsel %vm6394, 0.0, %v6922
      %v6945 = vsel %vm6395, 0.0, %v6921
      %v6946 = vsel %vm6396, 0.0, %v6920
      %v6947 = vsel %vm6397, 0.0, %v6919
      %v6948 = vsel %vm6398, 0.0, %v6918
      %v6949 = vsel %vm6399, 0.0, %v6933
      %6966 = vrot.lane.b32.xlu0 %v6838, 32
      %v6967 = vpop.permute.xlu0 %6966
      %6968 = vrot.lane.b32.xlu0 %v6839, 32
      %v6969 = vpop.permute.xlu0 %6968
      %6970 = vrot.lane.b32.xlu0 %v6840, 32
      %v6971 = vpop.permute.xlu0 %6970
      %6972 = vrot.lane.b32.xlu0 %v6841, 32
      %v6973 = vpop.permute.xlu0 %6972
      %6974 = vrot.lane.b32.xlu0 %v6842, 32
      %v6975 = vpop.permute.xlu0 %6974
      %6976 = vrot.lane.b32.xlu0 %v6843, 32
      %v6977 = vpop.permute.xlu0 %6976
      %6978 = vrot.lane.b32.xlu0 %v6844, 32
      %v6979 = vpop.permute.xlu0 %6978
      %6980 = vrot.lane.b32.xlu0 %v6845, 32
      %v6981 = vpop.permute.xlu0 %6980
      %6982 = vrot.lane.b32.xlu0 %v6846, 32
      %v6983 = vpop.permute.xlu0 %6982
      %6984 = vrot.lane.b32.xlu0 %v6847, 32
      %v6985 = vpop.permute.xlu0 %6984
      %6986 = vrot.lane.b32.xlu0 %v6848, 32
      %v6987 = vpop.permute.xlu0 %6986
      %6988 = vrot.lane.b32.xlu0 %v6849, 32
      %v6989 = vpop.permute.xlu0 %6988
      %6990 = vrot.lane.b32.xlu0 %v6850, 32
      %v6991 = vpop.permute.xlu0 %6990
      %6992 = vrot.lane.b32.xlu0 %v6851, 32
      %v6993 = vpop.permute.xlu0 %6992
      %6994 = vrot.lane.b32.xlu0 %v6852, 32
      %v6995 = vpop.permute.xlu0 %6994
      %6996 = vrot.lane.b32.xlu0 %v6853, 32
      %v6997 = vpop.permute.xlu0 %6996
      %7030 = vrot.lane.b32.xlu0 %v6934, 64
      %v7031 = vpop.permute.xlu0 %7030
      %7032 = vrot.lane.b32.xlu0 %v6935, 64
      %v7033 = vpop.permute.xlu0 %7032
      %7034 = vrot.lane.b32.xlu0 %v6936, 64
      %v7035 = vpop.permute.xlu0 %7034
      %7036 = vrot.lane.b32.xlu0 %v6937, 64
      %v7037 = vpop.permute.xlu0 %7036
      %7038 = vrot.lane.b32.xlu0 %v6938, 64
      %v7039 = vpop.permute.xlu0 %7038
      %7040 = vrot.lane.b32.xlu0 %v6939, 64
      %v7041 = vpop.permute.xlu0 %7040
      %7042 = vrot.lane.b32.xlu0 %v6940, 64
      %v7043 = vpop.permute.xlu0 %7042
      %7044 = vrot.lane.b32.xlu0 %v6941, 64
      %v7045 = vpop.permute.xlu0 %7044
      %7046 = vrot.lane.b32.xlu0 %v6942, 64
      %v7047 = vpop.permute.xlu0 %7046
      %7048 = vrot.lane.b32.xlu0 %v6943, 64
      %v7049 = vpop.permute.xlu0 %7048
      %7050 = vrot.lane.b32.xlu0 %v6944, 64
      %v7051 = vpop.permute.xlu0 %7050
      %7052 = vrot.lane.b32.xlu0 %v6945, 64
      %v7053 = vpop.permute.xlu0 %7052
      %7054 = vrot.lane.b32.xlu0 %v6946, 64
      %v7055 = vpop.permute.xlu0 %7054
      %7056 = vrot.lane.b32.xlu0 %v6947, 64
      %v7057 = vpop.permute.xlu0 %7056
      %7058 = vrot.lane.b32.xlu0 %v6948, 64
      %v7059 = vpop.permute.xlu0 %7058
      %7060 = vrot.lane.b32.xlu0 %v6949, 64
      %v7061 = vpop.permute.xlu0 %7060
      %v7078 = vsel %vm1447, %v6886, %v6967
      %v7079 = vsel %vm1447, %v6887, %v6969
      %v7080 = vsel %vm1447, %v6888, %v6971
      %v7081 = vsel %vm1447, %v6889, %v6973
      %v7082 = vsel %vm1447, %v6890, %v6975
      %v7083 = vsel %vm1447, %v6891, %v6977
      %v7084 = vsel %vm1447, %v6892, %v6979
      %v7085 = vsel %vm1447, %v6893, %v6981
      %v7086 = vsel %vm1447, %v6894, %v6983
      %v7087 = vsel %vm1447, %v6895, %v6985
      %v7088 = vsel %vm1447, %v6896, %v6987
      %v7089 = vsel %vm1447, %v6897, %v6989
      %v7090 = vsel %vm1447, %v6898, %v6991
      %v7091 = vsel %vm1447, %v6899, %v6993
      %v7092 = vsel %vm1447, %v6900, %v6995
      %v7093 = vsel %vm1447, %v6901, %v6997
      %v7094 = vsel %vm1512, %v7078, %v7031
      %v7095 = vsel %vm1512, %v7079, %v7033
      %v7096 = vsel %vm1512, %v7080, %v7035
      %v7097 = vsel %vm1512, %v7081, %v7037
      %v7098 = vsel %vm1512, %v7082, %v7039
      %v7099 = vsel %vm1512, %v7083, %v7041
      %v7100 = vsel %vm1512, %v7084, %v7043
      %v7101 = vsel %vm1512, %v7085, %v7045
      %v7102 = vsel %vm1512, %v7086, %v7047
      %v7103 = vsel %vm1512, %v7087, %v7049
      %v7104 = vsel %vm1512, %v7088, %v7051
      %v7105 = vsel %vm1512, %v7089, %v7053
      %v7106 = vsel %vm1512, %v7090, %v7055
      %v7107 = vsel %vm1512, %v7091, %v7057
      %v7108 = vsel %vm1512, %v7092, %v7059
      %v7109 = vsel %vm1512, %v7093, %v7061
      %v7110 = vpack.c.bf16 %v7095, %v7094
      %v7111 = vpack.c.bf16 %v7097, %v7096
      %v7112 = vpack.c.bf16 %v7099, %v7098
      %v7113 = vpack.c.bf16 %v7101, %v7100
      %v7114 = vpack.c.bf16 %v7103, %v7102
      %v7115 = vpack.c.bf16 %v7105, %v7104
      %v7116 = vpack.c.bf16 %v7107, %v7106
      %v7117 = vpack.c.bf16 %v7109, %v7108
      %s7118 = scalar_lea.vmem %s1, 240
      %v7119 = vld [vmem:[%s7118] sm:$0xf]
      %v7120 = vld [vmem:[%s7118 + $0x4] sm:$0xf]
      %v7121 = vld [vmem:[%s7118 + $0x8] sm:$0xf]
      %v7122 = vld [vmem:[%s7118 + $0xc] sm:$0xf]
      %v7123 = vld [vmem:[%s7118 + $0x10] sm:$0xf]
      %v7124 = vld [vmem:[%s7118 + $0x14] sm:$0xf]
      %v7125 = vld [vmem:[%s7118 + $0x18] sm:$0xf]
      %v7126 = vld [vmem:[%s7118 + $0x1c] sm:$0xf]
      %v7127 = vld [vmem:[%s7118 + $0x20] sm:$0xf]
      %v7128 = vld [vmem:[%s7118 + $0x24] sm:$0xf]
      %v7129 = vld [vmem:[%s7118 + $0x28] sm:$0xf]
      %v7130 = vld [vmem:[%s7118 + $0x2c] sm:$0xf]
      %v7131 = vlaneseq
      %v7132 = vshrl.u32 %v7131, 7
      %v7133 = vsub.s32 5, %v7132
      %v7134 = vrot.slane %v226, %v7133
      %v7147 = vunpack.c.l.b16 %v7119
      %v7148 = vunpack.c.l.b16 %v7120
      %v7149 = vunpack.c.l.b16 %v7121
      %v7150 = vunpack.c.l.b16 %v7122
      %v7151 = vunpack.c.l.b16 %v7123
      %v7152 = vunpack.c.l.b16 %v7124
      %v7153 = vunpack.c.l.b16 %v7125
      %v7154 = vunpack.c.l.b16 %v7126
      %v7155 = vunpack.c.l.b16 %v7127
      %v7156 = vunpack.c.l.b16 %v7128
      %v7157 = vunpack.c.l.b16 %v7129
      %v7158 = vunpack.c.l.b16 %v7130
      %v7159 = vpack.c.b16 %v7148, %v7147
      %v7160 = vpack.c.b16 %v7150, %v7149
      %v7161 = vpack.c.b16 %v7152, %v7151
      %v7162 = vpack.c.b16 %v7154, %v7153
      %v7163 = vpack.c.b16 %v7156, %v7155
      %v7164 = vpack.c.b16 %v7158, %v7157
      %v7172 = vsel %vm1661, %v7110, 0
      %v7175 = vsel %vm1661, %v7111, 0
      %v7178 = vsel %vm1661, %v7112, 0
      %v7181 = vsel %vm1661, %v7113, 0
      %v7184 = vsel %vm1661, %v7114, 0
      %v7187 = vsel %vm1661, %v7115, 0
      %v7190 = vsel %vm1661, %v7116, 0
      %v7193 = vsel %vm1661, %v7117, 0
      %7195 = vmatprep.subr.bf16.mxu0 0
      %7196 = vmatpush1.bf16.msra.mxu0 %v7159
      %7197 = vmatprep.subr.bf16.mxu0 0
      %7198 = vmatpush1.bf16.msra.mxu0 %v7160
      %7199 = vmatprep.subr.bf16.mxu0 0
      %7200 = vmatpush1.bf16.msra.mxu0 %v7161
      %7201 = vmatprep.subr.bf16.mxu0 0
      %7202 = vmatpush1.bf16.msra.mxu0 %v7162
      %7203 = vmatprep.subr.bf16.mxu0 0
      %7204 = vmatpush1.bf16.msra.mxu0 %v7163
      %7205 = vmatprep.subr.bf16.mxu0 0
      %7206 = vmatpush1.bf16.msra.mxu0 %v7164
      %7207 = vmatprep.subr.bf16.mxu0 0
      %7208 = vmatpush1.bf16.msra.mxu0 0
      %7209 = vmatprep.subr.bf16.mxu0 0
      %7210 = vmatpush1.bf16.msra.mxu0 0
      %7211 = vmatprep.subr.bf16.mxu0 0
      %7212 = vmatpush1.bf16.msra.mxu0 0
      %7213 = vmatprep.subr.bf16.mxu0 0
      %7214 = vmatpush1.bf16.msra.mxu0 0
      %7215 = vmatprep.subr.bf16.mxu0 0
      %7216 = vmatpush1.bf16.msra.mxu0 0
      %7217 = vmatprep.subr.bf16.mxu0 0
      %7218 = vmatpush1.bf16.msra.mxu0 0
      %7219 = vmatprep.subr.bf16.mxu0 0
      %7220 = vmatpush1.bf16.msra.mxu0 0
      %7221 = vmatprep.subr.bf16.mxu0 0
      %7222 = vmatpush1.bf16.msra.mxu0 0
      %7223 = vmatprep.subr.bf16.mxu0 0
      %7224 = vmatpush1.bf16.msra.mxu0 0
      %7225 = vmatprep.subr.bf16.mxu0 0
      %7226 = vmatpush1.bf16.msra.mxu0 0
      %7227 = vmatprep.mubr.bf16.mxu0 0
      %7228 = vmatmul.mubr.bf16.gmra.mrb[0].mxu0 %v7172
      %v7229 = vpop.f32.mrb[0].mxu0
      %v7230 = vadd.f32 %v7134, %v7229
      %v7231 = vpop.f32.mrb[0].mxu0
      %v7232 = vpop.f32.mrb[0].mxu0
      %v7233 = vadd.f32 %v7134, %v7232
      %v7234 = vpop.f32.mrb[0].mxu0
      %7235 = vmatprep.mubr.bf16.mxu0 0
      %7236 = vmatmul.mubr.bf16.gmra.mrb[0].mxu0 %v7175
      %v7237 = vpop.f32.mrb[0].mxu0
      %v7238 = vadd.f32 %v7134, %v7237
      %v7239 = vpop.f32.mrb[0].mxu0
      %v7240 = vpop.f32.mrb[0].mxu0
      %v7241 = vadd.f32 %v7134, %v7240
      %v7242 = vpop.f32.mrb[0].mxu0
      %7243 = vmatprep.mubr.bf16.mxu0 0
      %7244 = vmatmul.mubr.bf16.gmra.mrb[0].mxu0 %v7178
      %v7245 = vpop.f32.mrb[0].mxu0
      %v7246 = vadd.f32 %v7134, %v7245
      %v7247 = vpop.f32.mrb[0].mxu0
      %v7248 = vpop.f32.mrb[0].mxu0
      %v7249 = vadd.f32 %v7134, %v7248
      %v7250 = vpop.f32.mrb[0].mxu0
      %7251 = vmatprep.mubr.bf16.mxu0 0
      %7252 = vmatmul.mubr.bf16.gmra.mrb[0].mxu0 %v7181
      %v7253 = vpop.f32.mrb[0].mxu0
      %v7254 = vadd.f32 %v7134, %v7253
      %v7255 = vpop.f32.mrb[0].mxu0
      %v7256 = vpop.f32.mrb[0].mxu0
      %v7257 = vadd.f32 %v7134, %v7256
      %v7258 = vpop.f32.mrb[0].mxu0
      %7259 = vmatprep.mubr.bf16.mxu0 0
      %7260 = vmatmul.mubr.bf16.gmra.mrb[0].mxu0 %v7184
      %v7261 = vpop.f32.mrb[0].mxu0
      %v7262 = vadd.f32 %v7134, %v7261
      %v7263 = vpop.f32.mrb[0].mxu0
      %v7264 = vpop.f32.mrb[0].mxu0
      %v7265 = vadd.f32 %v7134, %v7264
      %v7266 = vpop.f32.mrb[0].mxu0
      %7267 = vmatprep.mubr.bf16.mxu0 0
      %7268 = vmatmul.mubr.bf16.gmra.mrb[0].mxu0 %v7187
      %v7269 = vpop.f32.mrb[0].mxu0
      %v7270 = vadd.f32 %v7134, %v7269
      %v7271 = vpop.f32.mrb[0].mxu0
      %v7272 = vpop.f32.mrb[0].mxu0
      %v7273 = vadd.f32 %v7134, %v7272
      %v7274 = vpop.f32.mrb[0].mxu0
      %7275 = vmatprep.mubr.bf16.mxu0 0
      %7276 = vmatmul.mubr.bf16.gmra.mrb[0].mxu0 %v7190
      %v7277 = vpop.f32.mrb[0].mxu0
      %v7278 = vadd.f32 %v7134, %v7277
      %v7279 = vpop.f32.mrb[0].mxu0
      %v7280 = vpop.f32.mrb[0].mxu0
      %v7281 = vadd.f32 %v7134, %v7280
      %v7282 = vpop.f32.mrb[0].mxu0
      %7283 = vmatprep.mubr.bf16.mxu0 0
      %7284 = vmatmul.mubr.bf16.gmra.mrb[0].mxu0 %v7193
      %v7285 = vpop.f32.mrb[0].mxu0
      %v7286 = vadd.f32 %v7134, %v7285
      %v7287 = vpop.f32.mrb[0].mxu0
      %v7288 = vpop.f32.mrb[0].mxu0
      %v7289 = vadd.f32 %v7134, %v7288
      %v7290 = vpop.f32.mrb[0].mxu0
      %7291 = vdwg.mxu0
      %v7292 = vmax.f32 %v7230, 0.0
      %v7293 = vmax.f32 %v7233, 0.0
      %v7294 = vmax.f32 %v7238, 0.0
      %v7295 = vmax.f32 %v7241, 0.0
      %v7296 = vmax.f32 %v7246, 0.0
      %v7297 = vmax.f32 %v7249, 0.0
      %v7298 = vmax.f32 %v7254, 0.0
      %v7299 = vmax.f32 %v7257, 0.0
      %v7300 = vmax.f32 %v7262, 0.0
      %v7301 = vmax.f32 %v7265, 0.0
      %v7302 = vmax.f32 %v7270, 0.0
      %v7303 = vmax.f32 %v7273, 0.0
      %v7304 = vmax.f32 %v7278, 0.0
      %v7305 = vmax.f32 %v7281, 0.0
      %v7306 = vmax.f32 %v7286, 0.0
      %v7307 = vmax.f32 %v7289, 0.0
      %v7308 = vadd.f32 %v7292, %v6336
      %v7309 = vadd.f32 %v7293, %v6337
      %v7310 = vadd.f32 %v7294, %v6338
      %v7311 = vadd.f32 %v7295, %v6339
      %v7312 = vadd.f32 %v7296, %v6340
      %v7313 = vadd.f32 %v7297, %v6341
      %v7314 = vadd.f32 %v7298, %v6342
      %v7315 = vadd.f32 %v7299, %v6343
      %v7316 = vadd.f32 %v7300, %v6344
      %v7317 = vadd.f32 %v7301, %v6345
      %v7318 = vadd.f32 %v7302, %v6346
      %v7319 = vadd.f32 %v7303, %v6347
      %v7320 = vadd.f32 %v7304, %v6348
      %v7321 = vadd.f32 %v7305, %v6349
      %v7322 = vadd.f32 %v7306, %v6350
      %v7323 = vadd.f32 %v7307, %v6351
      %v7324 = vrot.slane %v7308, 7
      %v7325 = vrot.slane %v7309, 7
      %v7326 = vrot.slane %v7310, 7
      %v7327 = vrot.slane %v7311, 7
      %v7328 = vrot.slane %v7312, 7
      %v7329 = vrot.slane %v7313, 7
      %v7330 = vrot.slane %v7314, 7
      %v7331 = vrot.slane %v7315, 7
      %v7332 = vrot.slane %v7316, 7
      %v7333 = vrot.slane %v7317, 7
      %v7334 = vrot.slane %v7318, 7
      %v7335 = vrot.slane %v7319, 7
      %v7336 = vrot.slane %v7320, 7
      %v7337 = vrot.slane %v7321, 7
      %v7338 = vrot.slane %v7322, 7
      %v7339 = vrot.slane %v7323, 7
      %v7340 = vsel %vm613, %v7338, %v7339
      %v7341 = vsel %vm613, %v7337, %v7338
      %v7342 = vsel %vm613, %v7336, %v7337
      %v7343 = vsel %vm613, %v7335, %v7336
      %v7344 = vsel %vm613, %v7334, %v7335
      %v7345 = vsel %vm613, %v7333, %v7334
      %v7346 = vsel %vm613, %v7332, %v7333
      %v7347 = vsel %vm613, %v7331, %v7332
      %v7348 = vsel %vm613, %v7330, %v7331
      %v7349 = vsel %vm613, %v7329, %v7330
      %v7350 = vsel %vm613, %v7328, %v7329
      %v7351 = vsel %vm613, %v7327, %v7328
      %v7352 = vsel %vm613, %v7326, %v7327
      %v7353 = vsel %vm613, %v7325, %v7326
      %v7354 = vsel %vm613, %v7324, %v7325
      %v7355 = vsel %vm613, %v7339, %v7324
      %v7356 = vsel %vm6368, -inf, %v7355
      %v7357 = vsel %vm6369, -inf, %v7354
      %v7358 = vsel %vm6370, -inf, %v7353
      %v7359 = vsel %vm6371, -inf, %v7352
      %v7360 = vsel %vm6372, -inf, %v7351
      %v7361 = vsel %vm6373, -inf, %v7350
      %v7362 = vsel %vm6374, -inf, %v7349
      %v7363 = vsel %vm6375, -inf, %v7348
      %v7364 = vsel %vm6376, -inf, %v7347
      %v7365 = vsel %vm6377, -inf, %v7346
      %v7366 = vsel %vm6378, -inf, %v7345
      %v7367 = vsel %vm6379, -inf, %v7344
      %v7368 = vsel %vm6380, -inf, %v7343
      %v7369 = vsel %vm6381, -inf, %v7342
      %v7370 = vsel %vm6382, -inf, %v7341
      %v7371 = vsel %vm6383, -inf, %v7340
      %v7372 = vrot.slane %v7308, 1
      %v7373 = vrot.slane %v7309, 1
      %v7374 = vrot.slane %v7310, 1
      %v7375 = vrot.slane %v7311, 1
      %v7376 = vrot.slane %v7312, 1
      %v7377 = vrot.slane %v7313, 1
      %v7378 = vrot.slane %v7314, 1
      %v7379 = vrot.slane %v7315, 1
      %v7380 = vrot.slane %v7316, 1
      %v7381 = vrot.slane %v7317, 1
      %v7382 = vrot.slane %v7318, 1
      %v7383 = vrot.slane %v7319, 1
      %v7384 = vrot.slane %v7320, 1
      %v7385 = vrot.slane %v7321, 1
      %v7386 = vrot.slane %v7322, 1
      %v7387 = vrot.slane %v7323, 1
      %v7388 = vsel %vm806, %v7386, %v7387
      %v7389 = vsel %vm806, %v7385, %v7386
      %v7390 = vsel %vm806, %v7384, %v7385
      %v7391 = vsel %vm806, %v7383, %v7384
      %v7392 = vsel %vm806, %v7382, %v7383
      %v7393 = vsel %vm806, %v7381, %v7382
      %v7394 = vsel %vm806, %v7380, %v7381
      %v7395 = vsel %vm806, %v7379, %v7380
      %v7396 = vsel %vm806, %v7378, %v7379
      %v7397 = vsel %vm806, %v7377, %v7378
      %v7398 = vsel %vm806, %v7376, %v7377
      %v7399 = vsel %vm806, %v7375, %v7376
      %v7400 = vsel %vm806, %v7374, %v7375
      %v7401 = vsel %vm806, %v7373, %v7374
      %v7402 = vsel %vm806, %v7372, %v7373
      %v7403 = vsel %vm806, %v7387, %v7372
      %v7404 = vmax.f32 %v7356, %v7308
      %v7405 = vmax.f32 %v7357, %v7309
      %v7406 = vmax.f32 %v7358, %v7310
      %v7407 = vmax.f32 %v7359, %v7311
      %v7408 = vmax.f32 %v7360, %v7312
      %v7409 = vmax.f32 %v7361, %v7313
      %v7410 = vmax.f32 %v7362, %v7314
      %v7411 = vmax.f32 %v7363, %v7315
      %v7412 = vmax.f32 %v7364, %v7316
      %v7413 = vmax.f32 %v7365, %v7317
      %v7414 = vmax.f32 %v7366, %v7318
      %v7415 = vmax.f32 %v7367, %v7319
      %v7416 = vmax.f32 %v7368, %v7320
      %v7417 = vmax.f32 %v7369, %v7321
      %v7418 = vmax.f32 %v7370, %v7322
      %v7419 = vmax.f32 %v7371, %v7323
      %v7420 = vmax.f32 %v7404, %v7402
      %v7421 = vmax.f32 %v7405, %v7401
      %v7422 = vmax.f32 %v7406, %v7400
      %v7423 = vmax.f32 %v7407, %v7399
      %v7424 = vmax.f32 %v7408, %v7398
      %v7425 = vmax.f32 %v7409, %v7397
      %v7426 = vmax.f32 %v7410, %v7396
      %v7427 = vmax.f32 %v7411, %v7395
      %v7428 = vmax.f32 %v7412, %v7394
      %v7429 = vmax.f32 %v7413, %v7393
      %v7430 = vmax.f32 %v7414, %v7392
      %v7431 = vmax.f32 %v7415, %v7391
      %v7432 = vmax.f32 %v7416, %v7390
      %v7433 = vmax.f32 %v7417, %v7389
      %v7434 = vmax.f32 %v7418, %v7388
      %v7435 = vmax.f32 %v7419, %v7403
      %7436 = vst.msk [vmem:[#allocation2] sm:$0xff] %vm1447, %v7420
      %7437 = vst.msk [vmem:[#allocation2 + $0x8] sm:$0xff] %vm1447, %v7421
      %7438 = vst.msk [vmem:[#allocation2 + $0x10] sm:$0xff] %vm1447, %v7422
      %7439 = vst.msk [vmem:[#allocation2 + $0x18] sm:$0xff] %vm1447, %v7423
      %7440 = vst.msk [vmem:[#allocation2 + $0x20] sm:$0xff] %vm1447, %v7424
      %7441 = vst.msk [vmem:[#allocation2 + $0x28] sm:$0xff] %vm1447, %v7425
      %7442 = vst.msk [vmem:[#allocation2 + $0x30] sm:$0xff] %vm1447, %v7426
      %7443 = vst.msk [vmem:[#allocation2 + $0x38] sm:$0xff] %vm1447, %v7427
      %7444 = vst.msk [vmem:[#allocation2 + $0x40] sm:$0xff] %vm1447, %v7428
      %7445 = vst.msk [vmem:[#allocation2 + $0x48] sm:$0xff] %vm1447, %v7429
      %7446 = vst.msk [vmem:[#allocation2 + $0x50] sm:$0xff] %vm1447, %v7430
      %7447 = vst.msk [vmem:[#allocation2 + $0x58] sm:$0xff] %vm1447, %v7431
      %7448 = vst.msk [vmem:[#allocation2 + $0x60] sm:$0xff] %vm1447, %v7432
      %7449 = vst.msk [vmem:[#allocation2 + $0x68] sm:$0xff] %vm1447, %v7433
      %7450 = vst.msk [vmem:[#allocation2 + $0x70] sm:$0xff] %vm1447, %v7434
      %7451 = vst.msk [vmem:[#allocation2 + $0x78] sm:$0xff] %vm1447, %v7435
      %v7452 = vld [vmem:[#allocation2] ss:$2 sm:$0xff]
      %v7453 = vld [vmem:[%s4246] ss:$2 sm:$0xff]
      %v7454 = vld [vmem:[%s4248] ss:$2 sm:$0xff]
      %v7455 = vld [vmem:[%s4250] ss:$2 sm:$0xff]
      %v7456 = vld [vmem:[%s4252] ss:$2 sm:$0xff]
      %v7457 = vld [vmem:[%s4254] ss:$2 sm:$0xff]
      %v7458 = vld [vmem:[%s4256] ss:$2 sm:$0xff]
      %v7459 = vld [vmem:[%s4258] ss:$2 sm:$0xff]
      %v7460 = vand.u32 %v293, 15
      %v7461 = vand.u32 %v294, 15
      %v7462 = vand.u32 %v295, 15
      %v7463 = vand.u32 %v296, 15
      %v7464 = vand.u32 %v297, 15
      %v7465 = vand.u32 %v298, 15
      %v7466 = vand.u32 %v299, 15
      %v7467 = vand.u32 %v300, 15
      %vm7468 = vcmp.eq.s32.totalorder %v7460, 0
      %vm7469 = vcmp.eq.s32.totalorder %v7461, 0
      %vm7470 = vcmp.eq.s32.totalorder %v7462, 0
      %vm7471 = vcmp.eq.s32.totalorder %v7463, 0
      %vm7472 = vcmp.eq.s32.totalorder %v7464, 0
      %vm7473 = vcmp.eq.s32.totalorder %v7465, 0
      %vm7474 = vcmp.eq.s32.totalorder %v7466, 0
      %vm7475 = vcmp.eq.s32.totalorder %v7467, 0
      %vm7476 = vcmp.eq.s32.totalorder %v7460, 15
      %vm7477 = vcmp.eq.s32.totalorder %v7461, 15
      %vm7478 = vcmp.eq.s32.totalorder %v7462, 15
      %vm7479 = vcmp.eq.s32.totalorder %v7463, 15
      %vm7480 = vcmp.eq.s32.totalorder %v7464, 15
      %vm7481 = vcmp.eq.s32.totalorder %v7465, 15
      %vm7482 = vcmp.eq.s32.totalorder %v7466, 15
      %vm7483 = vcmp.eq.s32.totalorder %v7467, 15
      %v7484 = vrot.slane %v7452, 7
      %v7485 = vrot.slane %v7453, 7
      %v7486 = vrot.slane %v7454, 7
      %v7487 = vrot.slane %v7455, 7
      %v7488 = vrot.slane %v7456, 7
      %v7489 = vrot.slane %v7457, 7
      %v7490 = vrot.slane %v7458, 7
      %v7491 = vrot.slane %v7459, 7
      %v7492 = vsel %vm613, %v7490, %v7491
      %v7493 = vsel %vm613, %v7489, %v7490
      %v7494 = vsel %vm613, %v7488, %v7489
      %v7495 = vsel %vm613, %v7487, %v7488
      %v7496 = vsel %vm613, %v7486, %v7487
      %v7497 = vsel %vm613, %v7485, %v7486
      %v7498 = vsel %vm613, %v7484, %v7485
      %v7499 = vsel %vm613, %v7491, %v7484
      %v7500 = vsel %vm7468, 0.0, %v7499
      %v7501 = vsel %vm7469, 0.0, %v7498
      %v7502 = vsel %vm7470, 0.0, %v7497
      %v7503 = vsel %vm7471, 0.0, %v7496
      %v7504 = vsel %vm7472, 0.0, %v7495
      %v7505 = vsel %vm7473, 0.0, %v7494
      %v7506 = vsel %vm7474, 0.0, %v7493
      %v7507 = vsel %vm7475, 0.0, %v7492
      %v7508 = vrot.slane %v7452, 1
      %v7509 = vrot.slane %v7453, 1
      %v7510 = vrot.slane %v7454, 1
      %v7511 = vrot.slane %v7455, 1
      %v7512 = vrot.slane %v7456, 1
      %v7513 = vrot.slane %v7457, 1
      %v7514 = vrot.slane %v7458, 1
      %v7515 = vrot.slane %v7459, 1
      %v7516 = vsel %vm806, %v7514, %v7515
      %v7517 = vsel %vm806, %v7513, %v7514
      %v7518 = vsel %vm806, %v7512, %v7513
      %v7519 = vsel %vm806, %v7511, %v7512
      %v7520 = vsel %vm806, %v7510, %v7511
      %v7521 = vsel %vm806, %v7509, %v7510
      %v7522 = vsel %vm806, %v7508, %v7509
      %v7523 = vsel %vm806, %v7515, %v7508
      %v7524 = vsel %vm7476, 0.0, %v7522
      %v7525 = vsel %vm7477, 0.0, %v7521
      %v7526 = vsel %vm7478, 0.0, %v7520
      %v7527 = vsel %vm7479, 0.0, %v7519
      %v7528 = vsel %vm7480, 0.0, %v7518
      %v7529 = vsel %vm7481, 0.0, %v7517
      %v7530 = vsel %vm7482, 0.0, %v7516
      %v7531 = vsel %vm7483, 0.0, %v7523
      %7540 = vrot.lane.b32.xlu0 %v7452, 32
      %v7541 = vpop.permute.xlu0 %7540
      %7542 = vrot.lane.b32.xlu0 %v7453, 32
      %v7543 = vpop.permute.xlu0 %7542
      %7544 = vrot.lane.b32.xlu0 %v7454, 32
      %v7545 = vpop.permute.xlu0 %7544
      %7546 = vrot.lane.b32.xlu0 %v7455, 32
      %v7547 = vpop.permute.xlu0 %7546
      %7548 = vrot.lane.b32.xlu0 %v7456, 32
      %v7549 = vpop.permute.xlu0 %7548
      %7550 = vrot.lane.b32.xlu0 %v7457, 32
      %v7551 = vpop.permute.xlu0 %7550
      %7552 = vrot.lane.b32.xlu0 %v7458, 32
      %v7553 = vpop.permute.xlu0 %7552
      %7554 = vrot.lane.b32.xlu0 %v7459, 32
      %v7555 = vpop.permute.xlu0 %7554
      %7572 = vrot.lane.b32.xlu0 %v7524, 64
      %v7573 = vpop.permute.xlu0 %7572
      %7574 = vrot.lane.b32.xlu0 %v7525, 64
      %v7575 = vpop.permute.xlu0 %7574
      %7576 = vrot.lane.b32.xlu0 %v7526, 64
      %v7577 = vpop.permute.xlu0 %7576
      %7578 = vrot.lane.b32.xlu0 %v7527, 64
      %v7579 = vpop.permute.xlu0 %7578
      %7580 = vrot.lane.b32.xlu0 %v7528, 64
      %v7581 = vpop.permute.xlu0 %7580
      %7582 = vrot.lane.b32.xlu0 %v7529, 64
      %v7583 = vpop.permute.xlu0 %7582
      %7584 = vrot.lane.b32.xlu0 %v7530, 64
      %v7585 = vpop.permute.xlu0 %7584
      %7586 = vrot.lane.b32.xlu0 %v7531, 64
      %v7587 = vpop.permute.xlu0 %7586
      %v7596 = vsel %vm1447, %v7500, %v7541
      %v7597 = vsel %vm1447, %v7501, %v7543
      %v7598 = vsel %vm1447, %v7502, %v7545
      %v7599 = vsel %vm1447, %v7503, %v7547
      %v7600 = vsel %vm1447, %v7504, %v7549
      %v7601 = vsel %vm1447, %v7505, %v7551
      %v7602 = vsel %vm1447, %v7506, %v7553
      %v7603 = vsel %vm1447, %v7507, %v7555
      %v7604 = vsel %vm1512, %v7596, %v7573
      %v7605 = vsel %vm1512, %v7597, %v7575
      %v7606 = vsel %vm1512, %v7598, %v7577
      %v7607 = vsel %vm1512, %v7599, %v7579
      %v7608 = vsel %vm1512, %v7600, %v7581
      %v7609 = vsel %vm1512, %v7601, %v7583
      %v7610 = vsel %vm1512, %v7602, %v7585
      %v7611 = vsel %vm1512, %v7603, %v7587
      %v7612 = vpack.c.bf16 %v7605, %v7604
      %v7613 = vpack.c.bf16 %v7607, %v7606
      %v7614 = vpack.c.bf16 %v7609, %v7608
      %v7615 = vpack.c.bf16 %v7611, %v7610
      %s7616 = scalar_lea.vmem %s1, 288
      %v7617 = vld [vmem:[%s7616] sm:$0xf]
      %v7618 = vld [vmem:[%s7616 + $0x4] sm:$0xf]
      %v7619 = vld [vmem:[%s7616 + $0x8] sm:$0xf]
      %v7620 = vld [vmem:[%s7616 + $0xc] sm:$0xf]
      %v7621 = vld [vmem:[%s7616 + $0x10] sm:$0xf]
      %v7622 = vld [vmem:[%s7616 + $0x14] sm:$0xf]
      %v7623 = vld [vmem:[%s7616 + $0x18] sm:$0xf]
      %v7624 = vld [vmem:[%s7616 + $0x1c] sm:$0xf]
      %v7625 = vld [vmem:[%s7616 + $0x20] sm:$0xf]
      %v7626 = vld [vmem:[%s7616 + $0x24] sm:$0xf]
      %v7627 = vld [vmem:[%s7616 + $0x28] sm:$0xf]
      %v7628 = vld [vmem:[%s7616 + $0x2c] sm:$0xf]
      %v7629 = vlaneseq
      %v7630 = vshrl.u32 %v7629, 7
      %v7631 = vsub.s32 6, %v7630
      %v7632 = vrot.slane %v226, %v7631
      %v7645 = vunpack.c.l.b16 %v7617
      %v7646 = vunpack.c.l.b16 %v7618
      %v7647 = vunpack.c.l.b16 %v7619
      %v7648 = vunpack.c.l.b16 %v7620
      %v7649 = vunpack.c.l.b16 %v7621
      %v7650 = vunpack.c.l.b16 %v7622
      %v7651 = vunpack.c.l.b16 %v7623
      %v7652 = vunpack.c.l.b16 %v7624
      %v7653 = vunpack.c.l.b16 %v7625
      %v7654 = vunpack.c.l.b16 %v7626
      %v7655 = vunpack.c.l.b16 %v7627
      %v7656 = vunpack.c.l.b16 %v7628
      %v7657 = vpack.c.b16 %v7646, %v7645
      %v7658 = vpack.c.b16 %v7648, %v7647
      %v7659 = vpack.c.b16 %v7650, %v7649
      %v7660 = vpack.c.b16 %v7652, %v7651
      %v7661 = vpack.c.b16 %v7654, %v7653
      %v7662 = vpack.c.b16 %v7656, %v7655
      %v7670 = vsel %vm1661, %v7612, 0
      %v7673 = vsel %vm1661, %v7613, 0
      %v7676 = vsel %vm1661, %v7614, 0
      %v7679 = vsel %vm1661, %v7615, 0
      %7681 = vmatprep.subr.bf16.mxu0 0
      %7682 = vmatpush1.bf16.msra.mxu0 %v7657
      %7683 = vmatprep.subr.bf16.mxu0 0
      %7684 = vmatpush1.bf16.msra.mxu0 %v7658
      %7685 = vmatprep.subr.bf16.mxu0 0
      %7686 = vmatpush1.bf16.msra.mxu0 %v7659
      %7687 = vmatprep.subr.bf16.mxu0 0
      %7688 = vmatpush1.bf16.msra.mxu0 %v7660
      %7689 = vmatprep.subr.bf16.mxu0 0
      %7690 = vmatpush1.bf16.msra.mxu0 %v7661
      %7691 = vmatprep.subr.bf16.mxu0 0
      %7692 = vmatpush1.bf16.msra.mxu0 %v7662
      %7693 = vmatprep.subr.bf16.mxu0 0
      %7694 = vmatpush1.bf16.msra.mxu0 0
      %7695 = vmatprep.subr.bf16.mxu0 0
      %7696 = vmatpush1.bf16.msra.mxu0 0
      %7697 = vmatprep.subr.bf16.mxu0 0
      %7698 = vmatpush1.bf16.msra.mxu0 0
      %7699 = vmatprep.subr.bf16.mxu0 0
      %7700 = vmatpush1.bf16.msra.mxu0 0
      %7701 = vmatprep.subr.bf16.mxu0 0
      %7702 = vmatpush1.bf16.msra.mxu0 0
      %7703 = vmatprep.subr.bf16.mxu0 0
      %7704 = vmatpush1.bf16.msra.mxu0 0
      %7705 = vmatprep.subr.bf16.mxu0 0
      %7706 = vmatpush1.bf16.msra.mxu0 0
      %7707 = vmatprep.subr.bf16.mxu0 0
      %7708 = vmatpush1.bf16.msra.mxu0 0
      %7709 = vmatprep.subr.bf16.mxu0 0
      %7710 = vmatpush1.bf16.msra.mxu0 0
      %7711 = vmatprep.subr.bf16.mxu0 0
      %7712 = vmatpush1.bf16.msra.mxu0 0
      %7713 = vmatprep.mubr.bf16.mxu0 0
      %7714 = vmatmul.mubr.bf16.gmra.mrb[0].mxu0 %v7670
      %v7715 = vpop.f32.mrb[0].mxu0
      %v7716 = vadd.f32 %v7632, %v7715
      %v7717 = vpop.f32.mrb[0].mxu0
      %v7718 = vpop.f32.mrb[0].mxu0
      %v7719 = vadd.f32 %v7632, %v7718
      %v7720 = vpop.f32.mrb[0].mxu0
      %7721 = vmatprep.mubr.bf16.mxu0 0
      %7722 = vmatmul.mubr.bf16.gmra.mrb[0].mxu0 %v7673
      %v7723 = vpop.f32.mrb[0].mxu0
      %v7724 = vadd.f32 %v7632, %v7723
      %v7725 = vpop.f32.mrb[0].mxu0
      %v7726 = vpop.f32.mrb[0].mxu0
      %v7727 = vadd.f32 %v7632, %v7726
      %v7728 = vpop.f32.mrb[0].mxu0
      %7729 = vmatprep.mubr.bf16.mxu0 0
      %7730 = vmatmul.mubr.bf16.gmra.mrb[0].mxu0 %v7676
      %v7731 = vpop.f32.mrb[0].mxu0
      %v7732 = vadd.f32 %v7632, %v7731
      %v7733 = vpop.f32.mrb[0].mxu0
      %v7734 = vpop.f32.mrb[0].mxu0
      %v7735 = vadd.f32 %v7632, %v7734
      %v7736 = vpop.f32.mrb[0].mxu0
      %7737 = vmatprep.mubr.bf16.mxu0 0
      %7738 = vmatmul.mubr.bf16.gmra.mrb[0].mxu0 %v7679
      %v7739 = vpop.f32.mrb[0].mxu0
      %v7740 = vadd.f32 %v7632, %v7739
      %v7741 = vpop.f32.mrb[0].mxu0
      %v7742 = vpop.f32.mrb[0].mxu0
      %v7743 = vadd.f32 %v7632, %v7742
      %v7744 = vpop.f32.mrb[0].mxu0
      %7745 = vdwg.mxu0
      %v7746 = vmax.f32 %v7716, 0.0
      %v7747 = vmax.f32 %v7719, 0.0
      %v7748 = vmax.f32 %v7724, 0.0
      %v7749 = vmax.f32 %v7727, 0.0
      %v7750 = vmax.f32 %v7732, 0.0
      %v7751 = vmax.f32 %v7735, 0.0
      %v7752 = vmax.f32 %v7740, 0.0
      %v7753 = vmax.f32 %v7743, 0.0
      %v7754 = vrot.slane %v7746, 7
      %v7755 = vrot.slane %v7747, 7
      %v7756 = vrot.slane %v7748, 7
      %v7757 = vrot.slane %v7749, 7
      %v7758 = vrot.slane %v7750, 7
      %v7759 = vrot.slane %v7751, 7
      %v7760 = vrot.slane %v7752, 7
      %v7761 = vrot.slane %v7753, 7
      %v7762 = vsel %vm613, %v7760, %v7761
      %v7763 = vsel %vm613, %v7759, %v7760
      %v7764 = vsel %vm613, %v7758, %v7759
      %v7765 = vsel %vm613, %v7757, %v7758
      %v7766 = vsel %vm613, %v7756, %v7757
      %v7767 = vsel %vm613, %v7755, %v7756
      %v7768 = vsel %vm613, %v7754, %v7755
      %v7769 = vsel %vm613, %v7761, %v7754
      %v7770 = vsel %vm7468, 0.0, %v7769
      %v7771 = vsel %vm7469, 0.0, %v7768
      %v7772 = vsel %vm7470, 0.0, %v7767
      %v7773 = vsel %vm7471, 0.0, %v7766
      %v7774 = vsel %vm7472, 0.0, %v7765
      %v7775 = vsel %vm7473, 0.0, %v7764
      %v7776 = vsel %vm7474, 0.0, %v7763
      %v7777 = vsel %vm7475, 0.0, %v7762
      %v7778 = vrot.slane %v7746, 1
      %v7779 = vrot.slane %v7747, 1
      %v7780 = vrot.slane %v7748, 1
      %v7781 = vrot.slane %v7749, 1
      %v7782 = vrot.slane %v7750, 1
      %v7783 = vrot.slane %v7751, 1
      %v7784 = vrot.slane %v7752, 1
      %v7785 = vrot.slane %v7753, 1
      %v7786 = vsel %vm806, %v7784, %v7785
      %v7787 = vsel %vm806, %v7783, %v7784
      %v7788 = vsel %vm806, %v7782, %v7783
      %v7789 = vsel %vm806, %v7781, %v7782
      %v7790 = vsel %vm806, %v7780, %v7781
      %v7791 = vsel %vm806, %v7779, %v7780
      %v7792 = vsel %vm806, %v7778, %v7779
      %v7793 = vsel %vm806, %v7785, %v7778
      %v7794 = vsel %vm7476, 0.0, %v7792
      %v7795 = vsel %vm7477, 0.0, %v7791
      %v7796 = vsel %vm7478, 0.0, %v7790
      %v7797 = vsel %vm7479, 0.0, %v7789
      %v7798 = vsel %vm7480, 0.0, %v7788
      %v7799 = vsel %vm7481, 0.0, %v7787
      %v7800 = vsel %vm7482, 0.0, %v7786
      %v7801 = vsel %vm7483, 0.0, %v7793
      %7810 = vrot.lane.b32.xlu0 %v7746, 32
      %v7811 = vpop.permute.xlu0 %7810
      %7812 = vrot.lane.b32.xlu0 %v7747, 32
      %v7813 = vpop.permute.xlu0 %7812
      %7814 = vrot.lane.b32.xlu0 %v7748, 32
      %v7815 = vpop.permute.xlu0 %7814
      %7816 = vrot.lane.b32.xlu0 %v7749, 32
      %v7817 = vpop.permute.xlu0 %7816
      %7818 = vrot.lane.b32.xlu0 %v7750, 32
      %v7819 = vpop.permute.xlu0 %7818
      %7820 = vrot.lane.b32.xlu0 %v7751, 32
      %v7821 = vpop.permute.xlu0 %7820
      %7822 = vrot.lane.b32.xlu0 %v7752, 32
      %v7823 = vpop.permute.xlu0 %7822
      %7824 = vrot.lane.b32.xlu0 %v7753, 32
      %v7825 = vpop.permute.xlu0 %7824
      %7842 = vrot.lane.b32.xlu0 %v7794, 64
      %v7843 = vpop.permute.xlu0 %7842
      %7844 = vrot.lane.b32.xlu0 %v7795, 64
      %v7845 = vpop.permute.xlu0 %7844
      %7846 = vrot.lane.b32.xlu0 %v7796, 64
      %v7847 = vpop.permute.xlu0 %7846
      %7848 = vrot.lane.b32.xlu0 %v7797, 64
      %v7849 = vpop.permute.xlu0 %7848
      %7850 = vrot.lane.b32.xlu0 %v7798, 64
      %v7851 = vpop.permute.xlu0 %7850
      %7852 = vrot.lane.b32.xlu0 %v7799, 64
      %v7853 = vpop.permute.xlu0 %7852
      %7854 = vrot.lane.b32.xlu0 %v7800, 64
      %v7855 = vpop.permute.xlu0 %7854
      %7856 = vrot.lane.b32.xlu0 %v7801, 64
      %v7857 = vpop.permute.xlu0 %7856
      %v7866 = vsel %vm1447, %v7770, %v7811
      %v7867 = vsel %vm1447, %v7771, %v7813
      %v7868 = vsel %vm1447, %v7772, %v7815
      %v7869 = vsel %vm1447, %v7773, %v7817
      %v7870 = vsel %vm1447, %v7774, %v7819
      %v7871 = vsel %vm1447, %v7775, %v7821
      %v7872 = vsel %vm1447, %v7776, %v7823
      %v7873 = vsel %vm1447, %v7777, %v7825
      %v7874 = vsel %vm1512, %v7866, %v7843
      %v7875 = vsel %vm1512, %v7867, %v7845
      %v7876 = vsel %vm1512, %v7868, %v7847
      %v7877 = vsel %vm1512, %v7869, %v7849
      %v7878 = vsel %vm1512, %v7870, %v7851
      %v7879 = vsel %vm1512, %v7871, %v7853
      %v7880 = vsel %vm1512, %v7872, %v7855
      %v7881 = vsel %vm1512, %v7873, %v7857
      %v7882 = vpack.c.bf16 %v7875, %v7874
      %v7883 = vpack.c.bf16 %v7877, %v7876
      %v7884 = vpack.c.bf16 %v7879, %v7878
      %v7885 = vpack.c.bf16 %v7881, %v7880
      %s7886 = scalar_lea.vmem %s1, 336
      %v7887 = vld [vmem:[%s7886] sm:$0xf]
      %v7888 = vld [vmem:[%s7886 + $0x4] sm:$0xf]
      %v7889 = vld [vmem:[%s7886 + $0x8] sm:$0xf]
      %v7890 = vld [vmem:[%s7886 + $0xc] sm:$0xf]
      %v7891 = vld [vmem:[%s7886 + $0x10] sm:$0xf]
      %v7892 = vld [vmem:[%s7886 + $0x14] sm:$0xf]
      %v7893 = vld [vmem:[%s7886 + $0x18] sm:$0xf]
      %v7894 = vld [vmem:[%s7886 + $0x1c] sm:$0xf]
      %v7895 = vld [vmem:[%s7886 + $0x20] sm:$0xf]
      %v7896 = vld [vmem:[%s7886 + $0x24] sm:$0xf]
      %v7897 = vld [vmem:[%s7886 + $0x28] sm:$0xf]
      %v7898 = vld [vmem:[%s7886 + $0x2c] sm:$0xf]
      %v7899 = vlaneseq
      %v7900 = vshrl.u32 %v7899, 7
      %v7901 = vsub.s32 7, %v7900
      %v7902 = vrot.slane %v226, %v7901
      %v7915 = vunpack.c.l.b16 %v7887
      %v7916 = vunpack.c.l.b16 %v7888
      %v7917 = vunpack.c.l.b16 %v7889
      %v7918 = vunpack.c.l.b16 %v7890
      %v7919 = vunpack.c.l.b16 %v7891
      %v7920 = vunpack.c.l.b16 %v7892
      %v7921 = vunpack.c.l.b16 %v7893
      %v7922 = vunpack.c.l.b16 %v7894
      %v7923 = vunpack.c.l.b16 %v7895
      %v7924 = vunpack.c.l.b16 %v7896
      %v7925 = vunpack.c.l.b16 %v7897
      %v7926 = vunpack.c.l.b16 %v7898
      %v7927 = vpack.c.b16 %v7916, %v7915
      %v7928 = vpack.c.b16 %v7918, %v7917
      %v7929 = vpack.c.b16 %v7920, %v7919
      %v7930 = vpack.c.b16 %v7922, %v7921
      %v7931 = vpack.c.b16 %v7924, %v7923
      %v7932 = vpack.c.b16 %v7926, %v7925
      %v7940 = vsel %vm1661, %v7882, 0
      %v7943 = vsel %vm1661, %v7883, 0
      %v7946 = vsel %vm1661, %v7884, 0
      %v7949 = vsel %vm1661, %v7885, 0
      %7951 = vmatprep.subr.bf16.mxu0 0
      %7952 = vmatpush1.bf16.msra.mxu0 %v7927
      %7953 = vmatprep.subr.bf16.mxu0 0
      %7954 = vmatpush1.bf16.msra.mxu0 %v7928
      %7955 = vmatprep.subr.bf16.mxu0 0
      %7956 = vmatpush1.bf16.msra.mxu0 %v7929
      %7957 = vmatprep.subr.bf16.mxu0 0
      %7958 = vmatpush1.bf16.msra.mxu0 %v7930
      %7959 = vmatprep.subr.bf16.mxu0 0
      %7960 = vmatpush1.bf16.msra.mxu0 %v7931
      %7961 = vmatprep.subr.bf16.mxu0 0
      %7962 = vmatpush1.bf16.msra.mxu0 %v7932
      %7963 = vmatprep.subr.bf16.mxu0 0
      %7964 = vmatpush1.bf16.msra.mxu0 0
      %7965 = vmatprep.subr.bf16.mxu0 0
      %7966 = vmatpush1.bf16.msra.mxu0 0
      %7967 = vmatprep.subr.bf16.mxu0 0
      %7968 = vmatpush1.bf16.msra.mxu0 0
      %7969 = vmatprep.subr.bf16.mxu0 0
      %7970 = vmatpush1.bf16.msra.mxu0 0
      %7971 = vmatprep.subr.bf16.mxu0 0
      %7972 = vmatpush1.bf16.msra.mxu0 0
      %7973 = vmatprep.subr.bf16.mxu0 0
      %7974 = vmatpush1.bf16.msra.mxu0 0
      %7975 = vmatprep.subr.bf16.mxu0 0
      %7976 = vmatpush1.bf16.msra.mxu0 0
      %7977 = vmatprep.subr.bf16.mxu0 0
      %7978 = vmatpush1.bf16.msra.mxu0 0
      %7979 = vmatprep.subr.bf16.mxu0 0
      %7980 = vmatpush1.bf16.msra.mxu0 0
      %7981 = vmatprep.subr.bf16.mxu0 0
      %7982 = vmatpush1.bf16.msra.mxu0 0
      %7983 = vmatprep.mubr.bf16.mxu0 0
      %7984 = vmatmul.mubr.bf16.gmra.mrb[0].mxu0 %v7940
      %v7985 = vpop.f32.mrb[0].mxu0
      %v7986 = vadd.f32 %v7902, %v7985
      %v7987 = vpop.f32.mrb[0].mxu0
      %v7988 = vpop.f32.mrb[0].mxu0
      %v7989 = vadd.f32 %v7902, %v7988
      %v7990 = vpop.f32.mrb[0].mxu0
      %7991 = vmatprep.mubr.bf16.mxu0 0
      %7992 = vmatmul.mubr.bf16.gmra.mrb[0].mxu0 %v7943
      %v7993 = vpop.f32.mrb[0].mxu0
      %v7994 = vadd.f32 %v7902, %v7993
      %v7995 = vpop.f32.mrb[0].mxu0
      %v7996 = vpop.f32.mrb[0].mxu0
      %v7997 = vadd.f32 %v7902, %v7996
      %v7998 = vpop.f32.mrb[0].mxu0
      %7999 = vmatprep.mubr.bf16.mxu0 0
      %8000 = vmatmul.mubr.bf16.gmra.mrb[0].mxu0 %v7946
      %v8001 = vpop.f32.mrb[0].mxu0
      %v8002 = vadd.f32 %v7902, %v8001
      %v8003 = vpop.f32.mrb[0].mxu0
      %v8004 = vpop.f32.mrb[0].mxu0
      %v8005 = vadd.f32 %v7902, %v8004
      %v8006 = vpop.f32.mrb[0].mxu0
      %8007 = vmatprep.mubr.bf16.mxu0 0
      %8008 = vmatmul.mubr.bf16.gmra.mrb[0].mxu0 %v7949
      %v8009 = vpop.f32.mrb[0].mxu0
      %v8010 = vadd.f32 %v7902, %v8009
      %v8011 = vpop.f32.mrb[0].mxu0
      %v8012 = vpop.f32.mrb[0].mxu0
      %v8013 = vadd.f32 %v7902, %v8012
      %v8014 = vpop.f32.mrb[0].mxu0
      %8015 = vdwg.mxu0
      %v8016 = vmax.f32 %v7986, 0.0
      %v8017 = vmax.f32 %v7989, 0.0
      %v8018 = vmax.f32 %v7994, 0.0
      %v8019 = vmax.f32 %v7997, 0.0
      %v8020 = vmax.f32 %v8002, 0.0
      %v8021 = vmax.f32 %v8005, 0.0
      %v8022 = vmax.f32 %v8010, 0.0
      %v8023 = vmax.f32 %v8013, 0.0
      %v8024 = vadd.f32 %v8016, %v7452
      %v8025 = vadd.f32 %v8017, %v7453
      %v8026 = vadd.f32 %v8018, %v7454
      %v8027 = vadd.f32 %v8019, %v7455
      %v8028 = vadd.f32 %v8020, %v7456
      %v8029 = vadd.f32 %v8021, %v7457
      %v8030 = vadd.f32 %v8022, %v7458
      %v8031 = vadd.f32 %v8023, %v7459
      %v8032 = vrot.slane %v8024, 7
      %v8033 = vrot.slane %v8025, 7
      %v8034 = vrot.slane %v8026, 7
      %v8035 = vrot.slane %v8027, 7
      %v8036 = vrot.slane %v8028, 7
      %v8037 = vrot.slane %v8029, 7
      %v8038 = vrot.slane %v8030, 7
      %v8039 = vrot.slane %v8031, 7
      %v8040 = vsel %vm613, %v8038, %v8039
      %v8041 = vsel %vm613, %v8037, %v8038
      %v8042 = vsel %vm613, %v8036, %v8037
      %v8043 = vsel %vm613, %v8035, %v8036
      %v8044 = vsel %vm613, %v8034, %v8035
      %v8045 = vsel %vm613, %v8033, %v8034
      %v8046 = vsel %vm613, %v8032, %v8033
      %v8047 = vsel %vm613, %v8039, %v8032
      %v8048 = vsel %vm7468, -inf, %v8047
      %v8049 = vsel %vm7469, -inf, %v8046
      %v8050 = vsel %vm7470, -inf, %v8045
      %v8051 = vsel %vm7471, -inf, %v8044
      %v8052 = vsel %vm7472, -inf, %v8043
      %v8053 = vsel %vm7473, -inf, %v8042
      %v8054 = vsel %vm7474, -inf, %v8041
      %v8055 = vsel %vm7475, -inf, %v8040
      %v8056 = vrot.slane %v8024, 1
      %v8057 = vrot.slane %v8025, 1
      %v8058 = vrot.slane %v8026, 1
      %v8059 = vrot.slane %v8027, 1
      %v8060 = vrot.slane %v8028, 1
      %v8061 = vrot.slane %v8029, 1
      %v8062 = vrot.slane %v8030, 1
      %v8063 = vrot.slane %v8031, 1
      %v8064 = vsel %vm806, %v8062, %v8063
      %v8065 = vsel %vm806, %v8061, %v8062
      %v8066 = vsel %vm806, %v8060, %v8061
      %v8067 = vsel %vm806, %v8059, %v8060
      %v8068 = vsel %vm806, %v8058, %v8059
      %v8069 = vsel %vm806, %v8057, %v8058
      %v8070 = vsel %vm806, %v8056, %v8057
      %v8071 = vsel %vm806, %v8063, %v8056
      %v8072 = vmax.f32 %v8048, %v8024
      %v8073 = vmax.f32 %v8049, %v8025
      %v8074 = vmax.f32 %v8050, %v8026
      %v8075 = vmax.f32 %v8051, %v8027
      %v8076 = vmax.f32 %v8052, %v8028
      %v8077 = vmax.f32 %v8053, %v8029
      %v8078 = vmax.f32 %v8054, %v8030
      %v8079 = vmax.f32 %v8055, %v8031
      %v8080 = vmax.f32 %v8072, %v8070
      %v8081 = vmax.f32 %v8073, %v8069
      %v8082 = vmax.f32 %v8074, %v8068
      %v8083 = vmax.f32 %v8075, %v8067
      %v8084 = vmax.f32 %v8076, %v8066
      %v8085 = vmax.f32 %v8077, %v8065
      %v8086 = vmax.f32 %v8078, %v8064
      %v8087 = vmax.f32 %v8079, %v8071
      %8088 = vst.msk [vmem:[#allocation2] sm:$0xff] %vm1447, %v8080
      %8089 = vst.msk [vmem:[#allocation2 + $0x8] sm:$0xff] %vm1447, %v8081
      %8090 = vst.msk [vmem:[#allocation2 + $0x10] sm:$0xff] %vm1447, %v8082
      %8091 = vst.msk [vmem:[#allocation2 + $0x18] sm:$0xff] %vm1447, %v8083
      %8092 = vst.msk [vmem:[#allocation2 + $0x20] sm:$0xff] %vm1447, %v8084
      %8093 = vst.msk [vmem:[#allocation2 + $0x28] sm:$0xff] %vm1447, %v8085
      %8094 = vst.msk [vmem:[#allocation2 + $0x30] sm:$0xff] %vm1447, %v8086
      %8095 = vst.msk [vmem:[#allocation2 + $0x38] sm:$0xff] %vm1447, %v8087
      %v8096 = vld [vmem:[#allocation2] ss:$2 sm:$0xff]
      %v8097 = vld [vmem:[%s4246] ss:$2 sm:$0xff]
      %v8098 = vld [vmem:[%s4248] ss:$2 sm:$0xff]
      %v8099 = vld [vmem:[%s4250] ss:$2 sm:$0xff]
      %v8100 = vand.u32 %v293, 7
      %v8101 = vand.u32 %v294, 7
      %v8102 = vand.u32 %v295, 7
      %v8103 = vand.u32 %v296, 7
      %vm8104 = vcmp.eq.s32.totalorder %v8100, 0
      %vm8105 = vcmp.eq.s32.totalorder %v8101, 0
      %vm8106 = vcmp.eq.s32.totalorder %v8102, 0
      %vm8107 = vcmp.eq.s32.totalorder %v8103, 0
      %vm8108 = vcmp.eq.s32.totalorder %v8100, 7
      %vm8109 = vcmp.eq.s32.totalorder %v8101, 7
      %vm8110 = vcmp.eq.s32.totalorder %v8102, 7
      %vm8111 = vcmp.eq.s32.totalorder %v8103, 7
      %v8112 = vrot.slane %v8096, 7
      %v8113 = vrot.slane %v8097, 7
      %v8114 = vrot.slane %v8098, 7
      %v8115 = vrot.slane %v8099, 7
      %v8116 = vsel %vm613, %v8114, %v8115
      %v8117 = vsel %vm613, %v8113, %v8114
      %v8118 = vsel %vm613, %v8112, %v8113
      %v8119 = vsel %vm613, %v8115, %v8112
      %v8120 = vsel %vm8104, 0.0, %v8119
      %v8121 = vsel %vm8105, 0.0, %v8118
      %v8122 = vsel %vm8106, 0.0, %v8117
      %v8123 = vsel %vm8107, 0.0, %v8116
      %v8124 = vrot.slane %v8096, 1
      %v8125 = vrot.slane %v8097, 1
      %v8126 = vrot.slane %v8098, 1
      %v8127 = vrot.slane %v8099, 1
      %v8128 = vsel %vm806, %v8126, %v8127
      %v8129 = vsel %vm806, %v8125, %v8126
      %v8130 = vsel %vm806, %v8124, %v8125
      %v8131 = vsel %vm806, %v8127, %v8124
      %v8132 = vsel %vm8108, 0.0, %v8130
      %v8133 = vsel %vm8109, 0.0, %v8129
      %v8134 = vsel %vm8110, 0.0, %v8128
      %v8135 = vsel %vm8111, 0.0, %v8131
      %8140 = vrot.lane.b32.xlu0 %v8096, 32
      %v8141 = vpop.permute.xlu0 %8140
      %8142 = vrot.lane.b32.xlu0 %v8097, 32
      %v8143 = vpop.permute.xlu0 %8142
      %8144 = vrot.lane.b32.xlu0 %v8098, 32
      %v8145 = vpop.permute.xlu0 %8144
      %8146 = vrot.lane.b32.xlu0 %v8099, 32
      %v8147 = vpop.permute.xlu0 %8146
      %8156 = vrot.lane.b32.xlu0 %v8132, 64
      %v8157 = vpop.permute.xlu0 %8156
      %8158 = vrot.lane.b32.xlu0 %v8133, 64
      %v8159 = vpop.permute.xlu0 %8158
      %8160 = vrot.lane.b32.xlu0 %v8134, 64
      %v8161 = vpop.permute.xlu0 %8160
      %8162 = vrot.lane.b32.xlu0 %v8135, 64
      %v8163 = vpop.permute.xlu0 %8162
      %v8168 = vsel %vm1447, %v8120, %v8141
      %v8169 = vsel %vm1447, %v8121, %v8143
      %v8170 = vsel %vm1447, %v8122, %v8145
      %v8171 = vsel %vm1447, %v8123, %v8147
      %v8172 = vsel %vm1512, %v8168, %v8157
      %v8173 = vsel %vm1512, %v8169, %v8159
      %v8174 = vsel %vm1512, %v8170, %v8161
      %v8175 = vsel %vm1512, %v8171, %v8163
      %v8176 = vpack.c.bf16 %v8173, %v8172
      %v8177 = vpack.c.bf16 %v8175, %v8174
      %s8178 = scalar_lea.vmem %s1, 384
      %v8179 = vld [vmem:[%s8178] sm:$0xf]
      %v8180 = vld [vmem:[%s8178 + $0x4] sm:$0xf]
      %v8181 = vld [vmem:[%s8178 + $0x8] sm:$0xf]
      %v8182 = vld [vmem:[%s8178 + $0xc] sm:$0xf]
      %v8183 = vld [vmem:[%s8178 + $0x10] sm:$0xf]
      %v8184 = vld [vmem:[%s8178 + $0x14] sm:$0xf]
      %v8185 = vld [vmem:[%s8178 + $0x18] sm:$0xf]
      %v8186 = vld [vmem:[%s8178 + $0x1c] sm:$0xf]
      %v8187 = vld [vmem:[%s8178 + $0x20] sm:$0xf]
      %v8188 = vld [vmem:[%s8178 + $0x24] sm:$0xf]
      %v8189 = vld [vmem:[%s8178 + $0x28] sm:$0xf]
      %v8190 = vld [vmem:[%s8178 + $0x2c] sm:$0xf]
      %v8191 = vlaneseq
      %v8192 = vshrl.u32 %v8191, 7
      %v8193 = vsub.s32 0, %v8192
      %v8194 = vrot.slane %v227, %v8193
      %v8207 = vunpack.c.l.b16 %v8179
      %v8208 = vunpack.c.l.b16 %v8180
      %v8209 = vunpack.c.l.b16 %v8181
      %v8210 = vunpack.c.l.b16 %v8182
      %v8211 = vunpack.c.l.b16 %v8183
      %v8212 = vunpack.c.l.b16 %v8184
      %v8213 = vunpack.c.l.b16 %v8185
      %v8214 = vunpack.c.l.b16 %v8186
      %v8215 = vunpack.c.l.b16 %v8187
      %v8216 = vunpack.c.l.b16 %v8188
      %v8217 = vunpack.c.l.b16 %v8189
      %v8218 = vunpack.c.l.b16 %v8190
      %v8219 = vpack.c.b16 %v8208, %v8207
      %v8220 = vpack.c.b16 %v8210, %v8209
      %v8221 = vpack.c.b16 %v8212, %v8211
      %v8222 = vpack.c.b16 %v8214, %v8213
      %v8223 = vpack.c.b16 %v8216, %v8215
      %v8224 = vpack.c.b16 %v8218, %v8217
      %v8232 = vsel %vm1661, %v8176, 0
      %v8235 = vsel %vm1661, %v8177, 0
      %8237 = vmatprep.subr.bf16.mxu0 0
      %8238 = vmatpush1.bf16.msra.mxu0 %v8219
      %8239 = vmatprep.subr.bf16.mxu0 0
      %8240 = vmatpush1.bf16.msra.mxu0 %v8220
      %8241 = vmatprep.subr.bf16.mxu0 0
      %8242 = vmatpush1.bf16.msra.mxu0 %v8221
      %8243 = vmatprep.subr.bf16.mxu0 0
      %8244 = vmatpush1.bf16.msra.mxu0 %v8222
      %8245 = vmatprep.subr.bf16.mxu0 0
      %8246 = vmatpush1.bf16.msra.mxu0 %v8223
      %8247 = vmatprep.subr.bf16.mxu0 0
      %8248 = vmatpush1.bf16.msra.mxu0 %v8224
      %8249 = vmatprep.subr.bf16.mxu0 0
      %8250 = vmatpush1.bf16.msra.mxu0 0
      %8251 = vmatprep.subr.bf16.mxu0 0
      %8252 = vmatpush1.bf16.msra.mxu0 0
      %8253 = vmatprep.subr.bf16.mxu0 0
      %8254 = vmatpush1.bf16.msra.mxu0 0
      %8255 = vmatprep.subr.bf16.mxu0 0
      %8256 = vmatpush1.bf16.msra.mxu0 0
      %8257 = vmatprep.subr.bf16.mxu0 0
      %8258 = vmatpush1.bf16.msra.mxu0 0
      %8259 = vmatprep.subr.bf16.mxu0 0
      %8260 = vmatpush1.bf16.msra.mxu0 0
      %8261 = vmatprep.subr.bf16.mxu0 0
      %8262 = vmatpush1.bf16.msra.mxu0 0
      %8263 = vmatprep.subr.bf16.mxu0 0
      %8264 = vmatpush1.bf16.msra.mxu0 0
      %8265 = vmatprep.subr.bf16.mxu0 0
      %8266 = vmatpush1.bf16.msra.mxu0 0
      %8267 = vmatprep.subr.bf16.mxu0 0
      %8268 = vmatpush1.bf16.msra.mxu0 0
      %8269 = vmatprep.mubr.bf16.mxu0 0
      %8270 = vmatmul.mubr.bf16.gmra.mrb[0].mxu0 %v8232
      %v8271 = vpop.f32.mrb[0].mxu0
      %v8272 = vadd.f32 %v8194, %v8271
      %v8273 = vpop.f32.mrb[0].mxu0
      %v8274 = vpop.f32.mrb[0].mxu0
      %v8275 = vadd.f32 %v8194, %v8274
      %v8276 = vpop.f32.mrb[0].mxu0
      %8277 = vmatprep.mubr.bf16.mxu0 0
      %8278 = vmatmul.mubr.bf16.gmra.mrb[0].mxu0 %v8235
      %v8279 = vpop.f32.mrb[0].mxu0
      %v8280 = vadd.f32 %v8194, %v8279
      %v8281 = vpop.f32.mrb[0].mxu0
      %v8282 = vpop.f32.mrb[0].mxu0
      %v8283 = vadd.f32 %v8194, %v8282
      %v8284 = vpop.f32.mrb[0].mxu0
      %8285 = vdwg.mxu0
      %v8286 = vmax.f32 %v8272, 0.0
      %v8287 = vmax.f32 %v8275, 0.0
      %v8288 = vmax.f32 %v8280, 0.0
      %v8289 = vmax.f32 %v8283, 0.0
      %v8290 = vrot.slane %v8286, 7
      %v8291 = vrot.slane %v8287, 7
      %v8292 = vrot.slane %v8288, 7
      %v8293 = vrot.slane %v8289, 7
      %v8294 = vsel %vm613, %v8292, %v8293
      %v8295 = vsel %vm613, %v8291, %v8292
      %v8296 = vsel %vm613, %v8290, %v8291
      %v8297 = vsel %vm613, %v8293, %v8290
      %v8298 = vsel %vm8104, 0.0, %v8297
      %v8299 = vsel %vm8105, 0.0, %v8296
      %v8300 = vsel %vm8106, 0.0, %v8295
      %v8301 = vsel %vm8107, 0.0, %v8294
      %v8302 = vrot.slane %v8286, 1
      %v8303 = vrot.slane %v8287, 1
      %v8304 = vrot.slane %v8288, 1
      %v8305 = vrot.slane %v8289, 1
      %v8306 = vsel %vm806, %v8304, %v8305
      %v8307 = vsel %vm806, %v8303, %v8304
      %v8308 = vsel %vm806, %v8302, %v8303
      %v8309 = vsel %vm806, %v8305, %v8302
      %v8310 = vsel %vm8108, 0.0, %v8308
      %v8311 = vsel %vm8109, 0.0, %v8307
      %v8312 = vsel %vm8110, 0.0, %v8306
      %v8313 = vsel %vm8111, 0.0, %v8309
      %8318 = vrot.lane.b32.xlu0 %v8286, 32
      %v8319 = vpop.permute.xlu0 %8318
      %8320 = vrot.lane.b32.xlu0 %v8287, 32
      %v8321 = vpop.permute.xlu0 %8320
      %8322 = vrot.lane.b32.xlu0 %v8288, 32
      %v8323 = vpop.permute.xlu0 %8322
      %8324 = vrot.lane.b32.xlu0 %v8289, 32
      %v8325 = vpop.permute.xlu0 %8324
      %8334 = vrot.lane.b32.xlu0 %v8310, 64
      %v8335 = vpop.permute.xlu0 %8334
      %8336 = vrot.lane.b32.xlu0 %v8311, 64
      %v8337 = vpop.permute.xlu0 %8336
      %8338 = vrot.lane.b32.xlu0 %v8312, 64
      %v8339 = vpop.permute.xlu0 %8338
      %8340 = vrot.lane.b32.xlu0 %v8313, 64
      %v8341 = vpop.permute.xlu0 %8340
      %v8346 = vsel %vm1447, %v8298, %v8319
      %v8347 = vsel %vm1447, %v8299, %v8321
      %v8348 = vsel %vm1447, %v8300, %v8323
      %v8349 = vsel %vm1447, %v8301, %v8325
      %v8350 = vsel %vm1512, %v8346, %v8335
      %v8351 = vsel %vm1512, %v8347, %v8337
      %v8352 = vsel %vm1512, %v8348, %v8339
      %v8353 = vsel %vm1512, %v8349, %v8341
      %v8354 = vpack.c.bf16 %v8351, %v8350
      %v8355 = vpack.c.bf16 %v8353, %v8352
      %s8356 = scalar_lea.vmem %s1, 432
      %v8357 = vld [vmem:[%s8356] sm:$0xf]
      %v8358 = vld [vmem:[%s8356 + $0x4] sm:$0xf]
      %v8359 = vld [vmem:[%s8356 + $0x8] sm:$0xf]
      %v8360 = vld [vmem:[%s8356 + $0xc] sm:$0xf]
      %v8361 = vld [vmem:[%s8356 + $0x10] sm:$0xf]
      %v8362 = vld [vmem:[%s8356 + $0x14] sm:$0xf]
      %v8363 = vld [vmem:[%s8356 + $0x18] sm:$0xf]
      %v8364 = vld [vmem:[%s8356 + $0x1c] sm:$0xf]
      %v8365 = vld [vmem:[%s8356 + $0x20] sm:$0xf]
      %v8366 = vld [vmem:[%s8356 + $0x24] sm:$0xf]
      %v8367 = vld [vmem:[%s8356 + $0x28] sm:$0xf]
      %v8368 = vld [vmem:[%s8356 + $0x2c] sm:$0xf]
      %v8369 = vlaneseq
      %v8370 = vshrl.u32 %v8369, 7
      %v8371 = vsub.s32 1, %v8370
      %v8372 = vrot.slane %v227, %v8371
      %v8385 = vunpack.c.l.b16 %v8357
      %v8386 = vunpack.c.l.b16 %v8358
      %v8387 = vunpack.c.l.b16 %v8359
      %v8388 = vunpack.c.l.b16 %v8360
      %v8389 = vunpack.c.l.b16 %v8361
      %v8390 = vunpack.c.l.b16 %v8362
      %v8391 = vunpack.c.l.b16 %v8363
      %v8392 = vunpack.c.l.b16 %v8364
      %v8393 = vunpack.c.l.b16 %v8365
      %v8394 = vunpack.c.l.b16 %v8366
      %v8395 = vunpack.c.l.b16 %v8367
      %v8396 = vunpack.c.l.b16 %v8368
      %v8397 = vpack.c.b16 %v8386, %v8385
      %v8398 = vpack.c.b16 %v8388, %v8387
      %v8399 = vpack.c.b16 %v8390, %v8389
      %v8400 = vpack.c.b16 %v8392, %v8391
      %v8401 = vpack.c.b16 %v8394, %v8393
      %v8402 = vpack.c.b16 %v8396, %v8395
      %v8410 = vsel %vm1661, %v8354, 0
      %v8413 = vsel %vm1661, %v8355, 0
      %8415 = vmatprep.subr.bf16.mxu0 0
      %8416 = vmatpush1.bf16.msra.mxu0 %v8397
      %8417 = vmatprep.subr.bf16.mxu0 0
      %8418 = vmatpush1.bf16.msra.mxu0 %v8398
      %8419 = vmatprep.subr.bf16.mxu0 0
      %8420 = vmatpush1.bf16.msra.mxu0 %v8399
      %8421 = vmatprep.subr.bf16.mxu0 0
      %8422 = vmatpush1.bf16.msra.mxu0 %v8400
      %8423 = vmatprep.subr.bf16.mxu0 0
      %8424 = vmatpush1.bf16.msra.mxu0 %v8401
      %8425 = vmatprep.subr.bf16.mxu0 0
      %8426 = vmatpush1.bf16.msra.mxu0 %v8402
      %8427 = vmatprep.subr.bf16.mxu0 0
      %8428 = vmatpush1.bf16.msra.mxu0 0
      %8429 = vmatprep.subr.bf16.mxu0 0
      %8430 = vmatpush1.bf16.msra.mxu0 0
      %8431 = vmatprep.subr.bf16.mxu0 0
      %8432 = vmatpush1.bf16.msra.mxu0 0
      %8433 = vmatprep.subr.bf16.mxu0 0
      %8434 = vmatpush1.bf16.msra.mxu0 0
      %8435 = vmatprep.subr.bf16.mxu0 0
      %8436 = vmatpush1.bf16.msra.mxu0 0
      %8437 = vmatprep.subr.bf16.mxu0 0
      %8438 = vmatpush1.bf16.msra.mxu0 0
      %8439 = vmatprep.subr.bf16.mxu0 0
      %8440 = vmatpush1.bf16.msra.mxu0 0
      %8441 = vmatprep.subr.bf16.mxu0 0
      %8442 = vmatpush1.bf16.msra.mxu0 0
      %8443 = vmatprep.subr.bf16.mxu0 0
      %8444 = vmatpush1.bf16.msra.mxu0 0
      %8445 = vmatprep.subr.bf16.mxu0 0
      %8446 = vmatpush1.bf16.msra.mxu0 0
      %8447 = vmatprep.mubr.bf16.mxu0 0
      %8448 = vmatmul.mubr.bf16.gmra.mrb[0].mxu0 %v8410
      %v8449 = vpop.f32.mrb[0].mxu0
      %v8450 = vadd.f32 %v8372, %v8449
      %v8451 = vpop.f32.mrb[0].mxu0
      %v8452 = vpop.f32.mrb[0].mxu0
      %v8453 = vadd.f32 %v8372, %v8452
      %v8454 = vpop.f32.mrb[0].mxu0
      %8455 = vmatprep.mubr.bf16.mxu0 0
      %8456 = vmatmul.mubr.bf16.gmra.mrb[0].mxu0 %v8413
      %v8457 = vpop.f32.mrb[0].mxu0
      %v8458 = vadd.f32 %v8372, %v8457
      %v8459 = vpop.f32.mrb[0].mxu0
      %v8460 = vpop.f32.mrb[0].mxu0
      %v8461 = vadd.f32 %v8372, %v8460
      %v8462 = vpop.f32.mrb[0].mxu0
      %8463 = vdwg.mxu0
      %v8464 = vmax.f32 %v8450, 0.0
      %v8465 = vmax.f32 %v8453, 0.0
      %v8466 = vmax.f32 %v8458, 0.0
      %v8467 = vmax.f32 %v8461, 0.0
      %v8468 = vadd.f32 %v8464, %v8096
      %v8469 = vadd.f32 %v8465, %v8097
      %v8470 = vadd.f32 %v8466, %v8098
      %v8471 = vadd.f32 %v8467, %v8099
      %v8472 = vrot.slane %v8468, 7
      %v8473 = vrot.slane %v8469, 7
      %v8474 = vrot.slane %v8470, 7
      %v8475 = vrot.slane %v8471, 7
      %v8476 = vsel %vm613, %v8474, %v8475
      %v8477 = vsel %vm613, %v8473, %v8474
      %v8478 = vsel %vm613, %v8472, %v8473
      %v8479 = vsel %vm613, %v8475, %v8472
      %v8480 = vsel %vm8104, -inf, %v8479
      %v8481 = vsel %vm8105, -inf, %v8478
      %v8482 = vsel %vm8106, -inf, %v8477
      %v8483 = vsel %vm8107, -inf, %v8476
      %v8484 = vrot.slane %v8468, 1
      %v8485 = vrot.slane %v8469, 1
      %v8486 = vrot.slane %v8470, 1
      %v8487 = vrot.slane %v8471, 1
      %v8488 = vsel %vm806, %v8486, %v8487
      %v8489 = vsel %vm806, %v8485, %v8486
      %v8490 = vsel %vm806, %v8484, %v8485
      %v8491 = vsel %vm806, %v8487, %v8484
      %v8492 = vmax.f32 %v8480, %v8468
      %v8493 = vmax.f32 %v8481, %v8469
      %v8494 = vmax.f32 %v8482, %v8470
      %v8495 = vmax.f32 %v8483, %v8471
      %v8496 = vmax.f32 %v8492, %v8490
      %v8497 = vmax.f32 %v8493, %v8489
      %v8498 = vmax.f32 %v8494, %v8488
      %v8499 = vmax.f32 %v8495, %v8491
      %8500 = vst.msk [vmem:[#allocation2] sm:$0xff] %vm1447, %v8496
      %8501 = vst.msk [vmem:[#allocation2 + $0x8] sm:$0xff] %vm1447, %v8497
      %8502 = vst.msk [vmem:[#allocation2 + $0x10] sm:$0xff] %vm1447, %v8498
      %8503 = vst.msk [vmem:[#allocation2 + $0x18] sm:$0xff] %vm1447, %v8499
      %v8504 = vld [vmem:[#allocation2] ss:$2 sm:$0xff]
      %v8505 = vld [vmem:[%s4246] ss:$2 sm:$0xff]
      %v8506 = vand.u32 %v293, 3
      %v8507 = vand.u32 %v294, 3
      %vm8508 = vcmp.eq.s32.totalorder %v8506, 0
      %vm8509 = vcmp.eq.s32.totalorder %v8507, 0
      %vm8510 = vcmp.eq.s32.totalorder %v8506, 3
      %vm8511 = vcmp.eq.s32.totalorder %v8507, 3
      %v8512 = vrot.slane %v8504, 7
      %v8513 = vrot.slane %v8505, 7
      %v8514 = vsel %vm613, %v8512, %v8513
      %v8515 = vsel %vm613, %v8513, %v8512
      %v8516 = vsel %vm8508, 0.0, %v8515
      %v8517 = vsel %vm8509, 0.0, %v8514
      %v8518 = vrot.slane %v8504, 1
      %v8519 = vrot.slane %v8505, 1
      %v8520 = vsel %vm806, %v8518, %v8519
      %v8521 = vsel %vm806, %v8519, %v8518
      %v8522 = vsel %vm8510, 0.0, %v8520
      %v8523 = vsel %vm8511, 0.0, %v8521
      %8526 = vrot.lane.b32.xlu0 %v8504, 32
      %v8527 = vpop.permute.xlu0 %8526
      %8528 = vrot.lane.b32.xlu0 %v8505, 32
      %v8529 = vpop.permute.xlu0 %8528
      %8534 = vrot.lane.b32.xlu0 %v8522, 64
      %v8535 = vpop.permute.xlu0 %8534
      %8536 = vrot.lane.b32.xlu0 %v8523, 64
      %v8537 = vpop.permute.xlu0 %8536
      %v8540 = vsel %vm1447, %v8516, %v8527
      %v8541 = vsel %vm1447, %v8517, %v8529
      %v8542 = vsel %vm1512, %v8540, %v8535
      %v8543 = vsel %vm1512, %v8541, %v8537
      %v8544 = vpack.c.bf16 %v8543, %v8542
      %s8545 = scalar_lea.vmem %s1, 480
      %v8546 = vld [vmem:[%s8545] sm:$0xf]
      %v8547 = vld [vmem:[%s8545 + $0x4] sm:$0xf]
      %v8548 = vld [vmem:[%s8545 + $0x8] sm:$0xf]
      %v8549 = vld [vmem:[%s8545 + $0xc] sm:$0xf]
      %v8550 = vld [vmem:[%s8545 + $0x10] sm:$0xf]
      %v8551 = vld [vmem:[%s8545 + $0x14] sm:$0xf]
      %v8552 = vld [vmem:[%s8545 + $0x18] sm:$0xf]
      %v8553 = vld [vmem:[%s8545 + $0x1c] sm:$0xf]
      %v8554 = vld [vmem:[%s8545 + $0x20] sm:$0xf]
      %v8555 = vld [vmem:[%s8545 + $0x24] sm:$0xf]
      %v8556 = vld [vmem:[%s8545 + $0x28] sm:$0xf]
      %v8557 = vld [vmem:[%s8545 + $0x2c] sm:$0xf]
      %v8558 = vlaneseq
      %v8559 = vshrl.u32 %v8558, 7
      %v8560 = vsub.s32 2, %v8559
      %v8561 = vrot.slane %v227, %v8560
      %v8574 = vunpack.c.l.b16 %v8546
      %v8575 = vunpack.c.l.b16 %v8547
      %v8576 = vunpack.c.l.b16 %v8548
      %v8577 = vunpack.c.l.b16 %v8549
      %v8578 = vunpack.c.l.b16 %v8550
      %v8579 = vunpack.c.l.b16 %v8551
      %v8580 = vunpack.c.l.b16 %v8552
      %v8581 = vunpack.c.l.b16 %v8553
      %v8582 = vunpack.c.l.b16 %v8554
      %v8583 = vunpack.c.l.b16 %v8555
      %v8584 = vunpack.c.l.b16 %v8556
      %v8585 = vunpack.c.l.b16 %v8557
      %v8586 = vpack.c.b16 %v8575, %v8574
      %v8587 = vpack.c.b16 %v8577, %v8576
      %v8588 = vpack.c.b16 %v8579, %v8578
      %v8589 = vpack.c.b16 %v8581, %v8580
      %v8590 = vpack.c.b16 %v8583, %v8582
      %v8591 = vpack.c.b16 %v8585, %v8584
      %v8599 = vsel %vm1661, %v8544, 0
      %8601 = vmatprep.subr.bf16.mxu0 0
      %8602 = vmatpush1.bf16.msra.mxu0 %v8586
      %8603 = vmatprep.subr.bf16.mxu0 0
      %8604 = vmatpush1.bf16.msra.mxu0 %v8587
      %8605 = vmatprep.subr.bf16.mxu0 0
      %8606 = vmatpush1.bf16.msra.mxu0 %v8588
      %8607 = vmatprep.subr.bf16.mxu0 0
      %8608 = vmatpush1.bf16.msra.mxu0 %v8589
      %8609 = vmatprep.subr.bf16.mxu0 0
      %8610 = vmatpush1.bf16.msra.mxu0 %v8590
      %8611 = vmatprep.subr.bf16.mxu0 0
      %8612 = vmatpush1.bf16.msra.mxu0 %v8591
      %8613 = vmatprep.subr.bf16.mxu0 0
      %8614 = vmatpush1.bf16.msra.mxu0 0
      %8615 = vmatprep.subr.bf16.mxu0 0
      %8616 = vmatpush1.bf16.msra.mxu0 0
      %8617 = vmatprep.subr.bf16.mxu0 0
      %8618 = vmatpush1.bf16.msra.mxu0 0
      %8619 = vmatprep.subr.bf16.mxu0 0
      %8620 = vmatpush1.bf16.msra.mxu0 0
      %8621 = vmatprep.subr.bf16.mxu0 0
      %8622 = vmatpush1.bf16.msra.mxu0 0
      %8623 = vmatprep.subr.bf16.mxu0 0
      %8624 = vmatpush1.bf16.msra.mxu0 0
      %8625 = vmatprep.subr.bf16.mxu0 0
      %8626 = vmatpush1.bf16.msra.mxu0 0
      %8627 = vmatprep.subr.bf16.mxu0 0
      %8628 = vmatpush1.bf16.msra.mxu0 0
      %8629 = vmatprep.subr.bf16.mxu0 0
      %8630 = vmatpush1.bf16.msra.mxu0 0
      %8631 = vmatprep.subr.bf16.mxu0 0
      %8632 = vmatpush1.bf16.msra.mxu0 0
      %8633 = vmatprep.mubr.bf16.mxu0 0
      %8634 = vmatmul.mubr.bf16.gmra.mrb[0].mxu0 %v8599
      %v8635 = vpop.f32.mrb[0].mxu0
      %v8636 = vadd.f32 %v8561, %v8635
      %v8637 = vpop.f32.mrb[0].mxu0
      %v8638 = vpop.f32.mrb[0].mxu0
      %v8639 = vadd.f32 %v8561, %v8638
      %v8640 = vpop.f32.mrb[0].mxu0
      %8641 = vdwg.mxu0
      %v8642 = vmax.f32 %v8636, 0.0
      %v8643 = vmax.f32 %v8639, 0.0
      %v8644 = vrot.slane %v8642, 7
      %v8645 = vrot.slane %v8643, 7
      %v8646 = vsel %vm613, %v8644, %v8645
      %v8647 = vsel %vm613, %v8645, %v8644
      %v8648 = vsel %vm8508, 0.0, %v8647
      %v8649 = vsel %vm8509, 0.0, %v8646
      %v8650 = vrot.slane %v8642, 1
      %v8651 = vrot.slane %v8643, 1
      %v8652 = vsel %vm806, %v8650, %v8651
      %v8653 = vsel %vm806, %v8651, %v8650
      %v8654 = vsel %vm8510, 0.0, %v8652
      %v8655 = vsel %vm8511, 0.0, %v8653
      %8658 = vrot.lane.b32.xlu0 %v8642, 32
      %v8659 = vpop.permute.xlu0 %8658
      %8660 = vrot.lane.b32.xlu0 %v8643, 32
      %v8661 = vpop.permute.xlu0 %8660
      %8666 = vrot.lane.b32.xlu0 %v8654, 64
      %v8667 = vpop.permute.xlu0 %8666
      %8668 = vrot.lane.b32.xlu0 %v8655, 64
      %v8669 = vpop.permute.xlu0 %8668
      %v8672 = vsel %vm1447, %v8648, %v8659
      %v8673 = vsel %vm1447, %v8649, %v8661
      %v8674 = vsel %vm1512, %v8672, %v8667
      %v8675 = vsel %vm1512, %v8673, %v8669
      %v8676 = vpack.c.bf16 %v8675, %v8674
      %s8677 = scalar_lea.vmem %s1, 528
      %v8678 = vld [vmem:[%s8677] sm:$0xf]
      %v8679 = vld [vmem:[%s8677 + $0x4] sm:$0xf]
      %v8680 = vld [vmem:[%s8677 + $0x8] sm:$0xf]
      %v8681 = vld [vmem:[%s8677 + $0xc] sm:$0xf]
      %v8682 = vld [vmem:[%s8677 + $0x10] sm:$0xf]
      %v8683 = vld [vmem:[%s8677 + $0x14] sm:$0xf]
      %v8684 = vld [vmem:[%s8677 + $0x18] sm:$0xf]
      %v8685 = vld [vmem:[%s8677 + $0x1c] sm:$0xf]
      %v8686 = vld [vmem:[%s8677 + $0x20] sm:$0xf]
      %v8687 = vld [vmem:[%s8677 + $0x24] sm:$0xf]
      %v8688 = vld [vmem:[%s8677 + $0x28] sm:$0xf]
      %v8689 = vld [vmem:[%s8677 + $0x2c] sm:$0xf]
      %v8690 = vlaneseq
      %v8691 = vshrl.u32 %v8690, 7
      %v8692 = vsub.s32 3, %v8691
      %v8693 = vrot.slane %v227, %v8692
      %v8706 = vunpack.c.l.b16 %v8678
      %v8707 = vunpack.c.l.b16 %v8679
      %v8708 = vunpack.c.l.b16 %v8680
      %v8709 = vunpack.c.l.b16 %v8681
      %v8710 = vunpack.c.l.b16 %v8682
      %v8711 = vunpack.c.l.b16 %v8683
      %v8712 = vunpack.c.l.b16 %v8684
      %v8713 = vunpack.c.l.b16 %v8685
      %v8714 = vunpack.c.l.b16 %v8686
      %v8715 = vunpack.c.l.b16 %v8687
      %v8716 = vunpack.c.l.b16 %v8688
      %v8717 = vunpack.c.l.b16 %v8689
      %v8718 = vpack.c.b16 %v8707, %v8706
      %v8719 = vpack.c.b16 %v8709, %v8708
      %v8720 = vpack.c.b16 %v8711, %v8710
      %v8721 = vpack.c.b16 %v8713, %v8712
      %v8722 = vpack.c.b16 %v8715, %v8714
      %v8723 = vpack.c.b16 %v8717, %v8716
      %v8731 = vsel %vm1661, %v8676, 0
      %8733 = vmatprep.subr.bf16.mxu0 0
      %8734 = vmatpush1.bf16.msra.mxu0 %v8718
      %8735 = vmatprep.subr.bf16.mxu0 0
      %8736 = vmatpush1.bf16.msra.mxu0 %v8719
      %8737 = vmatprep.subr.bf16.mxu0 0
      %8738 = vmatpush1.bf16.msra.mxu0 %v8720
      %8739 = vmatprep.subr.bf16.mxu0 0
      %8740 = vmatpush1.bf16.msra.mxu0 %v8721
      %8741 = vmatprep.subr.bf16.mxu0 0
      %8742 = vmatpush1.bf16.msra.mxu0 %v8722
      %8743 = vmatprep.subr.bf16.mxu0 0
      %8744 = vmatpush1.bf16.msra.mxu0 %v8723
      %8745 = vmatprep.subr.bf16.mxu0 0
      %8746 = vmatpush1.bf16.msra.mxu0 0
      %8747 = vmatprep.subr.bf16.mxu0 0
      %8748 = vmatpush1.bf16.msra.mxu0 0
      %8749 = vmatprep.subr.bf16.mxu0 0
      %8750 = vmatpush1.bf16.msra.mxu0 0
      %8751 = vmatprep.subr.bf16.mxu0 0
      %8752 = vmatpush1.bf16.msra.mxu0 0
      %8753 = vmatprep.subr.bf16.mxu0 0
      %8754 = vmatpush1.bf16.msra.mxu0 0
      %8755 = vmatprep.subr.bf16.mxu0 0
      %8756 = vmatpush1.bf16.msra.mxu0 0
      %8757 = vmatprep.subr.bf16.mxu0 0
      %8758 = vmatpush1.bf16.msra.mxu0 0
      %8759 = vmatprep.subr.bf16.mxu0 0
      %8760 = vmatpush1.bf16.msra.mxu0 0
      %8761 = vmatprep.subr.bf16.mxu0 0
      %8762 = vmatpush1.bf16.msra.mxu0 0
      %8763 = vmatprep.subr.bf16.mxu0 0
      %8764 = vmatpush1.bf16.msra.mxu0 0
      %8765 = vmatprep.mubr.bf16.mxu0 0
      %8766 = vmatmul.mubr.bf16.gmra.mrb[0].mxu0 %v8731
      %v8767 = vpop.f32.mrb[0].mxu0
      %v8768 = vadd.f32 %v8693, %v8767
      %v8769 = vpop.f32.mrb[0].mxu0
      %v8770 = vpop.f32.mrb[0].mxu0
      %v8771 = vadd.f32 %v8693, %v8770
      %v8772 = vpop.f32.mrb[0].mxu0
      %8773 = vdwg.mxu0
      %v8774 = vmax.f32 %v8768, 0.0
      %v8775 = vmax.f32 %v8771, 0.0
      %v8776 = vadd.f32 %v8774, %v8504
      %v8777 = vadd.f32 %v8775, %v8505
      %v8778 = vrot.slane %v8776, 7
      %v8779 = vrot.slane %v8777, 7
      %v8780 = vsel %vm613, %v8778, %v8779
      %v8781 = vsel %vm613, %v8779, %v8778
      %v8782 = vsel %vm8508, -inf, %v8781
      %v8783 = vsel %vm8509, -inf, %v8780
      %v8784 = vrot.slane %v8776, 1
      %v8785 = vrot.slane %v8777, 1
      %v8786 = vsel %vm806, %v8784, %v8785
      %v8787 = vsel %vm806, %v8785, %v8784
      %v8788 = vmax.f32 %v8782, %v8776
      %v8789 = vmax.f32 %v8783, %v8777
      %v8790 = vmax.f32 %v8788, %v8786
      %v8791 = vmax.f32 %v8789, %v8787
      %8792 = vst.msk [vmem:[#allocation2] sm:$0xff] %vm1447, %v8790
      %8793 = vst.msk [vmem:[#allocation2 + $0x8] sm:$0xff] %vm1447, %v8791
      %v8794 = vld [vmem:[#allocation2] ss:$2 sm:$0xff]
      %v8795 = vand.u32 %v293, 1
      %vm8796 = vcmp.eq.s32.totalorder %v8795, 0
      %vm8797 = vcmp.eq.s32.totalorder %v8795, 1
      %v8798 = vrot.slane %v8794, 7
      %v8799 = vsel %vm8796, 0.0, %v8798
      %v8800 = vrot.slane %v8794, 1
      %v8801 = vsel %vm8797, 0.0, %v8800
      %8803 = vrot.lane.b32.xlu0 %v8794, 32
      %v8804 = vpop.permute.xlu0 %8803
      %8807 = vrot.lane.b32.xlu0 %v8801, 64
      %v8808 = vpop.permute.xlu0 %8807
      %v8810 = vsel %vm1447, %v8799, %v8804
      %v8811 = vsel %vm1512, %v8810, %v8808
      %v8812 = vpack.c.bf16 %v8811, %v8811
      %s8813 = scalar_lea.vmem %s1, 576
      %v8814 = vld [vmem:[%s8813] sm:$0xf]
      %v8815 = vld [vmem:[%s8813 + $0x4] sm:$0xf]
      %v8816 = vld [vmem:[%s8813 + $0x8] sm:$0xf]
      %v8817 = vld [vmem:[%s8813 + $0xc] sm:$0xf]
      %v8818 = vld [vmem:[%s8813 + $0x10] sm:$0xf]
      %v8819 = vld [vmem:[%s8813 + $0x14] sm:$0xf]
      %v8820 = vld [vmem:[%s8813 + $0x18] sm:$0xf]
      %v8821 = vld [vmem:[%s8813 + $0x1c] sm:$0xf]
      %v8822 = vld [vmem:[%s8813 + $0x20] sm:$0xf]
      %v8823 = vld [vmem:[%s8813 + $0x24] sm:$0xf]
      %v8824 = vld [vmem:[%s8813 + $0x28] sm:$0xf]
      %v8825 = vld [vmem:[%s8813 + $0x2c] sm:$0xf]
      %v8826 = vlaneseq
      %v8827 = vshrl.u32 %v8826, 7
      %v8828 = vsub.s32 4, %v8827
      %v8829 = vrot.slane %v227, %v8828
      %v8842 = vunpack.c.l.b16 %v8814
      %v8843 = vunpack.c.l.b16 %v8815
      %v8844 = vunpack.c.l.b16 %v8816
      %v8845 = vunpack.c.l.b16 %v8817
      %v8846 = vunpack.c.l.b16 %v8818
      %v8847 = vunpack.c.l.b16 %v8819
      %v8848 = vunpack.c.l.b16 %v8820
      %v8849 = vunpack.c.l.b16 %v8821
      %v8850 = vunpack.c.l.b16 %v8822
      %v8851 = vunpack.c.l.b16 %v8823
      %v8852 = vunpack.c.l.b16 %v8824
      %v8853 = vunpack.c.l.b16 %v8825
      %v8854 = vpack.c.b16 %v8843, %v8842
      %v8855 = vpack.c.b16 %v8845, %v8844
      %v8856 = vpack.c.b16 %v8847, %v8846
      %v8857 = vpack.c.b16 %v8849, %v8848
      %v8858 = vpack.c.b16 %v8851, %v8850
      %v8859 = vpack.c.b16 %v8853, %v8852
      %v8867 = vsel %vm1661, %v8812, 0
      %8869 = vmatprep.subr.bf16.mxu0 0
      %8870 = vmatpush1.bf16.msra.mxu0 %v8854
      %8871 = vmatprep.subr.bf16.mxu0 0
      %8872 = vmatpush1.bf16.msra.mxu0 %v8855
      %8873 = vmatprep.subr.bf16.mxu0 0
      %8874 = vmatpush1.bf16.msra.mxu0 %v8856
      %8875 = vmatprep.subr.bf16.mxu0 0
      %8876 = vmatpush1.bf16.msra.mxu0 %v8857
      %8877 = vmatprep.subr.bf16.mxu0 0
      %8878 = vmatpush1.bf16.msra.mxu0 %v8858
      %8879 = vmatprep.subr.bf16.mxu0 0
      %8880 = vmatpush1.bf16.msra.mxu0 %v8859
      %8881 = vmatprep.subr.bf16.mxu0 0
      %8882 = vmatpush1.bf16.msra.mxu0 0
      %8883 = vmatprep.subr.bf16.mxu0 0
      %8884 = vmatpush1.bf16.msra.mxu0 0
      %8885 = vmatprep.subr.bf16.mxu0 0
      %8886 = vmatpush1.bf16.msra.mxu0 0
      %8887 = vmatprep.subr.bf16.mxu0 0
      %8888 = vmatpush1.bf16.msra.mxu0 0
      %8889 = vmatprep.subr.bf16.mxu0 0
      %8890 = vmatpush1.bf16.msra.mxu0 0
      %8891 = vmatprep.subr.bf16.mxu0 0
      %8892 = vmatpush1.bf16.msra.mxu0 0
      %8893 = vmatprep.subr.bf16.mxu0 0
      %8894 = vmatpush1.bf16.msra.mxu0 0
      %8895 = vmatprep.subr.bf16.mxu0 0
      %8896 = vmatpush1.bf16.msra.mxu0 0
      %8897 = vmatprep.subr.bf16.mxu0 0
      %8898 = vmatpush1.bf16.msra.mxu0 0
      %8899 = vmatprep.subr.bf16.mxu0 0
      %8900 = vmatpush1.bf16.msra.mxu0 0
      %8901 = vmatprep.mubr.bf16.mxu0 0
      %8902 = vmatmul.mubr.bf16.gmra.mrb[0].mxu0 %v8867
      %v8903 = vpop.f32.mrb[0].mxu0
      %v8904 = vadd.f32 %v8829, %v8903
      %v8905 = vpop.f32.mrb[0].mxu0
      %v8906 = vpop.f32.mrb[0].mxu0
      %v8907 = vpop.f32.mrb[0].mxu0
      %8908 = vdwg.mxu0
      %v8909 = vmax.f32 %v8904, 0.0
      %v8910 = vrot.slane %v8909, 7
      %v8911 = vsel %vm8796, 0.0, %v8910
      %v8912 = vrot.slane %v8909, 1
      %v8913 = vsel %vm8797, 0.0, %v8912
      %8915 = vrot.lane.b32.xlu0 %v8909, 32
      %v8916 = vpop.permute.xlu0 %8915
      %8919 = vrot.lane.b32.xlu0 %v8913, 64
      %v8920 = vpop.permute.xlu0 %8919
      %v8922 = vsel %vm1447, %v8911, %v8916
      %v8923 = vsel %vm1512, %v8922, %v8920
      %v8924 = vpack.c.bf16 %v8923, %v8923
      %s8925 = scalar_lea.vmem %s1, 624
      %v8926 = vld [vmem:[%s8925] sm:$0xf]
      %v8927 = vld [vmem:[%s8925 + $0x4] sm:$0xf]
      %v8928 = vld [vmem:[%s8925 + $0x8] sm:$0xf]
      %v8929 = vld [vmem:[%s8925 + $0xc] sm:$0xf]
      %v8930 = vld [vmem:[%s8925 + $0x10] sm:$0xf]
      %v8931 = vld [vmem:[%s8925 + $0x14] sm:$0xf]
      %v8932 = vld [vmem:[%s8925 + $0x18] sm:$0xf]
      %v8933 = vld [vmem:[%s8925 + $0x1c] sm:$0xf]
      %v8934 = vld [vmem:[%s8925 + $0x20] sm:$0xf]
      %v8935 = vld [vmem:[%s8925 + $0x24] sm:$0xf]
      %v8936 = vld [vmem:[%s8925 + $0x28] sm:$0xf]
      %v8937 = vld [vmem:[%s8925 + $0x2c] sm:$0xf]
      %v8938 = vlaneseq
      %v8939 = vshrl.u32 %v8938, 7
      %v8940 = vsub.s32 5, %v8939
      %v8941 = vrot.slane %v227, %v8940
      %v8954 = vunpack.c.l.b16 %v8926
      %v8955 = vunpack.c.l.b16 %v8927
      %v8956 = vunpack.c.l.b16 %v8928
      %v8957 = vunpack.c.l.b16 %v8929
      %v8958 = vunpack.c.l.b16 %v8930
      %v8959 = vunpack.c.l.b16 %v8931
      %v8960 = vunpack.c.l.b16 %v8932
      %v8961 = vunpack.c.l.b16 %v8933
      %v8962 = vunpack.c.l.b16 %v8934
      %v8963 = vunpack.c.l.b16 %v8935
      %v8964 = vunpack.c.l.b16 %v8936
      %v8965 = vunpack.c.l.b16 %v8937
      %v8966 = vpack.c.b16 %v8955, %v8954
      %v8967 = vpack.c.b16 %v8957, %v8956
      %v8968 = vpack.c.b16 %v8959, %v8958
      %v8969 = vpack.c.b16 %v8961, %v8960
      %v8970 = vpack.c.b16 %v8963, %v8962
      %v8971 = vpack.c.b16 %v8965, %v8964
      %v8979 = vsel %vm1661, %v8924, 0
      %8981 = vmatprep.subr.bf16.mxu0 0
      %8982 = vmatpush1.bf16.msra.mxu0 %v8966
      %8983 = vmatprep.subr.bf16.mxu0 0
      %8984 = vmatpush1.bf16.msra.mxu0 %v8967
      %8985 = vmatprep.subr.bf16.mxu0 0
      %8986 = vmatpush1.bf16.msra.mxu0 %v8968
      %8987 = vmatprep.subr.bf16.mxu0 0
      %8988 = vmatpush1.bf16.msra.mxu0 %v8969
      %8989 = vmatprep.subr.bf16.mxu0 0
      %8990 = vmatpush1.bf16.msra.mxu0 %v8970
      %8991 = vmatprep.subr.bf16.mxu0 0
      %8992 = vmatpush1.bf16.msra.mxu0 %v8971
      %8993 = vmatprep.subr.bf16.mxu0 0
      %8994 = vmatpush1.bf16.msra.mxu0 0
      %8995 = vmatprep.subr.bf16.mxu0 0
      %8996 = vmatpush1.bf16.msra.mxu0 0
      %8997 = vmatprep.subr.bf16.mxu0 0
      %8998 = vmatpush1.bf16.msra.mxu0 0
      %8999 = vmatprep.subr.bf16.mxu0 0
      %9000 = vmatpush1.bf16.msra.mxu0 0
      %9001 = vmatprep.subr.bf16.mxu0 0
      %9002 = vmatpush1.bf16.msra.mxu0 0
      %9003 = vmatprep.subr.bf16.mxu0 0
      %9004 = vmatpush1.bf16.msra.mxu0 0
      %9005 = vmatprep.subr.bf16.mxu0 0
      %9006 = vmatpush1.bf16.msra.mxu0 0
      %9007 = vmatprep.subr.bf16.mxu0 0
      %9008 = vmatpush1.bf16.msra.mxu0 0
      %9009 = vmatprep.subr.bf16.mxu0 0
      %9010 = vmatpush1.bf16.msra.mxu0 0
      %9011 = vmatprep.subr.bf16.mxu0 0
      %9012 = vmatpush1.bf16.msra.mxu0 0
      %9013 = vmatprep.mubr.bf16.mxu0 0
      %9014 = vmatmul.mubr.bf16.gmra.mrb[0].mxu0 %v8979
      %v9015 = vpop.f32.mrb[0].mxu0
      %v9016 = vadd.f32 %v8941, %v9015
      %v9017 = vpop.f32.mrb[0].mxu0
      %v9018 = vpop.f32.mrb[0].mxu0
      %v9019 = vpop.f32.mrb[0].mxu0
      %9020 = vdwg.mxu0
      %v9021 = vmax.f32 %v9016, 0.0
      %v9022 = vadd.f32 %v9021, %v8794
      %9023 = vst.msk [vmem:[#allocation2] sm:$0xff] %vm1447, %v9022
      %v9024 = vld [vmem:[#allocation2] ss:$2 sm:$0xf]
      %s9025 = scalar_lea.vmem [#allocation2], 1
      %v9026 = vld [vmem:[%s9025] ss:$2 sm:$0xf]
      %v9027 = vmax.f32 %v9024, %v9026
      %v9028 = vpack.c.bf16 %v9027, %v9027
      %v9029 = vld [vmem:[%s3] sm:$0xff]
      %v9030 = vld [vmem:[%s3 + $0x8] sm:$0xff]
      %v9031 = vld [vmem:[%s3 + $0x10] sm:$0xff]
      %v9032 = vld [vmem:[%s3 + $0x18] sm:$0xff]
      %v9033 = vpack.c.bf16 %v9030, %v9029
      %v9034 = vpack.c.bf16 %v9032, %v9031
      %v9035 = vld [vmem:[%s4] sm:$0x1]
      %v9037 = vlaneseq
      %v9038 = vshrl.u32 %v9037, 7
      %v9039 = vsub.s32 0, %v9038
      %v9040 = vrot.slane %v9035, %v9039
      %v9043 = vsel %vm1447, %v9028, 0
      %9045 = vmatprep.subr.bf16.mxu0 0
      %9046 = vmatpush1.bf16.msra.mxu0 %v9033
      %9047 = vmatprep.subr.bf16.mxu0 0
      %9048 = vmatpush1.bf16.msra.mxu0 %v9034
      %9049 = vmatprep.subr.bf16.mxu0 0
      %9050 = vmatpush1.bf16.msra.mxu0 0
      %9051 = vmatprep.subr.bf16.mxu0 0
      %9052 = vmatpush1.bf16.msra.mxu0 0
      %9053 = vmatprep.subr.bf16.mxu0 0
      %9054 = vmatpush1.bf16.msra.mxu0 0
      %9055 = vmatprep.subr.bf16.mxu0 0
      %9056 = vmatpush1.bf16.msra.mxu0 0
      %9057 = vmatprep.subr.bf16.mxu0 0
      %9058 = vmatpush1.bf16.msra.mxu0 0
      %9059 = vmatprep.subr.bf16.mxu0 0
      %9060 = vmatpush1.bf16.msra.mxu0 0
      %9061 = vmatprep.subr.bf16.mxu0 0
      %9062 = vmatpush1.bf16.msra.mxu0 0
      %9063 = vmatprep.subr.bf16.mxu0 0
      %9064 = vmatpush1.bf16.msra.mxu0 0
      %9065 = vmatprep.subr.bf16.mxu0 0
      %9066 = vmatpush1.bf16.msra.mxu0 0
      %9067 = vmatprep.subr.bf16.mxu0 0
      %9068 = vmatpush1.bf16.msra.mxu0 0
      %9069 = vmatprep.subr.bf16.mxu0 0
      %9070 = vmatpush1.bf16.msra.mxu0 0
      %9071 = vmatprep.subr.bf16.mxu0 0
      %9072 = vmatpush1.bf16.msra.mxu0 0
      %9073 = vmatprep.subr.bf16.mxu0 0
      %9074 = vmatpush1.bf16.msra.mxu0 0
      %9075 = vmatprep.subr.bf16.mxu0 0
      %9076 = vmatpush1.bf16.msra.mxu0 0
      %9077 = vmatprep.mubr.bf16.mxu0 0
      %9078 = vmatmul.mubr.bf16.gmra.mrb[0].mxu0 %v9043
      %v9079 = vpop.f32.mrb[0].mxu0
      %v9080 = vadd.f32 %v9040, %v9079
      %v9081 = vpop.f32.mrb[0].mxu0
      %v9082 = vpop.f32.mrb[0].mxu0
      %v9083 = vpop.f32.mrb[0].mxu0
      %9084 = vdwg.mxu0
      %vm9085 = vcmask 27648
      %9086 = vst.msk [vmem:[%s224] sm:$0xf] %vm9085, %v9080
      %p9087 = scmp.lt.s32.totalorder %s16, 1
      %s9088 = scalar_select %p9087, %s16, 1
      %s9089 = smul.addr %s9088, 4
      %s9090 = scalar_lea.vmem %s5, %s9089
      // Predicated region
      $region41: #{dpcnn_forward.1} parent=39 // pred_check
        %p9091 = pneg %p144
      $region42: #{dpcnn_forward.1} parent=39 // pred_check_branch
        %9093 = sbr.rel (%p9091) target = $region44
      $region43: #{dpcnn_forward.1} parent=39 // pred_region
        _
      $region44: #{dpcnn_forward.1} parent=39 // pred_fallthru
        _
    $region40: #{dpcnn_forward.1} parent=5 // pred_fallthru
      _
    %p9094 = scmp.le.s32.totalorder 2, %s11
    // Predicated region
    $region45: #{dpcnn_forward.1} parent=5 // pred_check
      %p9095 = pneg %p9094
    $region46: #{dpcnn_forward.1} parent=5 // pred_check_branch
      %9097 = sbr.rel (%p9095) target = $region48
    $region47: #{dpcnn_forward.1} parent=5 // pred_region
      %s9098 = ssub.s32 %s11, 2
      // Predicated region
      $region49: #{dpcnn_forward.1} parent=47 // pred_check
        %p9099 = pneg %p150
      $region50: #{dpcnn_forward.1} parent=47 // pred_check_branch
        %9101 = sbr.rel (%p9099) target = $region52
      $region51: #{dpcnn_forward.1} parent=47 // pred_region
        %p9102 = scmp.lt.s32.totalorder %s17, 1
        %s9103 = scalar_select %p9102, %s17, 1
        %s9104 = smul.addr %s9103, 4
        %s9105 = scalar_lea.vmem %s5, %s9104
      $region52: #{dpcnn_forward.1} parent=47 // pred_fallthru
        _
    $region48: #{dpcnn_forward.1} parent=5 // pred_fallthru
      _
  $region6: #{dpcnn_forward.1} parent=0 // loop_footer
    %s15 = sadd.s32 1, %s11
  $region7: #{dpcnn_forward.1} parent=0 // loop_footer_branch
    %10 = sbr.rel target = $region3
  $region8: #{dpcnn_forward.1} parent=0 // loop_exit
    _

</llo_original>
